<compile_context>
chip_gen: v5e
topology: v5e:2x2
jax: 0.10.0
libtpu: 0.0.40
codegen_flags: <defaults>
</compile_context>

<pallas_src>
import jax
import jax.numpy as jnp
from jax.experimental import pallas as pl
from jax.experimental.pallas import tpu as pltpu

EPS = 1e-5  # nn.BatchNorm2d default eps


# ------------------------------ helpers ------------------------------------ #

def _bn_scale_shift(s, q, count, gamma, beta):
    """Training-mode BatchNorm affine from single-pass f32 sums (biased variance)."""
    mean = s / count
    var = jnp.maximum(q / count - mean * mean, 0.0)   # guard E[x^2]-E[x]^2 cancellation
    scale = gamma * jax.lax.rsqrt(var + EPS)
    shift = beta - mean * scale
    return scale, shift


def _build_im2col(pad_ref, slab_ref):
    """Fill slab_ref (9*cin, hp*wp) from the zero-padded planar image pad_ref."""
    cin = pad_ref.shape[0]
    hp = pad_ref.shape[1] - 2
    wp = pad_ref.shape[2] - 2
    for kh in range(3):
        for kw in range(3):
            t = kh * 3 + kw
            slab_ref[t * cin:(t + 1) * cin, :] = (
                pad_ref[:, kh:kh + hp, kw:kw + wp].reshape(cin, hp * wp))


# --------------------------- Pallas kernels -------------------------------- #

def _pool_conv_stats_kernel(x_ref, w_ref, y_ref, s_ref, q_ref, pad_ref, slab_ref):
    """2x2 max-pool + 3x3 conv (pad=1, bias folded into BN) + per-image channel stats.

    x_ref   : (1, cin, h, w)         raw NCHW image
    w_ref   : (cout, 9*cin) bf16     conv taps, (kh, kw, cin)-major columns
    y_ref   : (1, cout, hp*wp) bf16  pre-BN conv output (planar, pixels on lanes)
    s_ref/q_ref : (1, cout, 1) f32   per-image sum / sum-of-squares over pixels
    pad_ref : (cin, hp+2, wp+2) bf16 zero-padded pooled image (VMEM scratch)
    slab_ref: (9*cin, hp*wp) bf16    im2col slab (VMEM scratch)
    """
    _, cin, h, w = x_ref.shape
    hp, wp = h // 2, w // 2

    x = x_ref[0]                                          # (cin, h, w)
    xr = x.reshape(cin, hp, 2, w)                         # split row pairs (sublane axis)
    xv = jnp.maximum(xr[:, :, 0, :], xr[:, :, 1, :])      # vertical pool   (cin, hp, w)
    xh = xv.reshape(cin, hp, wp, 2)                       # split col pairs (lane axis)
    pooled = jnp.maximum(xh[..., 0], xh[..., 1])          # horizontal pool (cin, hp, wp)

    pad_ref[...] = jnp.zeros_like(pad_ref)                # conv zero border, in VMEM
    pad_ref[:, 1:hp + 1, 1:wp + 1] = pooled.astype(jnp.bfloat16)   # single bf16 cast

    _build_im2col(pad_ref, slab_ref)

    # Single MXU matmul per image: (cout, 9*cin) @ (9*cin, hp*wp) -> f32 accumulate.
    acc = jnp.dot(w_ref[...], slab_ref[...], preferred_element_type=jnp.float32)

    y_ref[0] = acc.astype(y_ref.dtype)
    s_ref[0] = jnp.sum(acc, axis=1, keepdims=True)
    q_ref[0] = jnp.sum(acc * acc, axis=1, keepdims=True)


def _bnrelu_conv_stats_kernel(y1_ref, w_ref, scale_ref, shift_ref,
                              y2_ref, s_ref, q_ref, pad_ref, slab_ref):
    """BN1(scale/shift)+ReLU fused into conv2's input path + conv2 + per-image stats.

    y1_ref  : (1, cin, hp*wp) bf16   pre-BN conv1 output (planar)
    scale_ref / shift_ref : (cin, 1) f32
    """
    cin = pad_ref.shape[0]
    hp = pad_ref.shape[1] - 2
    wp = pad_ref.shape[2] - 2

    a = y1_ref[0].astype(jnp.float32)                     # (cin, hp*wp)
    a = jnp.maximum(a * scale_ref[...] + shift_ref[...], 0.0)

    pad_ref[...] = jnp.zeros_like(pad_ref)                # conv2's zero padding (post-BN)
    pad_ref[:, 1:hp + 1, 1:wp + 1] = a.reshape(cin, hp, wp).astype(jnp.bfloat16)

    _build_im2col(pad_ref, slab_ref)

    acc = jnp.dot(w_ref[...], slab_ref[...], preferred_element_type=jnp.float32)

    y2_ref[0] = acc.astype(y2_ref.dtype)
    s_ref[0] = jnp.sum(acc, axis=1, keepdims=True)
    q_ref[0] = jnp.sum(acc * acc, axis=1, keepdims=True)


def _bnrelu_apply_kernel(y2_ref, scale_ref, shift_ref, o_ref):
    """Final BN2+ReLU apply, written directly in planar (NCHW-compatible) layout."""
    a = y2_ref[0].astype(jnp.float32)                     # (cout, hp*wp)
    o_ref[0] = jnp.maximum(a * scale_ref[...] + shift_ref[...], 0.0)


# ------------------------------- wrapper ------------------------------------ #

def down_forward(x_nchw, params):
    B, Cin, H, W = x_nchw.shape
    assert H % 2 == 0 and W % 2 == 0, "max_pool2d(2) path assumes even spatial dims"
    Hp, Wp = H // 2, W // 2
    N = Hp * Wp
    C1 = params["w1"].shape[-1]
    C2 = params["w2"].shape[-1]
    count = B * N

    # HWIO (3,3,cin,cout) -> (cout, 9*cin); columns ordered (kh, kw, cin)-major to match
    # the im2col slab rows.  Tiny host-side op.
    w1m = params["w1"].reshape(9 * Cin, C1).T.astype(jnp.bfloat16)
    w2m = params["w2"].reshape(9 * C1, C2).T.astype(jnp.bfloat16)

    par = pltpu.CompilerParams(dimension_semantics=("parallel",))

    # --------- stage 1: fused 2x2 max-pool + conv1 + per-image stats --------- #
    y1, s1, q1 = pl.pallas_call(
        _pool_conv_stats_kernel,
        grid=(B,),
        in_specs=[
            pl.BlockSpec((1, Cin, H, W), lambda b: (b, 0, 0, 0)),
            pl.BlockSpec((C1, 9 * Cin), lambda b: (0, 0)),
        ],
        out_specs=[
            pl.BlockSpec((1, C1, N), lambda b: (b, 0, 0)),
            pl.BlockSpec((1, C1, 1), lambda b: (b, 0, 0)),
            pl.BlockSpec((1, C1, 1), lambda b: (b, 0, 0)),
        ],
        out_shape=[
            jax.ShapeDtypeStruct((B, C1, N), jnp.bfloat16),   # bf16 intermediate
            jax.ShapeDtypeStruct((B, C1, 1), jnp.float32),
            jax.ShapeDtypeStruct((B, C1, 1), jnp.float32),
        ],
        scratch_shapes=[
            pltpu.VMEM((Cin, Hp + 2, Wp + 2), jnp.bfloat16),
            pltpu.VMEM((9 * Cin, N), jnp.bfloat16),
        ],
        compiler_params=par,
    )(x_nchw, w1m)

    scale1, shift1 = _bn_scale_shift(jnp.sum(s1, axis=(0, 2)), jnp.sum(q1, axis=(0, 2)),
                                     count, params["g1"], params["beta1"])

    # --------- stage 2: BN1+ReLU fused into conv2 + per-image stats --------- #
    y2, s2, q2 = pl.pallas_call(
        _bnrelu_conv_stats_kernel,
        grid=(B,),
        in_specs=[
            pl.BlockSpec((1, C1, N), lambda b: (b, 0, 0)),
            pl.BlockSpec((C2, 9 * C1), lambda b: (0, 0)),
            pl.BlockSpec((C1, 1), lambda b: (0, 0)),
            pl.BlockSpec((C1, 1), lambda b: (0, 0)),
        ],
        out_specs=[
            pl.BlockSpec((1, C2, N), lambda b: (b, 0, 0)),
            pl.BlockSpec((1, C2, 1), lambda b: (b, 0, 0)),
            pl.BlockSpec((1, C2, 1), lambda b: (b, 0, 0)),
        ],
        out_shape=[
            jax.ShapeDtypeStruct((B, C2, N), jnp.bfloat16),
            jax.ShapeDtypeStruct((B, C2, 1), jnp.float32),
            jax.ShapeDtypeStruct((B, C2, 1), jnp.float32),
        ],
        scratch_shapes=[
            pltpu.VMEM((C1, Hp + 2, Wp + 2), jnp.bfloat16),
            pltpu.VMEM((9 * C1, N), jnp.bfloat16),
        ],
        compiler_params=par,
    )(y1, w2m,
      scale1.reshape(C1, 1).astype(jnp.float32),
      shift1.reshape(C1, 1).astype(jnp.float32))

    scale2, shift2 = _bn_scale_shift(jnp.sum(s2, axis=(0, 2)), jnp.sum(q2, axis=(0, 2)),
                                     count, params["g2"], params["beta2"])

    # ---------------------- stage 3: BN2 + ReLU apply ---------------------- #
    out = pl.pallas_call(
        _bnrelu_apply_kernel,
        grid=(B,),
        in_specs=[
            pl.BlockSpec((1, C2, N), lambda b: (b, 0, 0)),
            pl.BlockSpec((C2, 1), lambda b: (0, 0)),
            pl.BlockSpec((C2, 1), lambda b: (0, 0)),
        ],
        out_specs=pl.BlockSpec((1, C2, N), lambda b: (b, 0, 0)),
        out_shape=jax.ShapeDtypeStruct((B, C2, N), jnp.float32),
        compiler_params=par,
    )(y2,
      scale2.reshape(C2, 1).astype(jnp.float32),
      shift2.reshape(C2, 1).astype(jnp.float32))

    # (B, C2, Hp*Wp) and (B, C2, Hp, Wp) share the same row-major layout: free reshape,
    # and the result is already NCHW -- no wrapper transpose.
    return out.reshape(B, C2, Hp, Wp)


# --------------------------- pure-JAX reference ----------------------------- #

def _ref_forward(x_nchw, params):
    x = jnp.transpose(x_nchw, (0, 2, 3, 1))
    B, H, W, C = x.shape
    x = x.reshape(B, H // 2, 2, W // 2, 2, C).max(axis=(2, 4))

    def block(x, w, b, g, beta):
        y = jax.lax.conv_general_dilated(
            x, w, window_strides=(1, 1), padding="SAME",
            dimension_numbers=("NHWC", "HWIO", "NHWC")) + b     # bias included here
        m = y.mean(axis=(0, 1, 2), keepdims=True)
        v = jnp.square(y - m).mean(axis=(0, 1, 2), keepdims=True)
        return jnp.maximum((y - m) / jnp.sqrt(v + EPS) * g + beta, 0.0)

    x = block(x, params["w1"], params["b1"], params["g1"], params["beta1"])
    x = block(x, params["w2"], params["b2"], params["g2"], params["beta2"])
    return jnp.transpose(x, (0, 3, 1, 2))


# ---------------------------------- main ------------------------------------ #

if __name__ == "__main__":
    B, Cin, H, W = 2, 4, 16, 16
    Cout = 8

    key = jax.random.PRNGKey(0)
    kx, kw1, kb1, kw2, kb2, kg1, kg2 = jax.random.split(key, 7)
    x = jax.random.normal(kx, (B, Cin, H, W), jnp.float32)

    params = {
        # Conv weights stored HWIO (kh, kw, cin, cout); deterministic synthetic init.
        "w1": jax.random.normal(kw1, (3, 3, Cin, Cout), jnp.float32) * 0.1,
        "b1": jax.random.normal(kb1, (Cout,), jnp.float32) * 0.1,   # absorbed by train-mode BN
        "g1": 1.0 + 0.1 * jax.random.normal(kg1, (Cout,), jnp.float32),
        "beta1": 0.1 * jax.random.normal(kg2, (Cout,), jnp.float32),
        "w2": jax.random.normal(kw2, (3, 3, Cout, Cout), jnp.float32) * 0.1,
        "b2": jax.random.normal(kb2, (Cout,), jnp.float32) * 0.1,   # absorbed by train-mode BN
        "g2": jnp.ones((Cout,), jnp.float32),
        "beta2": jnp.zeros((Cout,), jnp.float32),
    }

    out = jax.block_until_ready(jax.jit(down_forward)(x, params))
    ref = jax.block_until_ready(_ref_forward(x, params))

    assert out.shape == (B, Cout, H // 2, W // 2), out.shape
    max_err = float(jnp.max(jnp.abs(out - ref)))
    mean_err = float(jnp.mean(jnp.abs(out - ref)))
    # bf16 MXU inputs + bf16 inter-stage activations => ~1e-2-level error vs the pure-f32
    # reference; real indexing / statistics bugs would be O(1).
    assert max_err < 0.15 and mean_err < 0.03, (max_err, mean_err)
    print("KERNEL_OK")
</pallas_src>

<mosaic_0001>
module attributes {stable_mosaic.version = 11 : i64} {
  func.func @_bnrelu_apply_kernel(%arg0: i32, %arg1: memref<1x8x64xbf16, #tpu.memory_space<vmem>>, %arg2: memref<8x1xf32, #tpu.memory_space<vmem>>, %arg3: memref<8x1xf32, #tpu.memory_space<vmem>>, %arg4: memref<1x8x64xf32, #tpu.memory_space<vmem>>) attributes {dimension_semantics = [#tpu.dimension_semantics<parallel>], iteration_bounds = array<i64: 2>, scalar_prefetch = 0 : i64, scratch_operands = 0 : i64, tpu.core_type = #tpu.core_type<tc>, window_params = [{transform_indices = @transform_0, window_bounds = array<i64: 1, 8, 64>}, {pipeline_mode = #tpu.pipeline_mode<synchronous>, transform_indices = @transform_1, window_bounds = array<i64: 8, 1>}, {pipeline_mode = #tpu.pipeline_mode<synchronous>, transform_indices = @transform_2, window_bounds = array<i64: 8, 1>}, {transform_indices = @transform_3, window_bounds = array<i64: 1, 8, 64>}]} {
    %c0 = arith.constant 0 : index
    %c0_0 = arith.constant 0 : index
    %c0_1 = arith.constant 0 : index
    %0 = vector.load %arg1[%c0, %c0_0, %c0_1] : memref<1x8x64xbf16, #tpu.memory_space<vmem>>, vector<1x8x64xbf16>
    %1 = vector.shape_cast %0 : vector<1x8x64xbf16> to vector<8x64xbf16>
    %2 = arith.extf %1 : vector<8x64xbf16> to vector<8x64xf32>
    %c0_2 = arith.constant 0 : index
    %c0_3 = arith.constant 0 : index
    %3 = vector.load %arg2[%c0_2, %c0_3] : memref<8x1xf32, #tpu.memory_space<vmem>>, vector<8x1xf32>
    %4 = vector.broadcast %3 : vector<8x1xf32> to vector<8x64xf32>
    %5 = arith.mulf %2, %4 : vector<8x64xf32>
    %c0_4 = arith.constant 0 : index
    %c0_5 = arith.constant 0 : index
    %6 = vector.load %arg3[%c0_4, %c0_5] : memref<8x1xf32, #tpu.memory_space<vmem>>, vector<8x1xf32>
    %7 = vector.broadcast %6 : vector<8x1xf32> to vector<8x64xf32>
    %8 = arith.addf %5, %7 : vector<8x64xf32>
    %cst = arith.constant 0.000000e+00 : f32
    %9 = vector.broadcast %cst : f32 to vector<8x64xf32>
    %10 = arith.maximumf %8, %9 : vector<8x64xf32>
    %c0_6 = arith.constant 0 : index
    %c0_7 = arith.constant 0 : index
    %c0_8 = arith.constant 0 : index
    %11 = vector.load %arg4[%c0_6, %c0_7, %c0_8] : memref<1x8x64xf32, #tpu.memory_space<vmem>>, vector<1x8x64xf32>
    %12 = vector.shape_cast %11 : vector<1x8x64xf32> to vector<8x64xf32>
    %13 = vector.shape_cast %10 : vector<8x64xf32> to vector<1x8x64xf32>
    tpu.vector_store %arg4[%c0_6, %c0_7, %c0_8], %13 {strides = array<i32>} : memref<1x8x64xf32, #tpu.memory_space<vmem>>, vector<1x8x64xf32>,
    return
  }
  func.func @transform_0(%arg0: i32) -> (i32, i32, i32) {
    %c0_i32 = arith.constant 0 : i32
    %c0_i32_0 = arith.constant 0 : i32
    %c0_i32_1 = arith.constant 0 : i32
    return %arg0, %c0_i32, %c0_i32_0 : i32, i32, i32
  }
  func.func @transform_1(%arg0: i32) -> (i32, i32) {
    %c0_i32 = arith.constant 0 : i32
    %c0_i32_0 = arith.constant 0 : i32
    %c0_i32_1 = arith.constant 0 : i32
    return %c0_i32, %c0_i32_0 : i32, i32
  }
  func.func @transform_2(%arg0: i32) -> (i32, i32) {
    %c0_i32 = arith.constant 0 : i32
    %c0_i32_0 = arith.constant 0 : i32
    %c0_i32_1 = arith.constant 0 : i32
    return %c0_i32, %c0_i32_0 : i32, i32
  }
  func.func @transform_3(%arg0: i32) -> (i32, i32, i32) {
    %c0_i32 = arith.constant 0 : i32
    %c0_i32_0 = arith.constant 0 : i32
    %c0_i32_1 = arith.constant 0 : i32
    return %arg0, %c0_i32, %c0_i32_0 : i32, i32, i32
  }
}

module attributes {stable_mosaic.version = 11 : i64} {
  func.func @_bnrelu_conv_stats_kernel(%arg0: i32, %arg1: memref<1x8x64xbf16, #tpu.memory_space<vmem>>, %arg2: memref<8x72xbf16, #tpu.memory_space<vmem>>, %arg3: memref<8x1xf32, #tpu.memory_space<vmem>>, %arg4: memref<8x1xf32, #tpu.memory_space<vmem>>, %arg5: memref<1x8x64xbf16, #tpu.memory_space<vmem>>, %arg6: memref<1x8x1xf32, #tpu.memory_space<vmem>>, %arg7: memref<1x8x1xf32, #tpu.memory_space<vmem>>, %arg8: memref<8x10x10xbf16, #tpu.memory_space<vmem>>, %arg9: memref<72x64xbf16, #tpu.memory_space<vmem>>) attributes {dimension_semantics = [#tpu.dimension_semantics<parallel>], iteration_bounds = array<i64: 2>, scalar_prefetch = 0 : i64, scratch_operands = 2 : i64, tpu.core_type = #tpu.core_type<tc>, window_params = [{transform_indices = @transform_0, window_bounds = array<i64: 1, 8, 64>}, {pipeline_mode = #tpu.pipeline_mode<synchronous>, transform_indices = @transform_1, window_bounds = array<i64: 8, 72>}, {pipeline_mode = #tpu.pipeline_mode<synchronous>, transform_indices = @transform_2, window_bounds = array<i64: 8, 1>}, {pipeline_mode = #tpu.pipeline_mode<synchronous>, transform_indices = @transform_3, window_bounds = array<i64: 8, 1>}, {transform_indices = @transform_4, window_bounds = array<i64: 1, 8, 64>}, {transform_indices = @transform_5, window_bounds = array<i64: 1, 8, 1>}, {transform_indices = @transform_6, window_bounds = array<i64: 1, 8, 1>}]} {
    %c0 = arith.constant 0 : index
    %c0_0 = arith.constant 0 : index
    %c0_1 = arith.constant 0 : index
    %0 = vector.load %arg1[%c0, %c0_0, %c0_1] : memref<1x8x64xbf16, #tpu.memory_space<vmem>>, vector<1x8x64xbf16>
    %1 = vector.shape_cast %0 : vector<1x8x64xbf16> to vector<8x64xbf16>
    %2 = arith.extf %1 : vector<8x64xbf16> to vector<8x64xf32>
    %c0_2 = arith.constant 0 : index
    %c0_3 = arith.constant 0 : index
    %3 = vector.load %arg3[%c0_2, %c0_3] : memref<8x1xf32, #tpu.memory_space<vmem>>, vector<8x1xf32>
    %4 = vector.broadcast %3 : vector<8x1xf32> to vector<8x64xf32>
    %5 = arith.mulf %2, %4 : vector<8x64xf32>
    %c0_4 = arith.constant 0 : index
    %c0_5 = arith.constant 0 : index
    %6 = vector.load %arg4[%c0_4, %c0_5] : memref<8x1xf32, #tpu.memory_space<vmem>>, vector<8x1xf32>
    %7 = vector.broadcast %6 : vector<8x1xf32> to vector<8x64xf32>
    %8 = arith.addf %5, %7 : vector<8x64xf32>
    %cst = arith.constant 0.000000e+00 : f32
    %9 = vector.broadcast %cst : f32 to vector<8x64xf32>
    %10 = arith.maximumf %8, %9 : vector<8x64xf32>
    %cst_6 = arith.constant 0.000000e+00 : bf16
    %11 = vector.broadcast %cst_6 : bf16 to vector<8x10x10xbf16>
    %c0_7 = arith.constant 0 : index
    %c0_8 = arith.constant 0 : index
    %c0_9 = arith.constant 0 : index
    %12 = vector.load %arg8[%c0_7, %c0_8, %c0_9] : memref<8x10x10xbf16, #tpu.memory_space<vmem>>, vector<8x10x10xbf16>
    tpu.vector_store %arg8[%c0_7, %c0_8, %c0_9], %11 {strides = array<i32>} : memref<8x10x10xbf16, #tpu.memory_space<vmem>>, vector<8x10x10xbf16>,
    %13 = vector.shape_cast %10 : vector<8x64xf32> to vector<8x8x8xf32>
    %14 = arith.truncf %13 : vector<8x8x8xf32> to vector<8x8x8xbf16>
    %c0_10 = arith.constant 0 : index
    %c1 = arith.constant 1 : index
    %c1_11 = arith.constant 1 : index
    %15 = vector.load %arg8[%c0_10, %c1, %c1_11] : memref<8x10x10xbf16, #tpu.memory_space<vmem>>, vector<8x8x8xbf16>
    tpu.vector_store %arg8[%c0_10, %c1, %c1_11], %14 {strides = array<i32>} : memref<8x10x10xbf16, #tpu.memory_space<vmem>>, vector<8x8x8xbf16>,
    %c0_12 = arith.constant 0 : index
    %c0_13 = arith.constant 0 : index
    %c0_14 = arith.constant 0 : index
    %16 = vector.load %arg8[%c0_12, %c0_13, %c0_14] : memref<8x10x10xbf16, #tpu.memory_space<vmem>>, vector<8x8x8xbf16>
    %17 = vector.shape_cast %16 : vector<8x8x8xbf16> to vector<8x64xbf16>
    %c0_15 = arith.constant 0 : index
    %c0_16 = arith.constant 0 : index
    %18 = vector.load %arg9[%c0_15, %c0_16] : memref<72x64xbf16, #tpu.memory_space<vmem>>, vector<8x64xbf16>
    tpu.vector_store %arg9[%c0_15, %c0_16], %17 {strides = array<i32>} : memref<72x64xbf16, #tpu.memory_space<vmem>>, vector<8x64xbf16>,
    %c0_17 = arith.constant 0 : index
    %c0_18 = arith.constant 0 : index
    %c1_19 = arith.constant 1 : index
    %19 = vector.load %arg8[%c0_17, %c0_18, %c1_19] : memref<8x10x10xbf16, #tpu.memory_space<vmem>>, vector<8x8x8xbf16>
    %20 = vector.shape_cast %19 : vector<8x8x8xbf16> to vector<8x64xbf16>
    %c8 = arith.constant 8 : index
    %c0_20 = arith.constant 0 : index
    %21 = vector.load %arg9[%c8, %c0_20] : memref<72x64xbf16, #tpu.memory_space<vmem>>, vector<8x64xbf16>
    tpu.vector_store %arg9[%c8, %c0_20], %20 {strides = array<i32>} : memref<72x64xbf16, #tpu.memory_space<vmem>>, vector<8x64xbf16>,
    %c0_21 = arith.constant 0 : index
    %c0_22 = arith.constant 0 : index
    %c2 = arith.constant 2 : index
    %22 = vector.load %arg8[%c0_21, %c0_22, %c2] : memref<8x10x10xbf16, #tpu.memory_space<vmem>>, vector<8x8x8xbf16>
    %23 = vector.shape_cast %22 : vector<8x8x8xbf16> to vector<8x64xbf16>
    %c16 = arith.constant 16 : index
    %c0_23 = arith.constant 0 : index
    %24 = vector.load %arg9[%c16, %c0_23] : memref<72x64xbf16, #tpu.memory_space<vmem>>, vector<8x64xbf16>
    tpu.vector_store %arg9[%c16, %c0_23], %23 {strides = array<i32>} : memref<72x64xbf16, #tpu.memory_space<vmem>>, vector<8x64xbf16>,
    %c0_24 = arith.constant 0 : index
    %c1_25 = arith.constant 1 : index
    %c0_26 = arith.constant 0 : index
    %25 = vector.load %arg8[%c0_24, %c1_25, %c0_26] : memref<8x10x10xbf16, #tpu.memory_space<vmem>>, vector<8x8x8xbf16>
    %26 = vector.shape_cast %25 : vector<8x8x8xbf16> to vector<8x64xbf16>
    %c24 = arith.constant 24 : index
    %c0_27 = arith.constant 0 : index
    %27 = vector.load %arg9[%c24, %c0_27] : memref<72x64xbf16, #tpu.memory_space<vmem>>, vector<8x64xbf16>
    tpu.vector_store %arg9[%c24, %c0_27], %26 {strides = array<i32>} : memref<72x64xbf16, #tpu.memory_space<vmem>>, vector<8x64xbf16>,
    %c0_28 = arith.constant 0 : index
    %c1_29 = arith.constant 1 : index
    %c1_30 = arith.constant 1 : index
    %28 = vector.load %arg8[%c0_28, %c1_29, %c1_30] : memref<8x10x10xbf16, #tpu.memory_space<vmem>>, vector<8x8x8xbf16>
    %29 = vector.shape_cast %28 : vector<8x8x8xbf16> to vector<8x64xbf16>
    %c32 = arith.constant 32 : index
    %c0_31 = arith.constant 0 : index
    %30 = vector.load %arg9[%c32, %c0_31] : memref<72x64xbf16, #tpu.memory_space<vmem>>, vector<8x64xbf16>
    tpu.vector_store %arg9[%c32, %c0_31], %29 {strides = array<i32>} : memref<72x64xbf16, #tpu.memory_space<vmem>>, vector<8x64xbf16>,
    %c0_32 = arith.constant 0 : index
    %c1_33 = arith.constant 1 : index
    %c2_34 = arith.constant 2 : index
    %31 = vector.load %arg8[%c0_32, %c1_33, %c2_34] : memref<8x10x10xbf16, #tpu.memory_space<vmem>>, vector<8x8x8xbf16>
    %32 = vector.shape_cast %31 : vector<8x8x8xbf16> to vector<8x64xbf16>
    %c40 = arith.constant 40 : index
    %c0_35 = arith.constant 0 : index
    %33 = vector.load %arg9[%c40, %c0_35] : memref<72x64xbf16, #tpu.memory_space<vmem>>, vector<8x64xbf16>
    tpu.vector_store %arg9[%c40, %c0_35], %32 {strides = array<i32>} : memref<72x64xbf16, #tpu.memory_space<vmem>>, vector<8x64xbf16>,
    %c0_36 = arith.constant 0 : index
    %c2_37 = arith.constant 2 : index
    %c0_38 = arith.constant 0 : index
    %34 = vector.load %arg8[%c0_36, %c2_37, %c0_38] : memref<8x10x10xbf16, #tpu.memory_space<vmem>>, vector<8x8x8xbf16>
    %35 = vector.shape_cast %34 : vector<8x8x8xbf16> to vector<8x64xbf16>
    %c48 = arith.constant 48 : index
    %c0_39 = arith.constant 0 : index
    %36 = vector.load %arg9[%c48, %c0_39] : memref<72x64xbf16, #tpu.memory_space<vmem>>, vector<8x64xbf16>
    tpu.vector_store %arg9[%c48, %c0_39], %35 {strides = array<i32>} : memref<72x64xbf16, #tpu.memory_space<vmem>>, vector<8x64xbf16>,
    %c0_40 = arith.constant 0 : index
    %c2_41 = arith.constant 2 : index
    %c1_42 = arith.constant 1 : index
    %37 = vector.load %arg8[%c0_40, %c2_41, %c1_42] : memref<8x10x10xbf16, #tpu.memory_space<vmem>>, vector<8x8x8xbf16>
    %38 = vector.shape_cast %37 : vector<8x8x8xbf16> to vector<8x64xbf16>
    %c56 = arith.constant 56 : index
    %c0_43 = arith.constant 0 : index
    %39 = vector.load %arg9[%c56, %c0_43] : memref<72x64xbf16, #tpu.memory_space<vmem>>, vector<8x64xbf16>
    tpu.vector_store %arg9[%c56, %c0_43], %38 {strides = array<i32>} : memref<72x64xbf16, #tpu.memory_space<vmem>>, vector<8x64xbf16>,
    %c0_44 = arith.constant 0 : index
    %c2_45 = arith.constant 2 : index
    %c2_46 = arith.constant 2 : index
    %40 = vector.load %arg8[%c0_44, %c2_45, %c2_46] : memref<8x10x10xbf16, #tpu.memory_space<vmem>>, vector<8x8x8xbf16>
    %41 = vector.shape_cast %40 : vector<8x8x8xbf16> to vector<8x64xbf16>
    %c64 = arith.constant 64 : index
    %c0_47 = arith.constant 0 : index
    %42 = vector.load %arg9[%c64, %c0_47] : memref<72x64xbf16, #tpu.memory_space<vmem>>, vector<8x64xbf16>
    tpu.vector_store %arg9[%c64, %c0_47], %41 {strides = array<i32>} : memref<72x64xbf16, #tpu.memory_space<vmem>>, vector<8x64xbf16>,
    %c0_48 = arith.constant 0 : index
    %c0_49 = arith.constant 0 : index
    %43 = vector.load %arg2[%c0_48, %c0_49] : memref<8x72xbf16, #tpu.memory_space<vmem>>, vector<8x72xbf16>
    %c0_50 = arith.constant 0 : index
    %c0_51 = arith.constant 0 : index
    %44 = vector.load %arg9[%c0_50, %c0_51] : memref<72x64xbf16, #tpu.memory_space<vmem>>, vector<72x64xbf16>
    %cst_52 = arith.constant dense<0.000000e+00> : vector<8x64xf32>
    %45 = tpu.matmul %43, %44, %cst_52 {dimension_numbers = #tpu.dot_dimension_numbers<[1], [0], [0], [1], [0, 0, 1, 1], [], []>} : vector<8x72xbf16>, vector<72x64xbf16>, vector<8x64xf32> -> vector<8x64xf32>
    %46 = arith.truncf %45 : vector<8x64xf32> to vector<8x64xbf16>
    %c0_53 = arith.constant 0 : index
    %c0_54 = arith.constant 0 : index
    %c0_55 = arith.constant 0 : index
    %47 = vector.load %arg5[%c0_53, %c0_54, %c0_55] : memref<1x8x64xbf16, #tpu.memory_space<vmem>>, vector<1x8x64xbf16>
    %48 = vector.shape_cast %47 : vector<1x8x64xbf16> to vector<8x64xbf16>
    %49 = vector.shape_cast %46 : vector<8x64xbf16> to vector<1x8x64xbf16>
    tpu.vector_store %arg5[%c0_53, %c0_54, %c0_55], %49 {strides = array<i32>} : memref<1x8x64xbf16, #tpu.memory_space<vmem>>, vector<1x8x64xbf16>,
    %cst_56 = arith.constant dense<0.000000e+00> : vector<8xf32>
    %50 = vector.multi_reduction <add>, %45, %cst_56 [1] : vector<8x64xf32> to vector<8xf32>
    %51 = vector.shape_cast %50 : vector<8xf32> to vector<8x1xf32>
    %c0_57 = arith.constant 0 : index
    %c0_58 = arith.constant 0 : index
    %c0_59 = arith.constant 0 : index
    %52 = vector.load %arg6[%c0_57, %c0_58, %c0_59] : memref<1x8x1xf32, #tpu.memory_space<vmem>>, vector<1x8x1xf32>
    %53 = vector.shape_cast %52 : vector<1x8x1xf32> to vector<8x1xf32>
    %54 = vector.shape_cast %51 : vector<8x1xf32> to vector<1x8x1xf32>
    tpu.vector_store %arg6[%c0_57, %c0_58, %c0_59], %54 {strides = array<i32>} : memref<1x8x1xf32, #tpu.memory_space<vmem>>, vector<1x8x1xf32>,
    %55 = arith.mulf %45, %45 : vector<8x64xf32>
    %cst_60 = arith.constant dense<0.000000e+00> : vector<8xf32>
    %56 = vector.multi_reduction <add>, %55, %cst_60 [1] : vector<8x64xf32> to vector<8xf32>
    %57 = vector.shape_cast %56 : vector<8xf32> to vector<8x1xf32>
    %c0_61 = arith.constant 0 : index
    %c0_62 = arith.constant 0 : index
    %c0_63 = arith.constant 0 : index
    %58 = vector.load %arg7[%c0_61, %c0_62, %c0_63] : memref<1x8x1xf32, #tpu.memory_space<vmem>>, vector<1x8x1xf32>
    %59 = vector.shape_cast %58 : vector<1x8x1xf32> to vector<8x1xf32>
    %60 = vector.shape_cast %57 : vector<8x1xf32> to vector<1x8x1xf32>
    tpu.vector_store %arg7[%c0_61, %c0_62, %c0_63], %60 {strides = array<i32>} : memref<1x8x1xf32, #tpu.memory_space<vmem>>, vector<1x8x1xf32>,
    return
  }
  func.func @transform_0(%arg0: i32) -> (i32, i32, i32) {
    %c0_i32 = arith.constant 0 : i32
    %c0_i32_0 = arith.constant 0 : i32
    %c0_i32_1 = arith.constant 0 : i32
    return %arg0, %c0_i32, %c0_i32_0 : i32, i32, i32
  }
  func.func @transform_1(%arg0: i32) -> (i32, i32) {
    %c0_i32 = arith.constant 0 : i32
    %c0_i32_0 = arith.constant 0 : i32
    %c0_i32_1 = arith.constant 0 : i32
    return %c0_i32, %c0_i32_0 : i32, i32
  }
  func.func @transform_2(%arg0: i32) -> (i32, i32) {
    %c0_i32 = arith.constant 0 : i32
    %c0_i32_0 = arith.constant 0 : i32
    %c0_i32_1 = arith.constant 0 : i32
    return %c0_i32, %c0_i32_0 : i32, i32
  }
  func.func @transform_3(%arg0: i32) -> (i32, i32) {
    %c0_i32 = arith.constant 0 : i32
    %c0_i32_0 = arith.constant 0 : i32
    %c0_i32_1 = arith.constant 0 : i32
    return %c0_i32, %c0_i32_0 : i32, i32
  }
  func.func @transform_4(%arg0: i32) -> (i32, i32, i32) {
    %c0_i32 = arith.constant 0 : i32
    %c0_i32_0 = arith.constant 0 : i32
    %c0_i32_1 = arith.constant 0 : i32
    return %arg0, %c0_i32, %c0_i32_0 : i32, i32, i32
  }
  func.func @transform_5(%arg0: i32) -> (i32, i32, i32) {
    %c0_i32 = arith.constant 0 : i32
    %c0_i32_0 = arith.constant 0 : i32
    %c0_i32_1 = arith.constant 0 : i32
    return %arg0, %c0_i32, %c0_i32_0 : i32, i32, i32
  }
  func.func @transform_6(%arg0: i32) -> (i32, i32, i32) {
    %c0_i32 = arith.constant 0 : i32
    %c0_i32_0 = arith.constant 0 : i32
    %c0_i32_1 = arith.constant 0 : i32
    return %arg0, %c0_i32, %c0_i32_0 : i32, i32, i32
  }
}

module attributes {stable_mosaic.version = 11 : i64} {
  func.func @_pool_conv_stats_kernel(%arg0: i32, %arg1: memref<1x4x16x16xf32, #tpu.memory_space<vmem>>, %arg2: memref<8x36xbf16, #tpu.memory_space<vmem>>, %arg3: memref<1x8x64xbf16, #tpu.memory_space<vmem>>, %arg4: memref<1x8x1xf32, #tpu.memory_space<vmem>>, %arg5: memref<1x8x1xf32, #tpu.memory_space<vmem>>, %arg6: memref<4x10x10xbf16, #tpu.memory_space<vmem>>, %arg7: memref<36x64xbf16, #tpu.memory_space<vmem>>) attributes {dimension_semantics = [#tpu.dimension_semantics<parallel>], iteration_bounds = array<i64: 2>, scalar_prefetch = 0 : i64, scratch_operands = 2 : i64, tpu.core_type = #tpu.core_type<tc>, window_params = [{transform_indices = @transform_0, window_bounds = array<i64: 1, 4, 16, 16>}, {pipeline_mode = #tpu.pipeline_mode<synchronous>, transform_indices = @transform_1, window_bounds = array<i64: 8, 36>}, {transform_indices = @transform_2, window_bounds = array<i64: 1, 8, 64>}, {transform_indices = @transform_3, window_bounds = array<i64: 1, 8, 1>}, {transform_indices = @transform_4, window_bounds = array<i64: 1, 8, 1>}]} {
    %c0 = arith.constant 0 : index
    %c0_0 = arith.constant 0 : index
    %c0_1 = arith.constant 0 : index
    %c0_2 = arith.constant 0 : index
    %0 = vector.load %arg1[%c0, %c0_0, %c0_1, %c0_2] : memref<1x4x16x16xf32, #tpu.memory_space<vmem>>, vector<1x4x16x16xf32>
    %1 = vector.shape_cast %0 : vector<1x4x16x16xf32> to vector<4x16x16xf32>
    %2 = vector.shape_cast %1 : vector<4x16x16xf32> to vector<4x8x2x16xf32>
    %3 = vector.extract_strided_slice %2 {offsets = [0, 0, 0, 0], sizes = [4, 8, 1, 16], strides = [1, 1, 1, 1]} : vector<4x8x2x16xf32> to vector<4x8x1x16xf32>
    %4 = vector.shape_cast %3 : vector<4x8x1x16xf32> to vector<4x8x16xf32>
    %5 = vector.extract_strided_slice %2 {offsets = [0, 0, 1, 0], sizes = [4, 8, 1, 16], strides = [1, 1, 1, 1]} : vector<4x8x2x16xf32> to vector<4x8x1x16xf32>
    %6 = vector.shape_cast %5 : vector<4x8x1x16xf32> to vector<4x8x16xf32>
    %7 = arith.maximumf %4, %6 : vector<4x8x16xf32>
    %8 = vector.shape_cast %7 : vector<4x8x16xf32> to vector<4x8x8x2xf32>
    %9 = vector.extract_strided_slice %8 {offsets = [0, 0, 0, 0], sizes = [4, 8, 8, 1], strides = [1, 1, 1, 1]} : vector<4x8x8x2xf32> to vector<4x8x8x1xf32>
    %10 = vector.shape_cast %9 : vector<4x8x8x1xf32> to vector<4x8x8xf32>
    %11 = vector.extract_strided_slice %8 {offsets = [0, 0, 0, 1], sizes = [4, 8, 8, 1], strides = [1, 1, 1, 1]} : vector<4x8x8x2xf32> to vector<4x8x8x1xf32>
    %12 = vector.shape_cast %11 : vector<4x8x8x1xf32> to vector<4x8x8xf32>
    %13 = arith.maximumf %10, %12 : vector<4x8x8xf32>
    %cst = arith.constant 0.000000e+00 : bf16
    %14 = vector.broadcast %cst : bf16 to vector<4x10x10xbf16>
    %c0_3 = arith.constant 0 : index
    %c0_4 = arith.constant 0 : index
    %c0_5 = arith.constant 0 : index
    %15 = vector.load %arg6[%c0_3, %c0_4, %c0_5] : memref<4x10x10xbf16, #tpu.memory_space<vmem>>, vector<4x10x10xbf16>
    tpu.vector_store %arg6[%c0_3, %c0_4, %c0_5], %14 {strides = array<i32>} : memref<4x10x10xbf16, #tpu.memory_space<vmem>>, vector<4x10x10xbf16>,
    %16 = arith.truncf %13 : vector<4x8x8xf32> to vector<4x8x8xbf16>
    %c0_6 = arith.constant 0 : index
    %c1 = arith.constant 1 : index
    %c1_7 = arith.constant 1 : index
    %17 = vector.load %arg6[%c0_6, %c1, %c1_7] : memref<4x10x10xbf16, #tpu.memory_space<vmem>>, vector<4x8x8xbf16>
    tpu.vector_store %arg6[%c0_6, %c1, %c1_7], %16 {strides = array<i32>} : memref<4x10x10xbf16, #tpu.memory_space<vmem>>, vector<4x8x8xbf16>,
    %c0_8 = arith.constant 0 : index
    %c0_9 = arith.constant 0 : index
    %c0_10 = arith.constant 0 : index
    %18 = vector.load %arg6[%c0_8, %c0_9, %c0_10] : memref<4x10x10xbf16, #tpu.memory_space<vmem>>, vector<4x8x8xbf16>
    %19 = vector.shape_cast %18 : vector<4x8x8xbf16> to vector<4x64xbf16>
    %c0_11 = arith.constant 0 : index
    %c0_12 = arith.constant 0 : index
    %20 = vector.load %arg7[%c0_11, %c0_12] : memref<36x64xbf16, #tpu.memory_space<vmem>>, vector<4x64xbf16>
    tpu.vector_store %arg7[%c0_11, %c0_12], %19 {strides = array<i32>} : memref<36x64xbf16, #tpu.memory_space<vmem>>, vector<4x64xbf16>,
    %c0_13 = arith.constant 0 : index
    %c0_14 = arith.constant 0 : index
    %c1_15 = arith.constant 1 : index
    %21 = vector.load %arg6[%c0_13, %c0_14, %c1_15] : memref<4x10x10xbf16, #tpu.memory_space<vmem>>, vector<4x8x8xbf16>
    %22 = vector.shape_cast %21 : vector<4x8x8xbf16> to vector<4x64xbf16>
    %c4 = arith.constant 4 : index
    %c0_16 = arith.constant 0 : index
    %23 = vector.load %arg7[%c4, %c0_16] : memref<36x64xbf16, #tpu.memory_space<vmem>>, vector<4x64xbf16>
    tpu.vector_store %arg7[%c4, %c0_16], %22 {strides = array<i32>} : memref<36x64xbf16, #tpu.memory_space<vmem>>, vector<4x64xbf16>,
    %c0_17 = arith.constant 0 : index
    %c0_18 = arith.constant 0 : index
    %c2 = arith.constant 2 : index
    %24 = vector.load %arg6[%c0_17, %c0_18, %c2] : memref<4x10x10xbf16, #tpu.memory_space<vmem>>, vector<4x8x8xbf16>
    %25 = vector.shape_cast %24 : vector<4x8x8xbf16> to vector<4x64xbf16>
    %c8 = arith.constant 8 : index
    %c0_19 = arith.constant 0 : index
    %26 = vector.load %arg7[%c8, %c0_19] : memref<36x64xbf16, #tpu.memory_space<vmem>>, vector<4x64xbf16>
    tpu.vector_store %arg7[%c8, %c0_19], %25 {strides = array<i32>} : memref<36x64xbf16, #tpu.memory_space<vmem>>, vector<4x64xbf16>,
    %c0_20 = arith.constant 0 : index
    %c1_21 = arith.constant 1 : index
    %c0_22 = arith.constant 0 : index
    %27 = vector.load %arg6[%c0_20, %c1_21, %c0_22] : memref<4x10x10xbf16, #tpu.memory_space<vmem>>, vector<4x8x8xbf16>
    %28 = vector.shape_cast %27 : vector<4x8x8xbf16> to vector<4x64xbf16>
    %c12 = arith.constant 12 : index
    %c0_23 = arith.constant 0 : index
    %29 = vector.load %arg7[%c12, %c0_23] : memref<36x64xbf16, #tpu.memory_space<vmem>>, vector<4x64xbf16>
    tpu.vector_store %arg7[%c12, %c0_23], %28 {strides = array<i32>} : memref<36x64xbf16, #tpu.memory_space<vmem>>, vector<4x64xbf16>,
    %c0_24 = arith.constant 0 : index
    %c1_25 = arith.constant 1 : index
    %c1_26 = arith.constant 1 : index
    %30 = vector.load %arg6[%c0_24, %c1_25, %c1_26] : memref<4x10x10xbf16, #tpu.memory_space<vmem>>, vector<4x8x8xbf16>
    %31 = vector.shape_cast %30 : vector<4x8x8xbf16> to vector<4x64xbf16>
    %c16 = arith.constant 16 : index
    %c0_27 = arith.constant 0 : index
    %32 = vector.load %arg7[%c16, %c0_27] : memref<36x64xbf16, #tpu.memory_space<vmem>>, vector<4x64xbf16>
    tpu.vector_store %arg7[%c16, %c0_27], %31 {strides = array<i32>} : memref<36x64xbf16, #tpu.memory_space<vmem>>, vector<4x64xbf16>,
    %c0_28 = arith.constant 0 : index
    %c1_29 = arith.constant 1 : index
    %c2_30 = arith.constant 2 : index
    %33 = vector.load %arg6[%c0_28, %c1_29, %c2_30] : memref<4x10x10xbf16, #tpu.memory_space<vmem>>, vector<4x8x8xbf16>
    %34 = vector.shape_cast %33 : vector<4x8x8xbf16> to vector<4x64xbf16>
    %c20 = arith.constant 20 : index
    %c0_31 = arith.constant 0 : index
    %35 = vector.load %arg7[%c20, %c0_31] : memref<36x64xbf16, #tpu.memory_space<vmem>>, vector<4x64xbf16>
    tpu.vector_store %arg7[%c20, %c0_31], %34 {strides = array<i32>} : memref<36x64xbf16, #tpu.memory_space<vmem>>, vector<4x64xbf16>,
    %c0_32 = arith.constant 0 : index
    %c2_33 = arith.constant 2 : index
    %c0_34 = arith.constant 0 : index
    %36 = vector.load %arg6[%c0_32, %c2_33, %c0_34] : memref<4x10x10xbf16, #tpu.memory_space<vmem>>, vector<4x8x8xbf16>
    %37 = vector.shape_cast %36 : vector<4x8x8xbf16> to vector<4x64xbf16>
    %c24 = arith.constant 24 : index
    %c0_35 = arith.constant 0 : index
    %38 = vector.load %arg7[%c24, %c0_35] : memref<36x64xbf16, #tpu.memory_space<vmem>>, vector<4x64xbf16>
    tpu.vector_store %arg7[%c24, %c0_35], %37 {strides = array<i32>} : memref<36x64xbf16, #tpu.memory_space<vmem>>, vector<4x64xbf16>,
    %c0_36 = arith.constant 0 : index
    %c2_37 = arith.constant 2 : index
    %c1_38 = arith.constant 1 : index
    %39 = vector.load %arg6[%c0_36, %c2_37, %c1_38] : memref<4x10x10xbf16, #tpu.memory_space<vmem>>, vector<4x8x8xbf16>
    %40 = vector.shape_cast %39 : vector<4x8x8xbf16> to vector<4x64xbf16>
    %c28 = arith.constant 28 : index
    %c0_39 = arith.constant 0 : index
    %41 = vector.load %arg7[%c28, %c0_39] : memref<36x64xbf16, #tpu.memory_space<vmem>>, vector<4x64xbf16>
    tpu.vector_store %arg7[%c28, %c0_39], %40 {strides = array<i32>} : memref<36x64xbf16, #tpu.memory_space<vmem>>, vector<4x64xbf16>,
    %c0_40 = arith.constant 0 : index
    %c2_41 = arith.constant 2 : index
    %c2_42 = arith.constant 2 : index
    %42 = vector.load %arg6[%c0_40, %c2_41, %c2_42] : memref<4x10x10xbf16, #tpu.memory_space<vmem>>, vector<4x8x8xbf16>
    %43 = vector.shape_cast %42 : vector<4x8x8xbf16> to vector<4x64xbf16>
    %c32 = arith.constant 32 : index
    %c0_43 = arith.constant 0 : index
    %44 = vector.load %arg7[%c32, %c0_43] : memref<36x64xbf16, #tpu.memory_space<vmem>>, vector<4x64xbf16>
    tpu.vector_store %arg7[%c32, %c0_43], %43 {strides = array<i32>} : memref<36x64xbf16, #tpu.memory_space<vmem>>, vector<4x64xbf16>,
    %c0_44 = arith.constant 0 : index
    %c0_45 = arith.constant 0 : index
    %45 = vector.load %arg2[%c0_44, %c0_45] : memref<8x36xbf16, #tpu.memory_space<vmem>>, vector<8x36xbf16>
    %c0_46 = arith.constant 0 : index
    %c0_47 = arith.constant 0 : index
    %46 = vector.load %arg7[%c0_46, %c0_47] : memref<36x64xbf16, #tpu.memory_space<vmem>>, vector<36x64xbf16>
    %cst_48 = arith.constant dense<0.000000e+00> : vector<8x64xf32>
    %47 = tpu.matmul %45, %46, %cst_48 {dimension_numbers = #tpu.dot_dimension_numbers<[1], [0], [0], [1], [0, 0, 1, 1], [], []>} : vector<8x36xbf16>, vector<36x64xbf16>, vector<8x64xf32> -> vector<8x64xf32>
    %48 = arith.truncf %47 : vector<8x64xf32> to vector<8x64xbf16>
    %c0_49 = arith.constant 0 : index
    %c0_50 = arith.constant 0 : index
    %c0_51 = arith.constant 0 : index
    %49 = vector.load %arg3[%c0_49, %c0_50, %c0_51] : memref<1x8x64xbf16, #tpu.memory_space<vmem>>, vector<1x8x64xbf16>
    %50 = vector.shape_cast %49 : vector<1x8x64xbf16> to vector<8x64xbf16>
    %51 = vector.shape_cast %48 : vector<8x64xbf16> to vector<1x8x64xbf16>
    tpu.vector_store %arg3[%c0_49, %c0_50, %c0_51], %51 {strides = array<i32>} : memref<1x8x64xbf16, #tpu.memory_space<vmem>>, vector<1x8x64xbf16>,
    %cst_52 = arith.constant dense<0.000000e+00> : vector<8xf32>
    %52 = vector.multi_reduction <add>, %47, %cst_52 [1] : vector<8x64xf32> to vector<8xf32>
    %53 = vector.shape_cast %52 : vector<8xf32> to vector<8x1xf32>
    %c0_53 = arith.constant 0 : index
    %c0_54 = arith.constant 0 : index
    %c0_55 = arith.constant 0 : index
    %54 = vector.load %arg4[%c0_53, %c0_54, %c0_55] : memref<1x8x1xf32, #tpu.memory_space<vmem>>, vector<1x8x1xf32>
    %55 = vector.shape_cast %54 : vector<1x8x1xf32> to vector<8x1xf32>
    %56 = vector.shape_cast %53 : vector<8x1xf32> to vector<1x8x1xf32>
    tpu.vector_store %arg4[%c0_53, %c0_54, %c0_55], %56 {strides = array<i32>} : memref<1x8x1xf32, #tpu.memory_space<vmem>>, vector<1x8x1xf32>,
    %57 = arith.mulf %47, %47 : vector<8x64xf32>
    %cst_56 = arith.constant dense<0.000000e+00> : vector<8xf32>
    %58 = vector.multi_reduction <add>, %57, %cst_56 [1] : vector<8x64xf32> to vector<8xf32>
    %59 = vector.shape_cast %58 : vector<8xf32> to vector<8x1xf32>
    %c0_57 = arith.constant 0 : index
    %c0_58 = arith.constant 0 : index
    %c0_59 = arith.constant 0 : index
    %60 = vector.load %arg5[%c0_57, %c0_58, %c0_59] : memref<1x8x1xf32, #tpu.memory_space<vmem>>, vector<1x8x1xf32>
    %61 = vector.shape_cast %60 : vector<1x8x1xf32> to vector<8x1xf32>
    %62 = vector.shape_cast %59 : vector<8x1xf32> to vector<1x8x1xf32>
    tpu.vector_store %arg5[%c0_57, %c0_58, %c0_59], %62 {strides = array<i32>} : memref<1x8x1xf32, #tpu.memory_space<vmem>>, vector<1x8x1xf32>,
    return
  }
  func.func @transform_0(%arg0: i32) -> (i32, i32, i32, i32) {
    %c0_i32 = arith.constant 0 : i32
    %c0_i32_0 = arith.constant 0 : i32
    %c0_i32_1 = arith.constant 0 : i32
    %c0_i32_2 = arith.constant 0 : i32
    return %arg0, %c0_i32, %c0_i32_0, %c0_i32_1 : i32, i32, i32, i32
  }
  func.func @transform_1(%arg0: i32) -> (i32, i32) {
    %c0_i32 = arith.constant 0 : i32
    %c0_i32_0 = arith.constant 0 : i32
    %c0_i32_1 = arith.constant 0 : i32
    return %c0_i32, %c0_i32_0 : i32, i32
  }
  func.func @transform_2(%arg0: i32) -> (i32, i32, i32) {
    %c0_i32 = arith.constant 0 : i32
    %c0_i32_0 = arith.constant 0 : i32
    %c0_i32_1 = arith.constant 0 : i32
    return %arg0, %c0_i32, %c0_i32_0 : i32, i32, i32
  }
  func.func @transform_3(%arg0: i32) -> (i32, i32, i32) {
    %c0_i32 = arith.constant 0 : i32
    %c0_i32_0 = arith.constant 0 : i32
    %c0_i32_1 = arith.constant 0 : i32
    return %arg0, %c0_i32, %c0_i32_0 : i32, i32, i32
  }
  func.func @transform_4(%arg0: i32) -> (i32, i32, i32) {
    %c0_i32 = arith.constant 0 : i32
    %c0_i32_0 = arith.constant 0 : i32
    %c0_i32_1 = arith.constant 0 : i32
    return %arg0, %c0_i32, %c0_i32_0 : i32, i32, i32
  }
}

</mosaic_0001>

<llo_original>
// kernel: down_forward.5
$region0: #{down_forward.5}
  #allocation0 [shape = 'u32[]', space=smem, size = 0x4, offset = 0x4, fixed_abs, tag = 'smem constant byte address 0x4 - core index']
  #allocation1 [shape = 'u32[72,128]{1,0:T(1,128)}', space=vmem, size = 0x9000, scoped, tag = 'internal scratch']
  %s0 = inlined_call_operand.vmem [shape: bf16[2,8,64], index: 0, kind: input, shape index: {}]
  %s1 = inlined_call_operand.vmem [shape: f32[8,1], index: 1, kind: input, shape index: {}]
  %s2 = inlined_call_operand.vmem [shape: f32[8,1], index: 2, kind: input, shape index: {}]
  %s3 = inlined_call_operand.vmem [shape: f32[2,8,64], index: 3, kind: output, shape index: {}]
  %s4 = sld [smem:[#allocation0]]
  $region45: #{down_forward.5} parent=0
    _
  %s6 = ssub.s32 1, %s4
  %s7 = scalar_select 0, %s6, %s4
  loop: start=0, step=1, limit=4
  $region2: #{down_forward.5} parent=0 // loop_pre_header
    _
  $region3: #{down_forward.5} parent=0 // loop_header
    %s9 = sphi 0, %s13
    %p10 = scmp.ge.s32.totalorder %s9, 4
    %s19 = sphi 0, %s21
    %s22 = sphi 0, %s19
    %s23 = sphi 0, %s22
    %s39 = sphi 0, %s23
    %s43 = sphi 0, %s43
    %s45 = sphi 0, %s43
    %s46 = sphi 0, %s45
    %s60 = sphi 0, %s46
    %s64 = sphi 0, %s64
    %s66 = sphi 0, %s64
    %s67 = sphi 0, %s66
    %s81 = sphi 0, %s67
    %s87 = sphi 0, %s89
    %s90 = sphi 0, %s87
    %s91 = sphi 0, %s90
    %s107 = sphi 0, %s91
  $region4: #{down_forward.5} parent=0 // loop_header_branch
    %12 = sbr.rel (%p10) target = $region8
  $region5: #{down_forward.5} parent=0 // loop_body
    %s14 = ssub.s32 %s9, 1
    %s15 = ssub.s32 %s9, 2
    %s16 = sadd.s32 %s9, 1
    %s17 = ssub.s32 %s9, %s16
    %p18 = scmp.eq.s32.totalorder %s17, 0
    %s20 = sadd.s32 %s19, 1
    %s21 = scalar_select %p18, %s19, %s20
    %p24 = pneg %p18
    %p25 = scmp.eq.s32.totalorder %s9, 1
    %p26 = por %p24, %p25
    %p27 = scmp.ne.s32.totalorder %s19, %s22
    %p28 = scmp.eq.s32.totalorder %s9, 0
    %p29 = por %p27, %p28
    %p30 = scmp.ne.s32.totalorder %s19, %s22
    %p31 = scmp.eq.s32.totalorder %s14, 1
    %p32 = por %p30, %p31
    %p33 = scmp.ne.s32.totalorder %s22, %s23
    %p34 = scmp.eq.s32.totalorder %s14, 0
    %p35 = por %p33, %p34
    %p36 = scmp.ne.s32.totalorder %s22, %s23
    %p37 = scmp.eq.s32.totalorder %s15, 1
    %p38 = por %p36, %p37
    %p40 = scmp.ne.s32.totalorder %s23, %s39
    %p41 = scmp.eq.s32.totalorder %s15, 0
    %p42 = por %p40, %p41
    %s44 = sadd.s32 %s43, 1
    %p47 = scmp.eq.s32.totalorder %s9, 1
    %p48 = scmp.ne.s32.totalorder %s43, %s45
    %p49 = scmp.eq.s32.totalorder %s9, 0
    %p50 = por %p48, %p49
    %p51 = scmp.ne.s32.totalorder %s43, %s45
    %p52 = scmp.eq.s32.totalorder %s14, 1
    %p53 = por %p51, %p52
    %p54 = scmp.ne.s32.totalorder %s45, %s46
    %p55 = scmp.eq.s32.totalorder %s14, 0
    %p56 = por %p54, %p55
    %p57 = scmp.ne.s32.totalorder %s45, %s46
    %p58 = scmp.eq.s32.totalorder %s15, 1
    %p59 = por %p57, %p58
    %p61 = scmp.ne.s32.totalorder %s46, %s60
    %p62 = scmp.eq.s32.totalorder %s15, 0
    %p63 = por %p61, %p62
    %s65 = sadd.s32 %s64, 1
    %p68 = scmp.eq.s32.totalorder %s9, 1
    %p69 = scmp.ne.s32.totalorder %s64, %s66
    %p70 = scmp.eq.s32.totalorder %s9, 0
    %p71 = por %p69, %p70
    %p72 = scmp.ne.s32.totalorder %s64, %s66
    %p73 = scmp.eq.s32.totalorder %s14, 1
    %p74 = por %p72, %p73
    %p75 = scmp.ne.s32.totalorder %s66, %s67
    %p76 = scmp.eq.s32.totalorder %s14, 0
    %p77 = por %p75, %p76
    %p78 = scmp.ne.s32.totalorder %s66, %s67
    %p79 = scmp.eq.s32.totalorder %s15, 1
    %p80 = por %p78, %p79
    %p82 = scmp.ne.s32.totalorder %s67, %s81
    %p83 = scmp.eq.s32.totalorder %s15, 0
    %p84 = por %p82, %p83
    %s85 = ssub.s32 %s9, %s16
    %p86 = scmp.eq.s32.totalorder %s85, 0
    %s88 = sadd.s32 %s87, 1
    %s89 = scalar_select %p86, %s87, %s88
    %p92 = pneg %p86
    %p93 = scmp.eq.s32.totalorder %s9, 1
    %p94 = por %p92, %p93
    %p95 = scmp.ne.s32.totalorder %s87, %s90
    %p96 = scmp.eq.s32.totalorder %s9, 0
    %p97 = por %p95, %p96
    %p98 = scmp.ne.s32.totalorder %s87, %s90
    %p99 = scmp.eq.s32.totalorder %s14, 1
    %p100 = por %p98, %p99
    %p101 = scmp.ne.s32.totalorder %s90, %s91
    %p102 = scmp.eq.s32.totalorder %s14, 0
    %p103 = por %p101, %p102
    %p104 = scmp.ne.s32.totalorder %s90, %s91
    %p105 = scmp.eq.s32.totalorder %s15, 1
    %p106 = por %p104, %p105
    %p108 = scmp.ne.s32.totalorder %s91, %s107
    %p109 = scmp.eq.s32.totalorder %s15, 0
    %p110 = por %p108, %p109
    %p111 = scmp.le.s32.totalorder 1, %s9
    %p112 = scmp.lt.s32.totalorder %s9, 3
    %p113 = pnand %p111, %p112
    %p114 = pneg %p113
    // Predicated region
    $region9: #{down_forward.5} parent=5 // pred_check
      _
    $region10: #{down_forward.5} parent=5 // pred_check_branch
      %116 = sbr.rel (%p113) target = $region12
    $region11: #{down_forward.5} parent=5 // pred_region
      %s117 = ssub.s32 %s9, 1
      // Predicated region
      $region13: #{down_forward.5} parent=11 // pred_check
        %p118 = pneg %p56
      $region14: #{down_forward.5} parent=11 // pred_check_branch
        %120 = sbr.rel (%p118) target = $region16
      $region15: #{down_forward.5} parent=11 // pred_region
        _
      $region16: #{down_forward.5} parent=11 // pred_fallthru
        _
      // Predicated region
      $region17: #{down_forward.5} parent=11 // pred_check
        %p121 = pneg %p77
      $region18: #{down_forward.5} parent=11 // pred_check_branch
        %123 = sbr.rel (%p121) target = $region20
      $region19: #{down_forward.5} parent=11 // pred_region
        _
      $region20: #{down_forward.5} parent=11 // pred_fallthru
        _
    $region12: #{down_forward.5} parent=5 // pred_fallthru
      _
    %p124 = scmp.lt.s32.totalorder %s9, 2
    // Predicated region
    $region21: #{down_forward.5} parent=5 // pred_check
      %p125 = pneg %p124
    $region22: #{down_forward.5} parent=5 // pred_check_branch
      %127 = sbr.rel (%p125) target = $region24
    $region23: #{down_forward.5} parent=5 // pred_region
      // Predicated region
      $region25: #{down_forward.5} parent=23 // pred_check
        %p128 = pneg %p29
      $region26: #{down_forward.5} parent=23 // pred_check_branch
        %130 = sbr.rel (%p128) target = $region28
      $region27: #{down_forward.5} parent=23 // pred_region
        %p131 = scmp.lt.s32.totalorder %s9, 1
        %s132 = scalar_select %p131, %s9, 1
        %s133 = smul.addr %s132, 4
        %s134 = scalar_lea.vmem %s0, %s133
      $region28: #{down_forward.5} parent=23 // pred_fallthru
        _
    $region24: #{down_forward.5} parent=5 // pred_fallthru
      _
    %p135 = scmp.le.s32.totalorder 1, %s9
    %p136 = scmp.lt.s32.totalorder %s9, 3
    %p137 = pnand %p135, %p136
    %p138 = pneg %p137
    // Predicated region
    $region29: #{down_forward.5} parent=5 // pred_check
      _
    $region30: #{down_forward.5} parent=5 // pred_check_branch
      %140 = sbr.rel (%p137) target = $region32
    $region31: #{down_forward.5} parent=5 // pred_region
      %s141 = ssub.s32 %s9, 1
      %p142 = scmp.lt.s32.totalorder %s14, 1
      %s143 = scalar_select %p142, %s14, 1
      %s144 = smul.addr %s143, 4
      %s145 = scalar_lea.vmem %s0, %s144
      %p146 = pneg %p35
      %p147 = pneg %p32
      %p148 = pneg %p56
      %p149 = pneg %p53
      %p150 = pneg %p77
      %p151 = pneg %p74
      %p152 = pneg %p103
      %p153 = pneg %p100
      %p154 = scmp.lt.s32.totalorder %s14, 1
      %s155 = scalar_select %p154, %s14, 1
      %s156 = smul.addr %s155, 8
      %s157 = scalar_lea.vmem %s3, %s156
      %p158 = scmp.lt.s32.totalorder %s14, 1
      %s159 = scalar_select %p158, %s14, 1
      %s160 = smul.addr %s159, 4
      %s161 = scalar_lea.vmem %s0, %s160
      %p162 = scmp.lt.s32.totalorder %s14, 1
      %s163 = scalar_select %p162, %s14, 1
      %s164 = smul.addr %s163, 8
      %s165 = scalar_lea.vmem %s3, %s164
      %v166 = vld [vmem:[%s161] sm:$0xf]
      %v167 = vunpack.c.l.bf16 %v166
      %v168 = vld [vmem:[%s1] sm:$0xff]
      %170 = vset.pattern.permute.xlu0 0
      %171 = vperm.xlu0 %170, %v168
      %v172 = vpop.permute.xlu0 %171
      %v174 = vmul.f32 %v167, %v172
      %v175 = vld [vmem:[%s2] sm:$0xff]
      %177 = vset.pattern.permute.xlu0 0
      %178 = vperm.xlu0 %177, %v175
      %v179 = vpop.permute.xlu0 %178
      %v181 = vadd.f32 %v174, %v179
      %v182 = vmax.f32 %v181, 0.0
      %vm183 = vcmask 523264
      %184 = vst.msk [vmem:[%s165] sm:$0xff] %vm183, %v182
      %p185 = scmp.lt.s32.totalorder %s14, 1
      %s186 = scalar_select %p185, %s14, 1
      %s187 = smul.addr %s186, 8
      %s188 = scalar_lea.vmem %s3, %s187
      // Predicated region
      $region33: #{down_forward.5} parent=31 // pred_check
        %p189 = pneg %p100
      $region34: #{down_forward.5} parent=31 // pred_check_branch
        %191 = sbr.rel (%p189) target = $region36
      $region35: #{down_forward.5} parent=31 // pred_region
        _
      $region36: #{down_forward.5} parent=31 // pred_fallthru
        _
    $region32: #{down_forward.5} parent=5 // pred_fallthru
      _
    %p192 = scmp.le.s32.totalorder 2, %s9
    // Predicated region
    $region37: #{down_forward.5} parent=5 // pred_check
      %p193 = pneg %p192
    $region38: #{down_forward.5} parent=5 // pred_check_branch
      %195 = sbr.rel (%p193) target = $region40
    $region39: #{down_forward.5} parent=5 // pred_region
      %s196 = ssub.s32 %s9, 2
      // Predicated region
      $region41: #{down_forward.5} parent=39 // pred_check
        %p197 = pneg %p106
      $region42: #{down_forward.5} parent=39 // pred_check_branch
        %199 = sbr.rel (%p197) target = $region44
      $region43: #{down_forward.5} parent=39 // pred_region
        %p200 = scmp.lt.s32.totalorder %s15, 1
        %s201 = scalar_select %p200, %s15, 1
        %s202 = smul.addr %s201, 8
        %s203 = scalar_lea.vmem %s3, %s202
      $region44: #{down_forward.5} parent=39 // pred_fallthru
        _
    $region40: #{down_forward.5} parent=5 // pred_fallthru
      _
  $region6: #{down_forward.5} parent=0 // loop_footer
    %s13 = sadd.s32 1, %s9
  $region7: #{down_forward.5} parent=0 // loop_footer_branch
    %8 = sbr.rel target = $region3
  $region8: #{down_forward.5} parent=0 // loop_exit
    _

// kernel: down_forward.4
$region0: #{down_forward.4}
  #allocation0 [shape = 'u32[]', space=smem, size = 0x4, offset = 0x4, fixed_abs, tag = 'smem constant byte address 0x4 - core index']
  #allocation1 [shape = 'u32[72,128]{1,0:T(1,128)}', space=vmem, size = 0x9000, scoped, tag = 'internal scratch']
  #allocation2 [shape = 'bf16[8,10,10]{2,1,0:T(8,128)(2,1)}', space=vmem, size = 0x8000, scoped, tag = 'scratch operand']
  #allocation3 [shape = 'bf16[72,64]{1,0:T(8,128)(2,1)}', space=vmem, size = 0x4800, scoped, tag = 'scratch operand']
  %s0 = inlined_call_operand.vmem [shape: bf16[2,8,64], index: 0, kind: input, shape index: {}]
  %s1 = inlined_call_operand.vmem [shape: bf16[8,72], index: 1, kind: input, shape index: {}]
  %s2 = inlined_call_operand.vmem [shape: f32[8,1], index: 2, kind: input, shape index: {}]
  %s3 = inlined_call_operand.vmem [shape: f32[8,1], index: 3, kind: input, shape index: {}]
  %s4 = inlined_call_operand.vmem [shape: bf16[2,8,64], index: 4, kind: output, shape index: {0}]
  %s5 = inlined_call_operand.vmem [shape: f32[2,8,1], index: 5, kind: output, shape index: {1}]
  %s6 = inlined_call_operand.vmem [shape: f32[2,8,1], index: 6, kind: output, shape index: {2}]
  %7 = xla_tuple %s4, %s5, %s6
  %s8 = sld [smem:[#allocation0]]
  $region65: #{down_forward.4} parent=0
    _
  %s10 = ssub.s32 1, %s8
  %s11 = scalar_select 0, %s10, %s8
  loop: start=0, step=1, limit=4
  $region2: #{down_forward.4} parent=0 // loop_pre_header
    _
  $region3: #{down_forward.4} parent=0 // loop_header
    %s13 = sphi 0, %s17
    %p14 = scmp.ge.s32.totalorder %s13, 4
    %s23 = sphi 0, %s25
    %s26 = sphi 0, %s23
    %s27 = sphi 0, %s26
    %s43 = sphi 0, %s27
    %s47 = sphi 0, %s47
    %s49 = sphi 0, %s47
    %s50 = sphi 0, %s49
    %s64 = sphi 0, %s50
    %s68 = sphi 0, %s68
    %s70 = sphi 0, %s68
    %s71 = sphi 0, %s70
    %s85 = sphi 0, %s71
    %s89 = sphi 0, %s89
    %s91 = sphi 0, %s89
    %s92 = sphi 0, %s91
    %s106 = sphi 0, %s92
    %s112 = sphi 0, %s114
    %s115 = sphi 0, %s112
    %s116 = sphi 0, %s115
    %s132 = sphi 0, %s116
    %s138 = sphi 0, %s140
    %s141 = sphi 0, %s138
    %s142 = sphi 0, %s141
    %s158 = sphi 0, %s142
    %s164 = sphi 0, %s166
    %s167 = sphi 0, %s164
    %s168 = sphi 0, %s167
    %s184 = sphi 0, %s168
  $region4: #{down_forward.4} parent=0 // loop_header_branch
    %16 = sbr.rel (%p14) target = $region8
  $region5: #{down_forward.4} parent=0 // loop_body
    %s18 = ssub.s32 %s13, 1
    %s19 = ssub.s32 %s13, 2
    %s20 = sadd.s32 %s13, 1
    %s21 = ssub.s32 %s13, %s20
    %p22 = scmp.eq.s32.totalorder %s21, 0
    %s24 = sadd.s32 %s23, 1
    %s25 = scalar_select %p22, %s23, %s24
    %p28 = pneg %p22
    %p29 = scmp.eq.s32.totalorder %s13, 1
    %p30 = por %p28, %p29
    %p31 = scmp.ne.s32.totalorder %s23, %s26
    %p32 = scmp.eq.s32.totalorder %s13, 0
    %p33 = por %p31, %p32
    %p34 = scmp.ne.s32.totalorder %s23, %s26
    %p35 = scmp.eq.s32.totalorder %s18, 1
    %p36 = por %p34, %p35
    %p37 = scmp.ne.s32.totalorder %s26, %s27
    %p38 = scmp.eq.s32.totalorder %s18, 0
    %p39 = por %p37, %p38
    %p40 = scmp.ne.s32.totalorder %s26, %s27
    %p41 = scmp.eq.s32.totalorder %s19, 1
    %p42 = por %p40, %p41
    %p44 = scmp.ne.s32.totalorder %s27, %s43
    %p45 = scmp.eq.s32.totalorder %s19, 0
    %p46 = por %p44, %p45
    %s48 = sadd.s32 %s47, 1
    %p51 = scmp.eq.s32.totalorder %s13, 1
    %p52 = scmp.ne.s32.totalorder %s47, %s49
    %p53 = scmp.eq.s32.totalorder %s13, 0
    %p54 = por %p52, %p53
    %p55 = scmp.ne.s32.totalorder %s47, %s49
    %p56 = scmp.eq.s32.totalorder %s18, 1
    %p57 = por %p55, %p56
    %p58 = scmp.ne.s32.totalorder %s49, %s50
    %p59 = scmp.eq.s32.totalorder %s18, 0
    %p60 = por %p58, %p59
    %p61 = scmp.ne.s32.totalorder %s49, %s50
    %p62 = scmp.eq.s32.totalorder %s19, 1
    %p63 = por %p61, %p62
    %p65 = scmp.ne.s32.totalorder %s50, %s64
    %p66 = scmp.eq.s32.totalorder %s19, 0
    %p67 = por %p65, %p66
    %s69 = sadd.s32 %s68, 1
    %p72 = scmp.eq.s32.totalorder %s13, 1
    %p73 = scmp.ne.s32.totalorder %s68, %s70
    %p74 = scmp.eq.s32.totalorder %s13, 0
    %p75 = por %p73, %p74
    %p76 = scmp.ne.s32.totalorder %s68, %s70
    %p77 = scmp.eq.s32.totalorder %s18, 1
    %p78 = por %p76, %p77
    %p79 = scmp.ne.s32.totalorder %s70, %s71
    %p80 = scmp.eq.s32.totalorder %s18, 0
    %p81 = por %p79, %p80
    %p82 = scmp.ne.s32.totalorder %s70, %s71
    %p83 = scmp.eq.s32.totalorder %s19, 1
    %p84 = por %p82, %p83
    %p86 = scmp.ne.s32.totalorder %s71, %s85
    %p87 = scmp.eq.s32.totalorder %s19, 0
    %p88 = por %p86, %p87
    %s90 = sadd.s32 %s89, 1
    %p93 = scmp.eq.s32.totalorder %s13, 1
    %p94 = scmp.ne.s32.totalorder %s89, %s91
    %p95 = scmp.eq.s32.totalorder %s13, 0
    %p96 = por %p94, %p95
    %p97 = scmp.ne.s32.totalorder %s89, %s91
    %p98 = scmp.eq.s32.totalorder %s18, 1
    %p99 = por %p97, %p98
    %p100 = scmp.ne.s32.totalorder %s91, %s92
    %p101 = scmp.eq.s32.totalorder %s18, 0
    %p102 = por %p100, %p101
    %p103 = scmp.ne.s32.totalorder %s91, %s92
    %p104 = scmp.eq.s32.totalorder %s19, 1
    %p105 = por %p103, %p104
    %p107 = scmp.ne.s32.totalorder %s92, %s106
    %p108 = scmp.eq.s32.totalorder %s19, 0
    %p109 = por %p107, %p108
    %s110 = ssub.s32 %s13, %s20
    %p111 = scmp.eq.s32.totalorder %s110, 0
    %s113 = sadd.s32 %s112, 1
    %s114 = scalar_select %p111, %s112, %s113
    %p117 = pneg %p111
    %p118 = scmp.eq.s32.totalorder %s13, 1
    %p119 = por %p117, %p118
    %p120 = scmp.ne.s32.totalorder %s112, %s115
    %p121 = scmp.eq.s32.totalorder %s13, 0
    %p122 = por %p120, %p121
    %p123 = scmp.ne.s32.totalorder %s112, %s115
    %p124 = scmp.eq.s32.totalorder %s18, 1
    %p125 = por %p123, %p124
    %p126 = scmp.ne.s32.totalorder %s115, %s116
    %p127 = scmp.eq.s32.totalorder %s18, 0
    %p128 = por %p126, %p127
    %p129 = scmp.ne.s32.totalorder %s115, %s116
    %p130 = scmp.eq.s32.totalorder %s19, 1
    %p131 = por %p129, %p130
    %p133 = scmp.ne.s32.totalorder %s116, %s132
    %p134 = scmp.eq.s32.totalorder %s19, 0
    %p135 = por %p133, %p134
    %s136 = ssub.s32 %s13, %s20
    %p137 = scmp.eq.s32.totalorder %s136, 0
    %s139 = sadd.s32 %s138, 1
    %s140 = scalar_select %p137, %s138, %s139
    %p143 = pneg %p137
    %p144 = scmp.eq.s32.totalorder %s13, 1
    %p145 = por %p143, %p144
    %p146 = scmp.ne.s32.totalorder %s138, %s141
    %p147 = scmp.eq.s32.totalorder %s13, 0
    %p148 = por %p146, %p147
    %p149 = scmp.ne.s32.totalorder %s138, %s141
    %p150 = scmp.eq.s32.totalorder %s18, 1
    %p151 = por %p149, %p150
    %p152 = scmp.ne.s32.totalorder %s141, %s142
    %p153 = scmp.eq.s32.totalorder %s18, 0
    %p154 = por %p152, %p153
    %p155 = scmp.ne.s32.totalorder %s141, %s142
    %p156 = scmp.eq.s32.totalorder %s19, 1
    %p157 = por %p155, %p156
    %p159 = scmp.ne.s32.totalorder %s142, %s158
    %p160 = scmp.eq.s32.totalorder %s19, 0
    %p161 = por %p159, %p160
    %s162 = ssub.s32 %s13, %s20
    %p163 = scmp.eq.s32.totalorder %s162, 0
    %s165 = sadd.s32 %s164, 1
    %s166 = scalar_select %p163, %s164, %s165
    %p169 = pneg %p163
    %p170 = scmp.eq.s32.totalorder %s13, 1
    %p171 = por %p169, %p170
    %p172 = scmp.ne.s32.totalorder %s164, %s167
    %p173 = scmp.eq.s32.totalorder %s13, 0
    %p174 = por %p172, %p173
    %p175 = scmp.ne.s32.totalorder %s164, %s167
    %p176 = scmp.eq.s32.totalorder %s18, 1
    %p177 = por %p175, %p176
    %p178 = scmp.ne.s32.totalorder %s167, %s168
    %p179 = scmp.eq.s32.totalorder %s18, 0
    %p180 = por %p178, %p179
    %p181 = scmp.ne.s32.totalorder %s167, %s168
    %p182 = scmp.eq.s32.totalorder %s19, 1
    %p183 = por %p181, %p182
    %p185 = scmp.ne.s32.totalorder %s168, %s184
    %p186 = scmp.eq.s32.totalorder %s19, 0
    %p187 = por %p185, %p186
    %p188 = scmp.le.s32.totalorder 1, %s13
    %p189 = scmp.lt.s32.totalorder %s13, 3
    %p190 = pnand %p188, %p189
    %p191 = pneg %p190
    // Predicated region
    $region9: #{down_forward.4} parent=5 // pred_check
      _
    $region10: #{down_forward.4} parent=5 // pred_check_branch
      %193 = sbr.rel (%p190) target = $region12
    $region11: #{down_forward.4} parent=5 // pred_region
      %s194 = ssub.s32 %s13, 1
      // Predicated region
      $region13: #{down_forward.4} parent=11 // pred_check
        %p195 = pneg %p60
      $region14: #{down_forward.4} parent=11 // pred_check_branch
        %197 = sbr.rel (%p195) target = $region16
      $region15: #{down_forward.4} parent=11 // pred_region
        _
      $region16: #{down_forward.4} parent=11 // pred_fallthru
        _
      // Predicated region
      $region17: #{down_forward.4} parent=11 // pred_check
        %p198 = pneg %p81
      $region18: #{down_forward.4} parent=11 // pred_check_branch
        %200 = sbr.rel (%p198) target = $region20
      $region19: #{down_forward.4} parent=11 // pred_region
        _
      $region20: #{down_forward.4} parent=11 // pred_fallthru
        _
      // Predicated region
      $region21: #{down_forward.4} parent=11 // pred_check
        %p201 = pneg %p102
      $region22: #{down_forward.4} parent=11 // pred_check_branch
        %203 = sbr.rel (%p201) target = $region24
      $region23: #{down_forward.4} parent=11 // pred_region
        _
      $region24: #{down_forward.4} parent=11 // pred_fallthru
        _
    $region12: #{down_forward.4} parent=5 // pred_fallthru
      _
    %p204 = scmp.lt.s32.totalorder %s13, 2
    // Predicated region
    $region25: #{down_forward.4} parent=5 // pred_check
      %p205 = pneg %p204
    $region26: #{down_forward.4} parent=5 // pred_check_branch
      %207 = sbr.rel (%p205) target = $region28
    $region27: #{down_forward.4} parent=5 // pred_region
      // Predicated region
      $region29: #{down_forward.4} parent=27 // pred_check
        %p208 = pneg %p33
      $region30: #{down_forward.4} parent=27 // pred_check_branch
        %210 = sbr.rel (%p208) target = $region32
      $region31: #{down_forward.4} parent=27 // pred_region
        %p211 = scmp.lt.s32.totalorder %s13, 1
        %s212 = scalar_select %p211, %s13, 1
        %s213 = smul.addr %s212, 4
        %s214 = scalar_lea.vmem %s0, %s213
      $region32: #{down_forward.4} parent=27 // pred_fallthru
        _
    $region28: #{down_forward.4} parent=5 // pred_fallthru
      _
    %p215 = scmp.le.s32.totalorder 1, %s13
    %p216 = scmp.lt.s32.totalorder %s13, 3
    %p217 = pnand %p215, %p216
    %p218 = pneg %p217
    // Predicated region
    $region33: #{down_forward.4} parent=5 // pred_check
      _
    $region34: #{down_forward.4} parent=5 // pred_check_branch
      %220 = sbr.rel (%p217) target = $region36
    $region35: #{down_forward.4} parent=5 // pred_region
      %s221 = ssub.s32 %s13, 1
      %p222 = scmp.lt.s32.totalorder %s18, 1
      %s223 = scalar_select %p222, %s18, 1
      %s224 = smul.addr %s223, 4
      %s225 = scalar_lea.vmem %s0, %s224
      %p226 = pneg %p39
      %p227 = pneg %p36
      %p228 = pneg %p60
      %p229 = pneg %p57
      %p230 = pneg %p81
      %p231 = pneg %p78
      %p232 = pneg %p102
      %p233 = pneg %p99
      %p234 = pneg %p128
      %p235 = pneg %p125
      %p236 = scmp.lt.s32.totalorder %s18, 1
      %s237 = scalar_select %p236, %s18, 1
      %s238 = smul.addr %s237, 4
      %s239 = scalar_lea.vmem %s4, %s238
      %p240 = pneg %p154
      %p241 = pneg %p151
      %p242 = scmp.lt.s32.totalorder %s18, 1
      %s243 = scalar_select %p242, %s18, 1
      %s244 = smul.addr %s243, 8
      %s245 = scalar_lea.vmem %s5, %s244
      %p246 = pneg %p180
      %p247 = pneg %p177
      %p248 = scmp.lt.s32.totalorder %s18, 1
      %s249 = scalar_select %p248, %s18, 1
      %s250 = smul.addr %s249, 8
      %s251 = scalar_lea.vmem %s6, %s250
      %p252 = scmp.lt.s32.totalorder %s18, 1
      %s253 = scalar_select %p252, %s18, 1
      %s254 = smul.addr %s253, 4
      %s255 = scalar_lea.vmem %s0, %s254
      %p256 = scmp.lt.s32.totalorder %s18, 1
      %s257 = scalar_select %p256, %s18, 1
      %s258 = smul.addr %s257, 4
      %s259 = scalar_lea.vmem %s4, %s258
      %p260 = scmp.lt.s32.totalorder %s18, 1
      %s261 = scalar_select %p260, %s18, 1
      %s262 = smul.addr %s261, 8
      %s263 = scalar_lea.vmem %s5, %s262
      %p264 = scmp.lt.s32.totalorder %s18, 1
      %s265 = scalar_select %p264, %s18, 1
      %s266 = smul.addr %s265, 8
      %s267 = scalar_lea.vmem %s6, %s266
      %v269 = vld [vmem:[%s255] sm:$0xf]
      %v270 = vunpack.c.l.bf16 %v269
      %v271 = vld [vmem:[%s2] sm:$0xff]
      %273 = vset.pattern.permute.xlu0 0
      %274 = vperm.xlu0 %273, %v271
      %v275 = vpop.permute.xlu0 %274
      %v277 = vmul.f32 %v270, %v275
      %v278 = vld [vmem:[%s3] sm:$0xff]
      %280 = vset.pattern.permute.xlu0 0
      %281 = vperm.xlu0 %280, %v278
      %v282 = vpop.permute.xlu0 %281
      %v284 = vadd.f32 %v277, %v282
      %v285 = vmax.f32 %v284, 0.0
      %vm286 = vcmask 76800
      %287 = vst.msk [vmem:[#allocation2] sm:$0xf] %vm286, 0
      %vm288 = vcmask 73728
      %289 = vst.msk [vmem:[#allocation2 + $0x4] sm:$0x1] %vm288, 0
      %290 = vst.msk [vmem:[#allocation2 + $0x8] sm:$0xf] %vm286, 0
      %291 = vst.msk [vmem:[#allocation2 + $0xc] sm:$0x1] %vm288, 0
      %292 = vst.msk [vmem:[#allocation2 + $0x10] sm:$0xf] %vm286, 0
      %293 = vst.msk [vmem:[#allocation2 + $0x14] sm:$0x1] %vm288, 0
      %294 = vst.msk [vmem:[#allocation2 + $0x18] sm:$0xf] %vm286, 0
      %295 = vst.msk [vmem:[#allocation2 + $0x1c] sm:$0x1] %vm288, 0
      %296 = vst.msk [vmem:[#allocation2 + $0x20] sm:$0xf] %vm286, 0
      %297 = vst.msk [vmem:[#allocation2 + $0x24] sm:$0x1] %vm288, 0
      %298 = vst.msk [vmem:[#allocation2 + $0x28] sm:$0xf] %vm286, 0
      %299 = vst.msk [vmem:[#allocation2 + $0x2c] sm:$0x1] %vm288, 0
      %300 = vst.msk [vmem:[#allocation2 + $0x30] sm:$0xf] %vm286, 0
      %301 = vst.msk [vmem:[#allocation2 + $0x34] sm:$0x1] %vm288, 0
      %302 = vst.msk [vmem:[#allocation2 + $0x38] sm:$0xf] %vm286, 0
      %303 = vst.msk [vmem:[#allocation2 + $0x3c] sm:$0x1] %vm288, 0
      %305 = vrot.lane.b32.xlu0 %v285, 120
      %v306 = vpop.permute.xlu0 %305
      %308 = vrot.lane.b32.xlu0 %v285, 112
      %v309 = vpop.permute.xlu0 %308
      %311 = vrot.lane.b32.xlu0 %v285, 104
      %v312 = vpop.permute.xlu0 %311
      %314 = vrot.lane.b32.xlu0 %v285, 96
      %v315 = vpop.permute.xlu0 %314
      %317 = vrot.lane.b32.xlu0 %v285, 88
      %v318 = vpop.permute.xlu0 %317
      %320 = vrot.lane.b32.xlu0 %v285, 80
      %v321 = vpop.permute.xlu0 %320
      %323 = vrot.lane.b32.xlu0 %v285, 72
      %v324 = vpop.permute.xlu0 %323
      %v326 = vrot.slane %v309, 4
      %vm327 = vcmask 1047556
      %v328 = vsel %vm327, %v326, %v285
      %v329 = vrot.slane %v285, 4
      %v330 = vsel %vm327, %v309, %v329
      %v332 = vunpack.c.l.s4 1983009808
      %v333 = vunpack.c.0.s8 %v332
      %v334 = vperm.slane %v328, %v333
      %v336 = vunpack.c.l.s4 1983009808
      %v337 = vunpack.c.0.s8 %v336
      %v338 = vperm.slane %v330, %v337
      %v339 = vrot.slane %v312, 4
      %v340 = vsel %vm327, %v339, %v306
      %v341 = vrot.slane %v306, 4
      %v342 = vsel %vm327, %v312, %v341
      %v344 = vunpack.c.l.s4 1983009808
      %v345 = vunpack.c.0.s8 %v344
      %v346 = vperm.slane %v340, %v345
      %v348 = vunpack.c.l.s4 1983009808
      %v349 = vunpack.c.0.s8 %v348
      %v350 = vperm.slane %v342, %v349
      %v351 = vrot.slane %v321, 4
      %v352 = vsel %vm327, %v351, %v315
      %v353 = vrot.slane %v315, 4
      %v354 = vsel %vm327, %v321, %v353
      %v356 = vunpack.c.l.s4 1983009808
      %v357 = vunpack.c.0.s8 %v356
      %v358 = vperm.slane %v352, %v357
      %v360 = vunpack.c.l.s4 1983009808
      %v361 = vunpack.c.0.s8 %v360
      %v362 = vperm.slane %v354, %v361
      %v363 = vrot.slane %v324, 4
      %v364 = vsel %vm327, %v363, %v318
      %v365 = vrot.slane %v318, 4
      %v366 = vsel %vm327, %v324, %v365
      %v368 = vunpack.c.l.s4 1983009808
      %v369 = vunpack.c.0.s8 %v368
      %v370 = vperm.slane %v364, %v369
      %v372 = vunpack.c.l.s4 1983009808
      %v373 = vunpack.c.0.s8 %v372
      %v374 = vperm.slane %v366, %v373
      %v375 = vrot.slane %v346, 4
      %v376 = vsel %vm327, %v375, %v334
      %v377 = vrot.slane %v334, 4
      %v378 = vsel %vm327, %v346, %v377
      %v380 = vunpack.c.l.s4 1934713408
      %v381 = vunpack.c.0.s8 %v380
      %v382 = vperm.slane %v376, %v381
      %v384 = vunpack.c.l.s4 1934713408
      %v385 = vunpack.c.0.s8 %v384
      %v386 = vperm.slane %v378, %v385
      %v387 = vrot.slane %v350, 4
      %v388 = vsel %vm327, %v387, %v338
      %v389 = vrot.slane %v338, 4
      %v390 = vsel %vm327, %v350, %v389
      %v392 = vunpack.c.l.s4 1934713408
      %v393 = vunpack.c.0.s8 %v392
      %v394 = vperm.slane %v388, %v393
      %v396 = vunpack.c.l.s4 1934713408
      %v397 = vunpack.c.0.s8 %v396
      %v398 = vperm.slane %v390, %v397
      %v399 = vrot.slane %v370, 4
      %v400 = vsel %vm327, %v399, %v358
      %v401 = vrot.slane %v358, 4
      %v402 = vsel %vm327, %v370, %v401
      %v404 = vunpack.c.l.s4 1934713408
      %v405 = vunpack.c.0.s8 %v404
      %v406 = vperm.slane %v400, %v405
      %v408 = vunpack.c.l.s4 1934713408
      %v409 = vunpack.c.0.s8 %v408
      %v410 = vperm.slane %v402, %v409
      %v411 = vrot.slane %v374, 4
      %v412 = vsel %vm327, %v411, %v362
      %v413 = vrot.slane %v362, 4
      %v414 = vsel %vm327, %v374, %v413
      %v416 = vunpack.c.l.s4 1934713408
      %v417 = vunpack.c.0.s8 %v416
      %v418 = vperm.slane %v412, %v417
      %v420 = vunpack.c.l.s4 1934713408
      %v421 = vunpack.c.0.s8 %v420
      %v422 = vperm.slane %v414, %v421
      %v423 = vrot.slane %v406, 4
      %v424 = vsel %vm327, %v423, %v382
      %v425 = vrot.slane %v382, 4
      %v426 = vsel %vm327, %v406, %v425
      %v427 = vrot.slane %v410, 4
      %v428 = vsel %vm327, %v427, %v386
      %v429 = vrot.slane %v386, 4
      %v430 = vsel %vm327, %v410, %v429
      %v431 = vrot.slane %v418, 4
      %v432 = vsel %vm327, %v431, %v394
      %v433 = vrot.slane %v394, 4
      %v434 = vsel %vm327, %v418, %v433
      %v435 = vrot.slane %v422, 4
      %v436 = vsel %vm327, %v435, %v398
      %v437 = vrot.slane %v398, 4
      %v438 = vsel %vm327, %v422, %v437
      %v439 = vpack.c.bf16 %v424, %v424
      %v440 = vpack.c.bf16 %v426, %v426
      %v441 = vpack.c.bf16 %v428, %v428
      %v442 = vpack.c.bf16 %v430, %v430
      %v443 = vpack.c.bf16 %v432, %v432
      %v444 = vpack.c.bf16 %v434, %v434
      %v445 = vpack.c.bf16 %v436, %v436
      %v446 = vpack.c.bf16 %v438, %v438
      %v448 = vshrl.u32 %v439, 16
      %v450 = vrot.slane %v448, 7
      %v451 = vshll.u32 %v439, 16
      %v453 = vor.u32 %v450, %v451
      %v454 = vrot.slane %v450, 4
      %v456 = vshrl.u32 %v440, 16
      %v458 = vrot.slane %v456, 7
      %v459 = vshll.u32 %v440, 16
      %v461 = vor.u32 %v458, %v459
      %v462 = vrot.slane %v458, 4
      %v464 = vshrl.u32 %v441, 16
      %v466 = vrot.slane %v464, 7
      %v467 = vshll.u32 %v441, 16
      %v469 = vor.u32 %v466, %v467
      %v470 = vrot.slane %v466, 4
      %v472 = vshrl.u32 %v442, 16
      %v474 = vrot.slane %v472, 7
      %v475 = vshll.u32 %v442, 16
      %v477 = vor.u32 %v474, %v475
      %v478 = vrot.slane %v474, 4
      %v480 = vshrl.u32 %v443, 16
      %v482 = vrot.slane %v480, 7
      %v483 = vshll.u32 %v443, 16
      %v485 = vor.u32 %v482, %v483
      %v486 = vrot.slane %v482, 4
      %v488 = vshrl.u32 %v444, 16
      %v490 = vrot.slane %v488, 7
      %v491 = vshll.u32 %v444, 16
      %v493 = vor.u32 %v490, %v491
      %v494 = vrot.slane %v490, 4
      %v496 = vshrl.u32 %v445, 16
      %v498 = vrot.slane %v496, 7
      %v499 = vshll.u32 %v445, 16
      %v501 = vor.u32 %v498, %v499
      %v502 = vrot.slane %v498, 4
      %v504 = vshrl.u32 %v446, 16
      %v506 = vrot.slane %v504, 7
      %v507 = vshll.u32 %v446, 16
      %v509 = vor.u32 %v506, %v507
      %v510 = vrot.slane %v506, 4
      %511 = vrot.lane.b32.xlu0 %v453, 1
      %v512 = vpop.permute.xlu0 %511
      %513 = vrot.lane.b32.xlu0 %v454, 1
      %v514 = vpop.permute.xlu0 %513
      %515 = vrot.lane.b32.xlu0 %v461, 1
      %v516 = vpop.permute.xlu0 %515
      %517 = vrot.lane.b32.xlu0 %v462, 1
      %v518 = vpop.permute.xlu0 %517
      %519 = vrot.lane.b32.xlu0 %v469, 1
      %v520 = vpop.permute.xlu0 %519
      %521 = vrot.lane.b32.xlu0 %v470, 1
      %v522 = vpop.permute.xlu0 %521
      %523 = vrot.lane.b32.xlu0 %v477, 1
      %v524 = vpop.permute.xlu0 %523
      %525 = vrot.lane.b32.xlu0 %v478, 1
      %v526 = vpop.permute.xlu0 %525
      %527 = vrot.lane.b32.xlu0 %v485, 1
      %v528 = vpop.permute.xlu0 %527
      %529 = vrot.lane.b32.xlu0 %v486, 1
      %v530 = vpop.permute.xlu0 %529
      %531 = vrot.lane.b32.xlu0 %v493, 1
      %v532 = vpop.permute.xlu0 %531
      %533 = vrot.lane.b32.xlu0 %v494, 1
      %v534 = vpop.permute.xlu0 %533
      %535 = vrot.lane.b32.xlu0 %v501, 1
      %v536 = vpop.permute.xlu0 %535
      %537 = vrot.lane.b32.xlu0 %v502, 1
      %v538 = vpop.permute.xlu0 %537
      %539 = vrot.lane.b32.xlu0 %v509, 1
      %v540 = vpop.permute.xlu0 %539
      %541 = vrot.lane.b32.xlu0 %v510, 1
      %v542 = vpop.permute.xlu0 %541
      %vm559 = vcmask 68616
      %vm560 = vsmask.f32 7938
      %vm561 = vmand %vm559, %vm560
      %v562 = vld [vmem:[#allocation2] sm:$0xf]
      %v563 = vsel %vm561, %v512, %v562
      %564 = vst [vmem:[#allocation2] sm:$0xf] %v563
      %vm565 = vcmask 65544
      %vm566 = vsmask.f32 256
      %vm567 = vmand %vm565, %vm566
      %v568 = vld [vmem:[#allocation2 + $0x4] sm:$0x1]
      %v569 = vsel %vm567, %v514, %v568
      %570 = vst [vmem:[#allocation2 + $0x4] sm:$0x1] %v569
      %v571 = vld [vmem:[#allocation2 + $0x8] sm:$0xf]
      %v572 = vsel %vm561, %v516, %v571
      %573 = vst [vmem:[#allocation2 + $0x8] sm:$0xf] %v572
      %v574 = vld [vmem:[#allocation2 + $0xc] sm:$0x1]
      %v575 = vsel %vm567, %v518, %v574
      %576 = vst [vmem:[#allocation2 + $0xc] sm:$0x1] %v575
      %v577 = vld [vmem:[#allocation2 + $0x10] sm:$0xf]
      %v578 = vsel %vm561, %v520, %v577
      %579 = vst [vmem:[#allocation2 + $0x10] sm:$0xf] %v578
      %v580 = vld [vmem:[#allocation2 + $0x14] sm:$0x1]
      %v581 = vsel %vm567, %v522, %v580
      %582 = vst [vmem:[#allocation2 + $0x14] sm:$0x1] %v581
      %v583 = vld [vmem:[#allocation2 + $0x18] sm:$0xf]
      %v584 = vsel %vm561, %v524, %v583
      %585 = vst [vmem:[#allocation2 + $0x18] sm:$0xf] %v584
      %v586 = vld [vmem:[#allocation2 + $0x1c] sm:$0x1]
      %v587 = vsel %vm567, %v526, %v586
      %588 = vst [vmem:[#allocation2 + $0x1c] sm:$0x1] %v587
      %v589 = vld [vmem:[#allocation2 + $0x20] sm:$0xf]
      %v590 = vsel %vm561, %v528, %v589
      %591 = vst [vmem:[#allocation2 + $0x20] sm:$0xf] %v590
      %v592 = vld [vmem:[#allocation2 + $0x24] sm:$0x1]
      %v593 = vsel %vm567, %v530, %v592
      %594 = vst [vmem:[#allocation2 + $0x24] sm:$0x1] %v593
      %v595 = vld [vmem:[#allocation2 + $0x28] sm:$0xf]
      %v596 = vsel %vm561, %v532, %v595
      %597 = vst [vmem:[#allocation2 + $0x28] sm:$0xf] %v596
      %v598 = vld [vmem:[#allocation2 + $0x2c] sm:$0x1]
      %v599 = vsel %vm567, %v534, %v598
      %600 = vst [vmem:[#allocation2 + $0x2c] sm:$0x1] %v599
      %v601 = vld [vmem:[#allocation2 + $0x30] sm:$0xf]
      %v602 = vsel %vm561, %v536, %v601
      %603 = vst [vmem:[#allocation2 + $0x30] sm:$0xf] %v602
      %v604 = vld [vmem:[#allocation2 + $0x34] sm:$0x1]
      %v605 = vsel %vm567, %v538, %v604
      %606 = vst [vmem:[#allocation2 + $0x34] sm:$0x1] %v605
      %v607 = vld [vmem:[#allocation2 + $0x38] sm:$0xf]
      %v608 = vsel %vm561, %v540, %v607
      %609 = vst [vmem:[#allocation2 + $0x38] sm:$0xf] %v608
      %v610 = vld [vmem:[#allocation2 + $0x3c] sm:$0x1]
      %v611 = vsel %vm567, %v542, %v610
      %612 = vst [vmem:[#allocation2 + $0x3c] sm:$0x1] %v611
      %v613 = vld [vmem:[#allocation2] sm:$0xf]
      %v614 = vld [vmem:[#allocation2 + $0x8] sm:$0xf]
      %v615 = vld [vmem:[#allocation2 + $0x10] sm:$0xf]
      %v616 = vld [vmem:[#allocation2 + $0x18] sm:$0xf]
      %v617 = vld [vmem:[#allocation2 + $0x20] sm:$0xf]
      %v618 = vld [vmem:[#allocation2 + $0x28] sm:$0xf]
      %v619 = vld [vmem:[#allocation2 + $0x30] sm:$0xf]
      %v620 = vld [vmem:[#allocation2 + $0x38] sm:$0xf]
      %v621 = vrot.slane %v617, 4
      %vm622 = vcmask 1047556
      %v623 = vsel %vm622, %v621, %v613
      %v625 = vunpack.c.l.s4 1983009808
      %v626 = vunpack.c.0.s8 %v625
      %v627 = vperm.slane %v623, %v626
      %v628 = vrot.slane %v619, 4
      %v629 = vsel %vm622, %v628, %v615
      %v631 = vunpack.c.l.s4 1983009808
      %v632 = vunpack.c.0.s8 %v631
      %v633 = vperm.slane %v629, %v632
      %v634 = vrot.slane %v633, 4
      %v635 = vsel %vm622, %v634, %v627
      %v636 = vrot.slane %v627, 4
      %v637 = vsel %vm622, %v633, %v636
      %v639 = vunpack.c.l.s4 1934713408
      %v640 = vunpack.c.0.s8 %v639
      %v641 = vperm.slane %v635, %v640
      %v643 = vunpack.c.l.s4 1934713408
      %v644 = vunpack.c.0.s8 %v643
      %v645 = vperm.slane %v637, %v644
      %v646 = vrot.slane %v641, 4
      %v647 = vsel %vm622, 0, %v646
      %v648 = vrot.slane %v645, 4
      %v649 = vsel %vm622, 0, %v648
      %v650 = vrot.slane %v618, 4
      %v651 = vsel %vm622, %v650, %v614
      %v653 = vunpack.c.l.s4 1983009808
      %v654 = vunpack.c.0.s8 %v653
      %v655 = vperm.slane %v651, %v654
      %v656 = vrot.slane %v620, 4
      %v657 = vsel %vm622, %v656, %v616
      %v659 = vunpack.c.l.s4 1983009808
      %v660 = vunpack.c.0.s8 %v659
      %v661 = vperm.slane %v657, %v660
      %v662 = vrot.slane %v661, 4
      %v663 = vsel %vm622, %v662, %v655
      %v664 = vrot.slane %v655, 4
      %v665 = vsel %vm622, %v661, %v664
      %v667 = vunpack.c.l.s4 1934713408
      %v668 = vunpack.c.0.s8 %v667
      %v669 = vperm.slane %v663, %v668
      %v671 = vunpack.c.l.s4 1934713408
      %v672 = vunpack.c.0.s8 %v671
      %v673 = vperm.slane %v665, %v672
      %v674 = vrot.slane %v669, 4
      %v675 = vsel %vm622, 0, %v674
      %v676 = vrot.slane %v673, 4
      %v677 = vsel %vm622, 0, %v676
      %v680 = vpack.i.b16 %v669, %v641
      %v681 = vshrl.u32 %v641, 16
      %v682 = vshrl.u32 %v669, 16
      %v683 = vpack.i.b16 %v682, %v681
      %v686 = vpack.i.b16 %v675, %v647
      %v687 = vshrl.u32 %v647, 16
      %v688 = vshrl.u32 %v675, 16
      %v689 = vpack.i.b16 %v688, %v687
      %v692 = vpack.i.b16 %v673, %v645
      %v693 = vshrl.u32 %v645, 16
      %v694 = vshrl.u32 %v673, 16
      %v695 = vpack.i.b16 %v694, %v693
      %v698 = vpack.i.b16 %v677, %v649
      %v699 = vshrl.u32 %v649, 16
      %v700 = vshrl.u32 %v677, 16
      %v701 = vpack.i.b16 %v700, %v699
      %v702 = vunpack.c.l.b16 %v683
      %v703 = vpack.c.b16 %v702, %v702
      %704 = vrot.lane.b32.xlu0 %v703, 8
      %v705 = vpop.permute.xlu0 %704
      %v706 = vunpack.c.l.b16 %v686
      %v707 = vpack.c.b16 %v706, %v706
      %708 = vrot.lane.b32.xlu0 %v707, 16
      %v709 = vpop.permute.xlu0 %708
      %v710 = vunpack.c.l.b16 %v689
      %v711 = vpack.c.b16 %v710, %v710
      %712 = vrot.lane.b32.xlu0 %v711, 24
      %v713 = vpop.permute.xlu0 %712
      %v714 = vunpack.c.l.b16 %v692
      %v715 = vpack.c.b16 %v714, %v714
      %716 = vrot.lane.b32.xlu0 %v715, 32
      %v717 = vpop.permute.xlu0 %716
      %v718 = vunpack.c.l.b16 %v695
      %v719 = vpack.c.b16 %v718, %v718
      %720 = vrot.lane.b32.xlu0 %v719, 40
      %v721 = vpop.permute.xlu0 %720
      %v722 = vunpack.c.l.b16 %v698
      %v723 = vpack.c.b16 %v722, %v722
      %724 = vrot.lane.b32.xlu0 %v723, 48
      %v725 = vpop.permute.xlu0 %724
      %v726 = vunpack.c.l.b16 %v701
      %v727 = vpack.c.b16 %v726, %v726
      %728 = vrot.lane.b32.xlu0 %v727, 56
      %v729 = vpop.permute.xlu0 %728
      %vm730 = vcmask 64512
      %v733 = vsel %vm730, %v680, %v705
      %vm734 = vcmask 130048
      %v736 = vsel %vm734, %v733, %v709
      %vm737 = vcmask 195584
      %v739 = vsel %vm737, %v736, %v713
      %vm740 = vcmask 261120
      %v742 = vsel %vm740, %v739, %v717
      %vm743 = vcmask 326656
      %v745 = vsel %vm743, %v742, %v721
      %vm746 = vcmask 392192
      %v748 = vsel %vm746, %v745, %v725
      %vm749 = vcmask 457728
      %v751 = vsel %vm749, %v748, %v729
      %vm753 = vcmask 519168
      %754 = vst.msk [vmem:[#allocation3] sm:$0xf] %vm753, %v751
      %v755 = vld [vmem:[#allocation2] sm:$0xf]
      %v756 = vld [vmem:[#allocation2 + $0x8] sm:$0xf]
      %v757 = vld [vmem:[#allocation2 + $0x10] sm:$0xf]
      %v758 = vld [vmem:[#allocation2 + $0x18] sm:$0xf]
      %v759 = vld [vmem:[#allocation2 + $0x20] sm:$0xf]
      %v760 = vld [vmem:[#allocation2 + $0x28] sm:$0xf]
      %v761 = vld [vmem:[#allocation2 + $0x30] sm:$0xf]
      %v762 = vld [vmem:[#allocation2 + $0x38] sm:$0xf]
      %771 = vrot.lane.b32.xlu0 %v755, 127
      %v772 = vpop.permute.xlu0 %771
      %773 = vrot.lane.b32.xlu0 %v756, 127
      %v774 = vpop.permute.xlu0 %773
      %775 = vrot.lane.b32.xlu0 %v757, 127
      %v776 = vpop.permute.xlu0 %775
      %777 = vrot.lane.b32.xlu0 %v758, 127
      %v778 = vpop.permute.xlu0 %777
      %779 = vrot.lane.b32.xlu0 %v759, 127
      %v780 = vpop.permute.xlu0 %779
      %781 = vrot.lane.b32.xlu0 %v760, 127
      %v782 = vpop.permute.xlu0 %781
      %783 = vrot.lane.b32.xlu0 %v761, 127
      %v784 = vpop.permute.xlu0 %783
      %785 = vrot.lane.b32.xlu0 %v762, 127
      %v786 = vpop.permute.xlu0 %785
      %v795 = vrot.slane %v780, 4
      %v796 = vsel %vm622, %v795, %v772
      %v798 = vunpack.c.l.s4 1983009808
      %v799 = vunpack.c.0.s8 %v798
      %v800 = vperm.slane %v796, %v799
      %v801 = vrot.slane %v784, 4
      %v802 = vsel %vm622, %v801, %v776
      %v804 = vunpack.c.l.s4 1983009808
      %v805 = vunpack.c.0.s8 %v804
      %v806 = vperm.slane %v802, %v805
      %v807 = vrot.slane %v806, 4
      %v808 = vsel %vm622, %v807, %v800
      %v809 = vrot.slane %v800, 4
      %v810 = vsel %vm622, %v806, %v809
      %v812 = vunpack.c.l.s4 1934713408
      %v813 = vunpack.c.0.s8 %v812
      %v814 = vperm.slane %v808, %v813
      %v816 = vunpack.c.l.s4 1934713408
      %v817 = vunpack.c.0.s8 %v816
      %v818 = vperm.slane %v810, %v817
      %v819 = vrot.slane %v814, 4
      %v820 = vsel %vm622, 0, %v819
      %v821 = vrot.slane %v818, 4
      %v822 = vsel %vm622, 0, %v821
      %v823 = vrot.slane %v782, 4
      %v824 = vsel %vm622, %v823, %v774
      %v826 = vunpack.c.l.s4 1983009808
      %v827 = vunpack.c.0.s8 %v826
      %v828 = vperm.slane %v824, %v827
      %v829 = vrot.slane %v786, 4
      %v830 = vsel %vm622, %v829, %v778
      %v832 = vunpack.c.l.s4 1983009808
      %v833 = vunpack.c.0.s8 %v832
      %v834 = vperm.slane %v830, %v833
      %v835 = vrot.slane %v834, 4
      %v836 = vsel %vm622, %v835, %v828
      %v837 = vrot.slane %v828, 4
      %v838 = vsel %vm622, %v834, %v837
      %v840 = vunpack.c.l.s4 1934713408
      %v841 = vunpack.c.0.s8 %v840
      %v842 = vperm.slane %v836, %v841
      %v844 = vunpack.c.l.s4 1934713408
      %v845 = vunpack.c.0.s8 %v844
      %v846 = vperm.slane %v838, %v845
      %v847 = vrot.slane %v842, 4
      %v848 = vsel %vm622, 0, %v847
      %v849 = vrot.slane %v846, 4
      %v850 = vsel %vm622, 0, %v849
      %v853 = vpack.i.b16 %v842, %v814
      %v854 = vshrl.u32 %v814, 16
      %v855 = vshrl.u32 %v842, 16
      %v856 = vpack.i.b16 %v855, %v854
      %v859 = vpack.i.b16 %v848, %v820
      %v860 = vshrl.u32 %v820, 16
      %v861 = vshrl.u32 %v848, 16
      %v862 = vpack.i.b16 %v861, %v860
      %v865 = vpack.i.b16 %v846, %v818
      %v866 = vshrl.u32 %v818, 16
      %v867 = vshrl.u32 %v846, 16
      %v868 = vpack.i.b16 %v867, %v866
      %v871 = vpack.i.b16 %v850, %v822
      %v872 = vshrl.u32 %v822, 16
      %v873 = vshrl.u32 %v850, 16
      %v874 = vpack.i.b16 %v873, %v872
      %v875 = vunpack.c.l.b16 %v856
      %v876 = vpack.c.b16 %v875, %v875
      %877 = vrot.lane.b32.xlu0 %v876, 8
      %v878 = vpop.permute.xlu0 %877
      %v879 = vunpack.c.l.b16 %v859
      %v880 = vpack.c.b16 %v879, %v879
      %881 = vrot.lane.b32.xlu0 %v880, 16
      %v882 = vpop.permute.xlu0 %881
      %v883 = vunpack.c.l.b16 %v862
      %v884 = vpack.c.b16 %v883, %v883
      %885 = vrot.lane.b32.xlu0 %v884, 24
      %v886 = vpop.permute.xlu0 %885
      %v887 = vunpack.c.l.b16 %v865
      %v888 = vpack.c.b16 %v887, %v887
      %889 = vrot.lane.b32.xlu0 %v888, 32
      %v890 = vpop.permute.xlu0 %889
      %v891 = vunpack.c.l.b16 %v868
      %v892 = vpack.c.b16 %v891, %v891
      %893 = vrot.lane.b32.xlu0 %v892, 40
      %v894 = vpop.permute.xlu0 %893
      %v895 = vunpack.c.l.b16 %v871
      %v896 = vpack.c.b16 %v895, %v895
      %897 = vrot.lane.b32.xlu0 %v896, 48
      %v898 = vpop.permute.xlu0 %897
      %v899 = vunpack.c.l.b16 %v874
      %v900 = vpack.c.b16 %v899, %v899
      %901 = vrot.lane.b32.xlu0 %v900, 56
      %v902 = vpop.permute.xlu0 %901
      %v905 = vsel %vm730, %v853, %v878
      %v907 = vsel %vm734, %v905, %v882
      %v909 = vsel %vm737, %v907, %v886
      %v911 = vsel %vm740, %v909, %v890
      %v913 = vsel %vm743, %v911, %v894
      %v915 = vsel %vm746, %v913, %v898
      %v917 = vsel %vm749, %v915, %v902
      %919 = vst.msk [vmem:[#allocation3 + $0x4] sm:$0xf] %vm753, %v917
      %v920 = vld [vmem:[#allocation2] sm:$0xf]
      %v921 = vld [vmem:[#allocation2 + $0x8] sm:$0xf]
      %v922 = vld [vmem:[#allocation2 + $0x10] sm:$0xf]
      %v923 = vld [vmem:[#allocation2 + $0x18] sm:$0xf]
      %v924 = vld [vmem:[#allocation2 + $0x20] sm:$0xf]
      %v925 = vld [vmem:[#allocation2 + $0x28] sm:$0xf]
      %v926 = vld [vmem:[#allocation2 + $0x30] sm:$0xf]
      %v927 = vld [vmem:[#allocation2 + $0x38] sm:$0xf]
      %936 = vrot.lane.b32.xlu0 %v920, 126
      %v937 = vpop.permute.xlu0 %936
      %938 = vrot.lane.b32.xlu0 %v921, 126
      %v939 = vpop.permute.xlu0 %938
      %940 = vrot.lane.b32.xlu0 %v922, 126
      %v941 = vpop.permute.xlu0 %940
      %942 = vrot.lane.b32.xlu0 %v923, 126
      %v943 = vpop.permute.xlu0 %942
      %944 = vrot.lane.b32.xlu0 %v924, 126
      %v945 = vpop.permute.xlu0 %944
      %946 = vrot.lane.b32.xlu0 %v925, 126
      %v947 = vpop.permute.xlu0 %946
      %948 = vrot.lane.b32.xlu0 %v926, 126
      %v949 = vpop.permute.xlu0 %948
      %950 = vrot.lane.b32.xlu0 %v927, 126
      %v951 = vpop.permute.xlu0 %950
      %v960 = vrot.slane %v945, 4
      %v961 = vsel %vm622, %v960, %v937
      %v963 = vunpack.c.l.s4 1983009808
      %v964 = vunpack.c.0.s8 %v963
      %v965 = vperm.slane %v961, %v964
      %v966 = vrot.slane %v949, 4
      %v967 = vsel %vm622, %v966, %v941
      %v969 = vunpack.c.l.s4 1983009808
      %v970 = vunpack.c.0.s8 %v969
      %v971 = vperm.slane %v967, %v970
      %v972 = vrot.slane %v971, 4
      %v973 = vsel %vm622, %v972, %v965
      %v974 = vrot.slane %v965, 4
      %v975 = vsel %vm622, %v971, %v974
      %v977 = vunpack.c.l.s4 1934713408
      %v978 = vunpack.c.0.s8 %v977
      %v979 = vperm.slane %v973, %v978
      %v981 = vunpack.c.l.s4 1934713408
      %v982 = vunpack.c.0.s8 %v981
      %v983 = vperm.slane %v975, %v982
      %v984 = vrot.slane %v979, 4
      %v985 = vsel %vm622, 0, %v984
      %v986 = vrot.slane %v983, 4
      %v987 = vsel %vm622, 0, %v986
      %v988 = vrot.slane %v947, 4
      %v989 = vsel %vm622, %v988, %v939
      %v991 = vunpack.c.l.s4 1983009808
      %v992 = vunpack.c.0.s8 %v991
      %v993 = vperm.slane %v989, %v992
      %v994 = vrot.slane %v951, 4
      %v995 = vsel %vm622, %v994, %v943
      %v997 = vunpack.c.l.s4 1983009808
      %v998 = vunpack.c.0.s8 %v997
      %v999 = vperm.slane %v995, %v998
      %v1000 = vrot.slane %v999, 4
      %v1001 = vsel %vm622, %v1000, %v993
      %v1002 = vrot.slane %v993, 4
      %v1003 = vsel %vm622, %v999, %v1002
      %v1005 = vunpack.c.l.s4 1934713408
      %v1006 = vunpack.c.0.s8 %v1005
      %v1007 = vperm.slane %v1001, %v1006
      %v1009 = vunpack.c.l.s4 1934713408
      %v1010 = vunpack.c.0.s8 %v1009
      %v1011 = vperm.slane %v1003, %v1010
      %v1012 = vrot.slane %v1007, 4
      %v1013 = vsel %vm622, 0, %v1012
      %v1014 = vrot.slane %v1011, 4
      %v1015 = vsel %vm622, 0, %v1014
      %v1018 = vpack.i.b16 %v1007, %v979
      %v1019 = vshrl.u32 %v979, 16
      %v1020 = vshrl.u32 %v1007, 16
      %v1021 = vpack.i.b16 %v1020, %v1019
      %v1024 = vpack.i.b16 %v1013, %v985
      %v1025 = vshrl.u32 %v985, 16
      %v1026 = vshrl.u32 %v1013, 16
      %v1027 = vpack.i.b16 %v1026, %v1025
      %v1030 = vpack.i.b16 %v1011, %v983
      %v1031 = vshrl.u32 %v983, 16
      %v1032 = vshrl.u32 %v1011, 16
      %v1033 = vpack.i.b16 %v1032, %v1031
      %v1036 = vpack.i.b16 %v1015, %v987
      %v1037 = vshrl.u32 %v987, 16
      %v1038 = vshrl.u32 %v1015, 16
      %v1039 = vpack.i.b16 %v1038, %v1037
      %v1040 = vunpack.c.l.b16 %v1021
      %v1041 = vpack.c.b16 %v1040, %v1040
      %1042 = vrot.lane.b32.xlu0 %v1041, 8
      %v1043 = vpop.permute.xlu0 %1042
      %v1044 = vunpack.c.l.b16 %v1024
      %v1045 = vpack.c.b16 %v1044, %v1044
      %1046 = vrot.lane.b32.xlu0 %v1045, 16
      %v1047 = vpop.permute.xlu0 %1046
      %v1048 = vunpack.c.l.b16 %v1027
      %v1049 = vpack.c.b16 %v1048, %v1048
      %1050 = vrot.lane.b32.xlu0 %v1049, 24
      %v1051 = vpop.permute.xlu0 %1050
      %v1052 = vunpack.c.l.b16 %v1030
      %v1053 = vpack.c.b16 %v1052, %v1052
      %1054 = vrot.lane.b32.xlu0 %v1053, 32
      %v1055 = vpop.permute.xlu0 %1054
      %v1056 = vunpack.c.l.b16 %v1033
      %v1057 = vpack.c.b16 %v1056, %v1056
      %1058 = vrot.lane.b32.xlu0 %v1057, 40
      %v1059 = vpop.permute.xlu0 %1058
      %v1060 = vunpack.c.l.b16 %v1036
      %v1061 = vpack.c.b16 %v1060, %v1060
      %1062 = vrot.lane.b32.xlu0 %v1061, 48
      %v1063 = vpop.permute.xlu0 %1062
      %v1064 = vunpack.c.l.b16 %v1039
      %v1065 = vpack.c.b16 %v1064, %v1064
      %1066 = vrot.lane.b32.xlu0 %v1065, 56
      %v1067 = vpop.permute.xlu0 %1066
      %v1070 = vsel %vm730, %v1018, %v1043
      %v1072 = vsel %vm734, %v1070, %v1047
      %v1074 = vsel %vm737, %v1072, %v1051
      %v1076 = vsel %vm740, %v1074, %v1055
      %v1078 = vsel %vm743, %v1076, %v1059
      %v1080 = vsel %vm746, %v1078, %v1063
      %v1082 = vsel %vm749, %v1080, %v1067
      %1084 = vst.msk [vmem:[#allocation3 + $0x8] sm:$0xf] %vm753, %v1082
      %v1085 = vld [vmem:[#allocation2] sm:$0xf]
      %v1086 = vld [vmem:[#allocation2 + $0x4] sm:$0x1]
      %v1087 = vld [vmem:[#allocation2 + $0x8] sm:$0xf]
      %v1088 = vld [vmem:[#allocation2 + $0xc] sm:$0x1]
      %v1089 = vld [vmem:[#allocation2 + $0x10] sm:$0xf]
      %v1090 = vld [vmem:[#allocation2 + $0x14] sm:$0x1]
      %v1091 = vld [vmem:[#allocation2 + $0x18] sm:$0xf]
      %v1092 = vld [vmem:[#allocation2 + $0x1c] sm:$0x1]
      %v1093 = vld [vmem:[#allocation2 + $0x20] sm:$0xf]
      %v1094 = vld [vmem:[#allocation2 + $0x24] sm:$0x1]
      %v1095 = vld [vmem:[#allocation2 + $0x28] sm:$0xf]
      %v1096 = vld [vmem:[#allocation2 + $0x2c] sm:$0x1]
      %v1097 = vld [vmem:[#allocation2 + $0x30] sm:$0xf]
      %v1098 = vld [vmem:[#allocation2 + $0x34] sm:$0x1]
      %v1099 = vld [vmem:[#allocation2 + $0x38] sm:$0xf]
      %v1100 = vld [vmem:[#allocation2 + $0x3c] sm:$0x1]
      %vm1101 = vsmask.f32 3328
      %vm1102 = vsmask.f32 7440
      %vm1103 = vmor %vm1101, %vm1102
      %v1105 = vshrl.u32 %v1085, 16
      %v1107 = vrot.slane %v1105, 4
      %v1108 = vshll.u32 %v1085, 16
      %v1110 = vrot.slane %v1108, 5
      %v1111 = vor.u32 %v1107, %v1110
      %v1112 = vrot.slane %v1111, 4
      %v1114 = vshll.u32 %v1086, 16
      %v1116 = vrot.slane %v1114, 5
      %v1117 = vsel %vm1103, %v1112, %v1116
      %v1119 = vshrl.u32 %v1087, 16
      %v1121 = vrot.slane %v1119, 4
      %v1122 = vshll.u32 %v1087, 16
      %v1124 = vrot.slane %v1122, 5
      %v1125 = vor.u32 %v1121, %v1124
      %v1126 = vrot.slane %v1125, 4
      %v1128 = vshll.u32 %v1088, 16
      %v1130 = vrot.slane %v1128, 5
      %v1131 = vsel %vm1103, %v1126, %v1130
      %v1133 = vshrl.u32 %v1089, 16
      %v1135 = vrot.slane %v1133, 4
      %v1136 = vshll.u32 %v1089, 16
      %v1138 = vrot.slane %v1136, 5
      %v1139 = vor.u32 %v1135, %v1138
      %v1140 = vrot.slane %v1139, 4
      %v1142 = vshll.u32 %v1090, 16
      %v1144 = vrot.slane %v1142, 5
      %v1145 = vsel %vm1103, %v1140, %v1144
      %v1147 = vshrl.u32 %v1091, 16
      %v1149 = vrot.slane %v1147, 4
      %v1150 = vshll.u32 %v1091, 16
      %v1152 = vrot.slane %v1150, 5
      %v1153 = vor.u32 %v1149, %v1152
      %v1154 = vrot.slane %v1153, 4
      %v1156 = vshll.u32 %v1092, 16
      %v1158 = vrot.slane %v1156, 5
      %v1159 = vsel %vm1103, %v1154, %v1158
      %v1161 = vshrl.u32 %v1093, 16
      %v1163 = vrot.slane %v1161, 4
      %v1164 = vshll.u32 %v1093, 16
      %v1166 = vrot.slane %v1164, 5
      %v1167 = vor.u32 %v1163, %v1166
      %v1168 = vrot.slane %v1167, 4
      %v1170 = vshll.u32 %v1094, 16
      %v1172 = vrot.slane %v1170, 5
      %v1173 = vsel %vm1103, %v1168, %v1172
      %v1175 = vshrl.u32 %v1095, 16
      %v1177 = vrot.slane %v1175, 4
      %v1178 = vshll.u32 %v1095, 16
      %v1180 = vrot.slane %v1178, 5
      %v1181 = vor.u32 %v1177, %v1180
      %v1182 = vrot.slane %v1181, 4
      %v1184 = vshll.u32 %v1096, 16
      %v1186 = vrot.slane %v1184, 5
      %v1187 = vsel %vm1103, %v1182, %v1186
      %v1189 = vshrl.u32 %v1097, 16
      %v1191 = vrot.slane %v1189, 4
      %v1192 = vshll.u32 %v1097, 16
      %v1194 = vrot.slane %v1192, 5
      %v1195 = vor.u32 %v1191, %v1194
      %v1196 = vrot.slane %v1195, 4
      %v1198 = vshll.u32 %v1098, 16
      %v1200 = vrot.slane %v1198, 5
      %v1201 = vsel %vm1103, %v1196, %v1200
      %v1203 = vshrl.u32 %v1099, 16
      %v1205 = vrot.slane %v1203, 4
      %v1206 = vshll.u32 %v1099, 16
      %v1208 = vrot.slane %v1206, 5
      %v1209 = vor.u32 %v1205, %v1208
      %v1210 = vrot.slane %v1209, 4
      %v1212 = vshll.u32 %v1100, 16
      %v1214 = vrot.slane %v1212, 5
      %v1215 = vsel %vm1103, %v1210, %v1214
      %v1224 = vrot.slane %v1173, 4
      %v1225 = vsel %vm622, %v1224, %v1117
      %v1227 = vunpack.c.l.s4 1983009808
      %v1228 = vunpack.c.0.s8 %v1227
      %v1229 = vperm.slane %v1225, %v1228
      %v1230 = vrot.slane %v1201, 4
      %v1231 = vsel %vm622, %v1230, %v1145
      %v1233 = vunpack.c.l.s4 1983009808
      %v1234 = vunpack.c.0.s8 %v1233
      %v1235 = vperm.slane %v1231, %v1234
      %v1236 = vrot.slane %v1235, 4
      %v1237 = vsel %vm622, %v1236, %v1229
      %v1238 = vrot.slane %v1229, 4
      %v1239 = vsel %vm622, %v1235, %v1238
      %v1241 = vunpack.c.l.s4 1934713408
      %v1242 = vunpack.c.0.s8 %v1241
      %v1243 = vperm.slane %v1237, %v1242
      %v1245 = vunpack.c.l.s4 1934713408
      %v1246 = vunpack.c.0.s8 %v1245
      %v1247 = vperm.slane %v1239, %v1246
      %v1248 = vrot.slane %v1243, 4
      %v1249 = vsel %vm622, 0, %v1248
      %v1250 = vrot.slane %v1247, 4
      %v1251 = vsel %vm622, 0, %v1250
      %v1252 = vrot.slane %v1187, 4
      %v1253 = vsel %vm622, %v1252, %v1131
      %v1255 = vunpack.c.l.s4 1983009808
      %v1256 = vunpack.c.0.s8 %v1255
      %v1257 = vperm.slane %v1253, %v1256
      %v1258 = vrot.slane %v1215, 4
      %v1259 = vsel %vm622, %v1258, %v1159
      %v1261 = vunpack.c.l.s4 1983009808
      %v1262 = vunpack.c.0.s8 %v1261
      %v1263 = vperm.slane %v1259, %v1262
      %v1264 = vrot.slane %v1263, 4
      %v1265 = vsel %vm622, %v1264, %v1257
      %v1266 = vrot.slane %v1257, 4
      %v1267 = vsel %vm622, %v1263, %v1266
      %v1269 = vunpack.c.l.s4 1934713408
      %v1270 = vunpack.c.0.s8 %v1269
      %v1271 = vperm.slane %v1265, %v1270
      %v1273 = vunpack.c.l.s4 1934713408
      %v1274 = vunpack.c.0.s8 %v1273
      %v1275 = vperm.slane %v1267, %v1274
      %v1276 = vrot.slane %v1271, 4
      %v1277 = vsel %vm622, 0, %v1276
      %v1278 = vrot.slane %v1275, 4
      %v1279 = vsel %vm622, 0, %v1278
      %v1282 = vpack.i.b16 %v1271, %v1243
      %v1283 = vshrl.u32 %v1243, 16
      %v1284 = vshrl.u32 %v1271, 16
      %v1285 = vpack.i.b16 %v1284, %v1283
      %v1288 = vpack.i.b16 %v1277, %v1249
      %v1289 = vshrl.u32 %v1249, 16
      %v1290 = vshrl.u32 %v1277, 16
      %v1291 = vpack.i.b16 %v1290, %v1289
      %v1294 = vpack.i.b16 %v1275, %v1247
      %v1295 = vshrl.u32 %v1247, 16
      %v1296 = vshrl.u32 %v1275, 16
      %v1297 = vpack.i.b16 %v1296, %v1295
      %v1300 = vpack.i.b16 %v1279, %v1251
      %v1301 = vshrl.u32 %v1251, 16
      %v1302 = vshrl.u32 %v1279, 16
      %v1303 = vpack.i.b16 %v1302, %v1301
      %v1304 = vunpack.c.l.b16 %v1285
      %v1305 = vpack.c.b16 %v1304, %v1304
      %1306 = vrot.lane.b32.xlu0 %v1305, 8
      %v1307 = vpop.permute.xlu0 %1306
      %v1308 = vunpack.c.l.b16 %v1288
      %v1309 = vpack.c.b16 %v1308, %v1308
      %1310 = vrot.lane.b32.xlu0 %v1309, 16
      %v1311 = vpop.permute.xlu0 %1310
      %v1312 = vunpack.c.l.b16 %v1291
      %v1313 = vpack.c.b16 %v1312, %v1312
      %1314 = vrot.lane.b32.xlu0 %v1313, 24
      %v1315 = vpop.permute.xlu0 %1314
      %v1316 = vunpack.c.l.b16 %v1294
      %v1317 = vpack.c.b16 %v1316, %v1316
      %1318 = vrot.lane.b32.xlu0 %v1317, 32
      %v1319 = vpop.permute.xlu0 %1318
      %v1320 = vunpack.c.l.b16 %v1297
      %v1321 = vpack.c.b16 %v1320, %v1320
      %1322 = vrot.lane.b32.xlu0 %v1321, 40
      %v1323 = vpop.permute.xlu0 %1322
      %v1324 = vunpack.c.l.b16 %v1300
      %v1325 = vpack.c.b16 %v1324, %v1324
      %1326 = vrot.lane.b32.xlu0 %v1325, 48
      %v1327 = vpop.permute.xlu0 %1326
      %v1328 = vunpack.c.l.b16 %v1303
      %v1329 = vpack.c.b16 %v1328, %v1328
      %1330 = vrot.lane.b32.xlu0 %v1329, 56
      %v1331 = vpop.permute.xlu0 %1330
      %v1334 = vsel %vm730, %v1282, %v1307
      %v1336 = vsel %vm734, %v1334, %v1311
      %v1338 = vsel %vm737, %v1336, %v1315
      %v1340 = vsel %vm740, %v1338, %v1319
      %v1342 = vsel %vm743, %v1340, %v1323
      %v1344 = vsel %vm746, %v1342, %v1327
      %v1346 = vsel %vm749, %v1344, %v1331
      %1348 = vst.msk [vmem:[#allocation3 + $0xc] sm:$0xf] %vm753, %v1346
      %v1349 = vld [vmem:[#allocation2] sm:$0xf]
      %v1350 = vld [vmem:[#allocation2 + $0x4] sm:$0x1]
      %v1351 = vld [vmem:[#allocation2 + $0x8] sm:$0xf]
      %v1352 = vld [vmem:[#allocation2 + $0xc] sm:$0x1]
      %v1353 = vld [vmem:[#allocation2 + $0x10] sm:$0xf]
      %v1354 = vld [vmem:[#allocation2 + $0x14] sm:$0x1]
      %v1355 = vld [vmem:[#allocation2 + $0x18] sm:$0xf]
      %v1356 = vld [vmem:[#allocation2 + $0x1c] sm:$0x1]
      %v1357 = vld [vmem:[#allocation2 + $0x20] sm:$0xf]
      %v1358 = vld [vmem:[#allocation2 + $0x24] sm:$0x1]
      %v1359 = vld [vmem:[#allocation2 + $0x28] sm:$0xf]
      %v1360 = vld [vmem:[#allocation2 + $0x2c] sm:$0x1]
      %v1361 = vld [vmem:[#allocation2 + $0x30] sm:$0xf]
      %v1362 = vld [vmem:[#allocation2 + $0x34] sm:$0x1]
      %v1363 = vld [vmem:[#allocation2 + $0x38] sm:$0xf]
      %v1364 = vld [vmem:[#allocation2 + $0x3c] sm:$0x1]
      %v1366 = vshrl.u32 %v1349, 16
      %v1368 = vrot.slane %v1366, 4
      %v1369 = vshll.u32 %v1349, 16
      %v1371 = vrot.slane %v1369, 5
      %v1372 = vor.u32 %v1368, %v1371
      %v1373 = vrot.slane %v1372, 4
      %v1375 = vshll.u32 %v1350, 16
      %v1377 = vrot.slane %v1375, 5
      %v1378 = vsel %vm1103, %v1373, %v1377
      %v1380 = vshrl.u32 %v1351, 16
      %v1382 = vrot.slane %v1380, 4
      %v1383 = vshll.u32 %v1351, 16
      %v1385 = vrot.slane %v1383, 5
      %v1386 = vor.u32 %v1382, %v1385
      %v1387 = vrot.slane %v1386, 4
      %v1389 = vshll.u32 %v1352, 16
      %v1391 = vrot.slane %v1389, 5
      %v1392 = vsel %vm1103, %v1387, %v1391
      %v1394 = vshrl.u32 %v1353, 16
      %v1396 = vrot.slane %v1394, 4
      %v1397 = vshll.u32 %v1353, 16
      %v1399 = vrot.slane %v1397, 5
      %v1400 = vor.u32 %v1396, %v1399
      %v1401 = vrot.slane %v1400, 4
      %v1403 = vshll.u32 %v1354, 16
      %v1405 = vrot.slane %v1403, 5
      %v1406 = vsel %vm1103, %v1401, %v1405
      %v1408 = vshrl.u32 %v1355, 16
      %v1410 = vrot.slane %v1408, 4
      %v1411 = vshll.u32 %v1355, 16
      %v1413 = vrot.slane %v1411, 5
      %v1414 = vor.u32 %v1410, %v1413
      %v1415 = vrot.slane %v1414, 4
      %v1417 = vshll.u32 %v1356, 16
      %v1419 = vrot.slane %v1417, 5
      %v1420 = vsel %vm1103, %v1415, %v1419
      %v1422 = vshrl.u32 %v1357, 16
      %v1424 = vrot.slane %v1422, 4
      %v1425 = vshll.u32 %v1357, 16
      %v1427 = vrot.slane %v1425, 5
      %v1428 = vor.u32 %v1424, %v1427
      %v1429 = vrot.slane %v1428, 4
      %v1431 = vshll.u32 %v1358, 16
      %v1433 = vrot.slane %v1431, 5
      %v1434 = vsel %vm1103, %v1429, %v1433
      %v1436 = vshrl.u32 %v1359, 16
      %v1438 = vrot.slane %v1436, 4
      %v1439 = vshll.u32 %v1359, 16
      %v1441 = vrot.slane %v1439, 5
      %v1442 = vor.u32 %v1438, %v1441
      %v1443 = vrot.slane %v1442, 4
      %v1445 = vshll.u32 %v1360, 16
      %v1447 = vrot.slane %v1445, 5
      %v1448 = vsel %vm1103, %v1443, %v1447
      %v1450 = vshrl.u32 %v1361, 16
      %v1452 = vrot.slane %v1450, 4
      %v1453 = vshll.u32 %v1361, 16
      %v1455 = vrot.slane %v1453, 5
      %v1456 = vor.u32 %v1452, %v1455
      %v1457 = vrot.slane %v1456, 4
      %v1459 = vshll.u32 %v1362, 16
      %v1461 = vrot.slane %v1459, 5
      %v1462 = vsel %vm1103, %v1457, %v1461
      %v1464 = vshrl.u32 %v1363, 16
      %v1466 = vrot.slane %v1464, 4
      %v1467 = vshll.u32 %v1363, 16
      %v1469 = vrot.slane %v1467, 5
      %v1470 = vor.u32 %v1466, %v1469
      %v1471 = vrot.slane %v1470, 4
      %v1473 = vshll.u32 %v1364, 16
      %v1475 = vrot.slane %v1473, 5
      %v1476 = vsel %vm1103, %v1471, %v1475
      %1477 = vrot.lane.b32.xlu0 %v1378, 127
      %v1478 = vpop.permute.xlu0 %1477
      %1479 = vrot.lane.b32.xlu0 %v1392, 127
      %v1480 = vpop.permute.xlu0 %1479
      %1481 = vrot.lane.b32.xlu0 %v1406, 127
      %v1482 = vpop.permute.xlu0 %1481
      %1483 = vrot.lane.b32.xlu0 %v1420, 127
      %v1484 = vpop.permute.xlu0 %1483
      %1485 = vrot.lane.b32.xlu0 %v1434, 127
      %v1486 = vpop.permute.xlu0 %1485
      %1487 = vrot.lane.b32.xlu0 %v1448, 127
      %v1488 = vpop.permute.xlu0 %1487
      %1489 = vrot.lane.b32.xlu0 %v1462, 127
      %v1490 = vpop.permute.xlu0 %1489
      %1491 = vrot.lane.b32.xlu0 %v1476, 127
      %v1492 = vpop.permute.xlu0 %1491
      %v1501 = vrot.slane %v1486, 4
      %v1502 = vsel %vm622, %v1501, %v1478
      %v1504 = vunpack.c.l.s4 1983009808
      %v1505 = vunpack.c.0.s8 %v1504
      %v1506 = vperm.slane %v1502, %v1505
      %v1507 = vrot.slane %v1490, 4
      %v1508 = vsel %vm622, %v1507, %v1482
      %v1510 = vunpack.c.l.s4 1983009808
      %v1511 = vunpack.c.0.s8 %v1510
      %v1512 = vperm.slane %v1508, %v1511
      %v1513 = vrot.slane %v1512, 4
      %v1514 = vsel %vm622, %v1513, %v1506
      %v1515 = vrot.slane %v1506, 4
      %v1516 = vsel %vm622, %v1512, %v1515
      %v1518 = vunpack.c.l.s4 1934713408
      %v1519 = vunpack.c.0.s8 %v1518
      %v1520 = vperm.slane %v1514, %v1519
      %v1522 = vunpack.c.l.s4 1934713408
      %v1523 = vunpack.c.0.s8 %v1522
      %v1524 = vperm.slane %v1516, %v1523
      %v1525 = vrot.slane %v1520, 4
      %v1526 = vsel %vm622, 0, %v1525
      %v1527 = vrot.slane %v1524, 4
      %v1528 = vsel %vm622, 0, %v1527
      %v1529 = vrot.slane %v1488, 4
      %v1530 = vsel %vm622, %v1529, %v1480
      %v1532 = vunpack.c.l.s4 1983009808
      %v1533 = vunpack.c.0.s8 %v1532
      %v1534 = vperm.slane %v1530, %v1533
      %v1535 = vrot.slane %v1492, 4
      %v1536 = vsel %vm622, %v1535, %v1484
      %v1538 = vunpack.c.l.s4 1983009808
      %v1539 = vunpack.c.0.s8 %v1538
      %v1540 = vperm.slane %v1536, %v1539
      %v1541 = vrot.slane %v1540, 4
      %v1542 = vsel %vm622, %v1541, %v1534
      %v1543 = vrot.slane %v1534, 4
      %v1544 = vsel %vm622, %v1540, %v1543
      %v1546 = vunpack.c.l.s4 1934713408
      %v1547 = vunpack.c.0.s8 %v1546
      %v1548 = vperm.slane %v1542, %v1547
      %v1550 = vunpack.c.l.s4 1934713408
      %v1551 = vunpack.c.0.s8 %v1550
      %v1552 = vperm.slane %v1544, %v1551
      %v1553 = vrot.slane %v1548, 4
      %v1554 = vsel %vm622, 0, %v1553
      %v1555 = vrot.slane %v1552, 4
      %v1556 = vsel %vm622, 0, %v1555
      %v1559 = vpack.i.b16 %v1548, %v1520
      %v1560 = vshrl.u32 %v1520, 16
      %v1561 = vshrl.u32 %v1548, 16
      %v1562 = vpack.i.b16 %v1561, %v1560
      %v1565 = vpack.i.b16 %v1554, %v1526
      %v1566 = vshrl.u32 %v1526, 16
      %v1567 = vshrl.u32 %v1554, 16
      %v1568 = vpack.i.b16 %v1567, %v1566
      %v1571 = vpack.i.b16 %v1552, %v1524
      %v1572 = vshrl.u32 %v1524, 16
      %v1573 = vshrl.u32 %v1552, 16
      %v1574 = vpack.i.b16 %v1573, %v1572
      %v1577 = vpack.i.b16 %v1556, %v1528
      %v1578 = vshrl.u32 %v1528, 16
      %v1579 = vshrl.u32 %v1556, 16
      %v1580 = vpack.i.b16 %v1579, %v1578
      %v1581 = vunpack.c.l.b16 %v1562
      %v1582 = vpack.c.b16 %v1581, %v1581
      %1583 = vrot.lane.b32.xlu0 %v1582, 8
      %v1584 = vpop.permute.xlu0 %1583
      %v1585 = vunpack.c.l.b16 %v1565
      %v1586 = vpack.c.b16 %v1585, %v1585
      %1587 = vrot.lane.b32.xlu0 %v1586, 16
      %v1588 = vpop.permute.xlu0 %1587
      %v1589 = vunpack.c.l.b16 %v1568
      %v1590 = vpack.c.b16 %v1589, %v1589
      %1591 = vrot.lane.b32.xlu0 %v1590, 24
      %v1592 = vpop.permute.xlu0 %1591
      %v1593 = vunpack.c.l.b16 %v1571
      %v1594 = vpack.c.b16 %v1593, %v1593
      %1595 = vrot.lane.b32.xlu0 %v1594, 32
      %v1596 = vpop.permute.xlu0 %1595
      %v1597 = vunpack.c.l.b16 %v1574
      %v1598 = vpack.c.b16 %v1597, %v1597
      %1599 = vrot.lane.b32.xlu0 %v1598, 40
      %v1600 = vpop.permute.xlu0 %1599
      %v1601 = vunpack.c.l.b16 %v1577
      %v1602 = vpack.c.b16 %v1601, %v1601
      %1603 = vrot.lane.b32.xlu0 %v1602, 48
      %v1604 = vpop.permute.xlu0 %1603
      %v1605 = vunpack.c.l.b16 %v1580
      %v1606 = vpack.c.b16 %v1605, %v1605
      %1607 = vrot.lane.b32.xlu0 %v1606, 56
      %v1608 = vpop.permute.xlu0 %1607
      %v1611 = vsel %vm730, %v1559, %v1584
      %v1613 = vsel %vm734, %v1611, %v1588
      %v1615 = vsel %vm737, %v1613, %v1592
      %v1617 = vsel %vm740, %v1615, %v1596
      %v1619 = vsel %vm743, %v1617, %v1600
      %v1621 = vsel %vm746, %v1619, %v1604
      %v1623 = vsel %vm749, %v1621, %v1608
      %1625 = vst.msk [vmem:[#allocation3 + $0x10] sm:$0xf] %vm753, %v1623
      %v1626 = vld [vmem:[#allocation2] sm:$0xf]
      %v1627 = vld [vmem:[#allocation2 + $0x4] sm:$0x1]
      %v1628 = vld [vmem:[#allocation2 + $0x8] sm:$0xf]
      %v1629 = vld [vmem:[#allocation2 + $0xc] sm:$0x1]
      %v1630 = vld [vmem:[#allocation2 + $0x10] sm:$0xf]
      %v1631 = vld [vmem:[#allocation2 + $0x14] sm:$0x1]
      %v1632 = vld [vmem:[#allocation2 + $0x18] sm:$0xf]
      %v1633 = vld [vmem:[#allocation2 + $0x1c] sm:$0x1]
      %v1634 = vld [vmem:[#allocation2 + $0x20] sm:$0xf]
      %v1635 = vld [vmem:[#allocation2 + $0x24] sm:$0x1]
      %v1636 = vld [vmem:[#allocation2 + $0x28] sm:$0xf]
      %v1637 = vld [vmem:[#allocation2 + $0x2c] sm:$0x1]
      %v1638 = vld [vmem:[#allocation2 + $0x30] sm:$0xf]
      %v1639 = vld [vmem:[#allocation2 + $0x34] sm:$0x1]
      %v1640 = vld [vmem:[#allocation2 + $0x38] sm:$0xf]
      %v1641 = vld [vmem:[#allocation2 + $0x3c] sm:$0x1]
      %v1643 = vshrl.u32 %v1626, 16
      %v1645 = vrot.slane %v1643, 4
      %v1646 = vshll.u32 %v1626, 16
      %v1648 = vrot.slane %v1646, 5
      %v1649 = vor.u32 %v1645, %v1648
      %v1650 = vrot.slane %v1649, 4
      %v1652 = vshll.u32 %v1627, 16
      %v1654 = vrot.slane %v1652, 5
      %v1655 = vsel %vm1103, %v1650, %v1654
      %v1657 = vshrl.u32 %v1628, 16
      %v1659 = vrot.slane %v1657, 4
      %v1660 = vshll.u32 %v1628, 16
      %v1662 = vrot.slane %v1660, 5
      %v1663 = vor.u32 %v1659, %v1662
      %v1664 = vrot.slane %v1663, 4
      %v1666 = vshll.u32 %v1629, 16
      %v1668 = vrot.slane %v1666, 5
      %v1669 = vsel %vm1103, %v1664, %v1668
      %v1671 = vshrl.u32 %v1630, 16
      %v1673 = vrot.slane %v1671, 4
      %v1674 = vshll.u32 %v1630, 16
      %v1676 = vrot.slane %v1674, 5
      %v1677 = vor.u32 %v1673, %v1676
      %v1678 = vrot.slane %v1677, 4
      %v1680 = vshll.u32 %v1631, 16
      %v1682 = vrot.slane %v1680, 5
      %v1683 = vsel %vm1103, %v1678, %v1682
      %v1685 = vshrl.u32 %v1632, 16
      %v1687 = vrot.slane %v1685, 4
      %v1688 = vshll.u32 %v1632, 16
      %v1690 = vrot.slane %v1688, 5
      %v1691 = vor.u32 %v1687, %v1690
      %v1692 = vrot.slane %v1691, 4
      %v1694 = vshll.u32 %v1633, 16
      %v1696 = vrot.slane %v1694, 5
      %v1697 = vsel %vm1103, %v1692, %v1696
      %v1699 = vshrl.u32 %v1634, 16
      %v1701 = vrot.slane %v1699, 4
      %v1702 = vshll.u32 %v1634, 16
      %v1704 = vrot.slane %v1702, 5
      %v1705 = vor.u32 %v1701, %v1704
      %v1706 = vrot.slane %v1705, 4
      %v1708 = vshll.u32 %v1635, 16
      %v1710 = vrot.slane %v1708, 5
      %v1711 = vsel %vm1103, %v1706, %v1710
      %v1713 = vshrl.u32 %v1636, 16
      %v1715 = vrot.slane %v1713, 4
      %v1716 = vshll.u32 %v1636, 16
      %v1718 = vrot.slane %v1716, 5
      %v1719 = vor.u32 %v1715, %v1718
      %v1720 = vrot.slane %v1719, 4
      %v1722 = vshll.u32 %v1637, 16
      %v1724 = vrot.slane %v1722, 5
      %v1725 = vsel %vm1103, %v1720, %v1724
      %v1727 = vshrl.u32 %v1638, 16
      %v1729 = vrot.slane %v1727, 4
      %v1730 = vshll.u32 %v1638, 16
      %v1732 = vrot.slane %v1730, 5
      %v1733 = vor.u32 %v1729, %v1732
      %v1734 = vrot.slane %v1733, 4
      %v1736 = vshll.u32 %v1639, 16
      %v1738 = vrot.slane %v1736, 5
      %v1739 = vsel %vm1103, %v1734, %v1738
      %v1741 = vshrl.u32 %v1640, 16
      %v1743 = vrot.slane %v1741, 4
      %v1744 = vshll.u32 %v1640, 16
      %v1746 = vrot.slane %v1744, 5
      %v1747 = vor.u32 %v1743, %v1746
      %v1748 = vrot.slane %v1747, 4
      %v1750 = vshll.u32 %v1641, 16
      %v1752 = vrot.slane %v1750, 5
      %v1753 = vsel %vm1103, %v1748, %v1752
      %1754 = vrot.lane.b32.xlu0 %v1655, 126
      %v1755 = vpop.permute.xlu0 %1754
      %1756 = vrot.lane.b32.xlu0 %v1669, 126
      %v1757 = vpop.permute.xlu0 %1756
      %1758 = vrot.lane.b32.xlu0 %v1683, 126
      %v1759 = vpop.permute.xlu0 %1758
      %1760 = vrot.lane.b32.xlu0 %v1697, 126
      %v1761 = vpop.permute.xlu0 %1760
      %1762 = vrot.lane.b32.xlu0 %v1711, 126
      %v1763 = vpop.permute.xlu0 %1762
      %1764 = vrot.lane.b32.xlu0 %v1725, 126
      %v1765 = vpop.permute.xlu0 %1764
      %1766 = vrot.lane.b32.xlu0 %v1739, 126
      %v1767 = vpop.permute.xlu0 %1766
      %1768 = vrot.lane.b32.xlu0 %v1753, 126
      %v1769 = vpop.permute.xlu0 %1768
      %v1778 = vrot.slane %v1763, 4
      %v1779 = vsel %vm622, %v1778, %v1755
      %v1781 = vunpack.c.l.s4 1983009808
      %v1782 = vunpack.c.0.s8 %v1781
      %v1783 = vperm.slane %v1779, %v1782
      %v1784 = vrot.slane %v1767, 4
      %v1785 = vsel %vm622, %v1784, %v1759
      %v1787 = vunpack.c.l.s4 1983009808
      %v1788 = vunpack.c.0.s8 %v1787
      %v1789 = vperm.slane %v1785, %v1788
      %v1790 = vrot.slane %v1789, 4
      %v1791 = vsel %vm622, %v1790, %v1783
      %v1792 = vrot.slane %v1783, 4
      %v1793 = vsel %vm622, %v1789, %v1792
      %v1795 = vunpack.c.l.s4 1934713408
      %v1796 = vunpack.c.0.s8 %v1795
      %v1797 = vperm.slane %v1791, %v1796
      %v1799 = vunpack.c.l.s4 1934713408
      %v1800 = vunpack.c.0.s8 %v1799
      %v1801 = vperm.slane %v1793, %v1800
      %v1802 = vrot.slane %v1797, 4
      %v1803 = vsel %vm622, 0, %v1802
      %v1804 = vrot.slane %v1801, 4
      %v1805 = vsel %vm622, 0, %v1804
      %v1806 = vrot.slane %v1765, 4
      %v1807 = vsel %vm622, %v1806, %v1757
      %v1809 = vunpack.c.l.s4 1983009808
      %v1810 = vunpack.c.0.s8 %v1809
      %v1811 = vperm.slane %v1807, %v1810
      %v1812 = vrot.slane %v1769, 4
      %v1813 = vsel %vm622, %v1812, %v1761
      %v1815 = vunpack.c.l.s4 1983009808
      %v1816 = vunpack.c.0.s8 %v1815
      %v1817 = vperm.slane %v1813, %v1816
      %v1818 = vrot.slane %v1817, 4
      %v1819 = vsel %vm622, %v1818, %v1811
      %v1820 = vrot.slane %v1811, 4
      %v1821 = vsel %vm622, %v1817, %v1820
      %v1823 = vunpack.c.l.s4 1934713408
      %v1824 = vunpack.c.0.s8 %v1823
      %v1825 = vperm.slane %v1819, %v1824
      %v1827 = vunpack.c.l.s4 1934713408
      %v1828 = vunpack.c.0.s8 %v1827
      %v1829 = vperm.slane %v1821, %v1828
      %v1830 = vrot.slane %v1825, 4
      %v1831 = vsel %vm622, 0, %v1830
      %v1832 = vrot.slane %v1829, 4
      %v1833 = vsel %vm622, 0, %v1832
      %v1836 = vpack.i.b16 %v1825, %v1797
      %v1837 = vshrl.u32 %v1797, 16
      %v1838 = vshrl.u32 %v1825, 16
      %v1839 = vpack.i.b16 %v1838, %v1837
      %v1842 = vpack.i.b16 %v1831, %v1803
      %v1843 = vshrl.u32 %v1803, 16
      %v1844 = vshrl.u32 %v1831, 16
      %v1845 = vpack.i.b16 %v1844, %v1843
      %v1848 = vpack.i.b16 %v1829, %v1801
      %v1849 = vshrl.u32 %v1801, 16
      %v1850 = vshrl.u32 %v1829, 16
      %v1851 = vpack.i.b16 %v1850, %v1849
      %v1854 = vpack.i.b16 %v1833, %v1805
      %v1855 = vshrl.u32 %v1805, 16
      %v1856 = vshrl.u32 %v1833, 16
      %v1857 = vpack.i.b16 %v1856, %v1855
      %v1858 = vunpack.c.l.b16 %v1839
      %v1859 = vpack.c.b16 %v1858, %v1858
      %1860 = vrot.lane.b32.xlu0 %v1859, 8
      %v1861 = vpop.permute.xlu0 %1860
      %v1862 = vunpack.c.l.b16 %v1842
      %v1863 = vpack.c.b16 %v1862, %v1862
      %1864 = vrot.lane.b32.xlu0 %v1863, 16
      %v1865 = vpop.permute.xlu0 %1864
      %v1866 = vunpack.c.l.b16 %v1845
      %v1867 = vpack.c.b16 %v1866, %v1866
      %1868 = vrot.lane.b32.xlu0 %v1867, 24
      %v1869 = vpop.permute.xlu0 %1868
      %v1870 = vunpack.c.l.b16 %v1848
      %v1871 = vpack.c.b16 %v1870, %v1870
      %1872 = vrot.lane.b32.xlu0 %v1871, 32
      %v1873 = vpop.permute.xlu0 %1872
      %v1874 = vunpack.c.l.b16 %v1851
      %v1875 = vpack.c.b16 %v1874, %v1874
      %1876 = vrot.lane.b32.xlu0 %v1875, 40
      %v1877 = vpop.permute.xlu0 %1876
      %v1878 = vunpack.c.l.b16 %v1854
      %v1879 = vpack.c.b16 %v1878, %v1878
      %1880 = vrot.lane.b32.xlu0 %v1879, 48
      %v1881 = vpop.permute.xlu0 %1880
      %v1882 = vunpack.c.l.b16 %v1857
      %v1883 = vpack.c.b16 %v1882, %v1882
      %1884 = vrot.lane.b32.xlu0 %v1883, 56
      %v1885 = vpop.permute.xlu0 %1884
      %v1888 = vsel %vm730, %v1836, %v1861
      %v1890 = vsel %vm734, %v1888, %v1865
      %v1892 = vsel %vm737, %v1890, %v1869
      %v1894 = vsel %vm740, %v1892, %v1873
      %v1896 = vsel %vm743, %v1894, %v1877
      %v1898 = vsel %vm746, %v1896, %v1881
      %v1900 = vsel %vm749, %v1898, %v1885
      %1902 = vst.msk [vmem:[#allocation3 + $0x14] sm:$0xf] %vm753, %v1900
      %v1903 = vld [vmem:[#allocation2] sm:$0xe]
      %v1904 = vld [vmem:[#allocation2 + $0x4] sm:$0x1]
      %v1905 = vld [vmem:[#allocation2 + $0x8] sm:$0xe]
      %v1906 = vld [vmem:[#allocation2 + $0xc] sm:$0x1]
      %v1907 = vld [vmem:[#allocation2 + $0x10] sm:$0xe]
      %v1908 = vld [vmem:[#allocation2 + $0x14] sm:$0x1]
      %v1909 = vld [vmem:[#allocation2 + $0x18] sm:$0xe]
      %v1910 = vld [vmem:[#allocation2 + $0x1c] sm:$0x1]
      %v1911 = vld [vmem:[#allocation2 + $0x20] sm:$0xe]
      %v1912 = vld [vmem:[#allocation2 + $0x24] sm:$0x1]
      %v1913 = vld [vmem:[#allocation2 + $0x28] sm:$0xe]
      %v1914 = vld [vmem:[#allocation2 + $0x2c] sm:$0x1]
      %v1915 = vld [vmem:[#allocation2 + $0x30] sm:$0xe]
      %v1916 = vld [vmem:[#allocation2 + $0x34] sm:$0x1]
      %v1917 = vld [vmem:[#allocation2 + $0x38] sm:$0xe]
      %v1918 = vld [vmem:[#allocation2 + $0x3c] sm:$0x1]
      %vm1935 = vcmask 1042432
      %vm1936 = vcmask 1046532
      %vm1937 = vmor %vm1935, %vm1936
      %v1938 = vrot.slane %v1903, 5
      %v1939 = vrot.slane %v1938, 4
      %v1940 = vrot.slane %v1904, 5
      %v1941 = vsel %vm1937, %v1939, %v1940
      %v1942 = vrot.slane %v1905, 5
      %v1943 = vrot.slane %v1942, 4
      %v1944 = vrot.slane %v1906, 5
      %v1945 = vsel %vm1937, %v1943, %v1944
      %v1946 = vrot.slane %v1907, 5
      %v1947 = vrot.slane %v1946, 4
      %v1948 = vrot.slane %v1908, 5
      %v1949 = vsel %vm1937, %v1947, %v1948
      %v1950 = vrot.slane %v1909, 5
      %v1951 = vrot.slane %v1950, 4
      %v1952 = vrot.slane %v1910, 5
      %v1953 = vsel %vm1937, %v1951, %v1952
      %v1954 = vrot.slane %v1911, 5
      %v1955 = vrot.slane %v1954, 4
      %v1956 = vrot.slane %v1912, 5
      %v1957 = vsel %vm1937, %v1955, %v1956
      %v1958 = vrot.slane %v1913, 5
      %v1959 = vrot.slane %v1958, 4
      %v1960 = vrot.slane %v1914, 5
      %v1961 = vsel %vm1937, %v1959, %v1960
      %v1962 = vrot.slane %v1915, 5
      %v1963 = vrot.slane %v1962, 4
      %v1964 = vrot.slane %v1916, 5
      %v1965 = vsel %vm1937, %v1963, %v1964
      %v1966 = vrot.slane %v1917, 5
      %v1967 = vrot.slane %v1966, 4
      %v1968 = vrot.slane %v1918, 5
      %v1969 = vsel %vm1937, %v1967, %v1968
      %v1978 = vrot.slane %v1957, 4
      %v1979 = vsel %vm622, %v1978, %v1941
      %v1981 = vunpack.c.l.s4 1983009808
      %v1982 = vunpack.c.0.s8 %v1981
      %v1983 = vperm.slane %v1979, %v1982
      %v1984 = vrot.slane %v1965, 4
      %v1985 = vsel %vm622, %v1984, %v1949
      %v1987 = vunpack.c.l.s4 1983009808
      %v1988 = vunpack.c.0.s8 %v1987
      %v1989 = vperm.slane %v1985, %v1988
      %v1990 = vrot.slane %v1989, 4
      %v1991 = vsel %vm622, %v1990, %v1983
      %v1992 = vrot.slane %v1983, 4
      %v1993 = vsel %vm622, %v1989, %v1992
      %v1995 = vunpack.c.l.s4 1934713408
      %v1996 = vunpack.c.0.s8 %v1995
      %v1997 = vperm.slane %v1991, %v1996
      %v1999 = vunpack.c.l.s4 1934713408
      %v2000 = vunpack.c.0.s8 %v1999
      %v2001 = vperm.slane %v1993, %v2000
      %v2002 = vrot.slane %v1997, 4
      %v2003 = vsel %vm622, 0, %v2002
      %v2004 = vrot.slane %v2001, 4
      %v2005 = vsel %vm622, 0, %v2004
      %v2006 = vrot.slane %v1961, 4
      %v2007 = vsel %vm622, %v2006, %v1945
      %v2009 = vunpack.c.l.s4 1983009808
      %v2010 = vunpack.c.0.s8 %v2009
      %v2011 = vperm.slane %v2007, %v2010
      %v2012 = vrot.slane %v1969, 4
      %v2013 = vsel %vm622, %v2012, %v1953
      %v2015 = vunpack.c.l.s4 1983009808
      %v2016 = vunpack.c.0.s8 %v2015
      %v2017 = vperm.slane %v2013, %v2016
      %v2018 = vrot.slane %v2017, 4
      %v2019 = vsel %vm622, %v2018, %v2011
      %v2020 = vrot.slane %v2011, 4
      %v2021 = vsel %vm622, %v2017, %v2020
      %v2023 = vunpack.c.l.s4 1934713408
      %v2024 = vunpack.c.0.s8 %v2023
      %v2025 = vperm.slane %v2019, %v2024
      %v2027 = vunpack.c.l.s4 1934713408
      %v2028 = vunpack.c.0.s8 %v2027
      %v2029 = vperm.slane %v2021, %v2028
      %v2030 = vrot.slane %v2025, 4
      %v2031 = vsel %vm622, 0, %v2030
      %v2032 = vrot.slane %v2029, 4
      %v2033 = vsel %vm622, 0, %v2032
      %v2036 = vpack.i.b16 %v2025, %v1997
      %v2037 = vshrl.u32 %v1997, 16
      %v2038 = vshrl.u32 %v2025, 16
      %v2039 = vpack.i.b16 %v2038, %v2037
      %v2042 = vpack.i.b16 %v2031, %v2003
      %v2043 = vshrl.u32 %v2003, 16
      %v2044 = vshrl.u32 %v2031, 16
      %v2045 = vpack.i.b16 %v2044, %v2043
      %v2048 = vpack.i.b16 %v2029, %v2001
      %v2049 = vshrl.u32 %v2001, 16
      %v2050 = vshrl.u32 %v2029, 16
      %v2051 = vpack.i.b16 %v2050, %v2049
      %v2054 = vpack.i.b16 %v2033, %v2005
      %v2055 = vshrl.u32 %v2005, 16
      %v2056 = vshrl.u32 %v2033, 16
      %v2057 = vpack.i.b16 %v2056, %v2055
      %v2058 = vunpack.c.l.b16 %v2039
      %v2059 = vpack.c.b16 %v2058, %v2058
      %2060 = vrot.lane.b32.xlu0 %v2059, 8
      %v2061 = vpop.permute.xlu0 %2060
      %v2062 = vunpack.c.l.b16 %v2042
      %v2063 = vpack.c.b16 %v2062, %v2062
      %2064 = vrot.lane.b32.xlu0 %v2063, 16
      %v2065 = vpop.permute.xlu0 %2064
      %v2066 = vunpack.c.l.b16 %v2045
      %v2067 = vpack.c.b16 %v2066, %v2066
      %2068 = vrot.lane.b32.xlu0 %v2067, 24
      %v2069 = vpop.permute.xlu0 %2068
      %v2070 = vunpack.c.l.b16 %v2048
      %v2071 = vpack.c.b16 %v2070, %v2070
      %2072 = vrot.lane.b32.xlu0 %v2071, 32
      %v2073 = vpop.permute.xlu0 %2072
      %v2074 = vunpack.c.l.b16 %v2051
      %v2075 = vpack.c.b16 %v2074, %v2074
      %2076 = vrot.lane.b32.xlu0 %v2075, 40
      %v2077 = vpop.permute.xlu0 %2076
      %v2078 = vunpack.c.l.b16 %v2054
      %v2079 = vpack.c.b16 %v2078, %v2078
      %2080 = vrot.lane.b32.xlu0 %v2079, 48
      %v2081 = vpop.permute.xlu0 %2080
      %v2082 = vunpack.c.l.b16 %v2057
      %v2083 = vpack.c.b16 %v2082, %v2082
      %2084 = vrot.lane.b32.xlu0 %v2083, 56
      %v2085 = vpop.permute.xlu0 %2084
      %v2088 = vsel %vm730, %v2036, %v2061
      %v2090 = vsel %vm734, %v2088, %v2065
      %v2092 = vsel %vm737, %v2090, %v2069
      %v2094 = vsel %vm740, %v2092, %v2073
      %v2096 = vsel %vm743, %v2094, %v2077
      %v2098 = vsel %vm746, %v2096, %v2081
      %v2100 = vsel %vm749, %v2098, %v2085
      %2102 = vst.msk [vmem:[#allocation3 + $0x18] sm:$0xf] %vm753, %v2100
      %v2103 = vld [vmem:[#allocation2] sm:$0xe]
      %v2104 = vld [vmem:[#allocation2 + $0x4] sm:$0x1]
      %v2105 = vld [vmem:[#allocation2 + $0x8] sm:$0xe]
      %v2106 = vld [vmem:[#allocation2 + $0xc] sm:$0x1]
      %v2107 = vld [vmem:[#allocation2 + $0x10] sm:$0xe]
      %v2108 = vld [vmem:[#allocation2 + $0x14] sm:$0x1]
      %v2109 = vld [vmem:[#allocation2 + $0x18] sm:$0xe]
      %v2110 = vld [vmem:[#allocation2 + $0x1c] sm:$0x1]
      %v2111 = vld [vmem:[#allocation2 + $0x20] sm:$0xe]
      %v2112 = vld [vmem:[#allocation2 + $0x24] sm:$0x1]
      %v2113 = vld [vmem:[#allocation2 + $0x28] sm:$0xe]
      %v2114 = vld [vmem:[#allocation2 + $0x2c] sm:$0x1]
      %v2115 = vld [vmem:[#allocation2 + $0x30] sm:$0xe]
      %v2116 = vld [vmem:[#allocation2 + $0x34] sm:$0x1]
      %v2117 = vld [vmem:[#allocation2 + $0x38] sm:$0xe]
      %v2118 = vld [vmem:[#allocation2 + $0x3c] sm:$0x1]
      %v2135 = vrot.slane %v2103, 5
      %v2136 = vrot.slane %v2135, 4
      %v2137 = vrot.slane %v2104, 5
      %v2138 = vsel %vm1937, %v2136, %v2137
      %v2139 = vrot.slane %v2105, 5
      %v2140 = vrot.slane %v2139, 4
      %v2141 = vrot.slane %v2106, 5
      %v2142 = vsel %vm1937, %v2140, %v2141
      %v2143 = vrot.slane %v2107, 5
      %v2144 = vrot.slane %v2143, 4
      %v2145 = vrot.slane %v2108, 5
      %v2146 = vsel %vm1937, %v2144, %v2145
      %v2147 = vrot.slane %v2109, 5
      %v2148 = vrot.slane %v2147, 4
      %v2149 = vrot.slane %v2110, 5
      %v2150 = vsel %vm1937, %v2148, %v2149
      %v2151 = vrot.slane %v2111, 5
      %v2152 = vrot.slane %v2151, 4
      %v2153 = vrot.slane %v2112, 5
      %v2154 = vsel %vm1937, %v2152, %v2153
      %v2155 = vrot.slane %v2113, 5
      %v2156 = vrot.slane %v2155, 4
      %v2157 = vrot.slane %v2114, 5
      %v2158 = vsel %vm1937, %v2156, %v2157
      %v2159 = vrot.slane %v2115, 5
      %v2160 = vrot.slane %v2159, 4
      %v2161 = vrot.slane %v2116, 5
      %v2162 = vsel %vm1937, %v2160, %v2161
      %v2163 = vrot.slane %v2117, 5
      %v2164 = vrot.slane %v2163, 4
      %v2165 = vrot.slane %v2118, 5
      %v2166 = vsel %vm1937, %v2164, %v2165
      %2167 = vrot.lane.b32.xlu0 %v2138, 127
      %v2168 = vpop.permute.xlu0 %2167
      %2169 = vrot.lane.b32.xlu0 %v2142, 127
      %v2170 = vpop.permute.xlu0 %2169
      %2171 = vrot.lane.b32.xlu0 %v2146, 127
      %v2172 = vpop.permute.xlu0 %2171
      %2173 = vrot.lane.b32.xlu0 %v2150, 127
      %v2174 = vpop.permute.xlu0 %2173
      %2175 = vrot.lane.b32.xlu0 %v2154, 127
      %v2176 = vpop.permute.xlu0 %2175
      %2177 = vrot.lane.b32.xlu0 %v2158, 127
      %v2178 = vpop.permute.xlu0 %2177
      %2179 = vrot.lane.b32.xlu0 %v2162, 127
      %v2180 = vpop.permute.xlu0 %2179
      %2181 = vrot.lane.b32.xlu0 %v2166, 127
      %v2182 = vpop.permute.xlu0 %2181
      %v2191 = vrot.slane %v2176, 4
      %v2192 = vsel %vm622, %v2191, %v2168
      %v2194 = vunpack.c.l.s4 1983009808
      %v2195 = vunpack.c.0.s8 %v2194
      %v2196 = vperm.slane %v2192, %v2195
      %v2197 = vrot.slane %v2180, 4
      %v2198 = vsel %vm622, %v2197, %v2172
      %v2200 = vunpack.c.l.s4 1983009808
      %v2201 = vunpack.c.0.s8 %v2200
      %v2202 = vperm.slane %v2198, %v2201
      %v2203 = vrot.slane %v2202, 4
      %v2204 = vsel %vm622, %v2203, %v2196
      %v2205 = vrot.slane %v2196, 4
      %v2206 = vsel %vm622, %v2202, %v2205
      %v2208 = vunpack.c.l.s4 1934713408
      %v2209 = vunpack.c.0.s8 %v2208
      %v2210 = vperm.slane %v2204, %v2209
      %v2212 = vunpack.c.l.s4 1934713408
      %v2213 = vunpack.c.0.s8 %v2212
      %v2214 = vperm.slane %v2206, %v2213
      %v2215 = vrot.slane %v2210, 4
      %v2216 = vsel %vm622, 0, %v2215
      %v2217 = vrot.slane %v2214, 4
      %v2218 = vsel %vm622, 0, %v2217
      %v2219 = vrot.slane %v2178, 4
      %v2220 = vsel %vm622, %v2219, %v2170
      %v2222 = vunpack.c.l.s4 1983009808
      %v2223 = vunpack.c.0.s8 %v2222
      %v2224 = vperm.slane %v2220, %v2223
      %v2225 = vrot.slane %v2182, 4
      %v2226 = vsel %vm622, %v2225, %v2174
      %v2228 = vunpack.c.l.s4 1983009808
      %v2229 = vunpack.c.0.s8 %v2228
      %v2230 = vperm.slane %v2226, %v2229
      %v2231 = vrot.slane %v2230, 4
      %v2232 = vsel %vm622, %v2231, %v2224
      %v2233 = vrot.slane %v2224, 4
      %v2234 = vsel %vm622, %v2230, %v2233
      %v2236 = vunpack.c.l.s4 1934713408
      %v2237 = vunpack.c.0.s8 %v2236
      %v2238 = vperm.slane %v2232, %v2237
      %v2240 = vunpack.c.l.s4 1934713408
      %v2241 = vunpack.c.0.s8 %v2240
      %v2242 = vperm.slane %v2234, %v2241
      %v2243 = vrot.slane %v2238, 4
      %v2244 = vsel %vm622, 0, %v2243
      %v2245 = vrot.slane %v2242, 4
      %v2246 = vsel %vm622, 0, %v2245
      %v2249 = vpack.i.b16 %v2238, %v2210
      %v2250 = vshrl.u32 %v2210, 16
      %v2251 = vshrl.u32 %v2238, 16
      %v2252 = vpack.i.b16 %v2251, %v2250
      %v2255 = vpack.i.b16 %v2244, %v2216
      %v2256 = vshrl.u32 %v2216, 16
      %v2257 = vshrl.u32 %v2244, 16
      %v2258 = vpack.i.b16 %v2257, %v2256
      %v2261 = vpack.i.b16 %v2242, %v2214
      %v2262 = vshrl.u32 %v2214, 16
      %v2263 = vshrl.u32 %v2242, 16
      %v2264 = vpack.i.b16 %v2263, %v2262
      %v2267 = vpack.i.b16 %v2246, %v2218
      %v2268 = vshrl.u32 %v2218, 16
      %v2269 = vshrl.u32 %v2246, 16
      %v2270 = vpack.i.b16 %v2269, %v2268
      %v2271 = vunpack.c.l.b16 %v2252
      %v2272 = vpack.c.b16 %v2271, %v2271
      %2273 = vrot.lane.b32.xlu0 %v2272, 8
      %v2274 = vpop.permute.xlu0 %2273
      %v2275 = vunpack.c.l.b16 %v2255
      %v2276 = vpack.c.b16 %v2275, %v2275
      %2277 = vrot.lane.b32.xlu0 %v2276, 16
      %v2278 = vpop.permute.xlu0 %2277
      %v2279 = vunpack.c.l.b16 %v2258
      %v2280 = vpack.c.b16 %v2279, %v2279
      %2281 = vrot.lane.b32.xlu0 %v2280, 24
      %v2282 = vpop.permute.xlu0 %2281
      %v2283 = vunpack.c.l.b16 %v2261
      %v2284 = vpack.c.b16 %v2283, %v2283
      %2285 = vrot.lane.b32.xlu0 %v2284, 32
      %v2286 = vpop.permute.xlu0 %2285
      %v2287 = vunpack.c.l.b16 %v2264
      %v2288 = vpack.c.b16 %v2287, %v2287
      %2289 = vrot.lane.b32.xlu0 %v2288, 40
      %v2290 = vpop.permute.xlu0 %2289
      %v2291 = vunpack.c.l.b16 %v2267
      %v2292 = vpack.c.b16 %v2291, %v2291
      %2293 = vrot.lane.b32.xlu0 %v2292, 48
      %v2294 = vpop.permute.xlu0 %2293
      %v2295 = vunpack.c.l.b16 %v2270
      %v2296 = vpack.c.b16 %v2295, %v2295
      %2297 = vrot.lane.b32.xlu0 %v2296, 56
      %v2298 = vpop.permute.xlu0 %2297
      %v2301 = vsel %vm730, %v2249, %v2274
      %v2303 = vsel %vm734, %v2301, %v2278
      %v2305 = vsel %vm737, %v2303, %v2282
      %v2307 = vsel %vm740, %v2305, %v2286
      %v2309 = vsel %vm743, %v2307, %v2290
      %v2311 = vsel %vm746, %v2309, %v2294
      %v2313 = vsel %vm749, %v2311, %v2298
      %2315 = vst.msk [vmem:[#allocation3 + $0x1c] sm:$0xf] %vm753, %v2313
      %v2316 = vld [vmem:[#allocation2] sm:$0xe]
      %v2317 = vld [vmem:[#allocation2 + $0x4] sm:$0x1]
      %v2318 = vld [vmem:[#allocation2 + $0x8] sm:$0xe]
      %v2319 = vld [vmem:[#allocation2 + $0xc] sm:$0x1]
      %v2320 = vld [vmem:[#allocation2 + $0x10] sm:$0xe]
      %v2321 = vld [vmem:[#allocation2 + $0x14] sm:$0x1]
      %v2322 = vld [vmem:[#allocation2 + $0x18] sm:$0xe]
      %v2323 = vld [vmem:[#allocation2 + $0x1c] sm:$0x1]
      %v2324 = vld [vmem:[#allocation2 + $0x20] sm:$0xe]
      %v2325 = vld [vmem:[#allocation2 + $0x24] sm:$0x1]
      %v2326 = vld [vmem:[#allocation2 + $0x28] sm:$0xe]
      %v2327 = vld [vmem:[#allocation2 + $0x2c] sm:$0x1]
      %v2328 = vld [vmem:[#allocation2 + $0x30] sm:$0xe]
      %v2329 = vld [vmem:[#allocation2 + $0x34] sm:$0x1]
      %v2330 = vld [vmem:[#allocation2 + $0x38] sm:$0xe]
      %v2331 = vld [vmem:[#allocation2 + $0x3c] sm:$0x1]
      %v2348 = vrot.slane %v2316, 5
      %v2349 = vrot.slane %v2348, 4
      %v2350 = vrot.slane %v2317, 5
      %v2351 = vsel %vm1937, %v2349, %v2350
      %v2352 = vrot.slane %v2318, 5
      %v2353 = vrot.slane %v2352, 4
      %v2354 = vrot.slane %v2319, 5
      %v2355 = vsel %vm1937, %v2353, %v2354
      %v2356 = vrot.slane %v2320, 5
      %v2357 = vrot.slane %v2356, 4
      %v2358 = vrot.slane %v2321, 5
      %v2359 = vsel %vm1937, %v2357, %v2358
      %v2360 = vrot.slane %v2322, 5
      %v2361 = vrot.slane %v2360, 4
      %v2362 = vrot.slane %v2323, 5
      %v2363 = vsel %vm1937, %v2361, %v2362
      %v2364 = vrot.slane %v2324, 5
      %v2365 = vrot.slane %v2364, 4
      %v2366 = vrot.slane %v2325, 5
      %v2367 = vsel %vm1937, %v2365, %v2366
      %v2368 = vrot.slane %v2326, 5
      %v2369 = vrot.slane %v2368, 4
      %v2370 = vrot.slane %v2327, 5
      %v2371 = vsel %vm1937, %v2369, %v2370
      %v2372 = vrot.slane %v2328, 5
      %v2373 = vrot.slane %v2372, 4
      %v2374 = vrot.slane %v2329, 5
      %v2375 = vsel %vm1937, %v2373, %v2374
      %v2376 = vrot.slane %v2330, 5
      %v2377 = vrot.slane %v2376, 4
      %v2378 = vrot.slane %v2331, 5
      %v2379 = vsel %vm1937, %v2377, %v2378
      %2380 = vrot.lane.b32.xlu0 %v2351, 126
      %v2381 = vpop.permute.xlu0 %2380
      %2382 = vrot.lane.b32.xlu0 %v2355, 126
      %v2383 = vpop.permute.xlu0 %2382
      %2384 = vrot.lane.b32.xlu0 %v2359, 126
      %v2385 = vpop.permute.xlu0 %2384
      %2386 = vrot.lane.b32.xlu0 %v2363, 126
      %v2387 = vpop.permute.xlu0 %2386
      %2388 = vrot.lane.b32.xlu0 %v2367, 126
      %v2389 = vpop.permute.xlu0 %2388
      %2390 = vrot.lane.b32.xlu0 %v2371, 126
      %v2391 = vpop.permute.xlu0 %2390
      %2392 = vrot.lane.b32.xlu0 %v2375, 126
      %v2393 = vpop.permute.xlu0 %2392
      %2394 = vrot.lane.b32.xlu0 %v2379, 126
      %v2395 = vpop.permute.xlu0 %2394
      %v2404 = vrot.slane %v2389, 4
      %v2405 = vsel %vm622, %v2404, %v2381
      %v2407 = vunpack.c.l.s4 1983009808
      %v2408 = vunpack.c.0.s8 %v2407
      %v2409 = vperm.slane %v2405, %v2408
      %v2410 = vrot.slane %v2393, 4
      %v2411 = vsel %vm622, %v2410, %v2385
      %v2413 = vunpack.c.l.s4 1983009808
      %v2414 = vunpack.c.0.s8 %v2413
      %v2415 = vperm.slane %v2411, %v2414
      %v2416 = vrot.slane %v2415, 4
      %v2417 = vsel %vm622, %v2416, %v2409
      %v2418 = vrot.slane %v2409, 4
      %v2419 = vsel %vm622, %v2415, %v2418
      %v2421 = vunpack.c.l.s4 1934713408
      %v2422 = vunpack.c.0.s8 %v2421
      %v2423 = vperm.slane %v2417, %v2422
      %v2425 = vunpack.c.l.s4 1934713408
      %v2426 = vunpack.c.0.s8 %v2425
      %v2427 = vperm.slane %v2419, %v2426
      %v2428 = vrot.slane %v2423, 4
      %v2429 = vsel %vm622, 0, %v2428
      %v2430 = vrot.slane %v2427, 4
      %v2431 = vsel %vm622, 0, %v2430
      %v2432 = vrot.slane %v2391, 4
      %v2433 = vsel %vm622, %v2432, %v2383
      %v2435 = vunpack.c.l.s4 1983009808
      %v2436 = vunpack.c.0.s8 %v2435
      %v2437 = vperm.slane %v2433, %v2436
      %v2438 = vrot.slane %v2395, 4
      %v2439 = vsel %vm622, %v2438, %v2387
      %v2441 = vunpack.c.l.s4 1983009808
      %v2442 = vunpack.c.0.s8 %v2441
      %v2443 = vperm.slane %v2439, %v2442
      %v2444 = vrot.slane %v2443, 4
      %v2445 = vsel %vm622, %v2444, %v2437
      %v2446 = vrot.slane %v2437, 4
      %v2447 = vsel %vm622, %v2443, %v2446
      %v2449 = vunpack.c.l.s4 1934713408
      %v2450 = vunpack.c.0.s8 %v2449
      %v2451 = vperm.slane %v2445, %v2450
      %v2453 = vunpack.c.l.s4 1934713408
      %v2454 = vunpack.c.0.s8 %v2453
      %v2455 = vperm.slane %v2447, %v2454
      %v2456 = vrot.slane %v2451, 4
      %v2457 = vsel %vm622, 0, %v2456
      %v2458 = vrot.slane %v2455, 4
      %v2459 = vsel %vm622, 0, %v2458
      %v2462 = vpack.i.b16 %v2451, %v2423
      %v2463 = vshrl.u32 %v2423, 16
      %v2464 = vshrl.u32 %v2451, 16
      %v2465 = vpack.i.b16 %v2464, %v2463
      %v2468 = vpack.i.b16 %v2457, %v2429
      %v2469 = vshrl.u32 %v2429, 16
      %v2470 = vshrl.u32 %v2457, 16
      %v2471 = vpack.i.b16 %v2470, %v2469
      %v2474 = vpack.i.b16 %v2455, %v2427
      %v2475 = vshrl.u32 %v2427, 16
      %v2476 = vshrl.u32 %v2455, 16
      %v2477 = vpack.i.b16 %v2476, %v2475
      %v2480 = vpack.i.b16 %v2459, %v2431
      %v2481 = vshrl.u32 %v2431, 16
      %v2482 = vshrl.u32 %v2459, 16
      %v2483 = vpack.i.b16 %v2482, %v2481
      %v2484 = vunpack.c.l.b16 %v2465
      %v2485 = vpack.c.b16 %v2484, %v2484
      %2486 = vrot.lane.b32.xlu0 %v2485, 8
      %v2487 = vpop.permute.xlu0 %2486
      %v2488 = vunpack.c.l.b16 %v2468
      %v2489 = vpack.c.b16 %v2488, %v2488
      %2490 = vrot.lane.b32.xlu0 %v2489, 16
      %v2491 = vpop.permute.xlu0 %2490
      %v2492 = vunpack.c.l.b16 %v2471
      %v2493 = vpack.c.b16 %v2492, %v2492
      %2494 = vrot.lane.b32.xlu0 %v2493, 24
      %v2495 = vpop.permute.xlu0 %2494
      %v2496 = vunpack.c.l.b16 %v2474
      %v2497 = vpack.c.b16 %v2496, %v2496
      %2498 = vrot.lane.b32.xlu0 %v2497, 32
      %v2499 = vpop.permute.xlu0 %2498
      %v2500 = vunpack.c.l.b16 %v2477
      %v2501 = vpack.c.b16 %v2500, %v2500
      %2502 = vrot.lane.b32.xlu0 %v2501, 40
      %v2503 = vpop.permute.xlu0 %2502
      %v2504 = vunpack.c.l.b16 %v2480
      %v2505 = vpack.c.b16 %v2504, %v2504
      %2506 = vrot.lane.b32.xlu0 %v2505, 48
      %v2507 = vpop.permute.xlu0 %2506
      %v2508 = vunpack.c.l.b16 %v2483
      %v2509 = vpack.c.b16 %v2508, %v2508
      %2510 = vrot.lane.b32.xlu0 %v2509, 56
      %v2511 = vpop.permute.xlu0 %2510
      %v2514 = vsel %vm730, %v2462, %v2487
      %v2516 = vsel %vm734, %v2514, %v2491
      %v2518 = vsel %vm737, %v2516, %v2495
      %v2520 = vsel %vm740, %v2518, %v2499
      %v2522 = vsel %vm743, %v2520, %v2503
      %v2524 = vsel %vm746, %v2522, %v2507
      %v2526 = vsel %vm749, %v2524, %v2511
      %2528 = vst.msk [vmem:[#allocation3 + $0x20] sm:$0xf] %vm753, %v2526
      %v2529 = vld [vmem:[%s1] sm:$0xf]
      %v2530 = vld [vmem:[#allocation3] sm:$0xf]
      %v2531 = vld [vmem:[#allocation3 + $0x4] sm:$0xf]
      %v2532 = vld [vmem:[#allocation3 + $0x8] sm:$0xf]
      %v2533 = vld [vmem:[#allocation3 + $0xc] sm:$0xf]
      %v2534 = vld [vmem:[#allocation3 + $0x10] sm:$0xf]
      %v2535 = vld [vmem:[#allocation3 + $0x14] sm:$0xf]
      %v2536 = vld [vmem:[#allocation3 + $0x18] sm:$0xf]
      %v2537 = vld [vmem:[#allocation3 + $0x1c] sm:$0xf]
      %v2538 = vld [vmem:[#allocation3 + $0x20] sm:$0xf]
      %v2548 = vunpack.c.l.b16 %v2530
      %v2549 = vunpack.c.l.b16 %v2531
      %v2550 = vunpack.c.l.b16 %v2532
      %v2551 = vunpack.c.l.b16 %v2533
      %v2552 = vunpack.c.l.b16 %v2534
      %v2553 = vunpack.c.l.b16 %v2535
      %v2554 = vunpack.c.l.b16 %v2536
      %v2555 = vunpack.c.l.b16 %v2537
      %v2556 = vunpack.c.l.b16 %v2538
      %v2557 = vpack.c.b16 %v2549, %v2548
      %v2558 = vpack.c.b16 %v2551, %v2550
      %v2559 = vpack.c.b16 %v2553, %v2552
      %v2560 = vpack.c.b16 %v2555, %v2554
      %v2561 = vpack.c.b16 %v2556, %v2556
      %vm2566 = vcmask 588800
      %v2568 = vsel %vm2566, %v2529, 0
      %vm2570 = vcmask 1043456
      %v2572 = vsel %vm2570, %v2561, 0
      %2574 = vmatpush.bf16.msra.mxu0 0
      %2575 = vmatpush.bf16.msra.mxu0 0
      %2576 = vmatpush.bf16.msra.mxu0 0
      %2577 = vmatpush.bf16.msra.mxu0 %v2572
      %2578 = vmatpush.bf16.msra.mxu0 %v2560
      %2579 = vmatpush.bf16.msra.mxu0 %v2559
      %2580 = vmatpush.bf16.msra.mxu0 %v2558
      %2581 = vmatpush.bf16.msra.mxu0 %v2557
      %2582 = vmatmul.bf16.gmra.mxu0 %v2568
      %v2583 = vpop.f32.mrf.mxu0
      %v2584 = vadd.f32 0.0, %v2583
      %v2585 = vpop.f32.mrf.mxu0
      %2586 = vdwg.mxu0
      %v2587 = vpack.c.bf16 %v2584, %v2584
      %2588 = vst.msk [vmem:[%s259] sm:$0xf] %vm753, %v2587
      %vm2589 = vcmask 523264
      %v2590 = vsel %vm2589, %v2584, 0.0
      %2591 = vadd.xlane.f32.xlu0 %v2590
      %v2592 = vpop.xlane.xlu0 %2591
      %vm2593 = vcmask 7168
      %2594 = vst.msk [vmem:[%s263] sm:$0xff] %vm2593, %v2592
      %v2595 = vmul.f32 %v2584, %v2584
      %v2596 = vsel %vm2589, %v2595, 0.0
      %2597 = vadd.xlane.f32.xlu0 %v2596
      %v2598 = vpop.xlane.xlu0 %2597
      %2599 = vst.msk [vmem:[%s267] sm:$0xff] %vm2593, %v2598
      %p2600 = scmp.lt.s32.totalorder %s18, 1
      %s2601 = scalar_select %p2600, %s18, 1
      %s2602 = smul.addr %s2601, 4
      %s2603 = scalar_lea.vmem %s4, %s2602
      %p2604 = scmp.lt.s32.totalorder %s18, 1
      %s2605 = scalar_select %p2604, %s18, 1
      %s2606 = smul.addr %s2605, 8
      %s2607 = scalar_lea.vmem %s5, %s2606
      %p2608 = scmp.lt.s32.totalorder %s18, 1
      %s2609 = scalar_select %p2608, %s18, 1
      %s2610 = smul.addr %s2609, 8
      %s2611 = scalar_lea.vmem %s6, %s2610
      // Predicated region
      $region37: #{down_forward.4} parent=35 // pred_check
        %p2612 = pneg %p125
      $region38: #{down_forward.4} parent=35 // pred_check_branch
        %2614 = sbr.rel (%p2612) target = $region40
      $region39: #{down_forward.4} parent=35 // pred_region
        _
      $region40: #{down_forward.4} parent=35 // pred_fallthru
        _
      // Predicated region
      $region41: #{down_forward.4} parent=35 // pred_check
        %p2615 = pneg %p151
      $region42: #{down_forward.4} parent=35 // pred_check_branch
        %2617 = sbr.rel (%p2615) target = $region44
      $region43: #{down_forward.4} parent=35 // pred_region
        _
      $region44: #{down_forward.4} parent=35 // pred_fallthru
        _
      // Predicated region
      $region45: #{down_forward.4} parent=35 // pred_check
        %p2618 = pneg %p177
      $region46: #{down_forward.4} parent=35 // pred_check_branch
        %2620 = sbr.rel (%p2618) target = $region48
      $region47: #{down_forward.4} parent=35 // pred_region
        _
      $region48: #{down_forward.4} parent=35 // pred_fallthru
        _
    $region36: #{down_forward.4} parent=5 // pred_fallthru
      _
    %p2621 = scmp.le.s32.totalorder 2, %s13
    // Predicated region
    $region49: #{down_forward.4} parent=5 // pred_check
      %p2622 = pneg %p2621
    $region50: #{down_forward.4} parent=5 // pred_check_branch
      %2624 = sbr.rel (%p2622) target = $region52
    $region51: #{down_forward.4} parent=5 // pred_region
      %s2625 = ssub.s32 %s13, 2
      // Predicated region
      $region53: #{down_forward.4} parent=51 // pred_check
        %p2626 = pneg %p131
      $region54: #{down_forward.4} parent=51 // pred_check_branch
        %2628 = sbr.rel (%p2626) target = $region56
      $region55: #{down_forward.4} parent=51 // pred_region
        %p2629 = scmp.lt.s32.totalorder %s19, 1
        %s2630 = scalar_select %p2629, %s19, 1
        %s2631 = smul.addr %s2630, 4
        %s2632 = scalar_lea.vmem %s4, %s2631
      $region56: #{down_forward.4} parent=51 // pred_fallthru
        _
      // Predicated region
      $region57: #{down_forward.4} parent=51 // pred_check
        %p2633 = pneg %p157
      $region58: #{down_forward.4} parent=51 // pred_check_branch
        %2635 = sbr.rel (%p2633) target = $region60
      $region59: #{down_forward.4} parent=51 // pred_region
        %p2636 = scmp.lt.s32.totalorder %s19, 1
        %s2637 = scalar_select %p2636, %s19, 1
        %s2638 = smul.addr %s2637, 8
        %s2639 = scalar_lea.vmem %s5, %s2638
      $region60: #{down_forward.4} parent=51 // pred_fallthru
        _
      // Predicated region
      $region61: #{down_forward.4} parent=51 // pred_check
        %p2640 = pneg %p183
      $region62: #{down_forward.4} parent=51 // pred_check_branch
        %2642 = sbr.rel (%p2640) target = $region64
      $region63: #{down_forward.4} parent=51 // pred_region
        %p2643 = scmp.lt.s32.totalorder %s19, 1
        %s2644 = scalar_select %p2643, %s19, 1
        %s2645 = smul.addr %s2644, 8
        %s2646 = scalar_lea.vmem %s6, %s2645
      $region64: #{down_forward.4} parent=51 // pred_fallthru
        _
    $region52: #{down_forward.4} parent=5 // pred_fallthru
      _
  $region6: #{down_forward.4} parent=0 // loop_footer
    %s17 = sadd.s32 1, %s13
  $region7: #{down_forward.4} parent=0 // loop_footer_branch
    %12 = sbr.rel target = $region3
  $region8: #{down_forward.4} parent=0 // loop_exit
    _

// kernel: down_forward.3
$region0: #{down_forward.3}
  #allocation0 [shape = 'u32[]', space=smem, size = 0x4, offset = 0x4, fixed_abs, tag = 'smem constant byte address 0x4 - core index']
  #allocation1 [shape = 'u32[72,128]{1,0:T(1,128)}', space=vmem, size = 0x9000, scoped, tag = 'internal scratch']
  #allocation2 [shape = 'bf16[4,10,10]{2,1,0:T(8,128)(2,1)}', space=vmem, size = 0x4000, scoped, tag = 'scratch operand']
  #allocation3 [shape = 'bf16[36,64]{1,0:T(8,128)(2,1)}', space=vmem, size = 0x2800, scoped, tag = 'scratch operand']
  %s0 = inlined_call_operand.vmem [shape: f32[2,4,16,16], index: 0, kind: input, shape index: {}]
  %s1 = inlined_call_operand.vmem [shape: bf16[8,36], index: 1, kind: input, shape index: {}]
  %s2 = inlined_call_operand.vmem [shape: bf16[2,8,64], index: 2, kind: output, shape index: {0}]
  %s3 = inlined_call_operand.vmem [shape: f32[2,8,1], index: 3, kind: output, shape index: {1}]
  %s4 = inlined_call_operand.vmem [shape: f32[2,8,1], index: 4, kind: output, shape index: {2}]
  %5 = xla_tuple %s2, %s3, %s4
  %s6 = sld [smem:[#allocation0]]
  $region57: #{down_forward.3} parent=0
    _
  %s8 = ssub.s32 1, %s6
  %s9 = scalar_select 0, %s8, %s6
  loop: start=0, step=1, limit=4
  $region2: #{down_forward.3} parent=0 // loop_pre_header
    _
  $region3: #{down_forward.3} parent=0 // loop_header
    %s11 = sphi 0, %s15
    %p12 = scmp.ge.s32.totalorder %s11, 4
    %s21 = sphi 0, %s23
    %s24 = sphi 0, %s21
    %s25 = sphi 0, %s24
    %s41 = sphi 0, %s25
    %s45 = sphi 0, %s45
    %s47 = sphi 0, %s45
    %s48 = sphi 0, %s47
    %s62 = sphi 0, %s48
    %s68 = sphi 0, %s70
    %s71 = sphi 0, %s68
    %s72 = sphi 0, %s71
    %s88 = sphi 0, %s72
    %s94 = sphi 0, %s96
    %s97 = sphi 0, %s94
    %s98 = sphi 0, %s97
    %s114 = sphi 0, %s98
    %s120 = sphi 0, %s122
    %s123 = sphi 0, %s120
    %s124 = sphi 0, %s123
    %s140 = sphi 0, %s124
  $region4: #{down_forward.3} parent=0 // loop_header_branch
    %14 = sbr.rel (%p12) target = $region8
  $region5: #{down_forward.3} parent=0 // loop_body
    %s16 = ssub.s32 %s11, 1
    %s17 = ssub.s32 %s11, 2
    %s18 = sadd.s32 %s11, 1
    %s19 = ssub.s32 %s11, %s18
    %p20 = scmp.eq.s32.totalorder %s19, 0
    %s22 = sadd.s32 %s21, 1
    %s23 = scalar_select %p20, %s21, %s22
    %p26 = pneg %p20
    %p27 = scmp.eq.s32.totalorder %s11, 1
    %p28 = por %p26, %p27
    %p29 = scmp.ne.s32.totalorder %s21, %s24
    %p30 = scmp.eq.s32.totalorder %s11, 0
    %p31 = por %p29, %p30
    %p32 = scmp.ne.s32.totalorder %s21, %s24
    %p33 = scmp.eq.s32.totalorder %s16, 1
    %p34 = por %p32, %p33
    %p35 = scmp.ne.s32.totalorder %s24, %s25
    %p36 = scmp.eq.s32.totalorder %s16, 0
    %p37 = por %p35, %p36
    %p38 = scmp.ne.s32.totalorder %s24, %s25
    %p39 = scmp.eq.s32.totalorder %s17, 1
    %p40 = por %p38, %p39
    %p42 = scmp.ne.s32.totalorder %s25, %s41
    %p43 = scmp.eq.s32.totalorder %s17, 0
    %p44 = por %p42, %p43
    %s46 = sadd.s32 %s45, 1
    %p49 = scmp.eq.s32.totalorder %s11, 1
    %p50 = scmp.ne.s32.totalorder %s45, %s47
    %p51 = scmp.eq.s32.totalorder %s11, 0
    %p52 = por %p50, %p51
    %p53 = scmp.ne.s32.totalorder %s45, %s47
    %p54 = scmp.eq.s32.totalorder %s16, 1
    %p55 = por %p53, %p54
    %p56 = scmp.ne.s32.totalorder %s47, %s48
    %p57 = scmp.eq.s32.totalorder %s16, 0
    %p58 = por %p56, %p57
    %p59 = scmp.ne.s32.totalorder %s47, %s48
    %p60 = scmp.eq.s32.totalorder %s17, 1
    %p61 = por %p59, %p60
    %p63 = scmp.ne.s32.totalorder %s48, %s62
    %p64 = scmp.eq.s32.totalorder %s17, 0
    %p65 = por %p63, %p64
    %s66 = ssub.s32 %s11, %s18
    %p67 = scmp.eq.s32.totalorder %s66, 0
    %s69 = sadd.s32 %s68, 1
    %s70 = scalar_select %p67, %s68, %s69
    %p73 = pneg %p67
    %p74 = scmp.eq.s32.totalorder %s11, 1
    %p75 = por %p73, %p74
    %p76 = scmp.ne.s32.totalorder %s68, %s71
    %p77 = scmp.eq.s32.totalorder %s11, 0
    %p78 = por %p76, %p77
    %p79 = scmp.ne.s32.totalorder %s68, %s71
    %p80 = scmp.eq.s32.totalorder %s16, 1
    %p81 = por %p79, %p80
    %p82 = scmp.ne.s32.totalorder %s71, %s72
    %p83 = scmp.eq.s32.totalorder %s16, 0
    %p84 = por %p82, %p83
    %p85 = scmp.ne.s32.totalorder %s71, %s72
    %p86 = scmp.eq.s32.totalorder %s17, 1
    %p87 = por %p85, %p86
    %p89 = scmp.ne.s32.totalorder %s72, %s88
    %p90 = scmp.eq.s32.totalorder %s17, 0
    %p91 = por %p89, %p90
    %s92 = ssub.s32 %s11, %s18
    %p93 = scmp.eq.s32.totalorder %s92, 0
    %s95 = sadd.s32 %s94, 1
    %s96 = scalar_select %p93, %s94, %s95
    %p99 = pneg %p93
    %p100 = scmp.eq.s32.totalorder %s11, 1
    %p101 = por %p99, %p100
    %p102 = scmp.ne.s32.totalorder %s94, %s97
    %p103 = scmp.eq.s32.totalorder %s11, 0
    %p104 = por %p102, %p103
    %p105 = scmp.ne.s32.totalorder %s94, %s97
    %p106 = scmp.eq.s32.totalorder %s16, 1
    %p107 = por %p105, %p106
    %p108 = scmp.ne.s32.totalorder %s97, %s98
    %p109 = scmp.eq.s32.totalorder %s16, 0
    %p110 = por %p108, %p109
    %p111 = scmp.ne.s32.totalorder %s97, %s98
    %p112 = scmp.eq.s32.totalorder %s17, 1
    %p113 = por %p111, %p112
    %p115 = scmp.ne.s32.totalorder %s98, %s114
    %p116 = scmp.eq.s32.totalorder %s17, 0
    %p117 = por %p115, %p116
    %s118 = ssub.s32 %s11, %s18
    %p119 = scmp.eq.s32.totalorder %s118, 0
    %s121 = sadd.s32 %s120, 1
    %s122 = scalar_select %p119, %s120, %s121
    %p125 = pneg %p119
    %p126 = scmp.eq.s32.totalorder %s11, 1
    %p127 = por %p125, %p126
    %p128 = scmp.ne.s32.totalorder %s120, %s123
    %p129 = scmp.eq.s32.totalorder %s11, 0
    %p130 = por %p128, %p129
    %p131 = scmp.ne.s32.totalorder %s120, %s123
    %p132 = scmp.eq.s32.totalorder %s16, 1
    %p133 = por %p131, %p132
    %p134 = scmp.ne.s32.totalorder %s123, %s124
    %p135 = scmp.eq.s32.totalorder %s16, 0
    %p136 = por %p134, %p135
    %p137 = scmp.ne.s32.totalorder %s123, %s124
    %p138 = scmp.eq.s32.totalorder %s17, 1
    %p139 = por %p137, %p138
    %p141 = scmp.ne.s32.totalorder %s124, %s140
    %p142 = scmp.eq.s32.totalorder %s17, 0
    %p143 = por %p141, %p142
    %p144 = scmp.le.s32.totalorder 1, %s11
    %p145 = scmp.lt.s32.totalorder %s11, 3
    %p146 = pnand %p144, %p145
    %p147 = pneg %p146
    // Predicated region
    $region9: #{down_forward.3} parent=5 // pred_check
      _
    $region10: #{down_forward.3} parent=5 // pred_check_branch
      %149 = sbr.rel (%p146) target = $region12
    $region11: #{down_forward.3} parent=5 // pred_region
      %s150 = ssub.s32 %s11, 1
      // Predicated region
      $region13: #{down_forward.3} parent=11 // pred_check
        %p151 = pneg %p58
      $region14: #{down_forward.3} parent=11 // pred_check_branch
        %153 = sbr.rel (%p151) target = $region16
      $region15: #{down_forward.3} parent=11 // pred_region
        _
      $region16: #{down_forward.3} parent=11 // pred_fallthru
        _
    $region12: #{down_forward.3} parent=5 // pred_fallthru
      _
    %p154 = scmp.lt.s32.totalorder %s11, 2
    // Predicated region
    $region17: #{down_forward.3} parent=5 // pred_check
      %p155 = pneg %p154
    $region18: #{down_forward.3} parent=5 // pred_check_branch
      %157 = sbr.rel (%p155) target = $region20
    $region19: #{down_forward.3} parent=5 // pred_region
      // Predicated region
      $region21: #{down_forward.3} parent=19 // pred_check
        %p158 = pneg %p31
      $region22: #{down_forward.3} parent=19 // pred_check_branch
        %160 = sbr.rel (%p158) target = $region24
      $region23: #{down_forward.3} parent=19 // pred_region
        %p161 = scmp.lt.s32.totalorder %s11, 1
        %s162 = scalar_select %p161, %s11, 1
        %s163 = smul.addr %s162, 8
        %s164 = smul.addr %s163, 8
        %s165 = scalar_lea.vmem %s0, %s164
      $region24: #{down_forward.3} parent=19 // pred_fallthru
        _
    $region20: #{down_forward.3} parent=5 // pred_fallthru
      _
    %p166 = scmp.le.s32.totalorder 1, %s11
    %p167 = scmp.lt.s32.totalorder %s11, 3
    %p168 = pnand %p166, %p167
    %p169 = pneg %p168
    // Predicated region
    $region25: #{down_forward.3} parent=5 // pred_check
      _
    $region26: #{down_forward.3} parent=5 // pred_check_branch
      %171 = sbr.rel (%p168) target = $region28
    $region27: #{down_forward.3} parent=5 // pred_region
      %s172 = ssub.s32 %s11, 1
      %p173 = scmp.lt.s32.totalorder %s16, 1
      %s174 = scalar_select %p173, %s16, 1
      %s175 = smul.addr %s174, 8
      %s176 = smul.addr %s175, 8
      %s177 = scalar_lea.vmem %s0, %s176
      %p178 = pneg %p37
      %p179 = pneg %p34
      %p180 = pneg %p58
      %p181 = pneg %p55
      %p182 = pneg %p84
      %p183 = pneg %p81
      %p184 = scmp.lt.s32.totalorder %s16, 1
      %s185 = scalar_select %p184, %s16, 1
      %s186 = smul.addr %s185, 4
      %s187 = scalar_lea.vmem %s2, %s186
      %p188 = pneg %p110
      %p189 = pneg %p107
      %p190 = scmp.lt.s32.totalorder %s16, 1
      %s191 = scalar_select %p190, %s16, 1
      %s192 = smul.addr %s191, 8
      %s193 = scalar_lea.vmem %s3, %s192
      %p194 = pneg %p136
      %p195 = pneg %p133
      %p196 = scmp.lt.s32.totalorder %s16, 1
      %s197 = scalar_select %p196, %s16, 1
      %s198 = smul.addr %s197, 8
      %s199 = scalar_lea.vmem %s4, %s198
      %p200 = scmp.lt.s32.totalorder %s16, 1
      %s201 = scalar_select %p200, %s16, 1
      %s202 = smul.addr %s201, 8
      %s203 = smul.addr %s202, 8
      %s204 = scalar_lea.vmem %s0, %s203
      %p205 = scmp.lt.s32.totalorder %s16, 1
      %s206 = scalar_select %p205, %s16, 1
      %s207 = smul.addr %s206, 4
      %s208 = scalar_lea.vmem %s2, %s207
      %p209 = scmp.lt.s32.totalorder %s16, 1
      %s210 = scalar_select %p209, %s16, 1
      %s211 = smul.addr %s210, 8
      %s212 = scalar_lea.vmem %s3, %s211
      %p213 = scmp.lt.s32.totalorder %s16, 1
      %s214 = scalar_select %p213, %s16, 1
      %s215 = smul.addr %s214, 8
      %s216 = scalar_lea.vmem %s4, %s215
      %v218 = vld [vmem:[%s204] sm:$0xff]
      %v219 = vld [vmem:[%s204 + $0x8] sm:$0xff]
      %v220 = vld [vmem:[%s204 + $0x10] sm:$0xff]
      %v221 = vld [vmem:[%s204 + $0x18] sm:$0xff]
      %v222 = vld [vmem:[%s204 + $0x20] sm:$0xff]
      %v223 = vld [vmem:[%s204 + $0x28] sm:$0xff]
      %v224 = vld [vmem:[%s204 + $0x30] sm:$0xff]
      %v225 = vld [vmem:[%s204 + $0x38] sm:$0xff]
      %v234 = vrot.slane %v218, 2
      %v235 = vrot.slane %v218, 4
      %v236 = vrot.slane %v218, 6
      %v237 = vrot.slane %v219, 2
      %v238 = vrot.slane %v219, 4
      %v239 = vrot.slane %v219, 6
      %v240 = vrot.slane %v220, 2
      %v241 = vrot.slane %v220, 4
      %v242 = vrot.slane %v220, 6
      %v243 = vrot.slane %v221, 2
      %v244 = vrot.slane %v221, 4
      %v245 = vrot.slane %v221, 6
      %v246 = vrot.slane %v222, 2
      %v247 = vrot.slane %v222, 4
      %v248 = vrot.slane %v222, 6
      %v249 = vrot.slane %v223, 2
      %v250 = vrot.slane %v223, 4
      %v251 = vrot.slane %v223, 6
      %v252 = vrot.slane %v224, 2
      %v253 = vrot.slane %v224, 4
      %v254 = vrot.slane %v224, 6
      %v255 = vrot.slane %v225, 2
      %v256 = vrot.slane %v225, 4
      %v257 = vrot.slane %v225, 6
      %v282 = vrot.slane %v218, 7
      %v283 = vrot.slane %v282, 2
      %v284 = vrot.slane %v234, 7
      %v285 = vrot.slane %v284, 2
      %v286 = vrot.slane %v235, 7
      %v287 = vrot.slane %v286, 2
      %v288 = vrot.slane %v236, 7
      %v289 = vrot.slane %v288, 2
      %v290 = vrot.slane %v219, 7
      %v291 = vrot.slane %v290, 2
      %v292 = vrot.slane %v237, 7
      %v293 = vrot.slane %v292, 2
      %v294 = vrot.slane %v238, 7
      %v295 = vrot.slane %v294, 2
      %v296 = vrot.slane %v239, 7
      %v297 = vrot.slane %v296, 2
      %v298 = vrot.slane %v220, 7
      %v299 = vrot.slane %v298, 2
      %v300 = vrot.slane %v240, 7
      %v301 = vrot.slane %v300, 2
      %v302 = vrot.slane %v241, 7
      %v303 = vrot.slane %v302, 2
      %v304 = vrot.slane %v242, 7
      %v305 = vrot.slane %v304, 2
      %v306 = vrot.slane %v221, 7
      %v307 = vrot.slane %v306, 2
      %v308 = vrot.slane %v243, 7
      %v309 = vrot.slane %v308, 2
      %v310 = vrot.slane %v244, 7
      %v311 = vrot.slane %v310, 2
      %v312 = vrot.slane %v245, 7
      %v313 = vrot.slane %v312, 2
      %v314 = vrot.slane %v222, 7
      %v315 = vrot.slane %v314, 2
      %v316 = vrot.slane %v246, 7
      %v317 = vrot.slane %v316, 2
      %v318 = vrot.slane %v247, 7
      %v319 = vrot.slane %v318, 2
      %v320 = vrot.slane %v248, 7
      %v321 = vrot.slane %v320, 2
      %v322 = vrot.slane %v223, 7
      %v323 = vrot.slane %v322, 2
      %v324 = vrot.slane %v249, 7
      %v325 = vrot.slane %v324, 2
      %v326 = vrot.slane %v250, 7
      %v327 = vrot.slane %v326, 2
      %v328 = vrot.slane %v251, 7
      %v329 = vrot.slane %v328, 2
      %v330 = vrot.slane %v224, 7
      %v331 = vrot.slane %v330, 2
      %v332 = vrot.slane %v252, 7
      %v333 = vrot.slane %v332, 2
      %v334 = vrot.slane %v253, 7
      %v335 = vrot.slane %v334, 2
      %v336 = vrot.slane %v254, 7
      %v337 = vrot.slane %v336, 2
      %v338 = vrot.slane %v225, 7
      %v339 = vrot.slane %v338, 2
      %v340 = vrot.slane %v255, 7
      %v341 = vrot.slane %v340, 2
      %v342 = vrot.slane %v256, 7
      %v343 = vrot.slane %v342, 2
      %v344 = vrot.slane %v257, 7
      %v345 = vrot.slane %v344, 2
      %v378 = vmax.f32 %v218, %v283
      %v379 = vmax.f32 %v234, %v285
      %v380 = vmax.f32 %v235, %v287
      %v381 = vmax.f32 %v236, %v289
      %v382 = vmax.f32 %v219, %v291
      %v383 = vmax.f32 %v237, %v293
      %v384 = vmax.f32 %v238, %v295
      %v385 = vmax.f32 %v239, %v297
      %v386 = vmax.f32 %v220, %v299
      %v387 = vmax.f32 %v240, %v301
      %v388 = vmax.f32 %v241, %v303
      %v389 = vmax.f32 %v242, %v305
      %v390 = vmax.f32 %v221, %v307
      %v391 = vmax.f32 %v243, %v309
      %v392 = vmax.f32 %v244, %v311
      %v393 = vmax.f32 %v245, %v313
      %v394 = vmax.f32 %v222, %v315
      %v395 = vmax.f32 %v246, %v317
      %v396 = vmax.f32 %v247, %v319
      %v397 = vmax.f32 %v248, %v321
      %v398 = vmax.f32 %v223, %v323
      %v399 = vmax.f32 %v249, %v325
      %v400 = vmax.f32 %v250, %v327
      %v401 = vmax.f32 %v251, %v329
      %v402 = vmax.f32 %v224, %v331
      %v403 = vmax.f32 %v252, %v333
      %v404 = vmax.f32 %v253, %v335
      %v405 = vmax.f32 %v254, %v337
      %v406 = vmax.f32 %v225, %v339
      %v407 = vmax.f32 %v255, %v341
      %v408 = vmax.f32 %v256, %v343
      %v409 = vmax.f32 %v257, %v345
      %442 = vrot.lane.b32.xlu0 %v378, 126
      %v443 = vpop.permute.xlu0 %442
      %444 = vrot.lane.b32.xlu0 %v379, 126
      %v445 = vpop.permute.xlu0 %444
      %446 = vrot.lane.b32.xlu0 %v380, 126
      %v447 = vpop.permute.xlu0 %446
      %448 = vrot.lane.b32.xlu0 %v381, 126
      %v449 = vpop.permute.xlu0 %448
      %450 = vrot.lane.b32.xlu0 %v382, 126
      %v451 = vpop.permute.xlu0 %450
      %452 = vrot.lane.b32.xlu0 %v383, 126
      %v453 = vpop.permute.xlu0 %452
      %454 = vrot.lane.b32.xlu0 %v384, 126
      %v455 = vpop.permute.xlu0 %454
      %456 = vrot.lane.b32.xlu0 %v385, 126
      %v457 = vpop.permute.xlu0 %456
      %458 = vrot.lane.b32.xlu0 %v386, 126
      %v459 = vpop.permute.xlu0 %458
      %460 = vrot.lane.b32.xlu0 %v387, 126
      %v461 = vpop.permute.xlu0 %460
      %462 = vrot.lane.b32.xlu0 %v388, 126
      %v463 = vpop.permute.xlu0 %462
      %464 = vrot.lane.b32.xlu0 %v389, 126
      %v465 = vpop.permute.xlu0 %464
      %466 = vrot.lane.b32.xlu0 %v390, 126
      %v467 = vpop.permute.xlu0 %466
      %468 = vrot.lane.b32.xlu0 %v391, 126
      %v469 = vpop.permute.xlu0 %468
      %470 = vrot.lane.b32.xlu0 %v392, 126
      %v471 = vpop.permute.xlu0 %470
      %472 = vrot.lane.b32.xlu0 %v393, 126
      %v473 = vpop.permute.xlu0 %472
      %474 = vrot.lane.b32.xlu0 %v394, 126
      %v475 = vpop.permute.xlu0 %474
      %476 = vrot.lane.b32.xlu0 %v395, 126
      %v477 = vpop.permute.xlu0 %476
      %478 = vrot.lane.b32.xlu0 %v396, 126
      %v479 = vpop.permute.xlu0 %478
      %480 = vrot.lane.b32.xlu0 %v397, 126
      %v481 = vpop.permute.xlu0 %480
      %482 = vrot.lane.b32.xlu0 %v398, 126
      %v483 = vpop.permute.xlu0 %482
      %484 = vrot.lane.b32.xlu0 %v399, 126
      %v485 = vpop.permute.xlu0 %484
      %486 = vrot.lane.b32.xlu0 %v400, 126
      %v487 = vpop.permute.xlu0 %486
      %488 = vrot.lane.b32.xlu0 %v401, 126
      %v489 = vpop.permute.xlu0 %488
      %490 = vrot.lane.b32.xlu0 %v402, 126
      %v491 = vpop.permute.xlu0 %490
      %492 = vrot.lane.b32.xlu0 %v403, 126
      %v493 = vpop.permute.xlu0 %492
      %494 = vrot.lane.b32.xlu0 %v404, 126
      %v495 = vpop.permute.xlu0 %494
      %496 = vrot.lane.b32.xlu0 %v405, 126
      %v497 = vpop.permute.xlu0 %496
      %498 = vrot.lane.b32.xlu0 %v406, 126
      %v499 = vpop.permute.xlu0 %498
      %500 = vrot.lane.b32.xlu0 %v407, 126
      %v501 = vpop.permute.xlu0 %500
      %502 = vrot.lane.b32.xlu0 %v408, 126
      %v503 = vpop.permute.xlu0 %502
      %504 = vrot.lane.b32.xlu0 %v409, 126
      %v505 = vpop.permute.xlu0 %504
      %506 = vrot.lane.b32.xlu0 %v378, 124
      %v507 = vpop.permute.xlu0 %506
      %508 = vrot.lane.b32.xlu0 %v379, 124
      %v509 = vpop.permute.xlu0 %508
      %510 = vrot.lane.b32.xlu0 %v380, 124
      %v511 = vpop.permute.xlu0 %510
      %512 = vrot.lane.b32.xlu0 %v381, 124
      %v513 = vpop.permute.xlu0 %512
      %514 = vrot.lane.b32.xlu0 %v382, 124
      %v515 = vpop.permute.xlu0 %514
      %516 = vrot.lane.b32.xlu0 %v383, 124
      %v517 = vpop.permute.xlu0 %516
      %518 = vrot.lane.b32.xlu0 %v384, 124
      %v519 = vpop.permute.xlu0 %518
      %520 = vrot.lane.b32.xlu0 %v385, 124
      %v521 = vpop.permute.xlu0 %520
      %522 = vrot.lane.b32.xlu0 %v386, 124
      %v523 = vpop.permute.xlu0 %522
      %524 = vrot.lane.b32.xlu0 %v387, 124
      %v525 = vpop.permute.xlu0 %524
      %526 = vrot.lane.b32.xlu0 %v388, 124
      %v527 = vpop.permute.xlu0 %526
      %528 = vrot.lane.b32.xlu0 %v389, 124
      %v529 = vpop.permute.xlu0 %528
      %530 = vrot.lane.b32.xlu0 %v390, 124
      %v531 = vpop.permute.xlu0 %530
      %532 = vrot.lane.b32.xlu0 %v391, 124
      %v533 = vpop.permute.xlu0 %532
      %534 = vrot.lane.b32.xlu0 %v392, 124
      %v535 = vpop.permute.xlu0 %534
      %536 = vrot.lane.b32.xlu0 %v393, 124
      %v537 = vpop.permute.xlu0 %536
      %538 = vrot.lane.b32.xlu0 %v394, 124
      %v539 = vpop.permute.xlu0 %538
      %540 = vrot.lane.b32.xlu0 %v395, 124
      %v541 = vpop.permute.xlu0 %540
      %542 = vrot.lane.b32.xlu0 %v396, 124
      %v543 = vpop.permute.xlu0 %542
      %544 = vrot.lane.b32.xlu0 %v397, 124
      %v545 = vpop.permute.xlu0 %544
      %546 = vrot.lane.b32.xlu0 %v398, 124
      %v547 = vpop.permute.xlu0 %546
      %548 = vrot.lane.b32.xlu0 %v399, 124
      %v549 = vpop.permute.xlu0 %548
      %550 = vrot.lane.b32.xlu0 %v400, 124
      %v551 = vpop.permute.xlu0 %550
      %552 = vrot.lane.b32.xlu0 %v401, 124
      %v553 = vpop.permute.xlu0 %552
      %554 = vrot.lane.b32.xlu0 %v402, 124
      %v555 = vpop.permute.xlu0 %554
      %556 = vrot.lane.b32.xlu0 %v403, 124
      %v557 = vpop.permute.xlu0 %556
      %558 = vrot.lane.b32.xlu0 %v404, 124
      %v559 = vpop.permute.xlu0 %558
      %560 = vrot.lane.b32.xlu0 %v405, 124
      %v561 = vpop.permute.xlu0 %560
      %562 = vrot.lane.b32.xlu0 %v406, 124
      %v563 = vpop.permute.xlu0 %562
      %564 = vrot.lane.b32.xlu0 %v407, 124
      %v565 = vpop.permute.xlu0 %564
      %566 = vrot.lane.b32.xlu0 %v408, 124
      %v567 = vpop.permute.xlu0 %566
      %568 = vrot.lane.b32.xlu0 %v409, 124
      %v569 = vpop.permute.xlu0 %568
      %570 = vrot.lane.b32.xlu0 %v378, 122
      %v571 = vpop.permute.xlu0 %570
      %572 = vrot.lane.b32.xlu0 %v379, 122
      %v573 = vpop.permute.xlu0 %572
      %574 = vrot.lane.b32.xlu0 %v380, 122
      %v575 = vpop.permute.xlu0 %574
      %576 = vrot.lane.b32.xlu0 %v381, 122
      %v577 = vpop.permute.xlu0 %576
      %578 = vrot.lane.b32.xlu0 %v382, 122
      %v579 = vpop.permute.xlu0 %578
      %580 = vrot.lane.b32.xlu0 %v383, 122
      %v581 = vpop.permute.xlu0 %580
      %582 = vrot.lane.b32.xlu0 %v384, 122
      %v583 = vpop.permute.xlu0 %582
      %584 = vrot.lane.b32.xlu0 %v385, 122
      %v585 = vpop.permute.xlu0 %584
      %586 = vrot.lane.b32.xlu0 %v386, 122
      %v587 = vpop.permute.xlu0 %586
      %588 = vrot.lane.b32.xlu0 %v387, 122
      %v589 = vpop.permute.xlu0 %588
      %590 = vrot.lane.b32.xlu0 %v388, 122
      %v591 = vpop.permute.xlu0 %590
      %592 = vrot.lane.b32.xlu0 %v389, 122
      %v593 = vpop.permute.xlu0 %592
      %594 = vrot.lane.b32.xlu0 %v390, 122
      %v595 = vpop.permute.xlu0 %594
      %596 = vrot.lane.b32.xlu0 %v391, 122
      %v597 = vpop.permute.xlu0 %596
      %598 = vrot.lane.b32.xlu0 %v392, 122
      %v599 = vpop.permute.xlu0 %598
      %600 = vrot.lane.b32.xlu0 %v393, 122
      %v601 = vpop.permute.xlu0 %600
      %602 = vrot.lane.b32.xlu0 %v394, 122
      %v603 = vpop.permute.xlu0 %602
      %604 = vrot.lane.b32.xlu0 %v395, 122
      %v605 = vpop.permute.xlu0 %604
      %606 = vrot.lane.b32.xlu0 %v396, 122
      %v607 = vpop.permute.xlu0 %606
      %608 = vrot.lane.b32.xlu0 %v397, 122
      %v609 = vpop.permute.xlu0 %608
      %610 = vrot.lane.b32.xlu0 %v398, 122
      %v611 = vpop.permute.xlu0 %610
      %612 = vrot.lane.b32.xlu0 %v399, 122
      %v613 = vpop.permute.xlu0 %612
      %614 = vrot.lane.b32.xlu0 %v400, 122
      %v615 = vpop.permute.xlu0 %614
      %616 = vrot.lane.b32.xlu0 %v401, 122
      %v617 = vpop.permute.xlu0 %616
      %618 = vrot.lane.b32.xlu0 %v402, 122
      %v619 = vpop.permute.xlu0 %618
      %620 = vrot.lane.b32.xlu0 %v403, 122
      %v621 = vpop.permute.xlu0 %620
      %622 = vrot.lane.b32.xlu0 %v404, 122
      %v623 = vpop.permute.xlu0 %622
      %624 = vrot.lane.b32.xlu0 %v405, 122
      %v625 = vpop.permute.xlu0 %624
      %626 = vrot.lane.b32.xlu0 %v406, 122
      %v627 = vpop.permute.xlu0 %626
      %628 = vrot.lane.b32.xlu0 %v407, 122
      %v629 = vpop.permute.xlu0 %628
      %630 = vrot.lane.b32.xlu0 %v408, 122
      %v631 = vpop.permute.xlu0 %630
      %632 = vrot.lane.b32.xlu0 %v409, 122
      %v633 = vpop.permute.xlu0 %632
      %634 = vrot.lane.b32.xlu0 %v378, 120
      %v635 = vpop.permute.xlu0 %634
      %636 = vrot.lane.b32.xlu0 %v379, 120
      %v637 = vpop.permute.xlu0 %636
      %638 = vrot.lane.b32.xlu0 %v380, 120
      %v639 = vpop.permute.xlu0 %638
      %640 = vrot.lane.b32.xlu0 %v381, 120
      %v641 = vpop.permute.xlu0 %640
      %642 = vrot.lane.b32.xlu0 %v382, 120
      %v643 = vpop.permute.xlu0 %642
      %644 = vrot.lane.b32.xlu0 %v383, 120
      %v645 = vpop.permute.xlu0 %644
      %646 = vrot.lane.b32.xlu0 %v384, 120
      %v647 = vpop.permute.xlu0 %646
      %648 = vrot.lane.b32.xlu0 %v385, 120
      %v649 = vpop.permute.xlu0 %648
      %650 = vrot.lane.b32.xlu0 %v386, 120
      %v651 = vpop.permute.xlu0 %650
      %652 = vrot.lane.b32.xlu0 %v387, 120
      %v653 = vpop.permute.xlu0 %652
      %654 = vrot.lane.b32.xlu0 %v388, 120
      %v655 = vpop.permute.xlu0 %654
      %656 = vrot.lane.b32.xlu0 %v389, 120
      %v657 = vpop.permute.xlu0 %656
      %658 = vrot.lane.b32.xlu0 %v390, 120
      %v659 = vpop.permute.xlu0 %658
      %660 = vrot.lane.b32.xlu0 %v391, 120
      %v661 = vpop.permute.xlu0 %660
      %662 = vrot.lane.b32.xlu0 %v392, 120
      %v663 = vpop.permute.xlu0 %662
      %664 = vrot.lane.b32.xlu0 %v393, 120
      %v665 = vpop.permute.xlu0 %664
      %666 = vrot.lane.b32.xlu0 %v394, 120
      %v667 = vpop.permute.xlu0 %666
      %668 = vrot.lane.b32.xlu0 %v395, 120
      %v669 = vpop.permute.xlu0 %668
      %670 = vrot.lane.b32.xlu0 %v396, 120
      %v671 = vpop.permute.xlu0 %670
      %672 = vrot.lane.b32.xlu0 %v397, 120
      %v673 = vpop.permute.xlu0 %672
      %674 = vrot.lane.b32.xlu0 %v398, 120
      %v675 = vpop.permute.xlu0 %674
      %676 = vrot.lane.b32.xlu0 %v399, 120
      %v677 = vpop.permute.xlu0 %676
      %678 = vrot.lane.b32.xlu0 %v400, 120
      %v679 = vpop.permute.xlu0 %678
      %680 = vrot.lane.b32.xlu0 %v401, 120
      %v681 = vpop.permute.xlu0 %680
      %682 = vrot.lane.b32.xlu0 %v402, 120
      %v683 = vpop.permute.xlu0 %682
      %684 = vrot.lane.b32.xlu0 %v403, 120
      %v685 = vpop.permute.xlu0 %684
      %686 = vrot.lane.b32.xlu0 %v404, 120
      %v687 = vpop.permute.xlu0 %686
      %688 = vrot.lane.b32.xlu0 %v405, 120
      %v689 = vpop.permute.xlu0 %688
      %690 = vrot.lane.b32.xlu0 %v406, 120
      %v691 = vpop.permute.xlu0 %690
      %692 = vrot.lane.b32.xlu0 %v407, 120
      %v693 = vpop.permute.xlu0 %692
      %694 = vrot.lane.b32.xlu0 %v408, 120
      %v695 = vpop.permute.xlu0 %694
      %696 = vrot.lane.b32.xlu0 %v409, 120
      %v697 = vpop.permute.xlu0 %696
      %698 = vrot.lane.b32.xlu0 %v378, 118
      %v699 = vpop.permute.xlu0 %698
      %700 = vrot.lane.b32.xlu0 %v379, 118
      %v701 = vpop.permute.xlu0 %700
      %702 = vrot.lane.b32.xlu0 %v380, 118
      %v703 = vpop.permute.xlu0 %702
      %704 = vrot.lane.b32.xlu0 %v381, 118
      %v705 = vpop.permute.xlu0 %704
      %706 = vrot.lane.b32.xlu0 %v382, 118
      %v707 = vpop.permute.xlu0 %706
      %708 = vrot.lane.b32.xlu0 %v383, 118
      %v709 = vpop.permute.xlu0 %708
      %710 = vrot.lane.b32.xlu0 %v384, 118
      %v711 = vpop.permute.xlu0 %710
      %712 = vrot.lane.b32.xlu0 %v385, 118
      %v713 = vpop.permute.xlu0 %712
      %714 = vrot.lane.b32.xlu0 %v386, 118
      %v715 = vpop.permute.xlu0 %714
      %716 = vrot.lane.b32.xlu0 %v387, 118
      %v717 = vpop.permute.xlu0 %716
      %718 = vrot.lane.b32.xlu0 %v388, 118
      %v719 = vpop.permute.xlu0 %718
      %720 = vrot.lane.b32.xlu0 %v389, 118
      %v721 = vpop.permute.xlu0 %720
      %722 = vrot.lane.b32.xlu0 %v390, 118
      %v723 = vpop.permute.xlu0 %722
      %724 = vrot.lane.b32.xlu0 %v391, 118
      %v725 = vpop.permute.xlu0 %724
      %726 = vrot.lane.b32.xlu0 %v392, 118
      %v727 = vpop.permute.xlu0 %726
      %728 = vrot.lane.b32.xlu0 %v393, 118
      %v729 = vpop.permute.xlu0 %728
      %730 = vrot.lane.b32.xlu0 %v394, 118
      %v731 = vpop.permute.xlu0 %730
      %732 = vrot.lane.b32.xlu0 %v395, 118
      %v733 = vpop.permute.xlu0 %732
      %734 = vrot.lane.b32.xlu0 %v396, 118
      %v735 = vpop.permute.xlu0 %734
      %736 = vrot.lane.b32.xlu0 %v397, 118
      %v737 = vpop.permute.xlu0 %736
      %738 = vrot.lane.b32.xlu0 %v398, 118
      %v739 = vpop.permute.xlu0 %738
      %740 = vrot.lane.b32.xlu0 %v399, 118
      %v741 = vpop.permute.xlu0 %740
      %742 = vrot.lane.b32.xlu0 %v400, 118
      %v743 = vpop.permute.xlu0 %742
      %744 = vrot.lane.b32.xlu0 %v401, 118
      %v745 = vpop.permute.xlu0 %744
      %746 = vrot.lane.b32.xlu0 %v402, 118
      %v747 = vpop.permute.xlu0 %746
      %748 = vrot.lane.b32.xlu0 %v403, 118
      %v749 = vpop.permute.xlu0 %748
      %750 = vrot.lane.b32.xlu0 %v404, 118
      %v751 = vpop.permute.xlu0 %750
      %752 = vrot.lane.b32.xlu0 %v405, 118
      %v753 = vpop.permute.xlu0 %752
      %754 = vrot.lane.b32.xlu0 %v406, 118
      %v755 = vpop.permute.xlu0 %754
      %756 = vrot.lane.b32.xlu0 %v407, 118
      %v757 = vpop.permute.xlu0 %756
      %758 = vrot.lane.b32.xlu0 %v408, 118
      %v759 = vpop.permute.xlu0 %758
      %760 = vrot.lane.b32.xlu0 %v409, 118
      %v761 = vpop.permute.xlu0 %760
      %762 = vrot.lane.b32.xlu0 %v378, 116
      %v763 = vpop.permute.xlu0 %762
      %764 = vrot.lane.b32.xlu0 %v379, 116
      %v765 = vpop.permute.xlu0 %764
      %766 = vrot.lane.b32.xlu0 %v380, 116
      %v767 = vpop.permute.xlu0 %766
      %768 = vrot.lane.b32.xlu0 %v381, 116
      %v769 = vpop.permute.xlu0 %768
      %770 = vrot.lane.b32.xlu0 %v382, 116
      %v771 = vpop.permute.xlu0 %770
      %772 = vrot.lane.b32.xlu0 %v383, 116
      %v773 = vpop.permute.xlu0 %772
      %774 = vrot.lane.b32.xlu0 %v384, 116
      %v775 = vpop.permute.xlu0 %774
      %776 = vrot.lane.b32.xlu0 %v385, 116
      %v777 = vpop.permute.xlu0 %776
      %778 = vrot.lane.b32.xlu0 %v386, 116
      %v779 = vpop.permute.xlu0 %778
      %780 = vrot.lane.b32.xlu0 %v387, 116
      %v781 = vpop.permute.xlu0 %780
      %782 = vrot.lane.b32.xlu0 %v388, 116
      %v783 = vpop.permute.xlu0 %782
      %784 = vrot.lane.b32.xlu0 %v389, 116
      %v785 = vpop.permute.xlu0 %784
      %786 = vrot.lane.b32.xlu0 %v390, 116
      %v787 = vpop.permute.xlu0 %786
      %788 = vrot.lane.b32.xlu0 %v391, 116
      %v789 = vpop.permute.xlu0 %788
      %790 = vrot.lane.b32.xlu0 %v392, 116
      %v791 = vpop.permute.xlu0 %790
      %792 = vrot.lane.b32.xlu0 %v393, 116
      %v793 = vpop.permute.xlu0 %792
      %794 = vrot.lane.b32.xlu0 %v394, 116
      %v795 = vpop.permute.xlu0 %794
      %796 = vrot.lane.b32.xlu0 %v395, 116
      %v797 = vpop.permute.xlu0 %796
      %798 = vrot.lane.b32.xlu0 %v396, 116
      %v799 = vpop.permute.xlu0 %798
      %800 = vrot.lane.b32.xlu0 %v397, 116
      %v801 = vpop.permute.xlu0 %800
      %802 = vrot.lane.b32.xlu0 %v398, 116
      %v803 = vpop.permute.xlu0 %802
      %804 = vrot.lane.b32.xlu0 %v399, 116
      %v805 = vpop.permute.xlu0 %804
      %806 = vrot.lane.b32.xlu0 %v400, 116
      %v807 = vpop.permute.xlu0 %806
      %808 = vrot.lane.b32.xlu0 %v401, 116
      %v809 = vpop.permute.xlu0 %808
      %810 = vrot.lane.b32.xlu0 %v402, 116
      %v811 = vpop.permute.xlu0 %810
      %812 = vrot.lane.b32.xlu0 %v403, 116
      %v813 = vpop.permute.xlu0 %812
      %814 = vrot.lane.b32.xlu0 %v404, 116
      %v815 = vpop.permute.xlu0 %814
      %816 = vrot.lane.b32.xlu0 %v405, 116
      %v817 = vpop.permute.xlu0 %816
      %818 = vrot.lane.b32.xlu0 %v406, 116
      %v819 = vpop.permute.xlu0 %818
      %820 = vrot.lane.b32.xlu0 %v407, 116
      %v821 = vpop.permute.xlu0 %820
      %822 = vrot.lane.b32.xlu0 %v408, 116
      %v823 = vpop.permute.xlu0 %822
      %824 = vrot.lane.b32.xlu0 %v409, 116
      %v825 = vpop.permute.xlu0 %824
      %826 = vrot.lane.b32.xlu0 %v378, 114
      %v827 = vpop.permute.xlu0 %826
      %828 = vrot.lane.b32.xlu0 %v379, 114
      %v829 = vpop.permute.xlu0 %828
      %830 = vrot.lane.b32.xlu0 %v380, 114
      %v831 = vpop.permute.xlu0 %830
      %832 = vrot.lane.b32.xlu0 %v381, 114
      %v833 = vpop.permute.xlu0 %832
      %834 = vrot.lane.b32.xlu0 %v382, 114
      %v835 = vpop.permute.xlu0 %834
      %836 = vrot.lane.b32.xlu0 %v383, 114
      %v837 = vpop.permute.xlu0 %836
      %838 = vrot.lane.b32.xlu0 %v384, 114
      %v839 = vpop.permute.xlu0 %838
      %840 = vrot.lane.b32.xlu0 %v385, 114
      %v841 = vpop.permute.xlu0 %840
      %842 = vrot.lane.b32.xlu0 %v386, 114
      %v843 = vpop.permute.xlu0 %842
      %844 = vrot.lane.b32.xlu0 %v387, 114
      %v845 = vpop.permute.xlu0 %844
      %846 = vrot.lane.b32.xlu0 %v388, 114
      %v847 = vpop.permute.xlu0 %846
      %848 = vrot.lane.b32.xlu0 %v389, 114
      %v849 = vpop.permute.xlu0 %848
      %850 = vrot.lane.b32.xlu0 %v390, 114
      %v851 = vpop.permute.xlu0 %850
      %852 = vrot.lane.b32.xlu0 %v391, 114
      %v853 = vpop.permute.xlu0 %852
      %854 = vrot.lane.b32.xlu0 %v392, 114
      %v855 = vpop.permute.xlu0 %854
      %856 = vrot.lane.b32.xlu0 %v393, 114
      %v857 = vpop.permute.xlu0 %856
      %858 = vrot.lane.b32.xlu0 %v394, 114
      %v859 = vpop.permute.xlu0 %858
      %860 = vrot.lane.b32.xlu0 %v395, 114
      %v861 = vpop.permute.xlu0 %860
      %862 = vrot.lane.b32.xlu0 %v396, 114
      %v863 = vpop.permute.xlu0 %862
      %864 = vrot.lane.b32.xlu0 %v397, 114
      %v865 = vpop.permute.xlu0 %864
      %866 = vrot.lane.b32.xlu0 %v398, 114
      %v867 = vpop.permute.xlu0 %866
      %868 = vrot.lane.b32.xlu0 %v399, 114
      %v869 = vpop.permute.xlu0 %868
      %870 = vrot.lane.b32.xlu0 %v400, 114
      %v871 = vpop.permute.xlu0 %870
      %872 = vrot.lane.b32.xlu0 %v401, 114
      %v873 = vpop.permute.xlu0 %872
      %874 = vrot.lane.b32.xlu0 %v402, 114
      %v875 = vpop.permute.xlu0 %874
      %876 = vrot.lane.b32.xlu0 %v403, 114
      %v877 = vpop.permute.xlu0 %876
      %878 = vrot.lane.b32.xlu0 %v404, 114
      %v879 = vpop.permute.xlu0 %878
      %880 = vrot.lane.b32.xlu0 %v405, 114
      %v881 = vpop.permute.xlu0 %880
      %882 = vrot.lane.b32.xlu0 %v406, 114
      %v883 = vpop.permute.xlu0 %882
      %884 = vrot.lane.b32.xlu0 %v407, 114
      %v885 = vpop.permute.xlu0 %884
      %886 = vrot.lane.b32.xlu0 %v408, 114
      %v887 = vpop.permute.xlu0 %886
      %888 = vrot.lane.b32.xlu0 %v409, 114
      %v889 = vpop.permute.xlu0 %888
      %vm890 = vcmask 1042434
      %vm891 = vcmask 1044484
      %v892 = vsel %vm891, %v378, %v378
      %vm893 = vcmask 1046534
      %v894 = vsel %vm893, %v378, %v892
      %v895 = vrot.slane %v379, 7
      %vm896 = vcmask 1041409
      %v897 = vsel %vm896, %v895, %v894
      %vm898 = vcmask 1043459
      %v899 = vsel %vm898, %v895, %v897
      %vm900 = vcmask 1045509
      %v901 = vsel %vm900, %v895, %v899
      %vm902 = vcmask 1047559
      %v903 = vsel %vm902, %v895, %v901
      %v904 = vsel %vm891, %v380, %v380
      %v905 = vsel %vm893, %v380, %v904
      %v906 = vrot.slane %v381, 7
      %v907 = vsel %vm896, %v906, %v905
      %v908 = vsel %vm898, %v906, %v907
      %v909 = vsel %vm900, %v906, %v908
      %v910 = vsel %vm902, %v906, %v909
      %v911 = vsel %vm891, %v382, %v382
      %v912 = vsel %vm893, %v382, %v911
      %v913 = vrot.slane %v383, 7
      %v914 = vsel %vm896, %v913, %v912
      %v915 = vsel %vm898, %v913, %v914
      %v916 = vsel %vm900, %v913, %v915
      %v917 = vsel %vm902, %v913, %v916
      %v918 = vsel %vm891, %v384, %v384
      %v919 = vsel %vm893, %v384, %v918
      %v920 = vrot.slane %v385, 7
      %v921 = vsel %vm896, %v920, %v919
      %v922 = vsel %vm898, %v920, %v921
      %v923 = vsel %vm900, %v920, %v922
      %v924 = vsel %vm902, %v920, %v923
      %v925 = vsel %vm891, %v443, %v443
      %v926 = vsel %vm893, %v443, %v925
      %v927 = vrot.slane %v445, 7
      %v928 = vsel %vm896, %v927, %v926
      %v929 = vsel %vm898, %v927, %v928
      %v930 = vsel %vm900, %v927, %v929
      %v931 = vsel %vm902, %v927, %v930
      %v932 = vsel %vm891, %v447, %v447
      %v933 = vsel %vm893, %v447, %v932
      %v934 = vrot.slane %v449, 7
      %v935 = vsel %vm896, %v934, %v933
      %v936 = vsel %vm898, %v934, %v935
      %v937 = vsel %vm900, %v934, %v936
      %v938 = vsel %vm902, %v934, %v937
      %v939 = vsel %vm891, %v451, %v451
      %v940 = vsel %vm893, %v451, %v939
      %v941 = vrot.slane %v453, 7
      %v942 = vsel %vm896, %v941, %v940
      %v943 = vsel %vm898, %v941, %v942
      %v944 = vsel %vm900, %v941, %v943
      %v945 = vsel %vm902, %v941, %v944
      %v946 = vsel %vm891, %v455, %v455
      %v947 = vsel %vm893, %v455, %v946
      %v948 = vrot.slane %v457, 7
      %v949 = vsel %vm896, %v948, %v947
      %v950 = vsel %vm898, %v948, %v949
      %v951 = vsel %vm900, %v948, %v950
      %v952 = vsel %vm902, %v948, %v951
      %v953 = vsel %vm891, %v507, %v507
      %v954 = vsel %vm893, %v507, %v953
      %v955 = vrot.slane %v509, 7
      %v956 = vsel %vm896, %v955, %v954
      %v957 = vsel %vm898, %v955, %v956
      %v958 = vsel %vm900, %v955, %v957
      %v959 = vsel %vm902, %v955, %v958
      %v960 = vsel %vm891, %v511, %v511
      %v961 = vsel %vm893, %v511, %v960
      %v962 = vrot.slane %v513, 7
      %v963 = vsel %vm896, %v962, %v961
      %v964 = vsel %vm898, %v962, %v963
      %v965 = vsel %vm900, %v962, %v964
      %v966 = vsel %vm902, %v962, %v965
      %v967 = vsel %vm891, %v515, %v515
      %v968 = vsel %vm893, %v515, %v967
      %v969 = vrot.slane %v517, 7
      %v970 = vsel %vm896, %v969, %v968
      %v971 = vsel %vm898, %v969, %v970
      %v972 = vsel %vm900, %v969, %v971
      %v973 = vsel %vm902, %v969, %v972
      %v974 = vsel %vm891, %v519, %v519
      %v975 = vsel %vm893, %v519, %v974
      %v976 = vrot.slane %v521, 7
      %v977 = vsel %vm896, %v976, %v975
      %v978 = vsel %vm898, %v976, %v977
      %v979 = vsel %vm900, %v976, %v978
      %v980 = vsel %vm902, %v976, %v979
      %v981 = vsel %vm891, %v571, %v571
      %v982 = vsel %vm893, %v571, %v981
      %v983 = vrot.slane %v573, 7
      %v984 = vsel %vm896, %v983, %v982
      %v985 = vsel %vm898, %v983, %v984
      %v986 = vsel %vm900, %v983, %v985
      %v987 = vsel %vm902, %v983, %v986
      %v988 = vsel %vm891, %v575, %v575
      %v989 = vsel %vm893, %v575, %v988
      %v990 = vrot.slane %v577, 7
      %v991 = vsel %vm896, %v990, %v989
      %v992 = vsel %vm898, %v990, %v991
      %v993 = vsel %vm900, %v990, %v992
      %v994 = vsel %vm902, %v990, %v993
      %v995 = vsel %vm891, %v579, %v579
      %v996 = vsel %vm893, %v579, %v995
      %v997 = vrot.slane %v581, 7
      %v998 = vsel %vm896, %v997, %v996
      %v999 = vsel %vm898, %v997, %v998
      %v1000 = vsel %vm900, %v997, %v999
      %v1001 = vsel %vm902, %v997, %v1000
      %v1002 = vsel %vm891, %v583, %v583
      %v1003 = vsel %vm893, %v583, %v1002
      %v1004 = vrot.slane %v585, 7
      %v1005 = vsel %vm896, %v1004, %v1003
      %v1006 = vsel %vm898, %v1004, %v1005
      %v1007 = vsel %vm900, %v1004, %v1006
      %v1008 = vsel %vm902, %v1004, %v1007
      %v1009 = vsel %vm891, %v635, %v635
      %v1010 = vsel %vm893, %v635, %v1009
      %v1011 = vrot.slane %v637, 7
      %v1012 = vsel %vm896, %v1011, %v1010
      %v1013 = vsel %vm898, %v1011, %v1012
      %v1014 = vsel %vm900, %v1011, %v1013
      %v1015 = vsel %vm902, %v1011, %v1014
      %v1016 = vsel %vm891, %v639, %v639
      %v1017 = vsel %vm893, %v639, %v1016
      %v1018 = vrot.slane %v641, 7
      %v1019 = vsel %vm896, %v1018, %v1017
      %v1020 = vsel %vm898, %v1018, %v1019
      %v1021 = vsel %vm900, %v1018, %v1020
      %v1022 = vsel %vm902, %v1018, %v1021
      %v1023 = vsel %vm891, %v643, %v643
      %v1024 = vsel %vm893, %v643, %v1023
      %v1025 = vrot.slane %v645, 7
      %v1026 = vsel %vm896, %v1025, %v1024
      %v1027 = vsel %vm898, %v1025, %v1026
      %v1028 = vsel %vm900, %v1025, %v1027
      %v1029 = vsel %vm902, %v1025, %v1028
      %v1030 = vsel %vm891, %v647, %v647
      %v1031 = vsel %vm893, %v647, %v1030
      %v1032 = vrot.slane %v649, 7
      %v1033 = vsel %vm896, %v1032, %v1031
      %v1034 = vsel %vm898, %v1032, %v1033
      %v1035 = vsel %vm900, %v1032, %v1034
      %v1036 = vsel %vm902, %v1032, %v1035
      %v1037 = vsel %vm891, %v699, %v699
      %v1038 = vsel %vm893, %v699, %v1037
      %v1039 = vrot.slane %v701, 7
      %v1040 = vsel %vm896, %v1039, %v1038
      %v1041 = vsel %vm898, %v1039, %v1040
      %v1042 = vsel %vm900, %v1039, %v1041
      %v1043 = vsel %vm902, %v1039, %v1042
      %v1044 = vsel %vm891, %v703, %v703
      %v1045 = vsel %vm893, %v703, %v1044
      %v1046 = vrot.slane %v705, 7
      %v1047 = vsel %vm896, %v1046, %v1045
      %v1048 = vsel %vm898, %v1046, %v1047
      %v1049 = vsel %vm900, %v1046, %v1048
      %v1050 = vsel %vm902, %v1046, %v1049
      %v1051 = vsel %vm891, %v707, %v707
      %v1052 = vsel %vm893, %v707, %v1051
      %v1053 = vrot.slane %v709, 7
      %v1054 = vsel %vm896, %v1053, %v1052
      %v1055 = vsel %vm898, %v1053, %v1054
      %v1056 = vsel %vm900, %v1053, %v1055
      %v1057 = vsel %vm902, %v1053, %v1056
      %v1058 = vsel %vm891, %v711, %v711
      %v1059 = vsel %vm893, %v711, %v1058
      %v1060 = vrot.slane %v713, 7
      %v1061 = vsel %vm896, %v1060, %v1059
      %v1062 = vsel %vm898, %v1060, %v1061
      %v1063 = vsel %vm900, %v1060, %v1062
      %v1064 = vsel %vm902, %v1060, %v1063
      %v1065 = vsel %vm891, %v763, %v763
      %v1066 = vsel %vm893, %v763, %v1065
      %v1067 = vrot.slane %v765, 7
      %v1068 = vsel %vm896, %v1067, %v1066
      %v1069 = vsel %vm898, %v1067, %v1068
      %v1070 = vsel %vm900, %v1067, %v1069
      %v1071 = vsel %vm902, %v1067, %v1070
      %v1072 = vsel %vm891, %v767, %v767
      %v1073 = vsel %vm893, %v767, %v1072
      %v1074 = vrot.slane %v769, 7
      %v1075 = vsel %vm896, %v1074, %v1073
      %v1076 = vsel %vm898, %v1074, %v1075
      %v1077 = vsel %vm900, %v1074, %v1076
      %v1078 = vsel %vm902, %v1074, %v1077
      %v1079 = vsel %vm891, %v771, %v771
      %v1080 = vsel %vm893, %v771, %v1079
      %v1081 = vrot.slane %v773, 7
      %v1082 = vsel %vm896, %v1081, %v1080
      %v1083 = vsel %vm898, %v1081, %v1082
      %v1084 = vsel %vm900, %v1081, %v1083
      %v1085 = vsel %vm902, %v1081, %v1084
      %v1086 = vsel %vm891, %v775, %v775
      %v1087 = vsel %vm893, %v775, %v1086
      %v1088 = vrot.slane %v777, 7
      %v1089 = vsel %vm896, %v1088, %v1087
      %v1090 = vsel %vm898, %v1088, %v1089
      %v1091 = vsel %vm900, %v1088, %v1090
      %v1092 = vsel %vm902, %v1088, %v1091
      %v1093 = vsel %vm891, %v827, %v827
      %v1094 = vsel %vm893, %v827, %v1093
      %v1095 = vrot.slane %v829, 7
      %v1096 = vsel %vm896, %v1095, %v1094
      %v1097 = vsel %vm898, %v1095, %v1096
      %v1098 = vsel %vm900, %v1095, %v1097
      %v1099 = vsel %vm902, %v1095, %v1098
      %v1100 = vsel %vm891, %v831, %v831
      %v1101 = vsel %vm893, %v831, %v1100
      %v1102 = vrot.slane %v833, 7
      %v1103 = vsel %vm896, %v1102, %v1101
      %v1104 = vsel %vm898, %v1102, %v1103
      %v1105 = vsel %vm900, %v1102, %v1104
      %v1106 = vsel %vm902, %v1102, %v1105
      %v1107 = vsel %vm891, %v835, %v835
      %v1108 = vsel %vm893, %v835, %v1107
      %v1109 = vrot.slane %v837, 7
      %v1110 = vsel %vm896, %v1109, %v1108
      %v1111 = vsel %vm898, %v1109, %v1110
      %v1112 = vsel %vm900, %v1109, %v1111
      %v1113 = vsel %vm902, %v1109, %v1112
      %v1114 = vsel %vm891, %v839, %v839
      %v1115 = vsel %vm893, %v839, %v1114
      %v1116 = vrot.slane %v841, 7
      %v1117 = vsel %vm896, %v1116, %v1115
      %v1118 = vsel %vm898, %v1116, %v1117
      %v1119 = vsel %vm900, %v1116, %v1118
      %v1120 = vsel %vm902, %v1116, %v1119
      %v1121 = vsel %vm891, %v386, %v386
      %v1122 = vsel %vm893, %v386, %v1121
      %v1123 = vrot.slane %v387, 7
      %v1124 = vsel %vm896, %v1123, %v1122
      %v1125 = vsel %vm898, %v1123, %v1124
      %v1126 = vsel %vm900, %v1123, %v1125
      %v1127 = vsel %vm902, %v1123, %v1126
      %v1128 = vsel %vm891, %v388, %v388
      %v1129 = vsel %vm893, %v388, %v1128
      %v1130 = vrot.slane %v389, 7
      %v1131 = vsel %vm896, %v1130, %v1129
      %v1132 = vsel %vm898, %v1130, %v1131
      %v1133 = vsel %vm900, %v1130, %v1132
      %v1134 = vsel %vm902, %v1130, %v1133
      %v1135 = vsel %vm891, %v390, %v390
      %v1136 = vsel %vm893, %v390, %v1135
      %v1137 = vrot.slane %v391, 7
      %v1138 = vsel %vm896, %v1137, %v1136
      %v1139 = vsel %vm898, %v1137, %v1138
      %v1140 = vsel %vm900, %v1137, %v1139
      %v1141 = vsel %vm902, %v1137, %v1140
      %v1142 = vsel %vm891, %v392, %v392
      %v1143 = vsel %vm893, %v392, %v1142
      %v1144 = vrot.slane %v393, 7
      %v1145 = vsel %vm896, %v1144, %v1143
      %v1146 = vsel %vm898, %v1144, %v1145
      %v1147 = vsel %vm900, %v1144, %v1146
      %v1148 = vsel %vm902, %v1144, %v1147
      %v1149 = vsel %vm891, %v459, %v459
      %v1150 = vsel %vm893, %v459, %v1149
      %v1151 = vrot.slane %v461, 7
      %v1152 = vsel %vm896, %v1151, %v1150
      %v1153 = vsel %vm898, %v1151, %v1152
      %v1154 = vsel %vm900, %v1151, %v1153
      %v1155 = vsel %vm902, %v1151, %v1154
      %v1156 = vsel %vm891, %v463, %v463
      %v1157 = vsel %vm893, %v463, %v1156
      %v1158 = vrot.slane %v465, 7
      %v1159 = vsel %vm896, %v1158, %v1157
      %v1160 = vsel %vm898, %v1158, %v1159
      %v1161 = vsel %vm900, %v1158, %v1160
      %v1162 = vsel %vm902, %v1158, %v1161
      %v1163 = vsel %vm891, %v467, %v467
      %v1164 = vsel %vm893, %v467, %v1163
      %v1165 = vrot.slane %v469, 7
      %v1166 = vsel %vm896, %v1165, %v1164
      %v1167 = vsel %vm898, %v1165, %v1166
      %v1168 = vsel %vm900, %v1165, %v1167
      %v1169 = vsel %vm902, %v1165, %v1168
      %v1170 = vsel %vm891, %v471, %v471
      %v1171 = vsel %vm893, %v471, %v1170
      %v1172 = vrot.slane %v473, 7
      %v1173 = vsel %vm896, %v1172, %v1171
      %v1174 = vsel %vm898, %v1172, %v1173
      %v1175 = vsel %vm900, %v1172, %v1174
      %v1176 = vsel %vm902, %v1172, %v1175
      %v1177 = vsel %vm891, %v523, %v523
      %v1178 = vsel %vm893, %v523, %v1177
      %v1179 = vrot.slane %v525, 7
      %v1180 = vsel %vm896, %v1179, %v1178
      %v1181 = vsel %vm898, %v1179, %v1180
      %v1182 = vsel %vm900, %v1179, %v1181
      %v1183 = vsel %vm902, %v1179, %v1182
      %v1184 = vsel %vm891, %v527, %v527
      %v1185 = vsel %vm893, %v527, %v1184
      %v1186 = vrot.slane %v529, 7
      %v1187 = vsel %vm896, %v1186, %v1185
      %v1188 = vsel %vm898, %v1186, %v1187
      %v1189 = vsel %vm900, %v1186, %v1188
      %v1190 = vsel %vm902, %v1186, %v1189
      %v1191 = vsel %vm891, %v531, %v531
      %v1192 = vsel %vm893, %v531, %v1191
      %v1193 = vrot.slane %v533, 7
      %v1194 = vsel %vm896, %v1193, %v1192
      %v1195 = vsel %vm898, %v1193, %v1194
      %v1196 = vsel %vm900, %v1193, %v1195
      %v1197 = vsel %vm902, %v1193, %v1196
      %v1198 = vsel %vm891, %v535, %v535
      %v1199 = vsel %vm893, %v535, %v1198
      %v1200 = vrot.slane %v537, 7
      %v1201 = vsel %vm896, %v1200, %v1199
      %v1202 = vsel %vm898, %v1200, %v1201
      %v1203 = vsel %vm900, %v1200, %v1202
      %v1204 = vsel %vm902, %v1200, %v1203
      %v1205 = vsel %vm891, %v587, %v587
      %v1206 = vsel %vm893, %v587, %v1205
      %v1207 = vrot.slane %v589, 7
      %v1208 = vsel %vm896, %v1207, %v1206
      %v1209 = vsel %vm898, %v1207, %v1208
      %v1210 = vsel %vm900, %v1207, %v1209
      %v1211 = vsel %vm902, %v1207, %v1210
      %v1212 = vsel %vm891, %v591, %v591
      %v1213 = vsel %vm893, %v591, %v1212
      %v1214 = vrot.slane %v593, 7
      %v1215 = vsel %vm896, %v1214, %v1213
      %v1216 = vsel %vm898, %v1214, %v1215
      %v1217 = vsel %vm900, %v1214, %v1216
      %v1218 = vsel %vm902, %v1214, %v1217
      %v1219 = vsel %vm891, %v595, %v595
      %v1220 = vsel %vm893, %v595, %v1219
      %v1221 = vrot.slane %v597, 7
      %v1222 = vsel %vm896, %v1221, %v1220
      %v1223 = vsel %vm898, %v1221, %v1222
      %v1224 = vsel %vm900, %v1221, %v1223
      %v1225 = vsel %vm902, %v1221, %v1224
      %v1226 = vsel %vm891, %v599, %v599
      %v1227 = vsel %vm893, %v599, %v1226
      %v1228 = vrot.slane %v601, 7
      %v1229 = vsel %vm896, %v1228, %v1227
      %v1230 = vsel %vm898, %v1228, %v1229
      %v1231 = vsel %vm900, %v1228, %v1230
      %v1232 = vsel %vm902, %v1228, %v1231
      %v1233 = vsel %vm891, %v651, %v651
      %v1234 = vsel %vm893, %v651, %v1233
      %v1235 = vrot.slane %v653, 7
      %v1236 = vsel %vm896, %v1235, %v1234
      %v1237 = vsel %vm898, %v1235, %v1236
      %v1238 = vsel %vm900, %v1235, %v1237
      %v1239 = vsel %vm902, %v1235, %v1238
      %v1240 = vsel %vm891, %v655, %v655
      %v1241 = vsel %vm893, %v655, %v1240
      %v1242 = vrot.slane %v657, 7
      %v1243 = vsel %vm896, %v1242, %v1241
      %v1244 = vsel %vm898, %v1242, %v1243
      %v1245 = vsel %vm900, %v1242, %v1244
      %v1246 = vsel %vm902, %v1242, %v1245
      %v1247 = vsel %vm891, %v659, %v659
      %v1248 = vsel %vm893, %v659, %v1247
      %v1249 = vrot.slane %v661, 7
      %v1250 = vsel %vm896, %v1249, %v1248
      %v1251 = vsel %vm898, %v1249, %v1250
      %v1252 = vsel %vm900, %v1249, %v1251
      %v1253 = vsel %vm902, %v1249, %v1252
      %v1254 = vsel %vm891, %v663, %v663
      %v1255 = vsel %vm893, %v663, %v1254
      %v1256 = vrot.slane %v665, 7
      %v1257 = vsel %vm896, %v1256, %v1255
      %v1258 = vsel %vm898, %v1256, %v1257
      %v1259 = vsel %vm900, %v1256, %v1258
      %v1260 = vsel %vm902, %v1256, %v1259
      %v1261 = vsel %vm891, %v715, %v715
      %v1262 = vsel %vm893, %v715, %v1261
      %v1263 = vrot.slane %v717, 7
      %v1264 = vsel %vm896, %v1263, %v1262
      %v1265 = vsel %vm898, %v1263, %v1264
      %v1266 = vsel %vm900, %v1263, %v1265
      %v1267 = vsel %vm902, %v1263, %v1266
      %v1268 = vsel %vm891, %v719, %v719
      %v1269 = vsel %vm893, %v719, %v1268
      %v1270 = vrot.slane %v721, 7
      %v1271 = vsel %vm896, %v1270, %v1269
      %v1272 = vsel %vm898, %v1270, %v1271
      %v1273 = vsel %vm900, %v1270, %v1272
      %v1274 = vsel %vm902, %v1270, %v1273
      %v1275 = vsel %vm891, %v723, %v723
      %v1276 = vsel %vm893, %v723, %v1275
      %v1277 = vrot.slane %v725, 7
      %v1278 = vsel %vm896, %v1277, %v1276
      %v1279 = vsel %vm898, %v1277, %v1278
      %v1280 = vsel %vm900, %v1277, %v1279
      %v1281 = vsel %vm902, %v1277, %v1280
      %v1282 = vsel %vm891, %v727, %v727
      %v1283 = vsel %vm893, %v727, %v1282
      %v1284 = vrot.slane %v729, 7
      %v1285 = vsel %vm896, %v1284, %v1283
      %v1286 = vsel %vm898, %v1284, %v1285
      %v1287 = vsel %vm900, %v1284, %v1286
      %v1288 = vsel %vm902, %v1284, %v1287
      %v1289 = vsel %vm891, %v779, %v779
      %v1290 = vsel %vm893, %v779, %v1289
      %v1291 = vrot.slane %v781, 7
      %v1292 = vsel %vm896, %v1291, %v1290
      %v1293 = vsel %vm898, %v1291, %v1292
      %v1294 = vsel %vm900, %v1291, %v1293
      %v1295 = vsel %vm902, %v1291, %v1294
      %v1296 = vsel %vm891, %v783, %v783
      %v1297 = vsel %vm893, %v783, %v1296
      %v1298 = vrot.slane %v785, 7
      %v1299 = vsel %vm896, %v1298, %v1297
      %v1300 = vsel %vm898, %v1298, %v1299
      %v1301 = vsel %vm900, %v1298, %v1300
      %v1302 = vsel %vm902, %v1298, %v1301
      %v1303 = vsel %vm891, %v787, %v787
      %v1304 = vsel %vm893, %v787, %v1303
      %v1305 = vrot.slane %v789, 7
      %v1306 = vsel %vm896, %v1305, %v1304
      %v1307 = vsel %vm898, %v1305, %v1306
      %v1308 = vsel %vm900, %v1305, %v1307
      %v1309 = vsel %vm902, %v1305, %v1308
      %v1310 = vsel %vm891, %v791, %v791
      %v1311 = vsel %vm893, %v791, %v1310
      %v1312 = vrot.slane %v793, 7
      %v1313 = vsel %vm896, %v1312, %v1311
      %v1314 = vsel %vm898, %v1312, %v1313
      %v1315 = vsel %vm900, %v1312, %v1314
      %v1316 = vsel %vm902, %v1312, %v1315
      %v1317 = vsel %vm891, %v843, %v843
      %v1318 = vsel %vm893, %v843, %v1317
      %v1319 = vrot.slane %v845, 7
      %v1320 = vsel %vm896, %v1319, %v1318
      %v1321 = vsel %vm898, %v1319, %v1320
      %v1322 = vsel %vm900, %v1319, %v1321
      %v1323 = vsel %vm902, %v1319, %v1322
      %v1324 = vsel %vm891, %v847, %v847
      %v1325 = vsel %vm893, %v847, %v1324
      %v1326 = vrot.slane %v849, 7
      %v1327 = vsel %vm896, %v1326, %v1325
      %v1328 = vsel %vm898, %v1326, %v1327
      %v1329 = vsel %vm900, %v1326, %v1328
      %v1330 = vsel %vm902, %v1326, %v1329
      %v1331 = vsel %vm891, %v851, %v851
      %v1332 = vsel %vm893, %v851, %v1331
      %v1333 = vrot.slane %v853, 7
      %v1334 = vsel %vm896, %v1333, %v1332
      %v1335 = vsel %vm898, %v1333, %v1334
      %v1336 = vsel %vm900, %v1333, %v1335
      %v1337 = vsel %vm902, %v1333, %v1336
      %v1338 = vsel %vm891, %v855, %v855
      %v1339 = vsel %vm893, %v855, %v1338
      %v1340 = vrot.slane %v857, 7
      %v1341 = vsel %vm896, %v1340, %v1339
      %v1342 = vsel %vm898, %v1340, %v1341
      %v1343 = vsel %vm900, %v1340, %v1342
      %v1344 = vsel %vm902, %v1340, %v1343
      %v1345 = vsel %vm891, %v394, %v394
      %v1346 = vsel %vm893, %v394, %v1345
      %v1347 = vrot.slane %v395, 7
      %v1348 = vsel %vm896, %v1347, %v1346
      %v1349 = vsel %vm898, %v1347, %v1348
      %v1350 = vsel %vm900, %v1347, %v1349
      %v1351 = vsel %vm902, %v1347, %v1350
      %v1352 = vsel %vm891, %v396, %v396
      %v1353 = vsel %vm893, %v396, %v1352
      %v1354 = vrot.slane %v397, 7
      %v1355 = vsel %vm896, %v1354, %v1353
      %v1356 = vsel %vm898, %v1354, %v1355
      %v1357 = vsel %vm900, %v1354, %v1356
      %v1358 = vsel %vm902, %v1354, %v1357
      %v1359 = vsel %vm891, %v398, %v398
      %v1360 = vsel %vm893, %v398, %v1359
      %v1361 = vrot.slane %v399, 7
      %v1362 = vsel %vm896, %v1361, %v1360
      %v1363 = vsel %vm898, %v1361, %v1362
      %v1364 = vsel %vm900, %v1361, %v1363
      %v1365 = vsel %vm902, %v1361, %v1364
      %v1366 = vsel %vm891, %v400, %v400
      %v1367 = vsel %vm893, %v400, %v1366
      %v1368 = vrot.slane %v401, 7
      %v1369 = vsel %vm896, %v1368, %v1367
      %v1370 = vsel %vm898, %v1368, %v1369
      %v1371 = vsel %vm900, %v1368, %v1370
      %v1372 = vsel %vm902, %v1368, %v1371
      %v1373 = vsel %vm891, %v475, %v475
      %v1374 = vsel %vm893, %v475, %v1373
      %v1375 = vrot.slane %v477, 7
      %v1376 = vsel %vm896, %v1375, %v1374
      %v1377 = vsel %vm898, %v1375, %v1376
      %v1378 = vsel %vm900, %v1375, %v1377
      %v1379 = vsel %vm902, %v1375, %v1378
      %v1380 = vsel %vm891, %v479, %v479
      %v1381 = vsel %vm893, %v479, %v1380
      %v1382 = vrot.slane %v481, 7
      %v1383 = vsel %vm896, %v1382, %v1381
      %v1384 = vsel %vm898, %v1382, %v1383
      %v1385 = vsel %vm900, %v1382, %v1384
      %v1386 = vsel %vm902, %v1382, %v1385
      %v1387 = vsel %vm891, %v483, %v483
      %v1388 = vsel %vm893, %v483, %v1387
      %v1389 = vrot.slane %v485, 7
      %v1390 = vsel %vm896, %v1389, %v1388
      %v1391 = vsel %vm898, %v1389, %v1390
      %v1392 = vsel %vm900, %v1389, %v1391
      %v1393 = vsel %vm902, %v1389, %v1392
      %v1394 = vsel %vm891, %v487, %v487
      %v1395 = vsel %vm893, %v487, %v1394
      %v1396 = vrot.slane %v489, 7
      %v1397 = vsel %vm896, %v1396, %v1395
      %v1398 = vsel %vm898, %v1396, %v1397
      %v1399 = vsel %vm900, %v1396, %v1398
      %v1400 = vsel %vm902, %v1396, %v1399
      %v1401 = vsel %vm891, %v539, %v539
      %v1402 = vsel %vm893, %v539, %v1401
      %v1403 = vrot.slane %v541, 7
      %v1404 = vsel %vm896, %v1403, %v1402
      %v1405 = vsel %vm898, %v1403, %v1404
      %v1406 = vsel %vm900, %v1403, %v1405
      %v1407 = vsel %vm902, %v1403, %v1406
      %v1408 = vsel %vm891, %v543, %v543
      %v1409 = vsel %vm893, %v543, %v1408
      %v1410 = vrot.slane %v545, 7
      %v1411 = vsel %vm896, %v1410, %v1409
      %v1412 = vsel %vm898, %v1410, %v1411
      %v1413 = vsel %vm900, %v1410, %v1412
      %v1414 = vsel %vm902, %v1410, %v1413
      %v1415 = vsel %vm891, %v547, %v547
      %v1416 = vsel %vm893, %v547, %v1415
      %v1417 = vrot.slane %v549, 7
      %v1418 = vsel %vm896, %v1417, %v1416
      %v1419 = vsel %vm898, %v1417, %v1418
      %v1420 = vsel %vm900, %v1417, %v1419
      %v1421 = vsel %vm902, %v1417, %v1420
      %v1422 = vsel %vm891, %v551, %v551
      %v1423 = vsel %vm893, %v551, %v1422
      %v1424 = vrot.slane %v553, 7
      %v1425 = vsel %vm896, %v1424, %v1423
      %v1426 = vsel %vm898, %v1424, %v1425
      %v1427 = vsel %vm900, %v1424, %v1426
      %v1428 = vsel %vm902, %v1424, %v1427
      %v1429 = vsel %vm891, %v603, %v603
      %v1430 = vsel %vm893, %v603, %v1429
      %v1431 = vrot.slane %v605, 7
      %v1432 = vsel %vm896, %v1431, %v1430
      %v1433 = vsel %vm898, %v1431, %v1432
      %v1434 = vsel %vm900, %v1431, %v1433
      %v1435 = vsel %vm902, %v1431, %v1434
      %v1436 = vsel %vm891, %v607, %v607
      %v1437 = vsel %vm893, %v607, %v1436
      %v1438 = vrot.slane %v609, 7
      %v1439 = vsel %vm896, %v1438, %v1437
      %v1440 = vsel %vm898, %v1438, %v1439
      %v1441 = vsel %vm900, %v1438, %v1440
      %v1442 = vsel %vm902, %v1438, %v1441
      %v1443 = vsel %vm891, %v611, %v611
      %v1444 = vsel %vm893, %v611, %v1443
      %v1445 = vrot.slane %v613, 7
      %v1446 = vsel %vm896, %v1445, %v1444
      %v1447 = vsel %vm898, %v1445, %v1446
      %v1448 = vsel %vm900, %v1445, %v1447
      %v1449 = vsel %vm902, %v1445, %v1448
      %v1450 = vsel %vm891, %v615, %v615
      %v1451 = vsel %vm893, %v615, %v1450
      %v1452 = vrot.slane %v617, 7
      %v1453 = vsel %vm896, %v1452, %v1451
      %v1454 = vsel %vm898, %v1452, %v1453
      %v1455 = vsel %vm900, %v1452, %v1454
      %v1456 = vsel %vm902, %v1452, %v1455
      %v1457 = vsel %vm891, %v667, %v667
      %v1458 = vsel %vm893, %v667, %v1457
      %v1459 = vrot.slane %v669, 7
      %v1460 = vsel %vm896, %v1459, %v1458
      %v1461 = vsel %vm898, %v1459, %v1460
      %v1462 = vsel %vm900, %v1459, %v1461
      %v1463 = vsel %vm902, %v1459, %v1462
      %v1464 = vsel %vm891, %v671, %v671
      %v1465 = vsel %vm893, %v671, %v1464
      %v1466 = vrot.slane %v673, 7
      %v1467 = vsel %vm896, %v1466, %v1465
      %v1468 = vsel %vm898, %v1466, %v1467
      %v1469 = vsel %vm900, %v1466, %v1468
      %v1470 = vsel %vm902, %v1466, %v1469
      %v1471 = vsel %vm891, %v675, %v675
      %v1472 = vsel %vm893, %v675, %v1471
      %v1473 = vrot.slane %v677, 7
      %v1474 = vsel %vm896, %v1473, %v1472
      %v1475 = vsel %vm898, %v1473, %v1474
      %v1476 = vsel %vm900, %v1473, %v1475
      %v1477 = vsel %vm902, %v1473, %v1476
      %v1478 = vsel %vm891, %v679, %v679
      %v1479 = vsel %vm893, %v679, %v1478
      %v1480 = vrot.slane %v681, 7
      %v1481 = vsel %vm896, %v1480, %v1479
      %v1482 = vsel %vm898, %v1480, %v1481
      %v1483 = vsel %vm900, %v1480, %v1482
      %v1484 = vsel %vm902, %v1480, %v1483
      %v1485 = vsel %vm891, %v731, %v731
      %v1486 = vsel %vm893, %v731, %v1485
      %v1487 = vrot.slane %v733, 7
      %v1488 = vsel %vm896, %v1487, %v1486
      %v1489 = vsel %vm898, %v1487, %v1488
      %v1490 = vsel %vm900, %v1487, %v1489
      %v1491 = vsel %vm902, %v1487, %v1490
      %v1492 = vsel %vm891, %v735, %v735
      %v1493 = vsel %vm893, %v735, %v1492
      %v1494 = vrot.slane %v737, 7
      %v1495 = vsel %vm896, %v1494, %v1493
      %v1496 = vsel %vm898, %v1494, %v1495
      %v1497 = vsel %vm900, %v1494, %v1496
      %v1498 = vsel %vm902, %v1494, %v1497
      %v1499 = vsel %vm891, %v739, %v739
      %v1500 = vsel %vm893, %v739, %v1499
      %v1501 = vrot.slane %v741, 7
      %v1502 = vsel %vm896, %v1501, %v1500
      %v1503 = vsel %vm898, %v1501, %v1502
      %v1504 = vsel %vm900, %v1501, %v1503
      %v1505 = vsel %vm902, %v1501, %v1504
      %v1506 = vsel %vm891, %v743, %v743
      %v1507 = vsel %vm893, %v743, %v1506
      %v1508 = vrot.slane %v745, 7
      %v1509 = vsel %vm896, %v1508, %v1507
      %v1510 = vsel %vm898, %v1508, %v1509
      %v1511 = vsel %vm900, %v1508, %v1510
      %v1512 = vsel %vm902, %v1508, %v1511
      %v1513 = vsel %vm891, %v795, %v795
      %v1514 = vsel %vm893, %v795, %v1513
      %v1515 = vrot.slane %v797, 7
      %v1516 = vsel %vm896, %v1515, %v1514
      %v1517 = vsel %vm898, %v1515, %v1516
      %v1518 = vsel %vm900, %v1515, %v1517
      %v1519 = vsel %vm902, %v1515, %v1518
      %v1520 = vsel %vm891, %v799, %v799
      %v1521 = vsel %vm893, %v799, %v1520
      %v1522 = vrot.slane %v801, 7
      %v1523 = vsel %vm896, %v1522, %v1521
      %v1524 = vsel %vm898, %v1522, %v1523
      %v1525 = vsel %vm900, %v1522, %v1524
      %v1526 = vsel %vm902, %v1522, %v1525
      %v1527 = vsel %vm891, %v803, %v803
      %v1528 = vsel %vm893, %v803, %v1527
      %v1529 = vrot.slane %v805, 7
      %v1530 = vsel %vm896, %v1529, %v1528
      %v1531 = vsel %vm898, %v1529, %v1530
      %v1532 = vsel %vm900, %v1529, %v1531
      %v1533 = vsel %vm902, %v1529, %v1532
      %v1534 = vsel %vm891, %v807, %v807
      %v1535 = vsel %vm893, %v807, %v1534
      %v1536 = vrot.slane %v809, 7
      %v1537 = vsel %vm896, %v1536, %v1535
      %v1538 = vsel %vm898, %v1536, %v1537
      %v1539 = vsel %vm900, %v1536, %v1538
      %v1540 = vsel %vm902, %v1536, %v1539
      %v1541 = vsel %vm891, %v859, %v859
      %v1542 = vsel %vm893, %v859, %v1541
      %v1543 = vrot.slane %v861, 7
      %v1544 = vsel %vm896, %v1543, %v1542
      %v1545 = vsel %vm898, %v1543, %v1544
      %v1546 = vsel %vm900, %v1543, %v1545
      %v1547 = vsel %vm902, %v1543, %v1546
      %v1548 = vsel %vm891, %v863, %v863
      %v1549 = vsel %vm893, %v863, %v1548
      %v1550 = vrot.slane %v865, 7
      %v1551 = vsel %vm896, %v1550, %v1549
      %v1552 = vsel %vm898, %v1550, %v1551
      %v1553 = vsel %vm900, %v1550, %v1552
      %v1554 = vsel %vm902, %v1550, %v1553
      %v1555 = vsel %vm891, %v867, %v867
      %v1556 = vsel %vm893, %v867, %v1555
      %v1557 = vrot.slane %v869, 7
      %v1558 = vsel %vm896, %v1557, %v1556
      %v1559 = vsel %vm898, %v1557, %v1558
      %v1560 = vsel %vm900, %v1557, %v1559
      %v1561 = vsel %vm902, %v1557, %v1560
      %v1562 = vsel %vm891, %v871, %v871
      %v1563 = vsel %vm893, %v871, %v1562
      %v1564 = vrot.slane %v873, 7
      %v1565 = vsel %vm896, %v1564, %v1563
      %v1566 = vsel %vm898, %v1564, %v1565
      %v1567 = vsel %vm900, %v1564, %v1566
      %v1568 = vsel %vm902, %v1564, %v1567
      %v1569 = vsel %vm891, %v402, %v402
      %v1570 = vsel %vm893, %v402, %v1569
      %v1571 = vrot.slane %v403, 7
      %v1572 = vsel %vm896, %v1571, %v1570
      %v1573 = vsel %vm898, %v1571, %v1572
      %v1574 = vsel %vm900, %v1571, %v1573
      %v1575 = vsel %vm902, %v1571, %v1574
      %v1576 = vsel %vm891, %v404, %v404
      %v1577 = vsel %vm893, %v404, %v1576
      %v1578 = vrot.slane %v405, 7
      %v1579 = vsel %vm896, %v1578, %v1577
      %v1580 = vsel %vm898, %v1578, %v1579
      %v1581 = vsel %vm900, %v1578, %v1580
      %v1582 = vsel %vm902, %v1578, %v1581
      %v1583 = vsel %vm891, %v406, %v406
      %v1584 = vsel %vm893, %v406, %v1583
      %v1585 = vrot.slane %v407, 7
      %v1586 = vsel %vm896, %v1585, %v1584
      %v1587 = vsel %vm898, %v1585, %v1586
      %v1588 = vsel %vm900, %v1585, %v1587
      %v1589 = vsel %vm902, %v1585, %v1588
      %v1590 = vsel %vm891, %v408, %v408
      %v1591 = vsel %vm893, %v408, %v1590
      %v1592 = vrot.slane %v409, 7
      %v1593 = vsel %vm896, %v1592, %v1591
      %v1594 = vsel %vm898, %v1592, %v1593
      %v1595 = vsel %vm900, %v1592, %v1594
      %v1596 = vsel %vm902, %v1592, %v1595
      %v1597 = vsel %vm891, %v491, %v491
      %v1598 = vsel %vm893, %v491, %v1597
      %v1599 = vrot.slane %v493, 7
      %v1600 = vsel %vm896, %v1599, %v1598
      %v1601 = vsel %vm898, %v1599, %v1600
      %v1602 = vsel %vm900, %v1599, %v1601
      %v1603 = vsel %vm902, %v1599, %v1602
      %v1604 = vsel %vm891, %v495, %v495
      %v1605 = vsel %vm893, %v495, %v1604
      %v1606 = vrot.slane %v497, 7
      %v1607 = vsel %vm896, %v1606, %v1605
      %v1608 = vsel %vm898, %v1606, %v1607
      %v1609 = vsel %vm900, %v1606, %v1608
      %v1610 = vsel %vm902, %v1606, %v1609
      %v1611 = vsel %vm891, %v499, %v499
      %v1612 = vsel %vm893, %v499, %v1611
      %v1613 = vrot.slane %v501, 7
      %v1614 = vsel %vm896, %v1613, %v1612
      %v1615 = vsel %vm898, %v1613, %v1614
      %v1616 = vsel %vm900, %v1613, %v1615
      %v1617 = vsel %vm902, %v1613, %v1616
      %v1618 = vsel %vm891, %v503, %v503
      %v1619 = vsel %vm893, %v503, %v1618
      %v1620 = vrot.slane %v505, 7
      %v1621 = vsel %vm896, %v1620, %v1619
      %v1622 = vsel %vm898, %v1620, %v1621
      %v1623 = vsel %vm900, %v1620, %v1622
      %v1624 = vsel %vm902, %v1620, %v1623
      %v1625 = vsel %vm891, %v555, %v555
      %v1626 = vsel %vm893, %v555, %v1625
      %v1627 = vrot.slane %v557, 7
      %v1628 = vsel %vm896, %v1627, %v1626
      %v1629 = vsel %vm898, %v1627, %v1628
      %v1630 = vsel %vm900, %v1627, %v1629
      %v1631 = vsel %vm902, %v1627, %v1630
      %v1632 = vsel %vm891, %v559, %v559
      %v1633 = vsel %vm893, %v559, %v1632
      %v1634 = vrot.slane %v561, 7
      %v1635 = vsel %vm896, %v1634, %v1633
      %v1636 = vsel %vm898, %v1634, %v1635
      %v1637 = vsel %vm900, %v1634, %v1636
      %v1638 = vsel %vm902, %v1634, %v1637
      %v1639 = vsel %vm891, %v563, %v563
      %v1640 = vsel %vm893, %v563, %v1639
      %v1641 = vrot.slane %v565, 7
      %v1642 = vsel %vm896, %v1641, %v1640
      %v1643 = vsel %vm898, %v1641, %v1642
      %v1644 = vsel %vm900, %v1641, %v1643
      %v1645 = vsel %vm902, %v1641, %v1644
      %v1646 = vsel %vm891, %v567, %v567
      %v1647 = vsel %vm893, %v567, %v1646
      %v1648 = vrot.slane %v569, 7
      %v1649 = vsel %vm896, %v1648, %v1647
      %v1650 = vsel %vm898, %v1648, %v1649
      %v1651 = vsel %vm900, %v1648, %v1650
      %v1652 = vsel %vm902, %v1648, %v1651
      %v1653 = vsel %vm891, %v619, %v619
      %v1654 = vsel %vm893, %v619, %v1653
      %v1655 = vrot.slane %v621, 7
      %v1656 = vsel %vm896, %v1655, %v1654
      %v1657 = vsel %vm898, %v1655, %v1656
      %v1658 = vsel %vm900, %v1655, %v1657
      %v1659 = vsel %vm902, %v1655, %v1658
      %v1660 = vsel %vm891, %v623, %v623
      %v1661 = vsel %vm893, %v623, %v1660
      %v1662 = vrot.slane %v625, 7
      %v1663 = vsel %vm896, %v1662, %v1661
      %v1664 = vsel %vm898, %v1662, %v1663
      %v1665 = vsel %vm900, %v1662, %v1664
      %v1666 = vsel %vm902, %v1662, %v1665
      %v1667 = vsel %vm891, %v627, %v627
      %v1668 = vsel %vm893, %v627, %v1667
      %v1669 = vrot.slane %v629, 7
      %v1670 = vsel %vm896, %v1669, %v1668
      %v1671 = vsel %vm898, %v1669, %v1670
      %v1672 = vsel %vm900, %v1669, %v1671
      %v1673 = vsel %vm902, %v1669, %v1672
      %v1674 = vsel %vm891, %v631, %v631
      %v1675 = vsel %vm893, %v631, %v1674
      %v1676 = vrot.slane %v633, 7
      %v1677 = vsel %vm896, %v1676, %v1675
      %v1678 = vsel %vm898, %v1676, %v1677
      %v1679 = vsel %vm900, %v1676, %v1678
      %v1680 = vsel %vm902, %v1676, %v1679
      %v1681 = vsel %vm891, %v683, %v683
      %v1682 = vsel %vm893, %v683, %v1681
      %v1683 = vrot.slane %v685, 7
      %v1684 = vsel %vm896, %v1683, %v1682
      %v1685 = vsel %vm898, %v1683, %v1684
      %v1686 = vsel %vm900, %v1683, %v1685
      %v1687 = vsel %vm902, %v1683, %v1686
      %v1688 = vsel %vm891, %v687, %v687
      %v1689 = vsel %vm893, %v687, %v1688
      %v1690 = vrot.slane %v689, 7
      %v1691 = vsel %vm896, %v1690, %v1689
      %v1692 = vsel %vm898, %v1690, %v1691
      %v1693 = vsel %vm900, %v1690, %v1692
      %v1694 = vsel %vm902, %v1690, %v1693
      %v1695 = vsel %vm891, %v691, %v691
      %v1696 = vsel %vm893, %v691, %v1695
      %v1697 = vrot.slane %v693, 7
      %v1698 = vsel %vm896, %v1697, %v1696
      %v1699 = vsel %vm898, %v1697, %v1698
      %v1700 = vsel %vm900, %v1697, %v1699
      %v1701 = vsel %vm902, %v1697, %v1700
      %v1702 = vsel %vm891, %v695, %v695
      %v1703 = vsel %vm893, %v695, %v1702
      %v1704 = vrot.slane %v697, 7
      %v1705 = vsel %vm896, %v1704, %v1703
      %v1706 = vsel %vm898, %v1704, %v1705
      %v1707 = vsel %vm900, %v1704, %v1706
      %v1708 = vsel %vm902, %v1704, %v1707
      %v1709 = vsel %vm891, %v747, %v747
      %v1710 = vsel %vm893, %v747, %v1709
      %v1711 = vrot.slane %v749, 7
      %v1712 = vsel %vm896, %v1711, %v1710
      %v1713 = vsel %vm898, %v1711, %v1712
      %v1714 = vsel %vm900, %v1711, %v1713
      %v1715 = vsel %vm902, %v1711, %v1714
      %v1716 = vsel %vm891, %v751, %v751
      %v1717 = vsel %vm893, %v751, %v1716
      %v1718 = vrot.slane %v753, 7
      %v1719 = vsel %vm896, %v1718, %v1717
      %v1720 = vsel %vm898, %v1718, %v1719
      %v1721 = vsel %vm900, %v1718, %v1720
      %v1722 = vsel %vm902, %v1718, %v1721
      %v1723 = vsel %vm891, %v755, %v755
      %v1724 = vsel %vm893, %v755, %v1723
      %v1725 = vrot.slane %v757, 7
      %v1726 = vsel %vm896, %v1725, %v1724
      %v1727 = vsel %vm898, %v1725, %v1726
      %v1728 = vsel %vm900, %v1725, %v1727
      %v1729 = vsel %vm902, %v1725, %v1728
      %v1730 = vsel %vm891, %v759, %v759
      %v1731 = vsel %vm893, %v759, %v1730
      %v1732 = vrot.slane %v761, 7
      %v1733 = vsel %vm896, %v1732, %v1731
      %v1734 = vsel %vm898, %v1732, %v1733
      %v1735 = vsel %vm900, %v1732, %v1734
      %v1736 = vsel %vm902, %v1732, %v1735
      %v1737 = vsel %vm891, %v811, %v811
      %v1738 = vsel %vm893, %v811, %v1737
      %v1739 = vrot.slane %v813, 7
      %v1740 = vsel %vm896, %v1739, %v1738
      %v1741 = vsel %vm898, %v1739, %v1740
      %v1742 = vsel %vm900, %v1739, %v1741
      %v1743 = vsel %vm902, %v1739, %v1742
      %v1744 = vsel %vm891, %v815, %v815
      %v1745 = vsel %vm893, %v815, %v1744
      %v1746 = vrot.slane %v817, 7
      %v1747 = vsel %vm896, %v1746, %v1745
      %v1748 = vsel %vm898, %v1746, %v1747
      %v1749 = vsel %vm900, %v1746, %v1748
      %v1750 = vsel %vm902, %v1746, %v1749
      %v1751 = vsel %vm891, %v819, %v819
      %v1752 = vsel %vm893, %v819, %v1751
      %v1753 = vrot.slane %v821, 7
      %v1754 = vsel %vm896, %v1753, %v1752
      %v1755 = vsel %vm898, %v1753, %v1754
      %v1756 = vsel %vm900, %v1753, %v1755
      %v1757 = vsel %vm902, %v1753, %v1756
      %v1758 = vsel %vm891, %v823, %v823
      %v1759 = vsel %vm893, %v823, %v1758
      %v1760 = vrot.slane %v825, 7
      %v1761 = vsel %vm896, %v1760, %v1759
      %v1762 = vsel %vm898, %v1760, %v1761
      %v1763 = vsel %vm900, %v1760, %v1762
      %v1764 = vsel %vm902, %v1760, %v1763
      %v1765 = vsel %vm891, %v875, %v875
      %v1766 = vsel %vm893, %v875, %v1765
      %v1767 = vrot.slane %v877, 7
      %v1768 = vsel %vm896, %v1767, %v1766
      %v1769 = vsel %vm898, %v1767, %v1768
      %v1770 = vsel %vm900, %v1767, %v1769
      %v1771 = vsel %vm902, %v1767, %v1770
      %v1772 = vsel %vm891, %v879, %v879
      %v1773 = vsel %vm893, %v879, %v1772
      %v1774 = vrot.slane %v881, 7
      %v1775 = vsel %vm896, %v1774, %v1773
      %v1776 = vsel %vm898, %v1774, %v1775
      %v1777 = vsel %vm900, %v1774, %v1776
      %v1778 = vsel %vm902, %v1774, %v1777
      %v1779 = vsel %vm891, %v883, %v883
      %v1780 = vsel %vm893, %v883, %v1779
      %v1781 = vrot.slane %v885, 7
      %v1782 = vsel %vm896, %v1781, %v1780
      %v1783 = vsel %vm898, %v1781, %v1782
      %v1784 = vsel %vm900, %v1781, %v1783
      %v1785 = vsel %vm902, %v1781, %v1784
      %v1786 = vsel %vm891, %v887, %v887
      %v1787 = vsel %vm893, %v887, %v1786
      %v1788 = vrot.slane %v889, 7
      %v1789 = vsel %vm896, %v1788, %v1787
      %v1790 = vsel %vm898, %v1788, %v1789
      %v1791 = vsel %vm900, %v1788, %v1790
      %v1792 = vsel %vm902, %v1788, %v1791
      %v1921 = vrot.slane %v931, 4
      %vm1922 = vcmask 1047556
      %v1923 = vsel %vm1922, %v1921, %v903
      %v1925 = vunpack.c.l.s4 1934713408
      %v1926 = vunpack.c.0.s8 %v1925
      %v1927 = vperm.slane %v1923, %v1926
      %v1928 = vrot.slane %v1927, 4
      %v1929 = vsel %vm1922, 0.0, %v1928
      %v1930 = vrot.slane %v987, 4
      %v1931 = vsel %vm1922, %v1930, %v959
      %v1933 = vunpack.c.l.s4 1934713408
      %v1934 = vunpack.c.0.s8 %v1933
      %v1935 = vperm.slane %v1931, %v1934
      %v1936 = vrot.slane %v1935, 4
      %v1937 = vsel %vm1922, 0.0, %v1936
      %v1938 = vrot.slane %v1043, 4
      %v1939 = vsel %vm1922, %v1938, %v1015
      %v1941 = vunpack.c.l.s4 1934713408
      %v1942 = vunpack.c.0.s8 %v1941
      %v1943 = vperm.slane %v1939, %v1942
      %v1944 = vrot.slane %v1943, 4
      %v1945 = vsel %vm1922, 0.0, %v1944
      %v1946 = vrot.slane %v1099, 4
      %v1947 = vsel %vm1922, %v1946, %v1071
      %v1949 = vunpack.c.l.s4 1934713408
      %v1950 = vunpack.c.0.s8 %v1949
      %v1951 = vperm.slane %v1947, %v1950
      %v1952 = vrot.slane %v1951, 4
      %v1953 = vsel %vm1922, 0.0, %v1952
      %v1954 = vrot.slane %v938, 4
      %v1955 = vsel %vm1922, %v1954, %v910
      %v1957 = vunpack.c.l.s4 1934713408
      %v1958 = vunpack.c.0.s8 %v1957
      %v1959 = vperm.slane %v1955, %v1958
      %v1960 = vrot.slane %v1959, 4
      %v1961 = vsel %vm1922, 0.0, %v1960
      %v1962 = vrot.slane %v994, 4
      %v1963 = vsel %vm1922, %v1962, %v966
      %v1965 = vunpack.c.l.s4 1934713408
      %v1966 = vunpack.c.0.s8 %v1965
      %v1967 = vperm.slane %v1963, %v1966
      %v1968 = vrot.slane %v1967, 4
      %v1969 = vsel %vm1922, 0.0, %v1968
      %v1970 = vrot.slane %v1050, 4
      %v1971 = vsel %vm1922, %v1970, %v1022
      %v1973 = vunpack.c.l.s4 1934713408
      %v1974 = vunpack.c.0.s8 %v1973
      %v1975 = vperm.slane %v1971, %v1974
      %v1976 = vrot.slane %v1975, 4
      %v1977 = vsel %vm1922, 0.0, %v1976
      %v1978 = vrot.slane %v1106, 4
      %v1979 = vsel %vm1922, %v1978, %v1078
      %v1981 = vunpack.c.l.s4 1934713408
      %v1982 = vunpack.c.0.s8 %v1981
      %v1983 = vperm.slane %v1979, %v1982
      %v1984 = vrot.slane %v1983, 4
      %v1985 = vsel %vm1922, 0.0, %v1984
      %v1986 = vrot.slane %v945, 4
      %v1987 = vsel %vm1922, %v1986, %v917
      %v1989 = vunpack.c.l.s4 1934713408
      %v1990 = vunpack.c.0.s8 %v1989
      %v1991 = vperm.slane %v1987, %v1990
      %v1992 = vrot.slane %v1991, 4
      %v1993 = vsel %vm1922, 0.0, %v1992
      %v1994 = vrot.slane %v1001, 4
      %v1995 = vsel %vm1922, %v1994, %v973
      %v1997 = vunpack.c.l.s4 1934713408
      %v1998 = vunpack.c.0.s8 %v1997
      %v1999 = vperm.slane %v1995, %v1998
      %v2000 = vrot.slane %v1999, 4
      %v2001 = vsel %vm1922, 0.0, %v2000
      %v2002 = vrot.slane %v1057, 4
      %v2003 = vsel %vm1922, %v2002, %v1029
      %v2005 = vunpack.c.l.s4 1934713408
      %v2006 = vunpack.c.0.s8 %v2005
      %v2007 = vperm.slane %v2003, %v2006
      %v2008 = vrot.slane %v2007, 4
      %v2009 = vsel %vm1922, 0.0, %v2008
      %v2010 = vrot.slane %v1113, 4
      %v2011 = vsel %vm1922, %v2010, %v1085
      %v2013 = vunpack.c.l.s4 1934713408
      %v2014 = vunpack.c.0.s8 %v2013
      %v2015 = vperm.slane %v2011, %v2014
      %v2016 = vrot.slane %v2015, 4
      %v2017 = vsel %vm1922, 0.0, %v2016
      %v2018 = vrot.slane %v952, 4
      %v2019 = vsel %vm1922, %v2018, %v924
      %v2021 = vunpack.c.l.s4 1934713408
      %v2022 = vunpack.c.0.s8 %v2021
      %v2023 = vperm.slane %v2019, %v2022
      %v2024 = vrot.slane %v2023, 4
      %v2025 = vsel %vm1922, 0.0, %v2024
      %v2026 = vrot.slane %v1008, 4
      %v2027 = vsel %vm1922, %v2026, %v980
      %v2029 = vunpack.c.l.s4 1934713408
      %v2030 = vunpack.c.0.s8 %v2029
      %v2031 = vperm.slane %v2027, %v2030
      %v2032 = vrot.slane %v2031, 4
      %v2033 = vsel %vm1922, 0.0, %v2032
      %v2034 = vrot.slane %v1064, 4
      %v2035 = vsel %vm1922, %v2034, %v1036
      %v2037 = vunpack.c.l.s4 1934713408
      %v2038 = vunpack.c.0.s8 %v2037
      %v2039 = vperm.slane %v2035, %v2038
      %v2040 = vrot.slane %v2039, 4
      %v2041 = vsel %vm1922, 0.0, %v2040
      %v2042 = vrot.slane %v1120, 4
      %v2043 = vsel %vm1922, %v2042, %v1092
      %v2045 = vunpack.c.l.s4 1934713408
      %v2046 = vunpack.c.0.s8 %v2045
      %v2047 = vperm.slane %v2043, %v2046
      %v2048 = vrot.slane %v2047, 4
      %v2049 = vsel %vm1922, 0.0, %v2048
      %v2050 = vrot.slane %v1155, 4
      %v2051 = vsel %vm1922, %v2050, %v1127
      %v2053 = vunpack.c.l.s4 1934713408
      %v2054 = vunpack.c.0.s8 %v2053
      %v2055 = vperm.slane %v2051, %v2054
      %v2056 = vrot.slane %v2055, 4
      %v2057 = vsel %vm1922, 0.0, %v2056
      %v2058 = vrot.slane %v1211, 4
      %v2059 = vsel %vm1922, %v2058, %v1183
      %v2061 = vunpack.c.l.s4 1934713408
      %v2062 = vunpack.c.0.s8 %v2061
      %v2063 = vperm.slane %v2059, %v2062
      %v2064 = vrot.slane %v2063, 4
      %v2065 = vsel %vm1922, 0.0, %v2064
      %v2066 = vrot.slane %v1267, 4
      %v2067 = vsel %vm1922, %v2066, %v1239
      %v2069 = vunpack.c.l.s4 1934713408
      %v2070 = vunpack.c.0.s8 %v2069
      %v2071 = vperm.slane %v2067, %v2070
      %v2072 = vrot.slane %v2071, 4
      %v2073 = vsel %vm1922, 0.0, %v2072
      %v2074 = vrot.slane %v1323, 4
      %v2075 = vsel %vm1922, %v2074, %v1295
      %v2077 = vunpack.c.l.s4 1934713408
      %v2078 = vunpack.c.0.s8 %v2077
      %v2079 = vperm.slane %v2075, %v2078
      %v2080 = vrot.slane %v2079, 4
      %v2081 = vsel %vm1922, 0.0, %v2080
      %v2082 = vrot.slane %v1162, 4
      %v2083 = vsel %vm1922, %v2082, %v1134
      %v2085 = vunpack.c.l.s4 1934713408
      %v2086 = vunpack.c.0.s8 %v2085
      %v2087 = vperm.slane %v2083, %v2086
      %v2088 = vrot.slane %v2087, 4
      %v2089 = vsel %vm1922, 0.0, %v2088
      %v2090 = vrot.slane %v1218, 4
      %v2091 = vsel %vm1922, %v2090, %v1190
      %v2093 = vunpack.c.l.s4 1934713408
      %v2094 = vunpack.c.0.s8 %v2093
      %v2095 = vperm.slane %v2091, %v2094
      %v2096 = vrot.slane %v2095, 4
      %v2097 = vsel %vm1922, 0.0, %v2096
      %v2098 = vrot.slane %v1274, 4
      %v2099 = vsel %vm1922, %v2098, %v1246
      %v2101 = vunpack.c.l.s4 1934713408
      %v2102 = vunpack.c.0.s8 %v2101
      %v2103 = vperm.slane %v2099, %v2102
      %v2104 = vrot.slane %v2103, 4
      %v2105 = vsel %vm1922, 0.0, %v2104
      %v2106 = vrot.slane %v1330, 4
      %v2107 = vsel %vm1922, %v2106, %v1302
      %v2109 = vunpack.c.l.s4 1934713408
      %v2110 = vunpack.c.0.s8 %v2109
      %v2111 = vperm.slane %v2107, %v2110
      %v2112 = vrot.slane %v2111, 4
      %v2113 = vsel %vm1922, 0.0, %v2112
      %v2114 = vrot.slane %v1169, 4
      %v2115 = vsel %vm1922, %v2114, %v1141
      %v2117 = vunpack.c.l.s4 1934713408
      %v2118 = vunpack.c.0.s8 %v2117
      %v2119 = vperm.slane %v2115, %v2118
      %v2120 = vrot.slane %v2119, 4
      %v2121 = vsel %vm1922, 0.0, %v2120
      %v2122 = vrot.slane %v1225, 4
      %v2123 = vsel %vm1922, %v2122, %v1197
      %v2125 = vunpack.c.l.s4 1934713408
      %v2126 = vunpack.c.0.s8 %v2125
      %v2127 = vperm.slane %v2123, %v2126
      %v2128 = vrot.slane %v2127, 4
      %v2129 = vsel %vm1922, 0.0, %v2128
      %v2130 = vrot.slane %v1281, 4
      %v2131 = vsel %vm1922, %v2130, %v1253
      %v2133 = vunpack.c.l.s4 1934713408
      %v2134 = vunpack.c.0.s8 %v2133
      %v2135 = vperm.slane %v2131, %v2134
      %v2136 = vrot.slane %v2135, 4
      %v2137 = vsel %vm1922, 0.0, %v2136
      %v2138 = vrot.slane %v1337, 4
      %v2139 = vsel %vm1922, %v2138, %v1309
      %v2141 = vunpack.c.l.s4 1934713408
      %v2142 = vunpack.c.0.s8 %v2141
      %v2143 = vperm.slane %v2139, %v2142
      %v2144 = vrot.slane %v2143, 4
      %v2145 = vsel %vm1922, 0.0, %v2144
      %v2146 = vrot.slane %v1176, 4
      %v2147 = vsel %vm1922, %v2146, %v1148
      %v2149 = vunpack.c.l.s4 1934713408
      %v2150 = vunpack.c.0.s8 %v2149
      %v2151 = vperm.slane %v2147, %v2150
      %v2152 = vrot.slane %v2151, 4
      %v2153 = vsel %vm1922, 0.0, %v2152
      %v2154 = vrot.slane %v1232, 4
      %v2155 = vsel %vm1922, %v2154, %v1204
      %v2157 = vunpack.c.l.s4 1934713408
      %v2158 = vunpack.c.0.s8 %v2157
      %v2159 = vperm.slane %v2155, %v2158
      %v2160 = vrot.slane %v2159, 4
      %v2161 = vsel %vm1922, 0.0, %v2160
      %v2162 = vrot.slane %v1288, 4
      %v2163 = vsel %vm1922, %v2162, %v1260
      %v2165 = vunpack.c.l.s4 1934713408
      %v2166 = vunpack.c.0.s8 %v2165
      %v2167 = vperm.slane %v2163, %v2166
      %v2168 = vrot.slane %v2167, 4
      %v2169 = vsel %vm1922, 0.0, %v2168
      %v2170 = vrot.slane %v1344, 4
      %v2171 = vsel %vm1922, %v2170, %v1316
      %v2173 = vunpack.c.l.s4 1934713408
      %v2174 = vunpack.c.0.s8 %v2173
      %v2175 = vperm.slane %v2171, %v2174
      %v2176 = vrot.slane %v2175, 4
      %v2177 = vsel %vm1922, 0.0, %v2176
      %v2178 = vrot.slane %v1379, 4
      %v2179 = vsel %vm1922, %v2178, %v1351
      %v2181 = vunpack.c.l.s4 1934713408
      %v2182 = vunpack.c.0.s8 %v2181
      %v2183 = vperm.slane %v2179, %v2182
      %v2184 = vrot.slane %v2183, 4
      %v2185 = vsel %vm1922, 0.0, %v2184
      %v2186 = vrot.slane %v1435, 4
      %v2187 = vsel %vm1922, %v2186, %v1407
      %v2189 = vunpack.c.l.s4 1934713408
      %v2190 = vunpack.c.0.s8 %v2189
      %v2191 = vperm.slane %v2187, %v2190
      %v2192 = vrot.slane %v2191, 4
      %v2193 = vsel %vm1922, 0.0, %v2192
      %v2194 = vrot.slane %v1491, 4
      %v2195 = vsel %vm1922, %v2194, %v1463
      %v2197 = vunpack.c.l.s4 1934713408
      %v2198 = vunpack.c.0.s8 %v2197
      %v2199 = vperm.slane %v2195, %v2198
      %v2200 = vrot.slane %v2199, 4
      %v2201 = vsel %vm1922, 0.0, %v2200
      %v2202 = vrot.slane %v1547, 4
      %v2203 = vsel %vm1922, %v2202, %v1519
      %v2205 = vunpack.c.l.s4 1934713408
      %v2206 = vunpack.c.0.s8 %v2205
      %v2207 = vperm.slane %v2203, %v2206
      %v2208 = vrot.slane %v2207, 4
      %v2209 = vsel %vm1922, 0.0, %v2208
      %v2210 = vrot.slane %v1386, 4
      %v2211 = vsel %vm1922, %v2210, %v1358
      %v2213 = vunpack.c.l.s4 1934713408
      %v2214 = vunpack.c.0.s8 %v2213
      %v2215 = vperm.slane %v2211, %v2214
      %v2216 = vrot.slane %v2215, 4
      %v2217 = vsel %vm1922, 0.0, %v2216
      %v2218 = vrot.slane %v1442, 4
      %v2219 = vsel %vm1922, %v2218, %v1414
      %v2221 = vunpack.c.l.s4 1934713408
      %v2222 = vunpack.c.0.s8 %v2221
      %v2223 = vperm.slane %v2219, %v2222
      %v2224 = vrot.slane %v2223, 4
      %v2225 = vsel %vm1922, 0.0, %v2224
      %v2226 = vrot.slane %v1498, 4
      %v2227 = vsel %vm1922, %v2226, %v1470
      %v2229 = vunpack.c.l.s4 1934713408
      %v2230 = vunpack.c.0.s8 %v2229
      %v2231 = vperm.slane %v2227, %v2230
      %v2232 = vrot.slane %v2231, 4
      %v2233 = vsel %vm1922, 0.0, %v2232
      %v2234 = vrot.slane %v1554, 4
      %v2235 = vsel %vm1922, %v2234, %v1526
      %v2237 = vunpack.c.l.s4 1934713408
      %v2238 = vunpack.c.0.s8 %v2237
      %v2239 = vperm.slane %v2235, %v2238
      %v2240 = vrot.slane %v2239, 4
      %v2241 = vsel %vm1922, 0.0, %v2240
      %v2242 = vrot.slane %v1393, 4
      %v2243 = vsel %vm1922, %v2242, %v1365
      %v2245 = vunpack.c.l.s4 1934713408
      %v2246 = vunpack.c.0.s8 %v2245
      %v2247 = vperm.slane %v2243, %v2246
      %v2248 = vrot.slane %v2247, 4
      %v2249 = vsel %vm1922, 0.0, %v2248
      %v2250 = vrot.slane %v1449, 4
      %v2251 = vsel %vm1922, %v2250, %v1421
      %v2253 = vunpack.c.l.s4 1934713408
      %v2254 = vunpack.c.0.s8 %v2253
      %v2255 = vperm.slane %v2251, %v2254
      %v2256 = vrot.slane %v2255, 4
      %v2257 = vsel %vm1922, 0.0, %v2256
      %v2258 = vrot.slane %v1505, 4
      %v2259 = vsel %vm1922, %v2258, %v1477
      %v2261 = vunpack.c.l.s4 1934713408
      %v2262 = vunpack.c.0.s8 %v2261
      %v2263 = vperm.slane %v2259, %v2262
      %v2264 = vrot.slane %v2263, 4
      %v2265 = vsel %vm1922, 0.0, %v2264
      %v2266 = vrot.slane %v1561, 4
      %v2267 = vsel %vm1922, %v2266, %v1533
      %v2269 = vunpack.c.l.s4 1934713408
      %v2270 = vunpack.c.0.s8 %v2269
      %v2271 = vperm.slane %v2267, %v2270
      %v2272 = vrot.slane %v2271, 4
      %v2273 = vsel %vm1922, 0.0, %v2272
      %v2274 = vrot.slane %v1400, 4
      %v2275 = vsel %vm1922, %v2274, %v1372
      %v2277 = vunpack.c.l.s4 1934713408
      %v2278 = vunpack.c.0.s8 %v2277
      %v2279 = vperm.slane %v2275, %v2278
      %v2280 = vrot.slane %v2279, 4
      %v2281 = vsel %vm1922, 0.0, %v2280
      %v2282 = vrot.slane %v1456, 4
      %v2283 = vsel %vm1922, %v2282, %v1428
      %v2285 = vunpack.c.l.s4 1934713408
      %v2286 = vunpack.c.0.s8 %v2285
      %v2287 = vperm.slane %v2283, %v2286
      %v2288 = vrot.slane %v2287, 4
      %v2289 = vsel %vm1922, 0.0, %v2288
      %v2290 = vrot.slane %v1512, 4
      %v2291 = vsel %vm1922, %v2290, %v1484
      %v2293 = vunpack.c.l.s4 1934713408
      %v2294 = vunpack.c.0.s8 %v2293
      %v2295 = vperm.slane %v2291, %v2294
      %v2296 = vrot.slane %v2295, 4
      %v2297 = vsel %vm1922, 0.0, %v2296
      %v2298 = vrot.slane %v1568, 4
      %v2299 = vsel %vm1922, %v2298, %v1540
      %v2301 = vunpack.c.l.s4 1934713408
      %v2302 = vunpack.c.0.s8 %v2301
      %v2303 = vperm.slane %v2299, %v2302
      %v2304 = vrot.slane %v2303, 4
      %v2305 = vsel %vm1922, 0.0, %v2304
      %v2306 = vrot.slane %v1603, 4
      %v2307 = vsel %vm1922, %v2306, %v1575
      %v2309 = vunpack.c.l.s4 1934713408
      %v2310 = vunpack.c.0.s8 %v2309
      %v2311 = vperm.slane %v2307, %v2310
      %v2312 = vrot.slane %v2311, 4
      %v2313 = vsel %vm1922, 0.0, %v2312
      %v2314 = vrot.slane %v1659, 4
      %v2315 = vsel %vm1922, %v2314, %v1631
      %v2317 = vunpack.c.l.s4 1934713408
      %v2318 = vunpack.c.0.s8 %v2317
      %v2319 = vperm.slane %v2315, %v2318
      %v2320 = vrot.slane %v2319, 4
      %v2321 = vsel %vm1922, 0.0, %v2320
      %v2322 = vrot.slane %v1715, 4
      %v2323 = vsel %vm1922, %v2322, %v1687
      %v2325 = vunpack.c.l.s4 1934713408
      %v2326 = vunpack.c.0.s8 %v2325
      %v2327 = vperm.slane %v2323, %v2326
      %v2328 = vrot.slane %v2327, 4
      %v2329 = vsel %vm1922, 0.0, %v2328
      %v2330 = vrot.slane %v1771, 4
      %v2331 = vsel %vm1922, %v2330, %v1743
      %v2333 = vunpack.c.l.s4 1934713408
      %v2334 = vunpack.c.0.s8 %v2333
      %v2335 = vperm.slane %v2331, %v2334
      %v2336 = vrot.slane %v2335, 4
      %v2337 = vsel %vm1922, 0.0, %v2336
      %v2338 = vrot.slane %v1610, 4
      %v2339 = vsel %vm1922, %v2338, %v1582
      %v2341 = vunpack.c.l.s4 1934713408
      %v2342 = vunpack.c.0.s8 %v2341
      %v2343 = vperm.slane %v2339, %v2342
      %v2344 = vrot.slane %v2343, 4
      %v2345 = vsel %vm1922, 0.0, %v2344
      %v2346 = vrot.slane %v1666, 4
      %v2347 = vsel %vm1922, %v2346, %v1638
      %v2349 = vunpack.c.l.s4 1934713408
      %v2350 = vunpack.c.0.s8 %v2349
      %v2351 = vperm.slane %v2347, %v2350
      %v2352 = vrot.slane %v2351, 4
      %v2353 = vsel %vm1922, 0.0, %v2352
      %v2354 = vrot.slane %v1722, 4
      %v2355 = vsel %vm1922, %v2354, %v1694
      %v2357 = vunpack.c.l.s4 1934713408
      %v2358 = vunpack.c.0.s8 %v2357
      %v2359 = vperm.slane %v2355, %v2358
      %v2360 = vrot.slane %v2359, 4
      %v2361 = vsel %vm1922, 0.0, %v2360
      %v2362 = vrot.slane %v1778, 4
      %v2363 = vsel %vm1922, %v2362, %v1750
      %v2365 = vunpack.c.l.s4 1934713408
      %v2366 = vunpack.c.0.s8 %v2365
      %v2367 = vperm.slane %v2363, %v2366
      %v2368 = vrot.slane %v2367, 4
      %v2369 = vsel %vm1922, 0.0, %v2368
      %v2370 = vrot.slane %v1617, 4
      %v2371 = vsel %vm1922, %v2370, %v1589
      %v2373 = vunpack.c.l.s4 1934713408
      %v2374 = vunpack.c.0.s8 %v2373
      %v2375 = vperm.slane %v2371, %v2374
      %v2376 = vrot.slane %v2375, 4
      %v2377 = vsel %vm1922, 0.0, %v2376
      %v2378 = vrot.slane %v1673, 4
      %v2379 = vsel %vm1922, %v2378, %v1645
      %v2381 = vunpack.c.l.s4 1934713408
      %v2382 = vunpack.c.0.s8 %v2381
      %v2383 = vperm.slane %v2379, %v2382
      %v2384 = vrot.slane %v2383, 4
      %v2385 = vsel %vm1922, 0.0, %v2384
      %v2386 = vrot.slane %v1729, 4
      %v2387 = vsel %vm1922, %v2386, %v1701
      %v2389 = vunpack.c.l.s4 1934713408
      %v2390 = vunpack.c.0.s8 %v2389
      %v2391 = vperm.slane %v2387, %v2390
      %v2392 = vrot.slane %v2391, 4
      %v2393 = vsel %vm1922, 0.0, %v2392
      %v2394 = vrot.slane %v1785, 4
      %v2395 = vsel %vm1922, %v2394, %v1757
      %v2397 = vunpack.c.l.s4 1934713408
      %v2398 = vunpack.c.0.s8 %v2397
      %v2399 = vperm.slane %v2395, %v2398
      %v2400 = vrot.slane %v2399, 4
      %v2401 = vsel %vm1922, 0.0, %v2400
      %v2402 = vrot.slane %v1624, 4
      %v2403 = vsel %vm1922, %v2402, %v1596
      %v2405 = vunpack.c.l.s4 1934713408
      %v2406 = vunpack.c.0.s8 %v2405
      %v2407 = vperm.slane %v2403, %v2406
      %v2408 = vrot.slane %v2407, 4
      %v2409 = vsel %vm1922, 0.0, %v2408
      %v2410 = vrot.slane %v1680, 4
      %v2411 = vsel %vm1922, %v2410, %v1652
      %v2413 = vunpack.c.l.s4 1934713408
      %v2414 = vunpack.c.0.s8 %v2413
      %v2415 = vperm.slane %v2411, %v2414
      %v2416 = vrot.slane %v2415, 4
      %v2417 = vsel %vm1922, 0.0, %v2416
      %v2418 = vrot.slane %v1736, 4
      %v2419 = vsel %vm1922, %v2418, %v1708
      %v2421 = vunpack.c.l.s4 1934713408
      %v2422 = vunpack.c.0.s8 %v2421
      %v2423 = vperm.slane %v2419, %v2422
      %v2424 = vrot.slane %v2423, 4
      %v2425 = vsel %vm1922, 0.0, %v2424
      %v2426 = vrot.slane %v1792, 4
      %v2427 = vsel %vm1922, %v2426, %v1764
      %v2429 = vunpack.c.l.s4 1934713408
      %v2430 = vunpack.c.0.s8 %v2429
      %v2431 = vperm.slane %v2427, %v2430
      %v2432 = vrot.slane %v2431, 4
      %v2433 = vsel %vm1922, 0.0, %v2432
      %2562 = vrot.lane.b32.xlu0 %v1927, 127
      %v2563 = vpop.permute.xlu0 %2562
      %2564 = vrot.lane.b32.xlu0 %v1935, 127
      %v2565 = vpop.permute.xlu0 %2564
      %2566 = vrot.lane.b32.xlu0 %v1943, 127
      %v2567 = vpop.permute.xlu0 %2566
      %2568 = vrot.lane.b32.xlu0 %v1951, 127
      %v2569 = vpop.permute.xlu0 %2568
      %2570 = vrot.lane.b32.xlu0 %v1929, 127
      %v2571 = vpop.permute.xlu0 %2570
      %2572 = vrot.lane.b32.xlu0 %v1937, 127
      %v2573 = vpop.permute.xlu0 %2572
      %2574 = vrot.lane.b32.xlu0 %v1945, 127
      %v2575 = vpop.permute.xlu0 %2574
      %2576 = vrot.lane.b32.xlu0 %v1953, 127
      %v2577 = vpop.permute.xlu0 %2576
      %2578 = vrot.lane.b32.xlu0 %v1959, 127
      %v2579 = vpop.permute.xlu0 %2578
      %2580 = vrot.lane.b32.xlu0 %v1967, 127
      %v2581 = vpop.permute.xlu0 %2580
      %2582 = vrot.lane.b32.xlu0 %v1975, 127
      %v2583 = vpop.permute.xlu0 %2582
      %2584 = vrot.lane.b32.xlu0 %v1983, 127
      %v2585 = vpop.permute.xlu0 %2584
      %2586 = vrot.lane.b32.xlu0 %v1961, 127
      %v2587 = vpop.permute.xlu0 %2586
      %2588 = vrot.lane.b32.xlu0 %v1969, 127
      %v2589 = vpop.permute.xlu0 %2588
      %2590 = vrot.lane.b32.xlu0 %v1977, 127
      %v2591 = vpop.permute.xlu0 %2590
      %2592 = vrot.lane.b32.xlu0 %v1985, 127
      %v2593 = vpop.permute.xlu0 %2592
      %2594 = vrot.lane.b32.xlu0 %v1991, 127
      %v2595 = vpop.permute.xlu0 %2594
      %2596 = vrot.lane.b32.xlu0 %v1999, 127
      %v2597 = vpop.permute.xlu0 %2596
      %2598 = vrot.lane.b32.xlu0 %v2007, 127
      %v2599 = vpop.permute.xlu0 %2598
      %2600 = vrot.lane.b32.xlu0 %v2015, 127
      %v2601 = vpop.permute.xlu0 %2600
      %2602 = vrot.lane.b32.xlu0 %v1993, 127
      %v2603 = vpop.permute.xlu0 %2602
      %2604 = vrot.lane.b32.xlu0 %v2001, 127
      %v2605 = vpop.permute.xlu0 %2604
      %2606 = vrot.lane.b32.xlu0 %v2009, 127
      %v2607 = vpop.permute.xlu0 %2606
      %2608 = vrot.lane.b32.xlu0 %v2017, 127
      %v2609 = vpop.permute.xlu0 %2608
      %2610 = vrot.lane.b32.xlu0 %v2023, 127
      %v2611 = vpop.permute.xlu0 %2610
      %2612 = vrot.lane.b32.xlu0 %v2031, 127
      %v2613 = vpop.permute.xlu0 %2612
      %2614 = vrot.lane.b32.xlu0 %v2039, 127
      %v2615 = vpop.permute.xlu0 %2614
      %2616 = vrot.lane.b32.xlu0 %v2047, 127
      %v2617 = vpop.permute.xlu0 %2616
      %2618 = vrot.lane.b32.xlu0 %v2025, 127
      %v2619 = vpop.permute.xlu0 %2618
      %2620 = vrot.lane.b32.xlu0 %v2033, 127
      %v2621 = vpop.permute.xlu0 %2620
      %2622 = vrot.lane.b32.xlu0 %v2041, 127
      %v2623 = vpop.permute.xlu0 %2622
      %2624 = vrot.lane.b32.xlu0 %v2049, 127
      %v2625 = vpop.permute.xlu0 %2624
      %2626 = vrot.lane.b32.xlu0 %v2055, 127
      %v2627 = vpop.permute.xlu0 %2626
      %2628 = vrot.lane.b32.xlu0 %v2063, 127
      %v2629 = vpop.permute.xlu0 %2628
      %2630 = vrot.lane.b32.xlu0 %v2071, 127
      %v2631 = vpop.permute.xlu0 %2630
      %2632 = vrot.lane.b32.xlu0 %v2079, 127
      %v2633 = vpop.permute.xlu0 %2632
      %2634 = vrot.lane.b32.xlu0 %v2057, 127
      %v2635 = vpop.permute.xlu0 %2634
      %2636 = vrot.lane.b32.xlu0 %v2065, 127
      %v2637 = vpop.permute.xlu0 %2636
      %2638 = vrot.lane.b32.xlu0 %v2073, 127
      %v2639 = vpop.permute.xlu0 %2638
      %2640 = vrot.lane.b32.xlu0 %v2081, 127
      %v2641 = vpop.permute.xlu0 %2640
      %2642 = vrot.lane.b32.xlu0 %v2087, 127
      %v2643 = vpop.permute.xlu0 %2642
      %2644 = vrot.lane.b32.xlu0 %v2095, 127
      %v2645 = vpop.permute.xlu0 %2644
      %2646 = vrot.lane.b32.xlu0 %v2103, 127
      %v2647 = vpop.permute.xlu0 %2646
      %2648 = vrot.lane.b32.xlu0 %v2111, 127
      %v2649 = vpop.permute.xlu0 %2648
      %2650 = vrot.lane.b32.xlu0 %v2089, 127
      %v2651 = vpop.permute.xlu0 %2650
      %2652 = vrot.lane.b32.xlu0 %v2097, 127
      %v2653 = vpop.permute.xlu0 %2652
      %2654 = vrot.lane.b32.xlu0 %v2105, 127
      %v2655 = vpop.permute.xlu0 %2654
      %2656 = vrot.lane.b32.xlu0 %v2113, 127
      %v2657 = vpop.permute.xlu0 %2656
      %2658 = vrot.lane.b32.xlu0 %v2119, 127
      %v2659 = vpop.permute.xlu0 %2658
      %2660 = vrot.lane.b32.xlu0 %v2127, 127
      %v2661 = vpop.permute.xlu0 %2660
      %2662 = vrot.lane.b32.xlu0 %v2135, 127
      %v2663 = vpop.permute.xlu0 %2662
      %2664 = vrot.lane.b32.xlu0 %v2143, 127
      %v2665 = vpop.permute.xlu0 %2664
      %2666 = vrot.lane.b32.xlu0 %v2121, 127
      %v2667 = vpop.permute.xlu0 %2666
      %2668 = vrot.lane.b32.xlu0 %v2129, 127
      %v2669 = vpop.permute.xlu0 %2668
      %2670 = vrot.lane.b32.xlu0 %v2137, 127
      %v2671 = vpop.permute.xlu0 %2670
      %2672 = vrot.lane.b32.xlu0 %v2145, 127
      %v2673 = vpop.permute.xlu0 %2672
      %2674 = vrot.lane.b32.xlu0 %v2151, 127
      %v2675 = vpop.permute.xlu0 %2674
      %2676 = vrot.lane.b32.xlu0 %v2159, 127
      %v2677 = vpop.permute.xlu0 %2676
      %2678 = vrot.lane.b32.xlu0 %v2167, 127
      %v2679 = vpop.permute.xlu0 %2678
      %2680 = vrot.lane.b32.xlu0 %v2175, 127
      %v2681 = vpop.permute.xlu0 %2680
      %2682 = vrot.lane.b32.xlu0 %v2153, 127
      %v2683 = vpop.permute.xlu0 %2682
      %2684 = vrot.lane.b32.xlu0 %v2161, 127
      %v2685 = vpop.permute.xlu0 %2684
      %2686 = vrot.lane.b32.xlu0 %v2169, 127
      %v2687 = vpop.permute.xlu0 %2686
      %2688 = vrot.lane.b32.xlu0 %v2177, 127
      %v2689 = vpop.permute.xlu0 %2688
      %2690 = vrot.lane.b32.xlu0 %v2183, 127
      %v2691 = vpop.permute.xlu0 %2690
      %2692 = vrot.lane.b32.xlu0 %v2191, 127
      %v2693 = vpop.permute.xlu0 %2692
      %2694 = vrot.lane.b32.xlu0 %v2199, 127
      %v2695 = vpop.permute.xlu0 %2694
      %2696 = vrot.lane.b32.xlu0 %v2207, 127
      %v2697 = vpop.permute.xlu0 %2696
      %2698 = vrot.lane.b32.xlu0 %v2185, 127
      %v2699 = vpop.permute.xlu0 %2698
      %2700 = vrot.lane.b32.xlu0 %v2193, 127
      %v2701 = vpop.permute.xlu0 %2700
      %2702 = vrot.lane.b32.xlu0 %v2201, 127
      %v2703 = vpop.permute.xlu0 %2702
      %2704 = vrot.lane.b32.xlu0 %v2209, 127
      %v2705 = vpop.permute.xlu0 %2704
      %2706 = vrot.lane.b32.xlu0 %v2215, 127
      %v2707 = vpop.permute.xlu0 %2706
      %2708 = vrot.lane.b32.xlu0 %v2223, 127
      %v2709 = vpop.permute.xlu0 %2708
      %2710 = vrot.lane.b32.xlu0 %v2231, 127
      %v2711 = vpop.permute.xlu0 %2710
      %2712 = vrot.lane.b32.xlu0 %v2239, 127
      %v2713 = vpop.permute.xlu0 %2712
      %2714 = vrot.lane.b32.xlu0 %v2217, 127
      %v2715 = vpop.permute.xlu0 %2714
      %2716 = vrot.lane.b32.xlu0 %v2225, 127
      %v2717 = vpop.permute.xlu0 %2716
      %2718 = vrot.lane.b32.xlu0 %v2233, 127
      %v2719 = vpop.permute.xlu0 %2718
      %2720 = vrot.lane.b32.xlu0 %v2241, 127
      %v2721 = vpop.permute.xlu0 %2720
      %2722 = vrot.lane.b32.xlu0 %v2247, 127
      %v2723 = vpop.permute.xlu0 %2722
      %2724 = vrot.lane.b32.xlu0 %v2255, 127
      %v2725 = vpop.permute.xlu0 %2724
      %2726 = vrot.lane.b32.xlu0 %v2263, 127
      %v2727 = vpop.permute.xlu0 %2726
      %2728 = vrot.lane.b32.xlu0 %v2271, 127
      %v2729 = vpop.permute.xlu0 %2728
      %2730 = vrot.lane.b32.xlu0 %v2249, 127
      %v2731 = vpop.permute.xlu0 %2730
      %2732 = vrot.lane.b32.xlu0 %v2257, 127
      %v2733 = vpop.permute.xlu0 %2732
      %2734 = vrot.lane.b32.xlu0 %v2265, 127
      %v2735 = vpop.permute.xlu0 %2734
      %2736 = vrot.lane.b32.xlu0 %v2273, 127
      %v2737 = vpop.permute.xlu0 %2736
      %2738 = vrot.lane.b32.xlu0 %v2279, 127
      %v2739 = vpop.permute.xlu0 %2738
      %2740 = vrot.lane.b32.xlu0 %v2287, 127
      %v2741 = vpop.permute.xlu0 %2740
      %2742 = vrot.lane.b32.xlu0 %v2295, 127
      %v2743 = vpop.permute.xlu0 %2742
      %2744 = vrot.lane.b32.xlu0 %v2303, 127
      %v2745 = vpop.permute.xlu0 %2744
      %2746 = vrot.lane.b32.xlu0 %v2281, 127
      %v2747 = vpop.permute.xlu0 %2746
      %2748 = vrot.lane.b32.xlu0 %v2289, 127
      %v2749 = vpop.permute.xlu0 %2748
      %2750 = vrot.lane.b32.xlu0 %v2297, 127
      %v2751 = vpop.permute.xlu0 %2750
      %2752 = vrot.lane.b32.xlu0 %v2305, 127
      %v2753 = vpop.permute.xlu0 %2752
      %2754 = vrot.lane.b32.xlu0 %v2311, 127
      %v2755 = vpop.permute.xlu0 %2754
      %2756 = vrot.lane.b32.xlu0 %v2319, 127
      %v2757 = vpop.permute.xlu0 %2756
      %2758 = vrot.lane.b32.xlu0 %v2327, 127
      %v2759 = vpop.permute.xlu0 %2758
      %2760 = vrot.lane.b32.xlu0 %v2335, 127
      %v2761 = vpop.permute.xlu0 %2760
      %2762 = vrot.lane.b32.xlu0 %v2313, 127
      %v2763 = vpop.permute.xlu0 %2762
      %2764 = vrot.lane.b32.xlu0 %v2321, 127
      %v2765 = vpop.permute.xlu0 %2764
      %2766 = vrot.lane.b32.xlu0 %v2329, 127
      %v2767 = vpop.permute.xlu0 %2766
      %2768 = vrot.lane.b32.xlu0 %v2337, 127
      %v2769 = vpop.permute.xlu0 %2768
      %2770 = vrot.lane.b32.xlu0 %v2343, 127
      %v2771 = vpop.permute.xlu0 %2770
      %2772 = vrot.lane.b32.xlu0 %v2351, 127
      %v2773 = vpop.permute.xlu0 %2772
      %2774 = vrot.lane.b32.xlu0 %v2359, 127
      %v2775 = vpop.permute.xlu0 %2774
      %2776 = vrot.lane.b32.xlu0 %v2367, 127
      %v2777 = vpop.permute.xlu0 %2776
      %2778 = vrot.lane.b32.xlu0 %v2345, 127
      %v2779 = vpop.permute.xlu0 %2778
      %2780 = vrot.lane.b32.xlu0 %v2353, 127
      %v2781 = vpop.permute.xlu0 %2780
      %2782 = vrot.lane.b32.xlu0 %v2361, 127
      %v2783 = vpop.permute.xlu0 %2782
      %2784 = vrot.lane.b32.xlu0 %v2369, 127
      %v2785 = vpop.permute.xlu0 %2784
      %2786 = vrot.lane.b32.xlu0 %v2375, 127
      %v2787 = vpop.permute.xlu0 %2786
      %2788 = vrot.lane.b32.xlu0 %v2383, 127
      %v2789 = vpop.permute.xlu0 %2788
      %2790 = vrot.lane.b32.xlu0 %v2391, 127
      %v2791 = vpop.permute.xlu0 %2790
      %2792 = vrot.lane.b32.xlu0 %v2399, 127
      %v2793 = vpop.permute.xlu0 %2792
      %2794 = vrot.lane.b32.xlu0 %v2377, 127
      %v2795 = vpop.permute.xlu0 %2794
      %2796 = vrot.lane.b32.xlu0 %v2385, 127
      %v2797 = vpop.permute.xlu0 %2796
      %2798 = vrot.lane.b32.xlu0 %v2393, 127
      %v2799 = vpop.permute.xlu0 %2798
      %2800 = vrot.lane.b32.xlu0 %v2401, 127
      %v2801 = vpop.permute.xlu0 %2800
      %2802 = vrot.lane.b32.xlu0 %v2407, 127
      %v2803 = vpop.permute.xlu0 %2802
      %2804 = vrot.lane.b32.xlu0 %v2415, 127
      %v2805 = vpop.permute.xlu0 %2804
      %2806 = vrot.lane.b32.xlu0 %v2423, 127
      %v2807 = vpop.permute.xlu0 %2806
      %2808 = vrot.lane.b32.xlu0 %v2431, 127
      %v2809 = vpop.permute.xlu0 %2808
      %2810 = vrot.lane.b32.xlu0 %v2409, 127
      %v2811 = vpop.permute.xlu0 %2810
      %2812 = vrot.lane.b32.xlu0 %v2417, 127
      %v2813 = vpop.permute.xlu0 %2812
      %2814 = vrot.lane.b32.xlu0 %v2425, 127
      %v2815 = vpop.permute.xlu0 %2814
      %2816 = vrot.lane.b32.xlu0 %v2433, 127
      %v2817 = vpop.permute.xlu0 %2816
      %v2946 = vmax.f32 %v1927, %v2563
      %v2947 = vmax.f32 %v1935, %v2565
      %v2948 = vmax.f32 %v1943, %v2567
      %v2949 = vmax.f32 %v1951, %v2569
      %v2950 = vmax.f32 %v1929, %v2571
      %v2951 = vmax.f32 %v1937, %v2573
      %v2952 = vmax.f32 %v1945, %v2575
      %v2953 = vmax.f32 %v1953, %v2577
      %v2954 = vmax.f32 %v1959, %v2579
      %v2955 = vmax.f32 %v1967, %v2581
      %v2956 = vmax.f32 %v1975, %v2583
      %v2957 = vmax.f32 %v1983, %v2585
      %v2958 = vmax.f32 %v1961, %v2587
      %v2959 = vmax.f32 %v1969, %v2589
      %v2960 = vmax.f32 %v1977, %v2591
      %v2961 = vmax.f32 %v1985, %v2593
      %v2962 = vmax.f32 %v1991, %v2595
      %v2963 = vmax.f32 %v1999, %v2597
      %v2964 = vmax.f32 %v2007, %v2599
      %v2965 = vmax.f32 %v2015, %v2601
      %v2966 = vmax.f32 %v1993, %v2603
      %v2967 = vmax.f32 %v2001, %v2605
      %v2968 = vmax.f32 %v2009, %v2607
      %v2969 = vmax.f32 %v2017, %v2609
      %v2970 = vmax.f32 %v2023, %v2611
      %v2971 = vmax.f32 %v2031, %v2613
      %v2972 = vmax.f32 %v2039, %v2615
      %v2973 = vmax.f32 %v2047, %v2617
      %v2974 = vmax.f32 %v2025, %v2619
      %v2975 = vmax.f32 %v2033, %v2621
      %v2976 = vmax.f32 %v2041, %v2623
      %v2977 = vmax.f32 %v2049, %v2625
      %v2978 = vmax.f32 %v2055, %v2627
      %v2979 = vmax.f32 %v2063, %v2629
      %v2980 = vmax.f32 %v2071, %v2631
      %v2981 = vmax.f32 %v2079, %v2633
      %v2982 = vmax.f32 %v2057, %v2635
      %v2983 = vmax.f32 %v2065, %v2637
      %v2984 = vmax.f32 %v2073, %v2639
      %v2985 = vmax.f32 %v2081, %v2641
      %v2986 = vmax.f32 %v2087, %v2643
      %v2987 = vmax.f32 %v2095, %v2645
      %v2988 = vmax.f32 %v2103, %v2647
      %v2989 = vmax.f32 %v2111, %v2649
      %v2990 = vmax.f32 %v2089, %v2651
      %v2991 = vmax.f32 %v2097, %v2653
      %v2992 = vmax.f32 %v2105, %v2655
      %v2993 = vmax.f32 %v2113, %v2657
      %v2994 = vmax.f32 %v2119, %v2659
      %v2995 = vmax.f32 %v2127, %v2661
      %v2996 = vmax.f32 %v2135, %v2663
      %v2997 = vmax.f32 %v2143, %v2665
      %v2998 = vmax.f32 %v2121, %v2667
      %v2999 = vmax.f32 %v2129, %v2669
      %v3000 = vmax.f32 %v2137, %v2671
      %v3001 = vmax.f32 %v2145, %v2673
      %v3002 = vmax.f32 %v2151, %v2675
      %v3003 = vmax.f32 %v2159, %v2677
      %v3004 = vmax.f32 %v2167, %v2679
      %v3005 = vmax.f32 %v2175, %v2681
      %v3006 = vmax.f32 %v2153, %v2683
      %v3007 = vmax.f32 %v2161, %v2685
      %v3008 = vmax.f32 %v2169, %v2687
      %v3009 = vmax.f32 %v2177, %v2689
      %v3010 = vmax.f32 %v2183, %v2691
      %v3011 = vmax.f32 %v2191, %v2693
      %v3012 = vmax.f32 %v2199, %v2695
      %v3013 = vmax.f32 %v2207, %v2697
      %v3014 = vmax.f32 %v2185, %v2699
      %v3015 = vmax.f32 %v2193, %v2701
      %v3016 = vmax.f32 %v2201, %v2703
      %v3017 = vmax.f32 %v2209, %v2705
      %v3018 = vmax.f32 %v2215, %v2707
      %v3019 = vmax.f32 %v2223, %v2709
      %v3020 = vmax.f32 %v2231, %v2711
      %v3021 = vmax.f32 %v2239, %v2713
      %v3022 = vmax.f32 %v2217, %v2715
      %v3023 = vmax.f32 %v2225, %v2717
      %v3024 = vmax.f32 %v2233, %v2719
      %v3025 = vmax.f32 %v2241, %v2721
      %v3026 = vmax.f32 %v2247, %v2723
      %v3027 = vmax.f32 %v2255, %v2725
      %v3028 = vmax.f32 %v2263, %v2727
      %v3029 = vmax.f32 %v2271, %v2729
      %v3030 = vmax.f32 %v2249, %v2731
      %v3031 = vmax.f32 %v2257, %v2733
      %v3032 = vmax.f32 %v2265, %v2735
      %v3033 = vmax.f32 %v2273, %v2737
      %v3034 = vmax.f32 %v2279, %v2739
      %v3035 = vmax.f32 %v2287, %v2741
      %v3036 = vmax.f32 %v2295, %v2743
      %v3037 = vmax.f32 %v2303, %v2745
      %v3038 = vmax.f32 %v2281, %v2747
      %v3039 = vmax.f32 %v2289, %v2749
      %v3040 = vmax.f32 %v2297, %v2751
      %v3041 = vmax.f32 %v2305, %v2753
      %v3042 = vmax.f32 %v2311, %v2755
      %v3043 = vmax.f32 %v2319, %v2757
      %v3044 = vmax.f32 %v2327, %v2759
      %v3045 = vmax.f32 %v2335, %v2761
      %v3046 = vmax.f32 %v2313, %v2763
      %v3047 = vmax.f32 %v2321, %v2765
      %v3048 = vmax.f32 %v2329, %v2767
      %v3049 = vmax.f32 %v2337, %v2769
      %v3050 = vmax.f32 %v2343, %v2771
      %v3051 = vmax.f32 %v2351, %v2773
      %v3052 = vmax.f32 %v2359, %v2775
      %v3053 = vmax.f32 %v2367, %v2777
      %v3054 = vmax.f32 %v2345, %v2779
      %v3055 = vmax.f32 %v2353, %v2781
      %v3056 = vmax.f32 %v2361, %v2783
      %v3057 = vmax.f32 %v2369, %v2785
      %v3058 = vmax.f32 %v2375, %v2787
      %v3059 = vmax.f32 %v2383, %v2789
      %v3060 = vmax.f32 %v2391, %v2791
      %v3061 = vmax.f32 %v2399, %v2793
      %v3062 = vmax.f32 %v2377, %v2795
      %v3063 = vmax.f32 %v2385, %v2797
      %v3064 = vmax.f32 %v2393, %v2799
      %v3065 = vmax.f32 %v2401, %v2801
      %v3066 = vmax.f32 %v2407, %v2803
      %v3067 = vmax.f32 %v2415, %v2805
      %v3068 = vmax.f32 %v2423, %v2807
      %v3069 = vmax.f32 %v2431, %v2809
      %v3070 = vmax.f32 %v2409, %v2811
      %v3071 = vmax.f32 %v2417, %v2813
      %v3072 = vmax.f32 %v2425, %v2815
      %v3073 = vmax.f32 %v2433, %v2817
      %vm3074 = vcmask 76800
      %3075 = vst.msk [vmem:[#allocation2] sm:$0xf] %vm3074, 0
      %vm3076 = vcmask 73728
      %3077 = vst.msk [vmem:[#allocation2 + $0x4] sm:$0x1] %vm3076, 0
      %3078 = vst.msk [vmem:[#allocation2 + $0x8] sm:$0xf] %vm3074, 0
      %3079 = vst.msk [vmem:[#allocation2 + $0xc] sm:$0x1] %vm3076, 0
      %3080 = vst.msk [vmem:[#allocation2 + $0x10] sm:$0xf] %vm3074, 0
      %3081 = vst.msk [vmem:[#allocation2 + $0x14] sm:$0x1] %vm3076, 0
      %3082 = vst.msk [vmem:[#allocation2 + $0x18] sm:$0xf] %vm3074, 0
      %3083 = vst.msk [vmem:[#allocation2 + $0x1c] sm:$0x1] %vm3076, 0
      %3212 = vst [vmem:[#allocation1] ss:$4 sm:$0xff] %v2946
      %s3213 = scalar_lea.vmem [#allocation1], 1
      %3214 = vst [vmem:[%s3213] ss:$4 sm:$0xff] %v2947
      %s3215 = scalar_lea.vmem [#allocation1], 2
      %3216 = vst [vmem:[%s3215] ss:$4 sm:$0xff] %v2948
      %s3217 = scalar_lea.vmem [#allocation1], 3
      %3218 = vst [vmem:[%s3217] ss:$4 sm:$0xff] %v2949
      %v3219 = vld.sshfl [vmem:[#allocation1] sm:$0xff pattern:$0x73625140]
      %s3220 = scalar_lea.vmem [#allocation1], 32
      %3221 = vst [vmem:[%s3220] ss:$4 sm:$0xff] %v2950
      %s3222 = scalar_lea.vmem [#allocation1], 33
      %3223 = vst [vmem:[%s3222] ss:$4 sm:$0xff] %v2951
      %s3224 = scalar_lea.vmem [#allocation1], 34
      %3225 = vst [vmem:[%s3224] ss:$4 sm:$0xff] %v2952
      %s3226 = scalar_lea.vmem [#allocation1], 35
      %3227 = vst [vmem:[%s3226] ss:$4 sm:$0xff] %v2953
      %v3228 = vld.sshfl [vmem:[#allocation1 + $0x20] sm:$0xff pattern:$0x73625140]
      %3229 = vst [vmem:[#allocation1] ss:$4 sm:$0xff] %v2954
      %3230 = vst [vmem:[%s3213] ss:$4 sm:$0xff] %v2955
      %3231 = vst [vmem:[%s3215] ss:$4 sm:$0xff] %v2956
      %3232 = vst [vmem:[%s3217] ss:$4 sm:$0xff] %v2957
      %v3233 = vld.sshfl [vmem:[#allocation1] sm:$0xff pattern:$0x73625140]
      %3234 = vst [vmem:[%s3220] ss:$4 sm:$0xff] %v2958
      %3235 = vst [vmem:[%s3222] ss:$4 sm:$0xff] %v2959
      %3236 = vst [vmem:[%s3224] ss:$4 sm:$0xff] %v2960
      %3237 = vst [vmem:[%s3226] ss:$4 sm:$0xff] %v2961
      %v3238 = vld.sshfl [vmem:[#allocation1 + $0x20] sm:$0xff pattern:$0x73625140]
      %3239 = vst [vmem:[#allocation1] ss:$4 sm:$0xff] %v2962
      %3240 = vst [vmem:[%s3213] ss:$4 sm:$0xff] %v2963
      %3241 = vst [vmem:[%s3215] ss:$4 sm:$0xff] %v2964
      %3242 = vst [vmem:[%s3217] ss:$4 sm:$0xff] %v2965
      %v3243 = vld.sshfl [vmem:[#allocation1] sm:$0xff pattern:$0x73625140]
      %3244 = vst [vmem:[%s3220] ss:$4 sm:$0xff] %v2966
      %3245 = vst [vmem:[%s3222] ss:$4 sm:$0xff] %v2967
      %3246 = vst [vmem:[%s3224] ss:$4 sm:$0xff] %v2968
      %3247 = vst [vmem:[%s3226] ss:$4 sm:$0xff] %v2969
      %v3248 = vld.sshfl [vmem:[#allocation1 + $0x20] sm:$0xff pattern:$0x73625140]
      %3249 = vst [vmem:[#allocation1] ss:$4 sm:$0xff] %v2970
      %3250 = vst [vmem:[%s3213] ss:$4 sm:$0xff] %v2971
      %3251 = vst [vmem:[%s3215] ss:$4 sm:$0xff] %v2972
      %3252 = vst [vmem:[%s3217] ss:$4 sm:$0xff] %v2973
      %v3253 = vld.sshfl [vmem:[#allocation1] sm:$0xff pattern:$0x73625140]
      %3254 = vst [vmem:[%s3220] ss:$4 sm:$0xff] %v2974
      %3255 = vst [vmem:[%s3222] ss:$4 sm:$0xff] %v2975
      %3256 = vst [vmem:[%s3224] ss:$4 sm:$0xff] %v2976
      %3257 = vst [vmem:[%s3226] ss:$4 sm:$0xff] %v2977
      %v3258 = vld.sshfl [vmem:[#allocation1 + $0x20] sm:$0xff pattern:$0x73625140]
      %3259 = vst [vmem:[#allocation1] ss:$4 sm:$0xff] %v2978
      %3260 = vst [vmem:[%s3213] ss:$4 sm:$0xff] %v2979
      %3261 = vst [vmem:[%s3215] ss:$4 sm:$0xff] %v2980
      %3262 = vst [vmem:[%s3217] ss:$4 sm:$0xff] %v2981
      %v3263 = vld.sshfl [vmem:[#allocation1] sm:$0xff pattern:$0x73625140]
      %3264 = vst [vmem:[%s3220] ss:$4 sm:$0xff] %v2982
      %3265 = vst [vmem:[%s3222] ss:$4 sm:$0xff] %v2983
      %3266 = vst [vmem:[%s3224] ss:$4 sm:$0xff] %v2984
      %3267 = vst [vmem:[%s3226] ss:$4 sm:$0xff] %v2985
      %v3268 = vld.sshfl [vmem:[#allocation1 + $0x20] sm:$0xff pattern:$0x73625140]
      %3269 = vst [vmem:[#allocation1] ss:$4 sm:$0xff] %v2986
      %3270 = vst [vmem:[%s3213] ss:$4 sm:$0xff] %v2987
      %3271 = vst [vmem:[%s3215] ss:$4 sm:$0xff] %v2988
      %3272 = vst [vmem:[%s3217] ss:$4 sm:$0xff] %v2989
      %v3273 = vld.sshfl [vmem:[#allocation1] sm:$0xff pattern:$0x73625140]
      %3274 = vst [vmem:[%s3220] ss:$4 sm:$0xff] %v2990
      %3275 = vst [vmem:[%s3222] ss:$4 sm:$0xff] %v2991
      %3276 = vst [vmem:[%s3224] ss:$4 sm:$0xff] %v2992
      %3277 = vst [vmem:[%s3226] ss:$4 sm:$0xff] %v2993
      %v3278 = vld.sshfl [vmem:[#allocation1 + $0x20] sm:$0xff pattern:$0x73625140]
      %3279 = vst [vmem:[#allocation1] ss:$4 sm:$0xff] %v2994
      %3280 = vst [vmem:[%s3213] ss:$4 sm:$0xff] %v2995
      %3281 = vst [vmem:[%s3215] ss:$4 sm:$0xff] %v2996
      %3282 = vst [vmem:[%s3217] ss:$4 sm:$0xff] %v2997
      %v3283 = vld.sshfl [vmem:[#allocation1] sm:$0xff pattern:$0x73625140]
      %3284 = vst [vmem:[%s3220] ss:$4 sm:$0xff] %v2998
      %3285 = vst [vmem:[%s3222] ss:$4 sm:$0xff] %v2999
      %3286 = vst [vmem:[%s3224] ss:$4 sm:$0xff] %v3000
      %3287 = vst [vmem:[%s3226] ss:$4 sm:$0xff] %v3001
      %v3288 = vld.sshfl [vmem:[#allocation1 + $0x20] sm:$0xff pattern:$0x73625140]
      %3289 = vst [vmem:[#allocation1] ss:$4 sm:$0xff] %v3002
      %3290 = vst [vmem:[%s3213] ss:$4 sm:$0xff] %v3003
      %3291 = vst [vmem:[%s3215] ss:$4 sm:$0xff] %v3004
      %3292 = vst [vmem:[%s3217] ss:$4 sm:$0xff] %v3005
      %v3293 = vld.sshfl [vmem:[#allocation1] sm:$0xff pattern:$0x73625140]
      %3294 = vst [vmem:[%s3220] ss:$4 sm:$0xff] %v3006
      %3295 = vst [vmem:[%s3222] ss:$4 sm:$0xff] %v3007
      %3296 = vst [vmem:[%s3224] ss:$4 sm:$0xff] %v3008
      %3297 = vst [vmem:[%s3226] ss:$4 sm:$0xff] %v3009
      %v3298 = vld.sshfl [vmem:[#allocation1 + $0x20] sm:$0xff pattern:$0x73625140]
      %3299 = vst [vmem:[#allocation1] ss:$4 sm:$0xff] %v3010
      %3300 = vst [vmem:[%s3213] ss:$4 sm:$0xff] %v3011
      %3301 = vst [vmem:[%s3215] ss:$4 sm:$0xff] %v3012
      %3302 = vst [vmem:[%s3217] ss:$4 sm:$0xff] %v3013
      %v3303 = vld.sshfl [vmem:[#allocation1] sm:$0xff pattern:$0x73625140]
      %3304 = vst [vmem:[%s3220] ss:$4 sm:$0xff] %v3014
      %3305 = vst [vmem:[%s3222] ss:$4 sm:$0xff] %v3015
      %3306 = vst [vmem:[%s3224] ss:$4 sm:$0xff] %v3016
      %3307 = vst [vmem:[%s3226] ss:$4 sm:$0xff] %v3017
      %v3308 = vld.sshfl [vmem:[#allocation1 + $0x20] sm:$0xff pattern:$0x73625140]
      %3309 = vst [vmem:[#allocation1] ss:$4 sm:$0xff] %v3018
      %3310 = vst [vmem:[%s3213] ss:$4 sm:$0xff] %v3019
      %3311 = vst [vmem:[%s3215] ss:$4 sm:$0xff] %v3020
      %3312 = vst [vmem:[%s3217] ss:$4 sm:$0xff] %v3021
      %v3313 = vld.sshfl [vmem:[#allocation1] sm:$0xff pattern:$0x73625140]
      %3314 = vst [vmem:[%s3220] ss:$4 sm:$0xff] %v3022
      %3315 = vst [vmem:[%s3222] ss:$4 sm:$0xff] %v3023
      %3316 = vst [vmem:[%s3224] ss:$4 sm:$0xff] %v3024
      %3317 = vst [vmem:[%s3226] ss:$4 sm:$0xff] %v3025
      %v3318 = vld.sshfl [vmem:[#allocation1 + $0x20] sm:$0xff pattern:$0x73625140]
      %3319 = vst [vmem:[#allocation1] ss:$4 sm:$0xff] %v3026
      %3320 = vst [vmem:[%s3213] ss:$4 sm:$0xff] %v3027
      %3321 = vst [vmem:[%s3215] ss:$4 sm:$0xff] %v3028
      %3322 = vst [vmem:[%s3217] ss:$4 sm:$0xff] %v3029
      %v3323 = vld.sshfl [vmem:[#allocation1] sm:$0xff pattern:$0x73625140]
      %3324 = vst [vmem:[%s3220] ss:$4 sm:$0xff] %v3030
      %3325 = vst [vmem:[%s3222] ss:$4 sm:$0xff] %v3031
      %3326 = vst [vmem:[%s3224] ss:$4 sm:$0xff] %v3032
      %3327 = vst [vmem:[%s3226] ss:$4 sm:$0xff] %v3033
      %v3328 = vld.sshfl [vmem:[#allocation1 + $0x20] sm:$0xff pattern:$0x73625140]
      %3329 = vst [vmem:[#allocation1] ss:$4 sm:$0xff] %v3034
      %3330 = vst [vmem:[%s3213] ss:$4 sm:$0xff] %v3035
      %3331 = vst [vmem:[%s3215] ss:$4 sm:$0xff] %v3036
      %3332 = vst [vmem:[%s3217] ss:$4 sm:$0xff] %v3037
      %v3333 = vld.sshfl [vmem:[#allocation1] sm:$0xff pattern:$0x73625140]
      %3334 = vst [vmem:[%s3220] ss:$4 sm:$0xff] %v3038
      %3335 = vst [vmem:[%s3222] ss:$4 sm:$0xff] %v3039
      %3336 = vst [vmem:[%s3224] ss:$4 sm:$0xff] %v3040
      %3337 = vst [vmem:[%s3226] ss:$4 sm:$0xff] %v3041
      %v3338 = vld.sshfl [vmem:[#allocation1 + $0x20] sm:$0xff pattern:$0x73625140]
      %3339 = vst [vmem:[#allocation1] ss:$4 sm:$0xff] %v3042
      %3340 = vst [vmem:[%s3213] ss:$4 sm:$0xff] %v3043
      %3341 = vst [vmem:[%s3215] ss:$4 sm:$0xff] %v3044
      %3342 = vst [vmem:[%s3217] ss:$4 sm:$0xff] %v3045
      %v3343 = vld.sshfl [vmem:[#allocation1] sm:$0xff pattern:$0x73625140]
      %3344 = vst [vmem:[%s3220] ss:$4 sm:$0xff] %v3046
      %3345 = vst [vmem:[%s3222] ss:$4 sm:$0xff] %v3047
      %3346 = vst [vmem:[%s3224] ss:$4 sm:$0xff] %v3048
      %3347 = vst [vmem:[%s3226] ss:$4 sm:$0xff] %v3049
      %v3348 = vld.sshfl [vmem:[#allocation1 + $0x20] sm:$0xff pattern:$0x73625140]
      %3349 = vst [vmem:[#allocation1] ss:$4 sm:$0xff] %v3050
      %3350 = vst [vmem:[%s3213] ss:$4 sm:$0xff] %v3051
      %3351 = vst [vmem:[%s3215] ss:$4 sm:$0xff] %v3052
      %3352 = vst [vmem:[%s3217] ss:$4 sm:$0xff] %v3053
      %v3353 = vld.sshfl [vmem:[#allocation1] sm:$0xff pattern:$0x73625140]
      %3354 = vst [vmem:[%s3220] ss:$4 sm:$0xff] %v3054
      %3355 = vst [vmem:[%s3222] ss:$4 sm:$0xff] %v3055
      %3356 = vst [vmem:[%s3224] ss:$4 sm:$0xff] %v3056
      %3357 = vst [vmem:[%s3226] ss:$4 sm:$0xff] %v3057
      %v3358 = vld.sshfl [vmem:[#allocation1 + $0x20] sm:$0xff pattern:$0x73625140]
      %3359 = vst [vmem:[#allocation1] ss:$4 sm:$0xff] %v3058
      %3360 = vst [vmem:[%s3213] ss:$4 sm:$0xff] %v3059
      %3361 = vst [vmem:[%s3215] ss:$4 sm:$0xff] %v3060
      %3362 = vst [vmem:[%s3217] ss:$4 sm:$0xff] %v3061
      %v3363 = vld.sshfl [vmem:[#allocation1] sm:$0xff pattern:$0x73625140]
      %3364 = vst [vmem:[%s3220] ss:$4 sm:$0xff] %v3062
      %3365 = vst [vmem:[%s3222] ss:$4 sm:$0xff] %v3063
      %3366 = vst [vmem:[%s3224] ss:$4 sm:$0xff] %v3064
      %3367 = vst [vmem:[%s3226] ss:$4 sm:$0xff] %v3065
      %v3368 = vld.sshfl [vmem:[#allocation1 + $0x20] sm:$0xff pattern:$0x73625140]
      %3369 = vst [vmem:[#allocation1] ss:$4 sm:$0xff] %v3066
      %3370 = vst [vmem:[%s3213] ss:$4 sm:$0xff] %v3067
      %3371 = vst [vmem:[%s3215] ss:$4 sm:$0xff] %v3068
      %3372 = vst [vmem:[%s3217] ss:$4 sm:$0xff] %v3069
      %v3373 = vld.sshfl [vmem:[#allocation1] sm:$0xff pattern:$0x73625140]
      %3374 = vst [vmem:[%s3220] ss:$4 sm:$0xff] %v3070
      %3375 = vst [vmem:[%s3222] ss:$4 sm:$0xff] %v3071
      %3376 = vst [vmem:[%s3224] ss:$4 sm:$0xff] %v3072
      %3377 = vst [vmem:[%s3226] ss:$4 sm:$0xff] %v3073
      %v3378 = vld.sshfl [vmem:[#allocation1 + $0x20] sm:$0xff pattern:$0x73625140]
      %v3411 = vpack.c.bf16 %v3219, %v3219
      %v3412 = vpack.c.bf16 %v3228, %v3228
      %v3413 = vpack.c.bf16 %v3233, %v3233
      %v3414 = vpack.c.bf16 %v3238, %v3238
      %v3415 = vpack.c.bf16 %v3243, %v3243
      %v3416 = vpack.c.bf16 %v3248, %v3248
      %v3417 = vpack.c.bf16 %v3253, %v3253
      %v3418 = vpack.c.bf16 %v3258, %v3258
      %v3419 = vpack.c.bf16 %v3263, %v3263
      %v3420 = vpack.c.bf16 %v3268, %v3268
      %v3421 = vpack.c.bf16 %v3273, %v3273
      %v3422 = vpack.c.bf16 %v3278, %v3278
      %v3423 = vpack.c.bf16 %v3283, %v3283
      %v3424 = vpack.c.bf16 %v3288, %v3288
      %v3425 = vpack.c.bf16 %v3293, %v3293
      %v3426 = vpack.c.bf16 %v3298, %v3298
      %v3427 = vpack.c.bf16 %v3303, %v3303
      %v3428 = vpack.c.bf16 %v3308, %v3308
      %v3429 = vpack.c.bf16 %v3313, %v3313
      %v3430 = vpack.c.bf16 %v3318, %v3318
      %v3431 = vpack.c.bf16 %v3323, %v3323
      %v3432 = vpack.c.bf16 %v3328, %v3328
      %v3433 = vpack.c.bf16 %v3333, %v3333
      %v3434 = vpack.c.bf16 %v3338, %v3338
      %v3435 = vpack.c.bf16 %v3343, %v3343
      %v3436 = vpack.c.bf16 %v3348, %v3348
      %v3437 = vpack.c.bf16 %v3353, %v3353
      %v3438 = vpack.c.bf16 %v3358, %v3358
      %v3439 = vpack.c.bf16 %v3363, %v3363
      %v3440 = vpack.c.bf16 %v3368, %v3368
      %v3441 = vpack.c.bf16 %v3373, %v3373
      %v3442 = vpack.c.bf16 %v3378, %v3378
      %v3475 = vunpack.c.l.b16 %v3411
      %v3476 = vunpack.c.l.b16 %v3412
      %v3477 = vunpack.c.l.b16 %v3413
      %v3478 = vunpack.c.l.b16 %v3414
      %v3479 = vunpack.c.l.b16 %v3415
      %v3480 = vunpack.c.l.b16 %v3416
      %v3481 = vunpack.c.l.b16 %v3417
      %v3482 = vunpack.c.l.b16 %v3418
      %v3483 = vunpack.c.l.b16 %v3419
      %v3484 = vunpack.c.l.b16 %v3420
      %v3485 = vunpack.c.l.b16 %v3421
      %v3486 = vunpack.c.l.b16 %v3422
      %v3487 = vunpack.c.l.b16 %v3423
      %v3488 = vunpack.c.l.b16 %v3424
      %v3489 = vunpack.c.l.b16 %v3425
      %v3490 = vunpack.c.l.b16 %v3426
      %v3491 = vunpack.c.l.b16 %v3427
      %v3492 = vunpack.c.l.b16 %v3428
      %v3493 = vunpack.c.l.b16 %v3429
      %v3494 = vunpack.c.l.b16 %v3430
      %v3495 = vunpack.c.l.b16 %v3431
      %v3496 = vunpack.c.l.b16 %v3432
      %v3497 = vunpack.c.l.b16 %v3433
      %v3498 = vunpack.c.l.b16 %v3434
      %v3499 = vunpack.c.l.b16 %v3435
      %v3500 = vunpack.c.l.b16 %v3436
      %v3501 = vunpack.c.l.b16 %v3437
      %v3502 = vunpack.c.l.b16 %v3438
      %v3503 = vunpack.c.l.b16 %v3439
      %v3504 = vunpack.c.l.b16 %v3440
      %v3505 = vunpack.c.l.b16 %v3441
      %v3506 = vunpack.c.l.b16 %v3442
      %3507 = vset.pattern.permute.xlu0 0
      %3508 = vperm.xlu0 %3507, %v3475
      %v3509 = vpop.permute.xlu0 %3508
      %3510 = vset.pattern.permute.xlu0 0
      %3511 = vperm.xlu0 %3510, %v3476
      %v3512 = vpop.permute.xlu0 %3511
      %3513 = vset.pattern.permute.xlu0 0
      %3514 = vperm.xlu0 %3513, %v3477
      %v3515 = vpop.permute.xlu0 %3514
      %3516 = vset.pattern.permute.xlu0 0
      %3517 = vperm.xlu0 %3516, %v3478
      %v3518 = vpop.permute.xlu0 %3517
      %3519 = vset.pattern.permute.xlu0 0
      %3520 = vperm.xlu0 %3519, %v3479
      %v3521 = vpop.permute.xlu0 %3520
      %3522 = vset.pattern.permute.xlu0 0
      %3523 = vperm.xlu0 %3522, %v3480
      %v3524 = vpop.permute.xlu0 %3523
      %3525 = vset.pattern.permute.xlu0 0
      %3526 = vperm.xlu0 %3525, %v3481
      %v3527 = vpop.permute.xlu0 %3526
      %3528 = vset.pattern.permute.xlu0 0
      %3529 = vperm.xlu0 %3528, %v3482
      %v3530 = vpop.permute.xlu0 %3529
      %3531 = vset.pattern.permute.xlu0 0
      %3532 = vperm.xlu0 %3531, %v3483
      %v3533 = vpop.permute.xlu0 %3532
      %3534 = vset.pattern.permute.xlu0 0
      %3535 = vperm.xlu0 %3534, %v3484
      %v3536 = vpop.permute.xlu0 %3535
      %3537 = vset.pattern.permute.xlu0 0
      %3538 = vperm.xlu0 %3537, %v3485
      %v3539 = vpop.permute.xlu0 %3538
      %3540 = vset.pattern.permute.xlu0 0
      %3541 = vperm.xlu0 %3540, %v3486
      %v3542 = vpop.permute.xlu0 %3541
      %3543 = vset.pattern.permute.xlu0 0
      %3544 = vperm.xlu0 %3543, %v3487
      %v3545 = vpop.permute.xlu0 %3544
      %3546 = vset.pattern.permute.xlu0 0
      %3547 = vperm.xlu0 %3546, %v3488
      %v3548 = vpop.permute.xlu0 %3547
      %3549 = vset.pattern.permute.xlu0 0
      %3550 = vperm.xlu0 %3549, %v3489
      %v3551 = vpop.permute.xlu0 %3550
      %3552 = vset.pattern.permute.xlu0 0
      %3553 = vperm.xlu0 %3552, %v3490
      %v3554 = vpop.permute.xlu0 %3553
      %3555 = vset.pattern.permute.xlu0 0
      %3556 = vperm.xlu0 %3555, %v3491
      %v3557 = vpop.permute.xlu0 %3556
      %3558 = vset.pattern.permute.xlu0 0
      %3559 = vperm.xlu0 %3558, %v3492
      %v3560 = vpop.permute.xlu0 %3559
      %3561 = vset.pattern.permute.xlu0 0
      %3562 = vperm.xlu0 %3561, %v3493
      %v3563 = vpop.permute.xlu0 %3562
      %3564 = vset.pattern.permute.xlu0 0
      %3565 = vperm.xlu0 %3564, %v3494
      %v3566 = vpop.permute.xlu0 %3565
      %3567 = vset.pattern.permute.xlu0 0
      %3568 = vperm.xlu0 %3567, %v3495
      %v3569 = vpop.permute.xlu0 %3568
      %3570 = vset.pattern.permute.xlu0 0
      %3571 = vperm.xlu0 %3570, %v3496
      %v3572 = vpop.permute.xlu0 %3571
      %3573 = vset.pattern.permute.xlu0 0
      %3574 = vperm.xlu0 %3573, %v3497
      %v3575 = vpop.permute.xlu0 %3574
      %3576 = vset.pattern.permute.xlu0 0
      %3577 = vperm.xlu0 %3576, %v3498
      %v3578 = vpop.permute.xlu0 %3577
      %3579 = vset.pattern.permute.xlu0 0
      %3580 = vperm.xlu0 %3579, %v3499
      %v3581 = vpop.permute.xlu0 %3580
      %3582 = vset.pattern.permute.xlu0 0
      %3583 = vperm.xlu0 %3582, %v3500
      %v3584 = vpop.permute.xlu0 %3583
      %3585 = vset.pattern.permute.xlu0 0
      %3586 = vperm.xlu0 %3585, %v3501
      %v3587 = vpop.permute.xlu0 %3586
      %3588 = vset.pattern.permute.xlu0 0
      %3589 = vperm.xlu0 %3588, %v3502
      %v3590 = vpop.permute.xlu0 %3589
      %3591 = vset.pattern.permute.xlu0 0
      %3592 = vperm.xlu0 %3591, %v3503
      %v3593 = vpop.permute.xlu0 %3592
      %3594 = vset.pattern.permute.xlu0 0
      %3595 = vperm.xlu0 %3594, %v3504
      %v3596 = vpop.permute.xlu0 %3595
      %3597 = vset.pattern.permute.xlu0 0
      %3598 = vperm.xlu0 %3597, %v3505
      %v3599 = vpop.permute.xlu0 %3598
      %3600 = vset.pattern.permute.xlu0 0
      %3601 = vperm.xlu0 %3600, %v3506
      %v3602 = vpop.permute.xlu0 %3601
      %v3603 = vlaneseq
      %v3604 = vand.u32 %v3603, 127
      %v3605 = vadd.s32 %v3604, 4294967295
      %v3606 = vperm.slane %v3509, %v3605
      %v3607 = vperm.slane %v3512, %v3605
      %v3608 = vperm.slane %v3515, %v3605
      %v3609 = vperm.slane %v3518, %v3605
      %v3610 = vperm.slane %v3521, %v3605
      %v3611 = vperm.slane %v3524, %v3605
      %v3612 = vperm.slane %v3527, %v3605
      %v3613 = vperm.slane %v3530, %v3605
      %v3614 = vperm.slane %v3533, %v3605
      %v3615 = vperm.slane %v3536, %v3605
      %v3616 = vperm.slane %v3539, %v3605
      %v3617 = vperm.slane %v3542, %v3605
      %v3618 = vperm.slane %v3545, %v3605
      %v3619 = vperm.slane %v3548, %v3605
      %v3620 = vperm.slane %v3551, %v3605
      %v3621 = vperm.slane %v3554, %v3605
      %v3622 = vperm.slane %v3557, %v3605
      %v3623 = vperm.slane %v3560, %v3605
      %v3624 = vperm.slane %v3563, %v3605
      %v3625 = vperm.slane %v3566, %v3605
      %v3626 = vperm.slane %v3569, %v3605
      %v3627 = vperm.slane %v3572, %v3605
      %v3628 = vperm.slane %v3575, %v3605
      %v3629 = vperm.slane %v3578, %v3605
      %v3630 = vperm.slane %v3581, %v3605
      %v3631 = vperm.slane %v3584, %v3605
      %v3632 = vperm.slane %v3587, %v3605
      %v3633 = vperm.slane %v3590, %v3605
      %v3634 = vperm.slane %v3593, %v3605
      %v3635 = vperm.slane %v3596, %v3605
      %v3636 = vperm.slane %v3599, %v3605
      %v3637 = vperm.slane %v3602, %v3605
      %v3638 = vsel %vm890, %v3607, %v3606
      %v3639 = vsel %vm898, %v3608, %v3638
      %v3640 = vsel %vm891, %v3609, %v3639
      %v3641 = vsel %vm900, %v3610, %v3640
      %v3642 = vsel %vm893, %v3611, %v3641
      %v3643 = vsel %vm902, %v3612, %v3642
      %v3644 = vsel %vm890, %v3615, %v3614
      %v3645 = vsel %vm898, %v3616, %v3644
      %v3646 = vsel %vm891, %v3617, %v3645
      %v3647 = vsel %vm900, %v3618, %v3646
      %v3648 = vsel %vm893, %v3619, %v3647
      %v3649 = vsel %vm902, %v3620, %v3648
      %v3650 = vsel %vm890, %v3623, %v3622
      %v3651 = vsel %vm898, %v3624, %v3650
      %v3652 = vsel %vm891, %v3625, %v3651
      %v3653 = vsel %vm900, %v3626, %v3652
      %v3654 = vsel %vm893, %v3627, %v3653
      %v3655 = vsel %vm902, %v3628, %v3654
      %v3656 = vsel %vm890, %v3631, %v3630
      %v3657 = vsel %vm898, %v3632, %v3656
      %v3658 = vsel %vm891, %v3633, %v3657
      %v3659 = vsel %vm900, %v3634, %v3658
      %v3660 = vsel %vm893, %v3635, %v3659
      %v3661 = vsel %vm902, %v3636, %v3660
      %v3662 = vpack.c.b16 %v3643, %v3643
      %v3663 = vpack.c.b16 %v3613, %v3613
      %v3664 = vpack.c.b16 %v3649, %v3649
      %v3665 = vpack.c.b16 %v3621, %v3621
      %v3666 = vpack.c.b16 %v3655, %v3655
      %v3667 = vpack.c.b16 %v3629, %v3629
      %v3668 = vpack.c.b16 %v3661, %v3661
      %v3669 = vpack.c.b16 %v3637, %v3637
      %vm3678 = vcmask 68616
      %vm3679 = vsmask.f32 7938
      %vm3680 = vmand %vm3678, %vm3679
      %v3681 = vld [vmem:[#allocation2] sm:$0xf]
      %v3682 = vsel %vm3680, %v3662, %v3681
      %3683 = vst [vmem:[#allocation2] sm:$0xf] %v3682
      %vm3684 = vcmask 65544
      %vm3685 = vsmask.f32 256
      %vm3686 = vmand %vm3684, %vm3685
      %v3687 = vld [vmem:[#allocation2 + $0x4] sm:$0x1]
      %v3688 = vsel %vm3686, %v3663, %v3687
      %3689 = vst [vmem:[#allocation2 + $0x4] sm:$0x1] %v3688
      %v3690 = vld [vmem:[#allocation2 + $0x8] sm:$0xf]
      %v3691 = vsel %vm3680, %v3664, %v3690
      %3692 = vst [vmem:[#allocation2 + $0x8] sm:$0xf] %v3691
      %v3693 = vld [vmem:[#allocation2 + $0xc] sm:$0x1]
      %v3694 = vsel %vm3686, %v3665, %v3693
      %3695 = vst [vmem:[#allocation2 + $0xc] sm:$0x1] %v3694
      %v3696 = vld [vmem:[#allocation2 + $0x10] sm:$0xf]
      %v3697 = vsel %vm3680, %v3666, %v3696
      %3698 = vst [vmem:[#allocation2 + $0x10] sm:$0xf] %v3697
      %v3699 = vld [vmem:[#allocation2 + $0x14] sm:$0x1]
      %v3700 = vsel %vm3686, %v3667, %v3699
      %3701 = vst [vmem:[#allocation2 + $0x14] sm:$0x1] %v3700
      %v3702 = vld [vmem:[#allocation2 + $0x18] sm:$0xf]
      %v3703 = vsel %vm3680, %v3668, %v3702
      %3704 = vst [vmem:[#allocation2 + $0x18] sm:$0xf] %v3703
      %v3705 = vld [vmem:[#allocation2 + $0x1c] sm:$0x1]
      %v3706 = vsel %vm3686, %v3669, %v3705
      %3707 = vst [vmem:[#allocation2 + $0x1c] sm:$0x1] %v3706
      %v3708 = vld [vmem:[#allocation2] sm:$0xf]
      %v3709 = vld [vmem:[#allocation2 + $0x8] sm:$0xf]
      %v3710 = vld [vmem:[#allocation2 + $0x10] sm:$0xf]
      %v3711 = vld [vmem:[#allocation2 + $0x18] sm:$0xf]
      %v3714 = vpack.i.b16 %v3709, %v3708
      %v3715 = vshrl.u32 %v3708, 16
      %v3716 = vshrl.u32 %v3709, 16
      %v3717 = vpack.i.b16 %v3716, %v3715
      %v3720 = vpack.i.b16 %v3711, %v3710
      %v3721 = vshrl.u32 %v3710, 16
      %v3722 = vshrl.u32 %v3711, 16
      %v3723 = vpack.i.b16 %v3722, %v3721
      %v3726 = vunpack.c.l.s4 1983009808
      %v3727 = vunpack.c.0.s8 %v3726
      %v3728 = vperm.slane %v3714, %v3727
      %v3731 = vunpack.c.l.s4 1983009808
      %v3732 = vunpack.c.0.s8 %v3731
      %v3733 = vperm.slane %v3720, %v3732
      %v3734 = vrot.slane %v3733, 4
      %vm3735 = vcmask 1047556
      %v3736 = vsel %vm3735, %v3734, %v3728
      %v3737 = vrot.slane %v3728, 4
      %v3738 = vsel %vm3735, %v3733, %v3737
      %v3740 = vunpack.c.l.s4 1934713408
      %v3741 = vunpack.c.0.s8 %v3740
      %v3742 = vperm.slane %v3736, %v3741
      %v3744 = vunpack.c.l.s4 1934713408
      %v3745 = vunpack.c.0.s8 %v3744
      %v3746 = vperm.slane %v3738, %v3745
      %v3747 = vrot.slane %v3742, 4
      %v3748 = vsel %vm3735, 0, %v3747
      %v3749 = vrot.slane %v3746, 4
      %v3750 = vsel %vm3735, 0, %v3749
      %v3753 = vunpack.c.l.s4 1983009808
      %v3754 = vunpack.c.0.s8 %v3753
      %v3755 = vperm.slane %v3717, %v3754
      %v3758 = vunpack.c.l.s4 1983009808
      %v3759 = vunpack.c.0.s8 %v3758
      %v3760 = vperm.slane %v3723, %v3759
      %v3761 = vrot.slane %v3760, 4
      %v3762 = vsel %vm3735, %v3761, %v3755
      %v3763 = vrot.slane %v3755, 4
      %v3764 = vsel %vm3735, %v3760, %v3763
      %v3766 = vunpack.c.l.s4 1934713408
      %v3767 = vunpack.c.0.s8 %v3766
      %v3768 = vperm.slane %v3762, %v3767
      %v3770 = vunpack.c.l.s4 1934713408
      %v3771 = vunpack.c.0.s8 %v3770
      %v3772 = vperm.slane %v3764, %v3771
      %v3773 = vrot.slane %v3768, 4
      %v3774 = vsel %vm3735, 0, %v3773
      %v3775 = vrot.slane %v3772, 4
      %v3776 = vsel %vm3735, 0, %v3775
      %v3778 = vunpack.c.l.b16 %v3768
      %v3779 = vpack.c.b16 %v3778, %v3778
      %3780 = vrot.lane.b32.xlu0 %v3779, 8
      %v3781 = vpop.permute.xlu0 %3780
      %v3783 = vunpack.c.l.b16 %v3748
      %v3784 = vpack.c.b16 %v3783, %v3783
      %3785 = vrot.lane.b32.xlu0 %v3784, 16
      %v3786 = vpop.permute.xlu0 %3785
      %v3788 = vunpack.c.l.b16 %v3774
      %v3789 = vpack.c.b16 %v3788, %v3788
      %3790 = vrot.lane.b32.xlu0 %v3789, 24
      %v3791 = vpop.permute.xlu0 %3790
      %v3793 = vunpack.c.l.b16 %v3746
      %v3794 = vpack.c.b16 %v3793, %v3793
      %3795 = vrot.lane.b32.xlu0 %v3794, 32
      %v3796 = vpop.permute.xlu0 %3795
      %v3798 = vunpack.c.l.b16 %v3772
      %v3799 = vpack.c.b16 %v3798, %v3798
      %3800 = vrot.lane.b32.xlu0 %v3799, 40
      %v3801 = vpop.permute.xlu0 %3800
      %v3803 = vunpack.c.l.b16 %v3750
      %v3804 = vpack.c.b16 %v3803, %v3803
      %3805 = vrot.lane.b32.xlu0 %v3804, 48
      %v3806 = vpop.permute.xlu0 %3805
      %v3808 = vunpack.c.l.b16 %v3776
      %v3809 = vpack.c.b16 %v3808, %v3808
      %3810 = vrot.lane.b32.xlu0 %v3809, 56
      %v3811 = vpop.permute.xlu0 %3810
      %vm3812 = vcmask 64512
      %v3815 = vsel %vm3812, %v3742, %v3781
      %vm3816 = vcmask 130048
      %v3818 = vsel %vm3816, %v3815, %v3786
      %vm3819 = vcmask 195584
      %v3821 = vsel %vm3819, %v3818, %v3791
      %vm3822 = vcmask 261120
      %v3824 = vsel %vm3822, %v3821, %v3796
      %vm3825 = vcmask 326656
      %v3827 = vsel %vm3825, %v3824, %v3801
      %vm3828 = vcmask 392192
      %v3830 = vsel %vm3828, %v3827, %v3806
      %vm3831 = vcmask 457728
      %v3833 = vsel %vm3831, %v3830, %v3811
      %vm3835 = vcmask 517120
      %3836 = vst.msk [vmem:[#allocation3] sm:$0x3] %vm3835, %v3833
      %v3837 = vld [vmem:[#allocation2] sm:$0xf]
      %v3838 = vld [vmem:[#allocation2 + $0x8] sm:$0xf]
      %v3839 = vld [vmem:[#allocation2 + $0x10] sm:$0xf]
      %v3840 = vld [vmem:[#allocation2 + $0x18] sm:$0xf]
      %3845 = vrot.lane.b32.xlu0 %v3837, 127
      %v3846 = vpop.permute.xlu0 %3845
      %3847 = vrot.lane.b32.xlu0 %v3838, 127
      %v3848 = vpop.permute.xlu0 %3847
      %3849 = vrot.lane.b32.xlu0 %v3839, 127
      %v3850 = vpop.permute.xlu0 %3849
      %3851 = vrot.lane.b32.xlu0 %v3840, 127
      %v3852 = vpop.permute.xlu0 %3851
      %v3855 = vpack.i.b16 %v3848, %v3846
      %v3856 = vshrl.u32 %v3846, 16
      %v3857 = vshrl.u32 %v3848, 16
      %v3858 = vpack.i.b16 %v3857, %v3856
      %v3861 = vpack.i.b16 %v3852, %v3850
      %v3862 = vshrl.u32 %v3850, 16
      %v3863 = vshrl.u32 %v3852, 16
      %v3864 = vpack.i.b16 %v3863, %v3862
      %v3867 = vunpack.c.l.s4 1983009808
      %v3868 = vunpack.c.0.s8 %v3867
      %v3869 = vperm.slane %v3855, %v3868
      %v3872 = vunpack.c.l.s4 1983009808
      %v3873 = vunpack.c.0.s8 %v3872
      %v3874 = vperm.slane %v3861, %v3873
      %v3875 = vrot.slane %v3874, 4
      %v3876 = vsel %vm3735, %v3875, %v3869
      %v3877 = vrot.slane %v3869, 4
      %v3878 = vsel %vm3735, %v3874, %v3877
      %v3880 = vunpack.c.l.s4 1934713408
      %v3881 = vunpack.c.0.s8 %v3880
      %v3882 = vperm.slane %v3876, %v3881
      %v3884 = vunpack.c.l.s4 1934713408
      %v3885 = vunpack.c.0.s8 %v3884
      %v3886 = vperm.slane %v3878, %v3885
      %v3887 = vrot.slane %v3882, 4
      %v3888 = vsel %vm3735, 0, %v3887
      %v3889 = vrot.slane %v3886, 4
      %v3890 = vsel %vm3735, 0, %v3889
      %v3893 = vunpack.c.l.s4 1983009808
      %v3894 = vunpack.c.0.s8 %v3893
      %v3895 = vperm.slane %v3858, %v3894
      %v3898 = vunpack.c.l.s4 1983009808
      %v3899 = vunpack.c.0.s8 %v3898
      %v3900 = vperm.slane %v3864, %v3899
      %v3901 = vrot.slane %v3900, 4
      %v3902 = vsel %vm3735, %v3901, %v3895
      %v3903 = vrot.slane %v3895, 4
      %v3904 = vsel %vm3735, %v3900, %v3903
      %v3906 = vunpack.c.l.s4 1934713408
      %v3907 = vunpack.c.0.s8 %v3906
      %v3908 = vperm.slane %v3902, %v3907
      %v3910 = vunpack.c.l.s4 1934713408
      %v3911 = vunpack.c.0.s8 %v3910
      %v3912 = vperm.slane %v3904, %v3911
      %v3913 = vrot.slane %v3908, 4
      %v3914 = vsel %vm3735, 0, %v3913
      %v3915 = vrot.slane %v3912, 4
      %v3916 = vsel %vm3735, 0, %v3915
      %v3918 = vunpack.c.l.b16 %v3908
      %v3919 = vpack.c.b16 %v3918, %v3918
      %3920 = vrot.lane.b32.xlu0 %v3919, 8
      %v3921 = vpop.permute.xlu0 %3920
      %v3923 = vunpack.c.l.b16 %v3888
      %v3924 = vpack.c.b16 %v3923, %v3923
      %3925 = vrot.lane.b32.xlu0 %v3924, 16
      %v3926 = vpop.permute.xlu0 %3925
      %v3928 = vunpack.c.l.b16 %v3914
      %v3929 = vpack.c.b16 %v3928, %v3928
      %3930 = vrot.lane.b32.xlu0 %v3929, 24
      %v3931 = vpop.permute.xlu0 %3930
      %v3933 = vunpack.c.l.b16 %v3886
      %v3934 = vpack.c.b16 %v3933, %v3933
      %3935 = vrot.lane.b32.xlu0 %v3934, 32
      %v3936 = vpop.permute.xlu0 %3935
      %v3938 = vunpack.c.l.b16 %v3912
      %v3939 = vpack.c.b16 %v3938, %v3938
      %3940 = vrot.lane.b32.xlu0 %v3939, 40
      %v3941 = vpop.permute.xlu0 %3940
      %v3943 = vunpack.c.l.b16 %v3890
      %v3944 = vpack.c.b16 %v3943, %v3943
      %3945 = vrot.lane.b32.xlu0 %v3944, 48
      %v3946 = vpop.permute.xlu0 %3945
      %v3948 = vunpack.c.l.b16 %v3916
      %v3949 = vpack.c.b16 %v3948, %v3948
      %3950 = vrot.lane.b32.xlu0 %v3949, 56
      %v3951 = vpop.permute.xlu0 %3950
      %v3954 = vsel %vm3812, %v3882, %v3921
      %v3956 = vsel %vm3816, %v3954, %v3926
      %v3958 = vsel %vm3819, %v3956, %v3931
      %v3960 = vsel %vm3822, %v3958, %v3936
      %v3962 = vsel %vm3825, %v3960, %v3941
      %v3964 = vsel %vm3828, %v3962, %v3946
      %v3966 = vsel %vm3831, %v3964, %v3951
      %v3968 = vunpack.c.l.b16 %v3966
      %v3969 = vpack.c.b16 %v3968, %v3968
      %v3970 = vrot.slane %v3969, 6
      %vm3972 = vcmask 519170
      %3973 = vst.msk [vmem:[#allocation3] sm:$0xc] %vm3972, %v3970
      %v3974 = vld [vmem:[#allocation2] sm:$0xf]
      %v3975 = vld [vmem:[#allocation2 + $0x8] sm:$0xf]
      %v3976 = vld [vmem:[#allocation2 + $0x10] sm:$0xf]
      %v3977 = vld [vmem:[#allocation2 + $0x18] sm:$0xf]
      %3982 = vrot.lane.b32.xlu0 %v3974, 126
      %v3983 = vpop.permute.xlu0 %3982
      %3984 = vrot.lane.b32.xlu0 %v3975, 126
      %v3985 = vpop.permute.xlu0 %3984
      %3986 = vrot.lane.b32.xlu0 %v3976, 126
      %v3987 = vpop.permute.xlu0 %3986
      %3988 = vrot.lane.b32.xlu0 %v3977, 126
      %v3989 = vpop.permute.xlu0 %3988
      %v3992 = vpack.i.b16 %v3985, %v3983
      %v3993 = vshrl.u32 %v3983, 16
      %v3994 = vshrl.u32 %v3985, 16
      %v3995 = vpack.i.b16 %v3994, %v3993
      %v3998 = vpack.i.b16 %v3989, %v3987
      %v3999 = vshrl.u32 %v3987, 16
      %v4000 = vshrl.u32 %v3989, 16
      %v4001 = vpack.i.b16 %v4000, %v3999
      %v4004 = vunpack.c.l.s4 1983009808
      %v4005 = vunpack.c.0.s8 %v4004
      %v4006 = vperm.slane %v3992, %v4005
      %v4009 = vunpack.c.l.s4 1983009808
      %v4010 = vunpack.c.0.s8 %v4009
      %v4011 = vperm.slane %v3998, %v4010
      %v4012 = vrot.slane %v4011, 4
      %v4013 = vsel %vm3735, %v4012, %v4006
      %v4014 = vrot.slane %v4006, 4
      %v4015 = vsel %vm3735, %v4011, %v4014
      %v4017 = vunpack.c.l.s4 1934713408
      %v4018 = vunpack.c.0.s8 %v4017
      %v4019 = vperm.slane %v4013, %v4018
      %v4021 = vunpack.c.l.s4 1934713408
      %v4022 = vunpack.c.0.s8 %v4021
      %v4023 = vperm.slane %v4015, %v4022
      %v4024 = vrot.slane %v4019, 4
      %v4025 = vsel %vm3735, 0, %v4024
      %v4026 = vrot.slane %v4023, 4
      %v4027 = vsel %vm3735, 0, %v4026
      %v4030 = vunpack.c.l.s4 1983009808
      %v4031 = vunpack.c.0.s8 %v4030
      %v4032 = vperm.slane %v3995, %v4031
      %v4035 = vunpack.c.l.s4 1983009808
      %v4036 = vunpack.c.0.s8 %v4035
      %v4037 = vperm.slane %v4001, %v4036
      %v4038 = vrot.slane %v4037, 4
      %v4039 = vsel %vm3735, %v4038, %v4032
      %v4040 = vrot.slane %v4032, 4
      %v4041 = vsel %vm3735, %v4037, %v4040
      %v4043 = vunpack.c.l.s4 1934713408
      %v4044 = vunpack.c.0.s8 %v4043
      %v4045 = vperm.slane %v4039, %v4044
      %v4047 = vunpack.c.l.s4 1934713408
      %v4048 = vunpack.c.0.s8 %v4047
      %v4049 = vperm.slane %v4041, %v4048
      %v4050 = vrot.slane %v4045, 4
      %v4051 = vsel %vm3735, 0, %v4050
      %v4052 = vrot.slane %v4049, 4
      %v4053 = vsel %vm3735, 0, %v4052
      %v4055 = vunpack.c.l.b16 %v4045
      %v4056 = vpack.c.b16 %v4055, %v4055
      %4057 = vrot.lane.b32.xlu0 %v4056, 8
      %v4058 = vpop.permute.xlu0 %4057
      %v4060 = vunpack.c.l.b16 %v4025
      %v4061 = vpack.c.b16 %v4060, %v4060
      %4062 = vrot.lane.b32.xlu0 %v4061, 16
      %v4063 = vpop.permute.xlu0 %4062
      %v4065 = vunpack.c.l.b16 %v4051
      %v4066 = vpack.c.b16 %v4065, %v4065
      %4067 = vrot.lane.b32.xlu0 %v4066, 24
      %v4068 = vpop.permute.xlu0 %4067
      %v4070 = vunpack.c.l.b16 %v4023
      %v4071 = vpack.c.b16 %v4070, %v4070
      %4072 = vrot.lane.b32.xlu0 %v4071, 32
      %v4073 = vpop.permute.xlu0 %4072
      %v4075 = vunpack.c.l.b16 %v4049
      %v4076 = vpack.c.b16 %v4075, %v4075
      %4077 = vrot.lane.b32.xlu0 %v4076, 40
      %v4078 = vpop.permute.xlu0 %4077
      %v4080 = vunpack.c.l.b16 %v4027
      %v4081 = vpack.c.b16 %v4080, %v4080
      %4082 = vrot.lane.b32.xlu0 %v4081, 48
      %v4083 = vpop.permute.xlu0 %4082
      %v4085 = vunpack.c.l.b16 %v4053
      %v4086 = vpack.c.b16 %v4085, %v4085
      %4087 = vrot.lane.b32.xlu0 %v4086, 56
      %v4088 = vpop.permute.xlu0 %4087
      %v4091 = vsel %vm3812, %v4019, %v4058
      %v4093 = vsel %vm3816, %v4091, %v4063
      %v4095 = vsel %vm3819, %v4093, %v4068
      %v4097 = vsel %vm3822, %v4095, %v4073
      %v4099 = vsel %vm3825, %v4097, %v4078
      %v4101 = vsel %vm3828, %v4099, %v4083
      %v4103 = vsel %vm3831, %v4101, %v4088
      %4105 = vst.msk [vmem:[#allocation3 + $0x4] sm:$0x3] %vm3835, %v4103
      %v4106 = vld [vmem:[#allocation2] sm:$0xf]
      %v4107 = vld [vmem:[#allocation2 + $0x4] sm:$0x1]
      %v4108 = vld [vmem:[#allocation2 + $0x8] sm:$0xf]
      %v4109 = vld [vmem:[#allocation2 + $0xc] sm:$0x1]
      %v4110 = vld [vmem:[#allocation2 + $0x10] sm:$0xf]
      %v4111 = vld [vmem:[#allocation2 + $0x14] sm:$0x1]
      %v4112 = vld [vmem:[#allocation2 + $0x18] sm:$0xf]
      %v4113 = vld [vmem:[#allocation2 + $0x1c] sm:$0x1]
      %vm4114 = vsmask.f32 3328
      %vm4115 = vsmask.f32 7440
      %vm4116 = vmor %vm4114, %vm4115
      %v4118 = vshrl.u32 %v4106, 16
      %v4120 = vrot.slane %v4118, 4
      %v4121 = vshll.u32 %v4106, 16
      %v4123 = vrot.slane %v4121, 5
      %v4124 = vor.u32 %v4120, %v4123
      %v4125 = vrot.slane %v4124, 4
      %v4127 = vshll.u32 %v4107, 16
      %v4129 = vrot.slane %v4127, 5
      %v4130 = vsel %vm4116, %v4125, %v4129
      %v4132 = vshrl.u32 %v4108, 16
      %v4134 = vrot.slane %v4132, 4
      %v4135 = vshll.u32 %v4108, 16
      %v4137 = vrot.slane %v4135, 5
      %v4138 = vor.u32 %v4134, %v4137
      %v4139 = vrot.slane %v4138, 4
      %v4141 = vshll.u32 %v4109, 16
      %v4143 = vrot.slane %v4141, 5
      %v4144 = vsel %vm4116, %v4139, %v4143
      %v4146 = vshrl.u32 %v4110, 16
      %v4148 = vrot.slane %v4146, 4
      %v4149 = vshll.u32 %v4110, 16
      %v4151 = vrot.slane %v4149, 5
      %v4152 = vor.u32 %v4148, %v4151
      %v4153 = vrot.slane %v4152, 4
      %v4155 = vshll.u32 %v4111, 16
      %v4157 = vrot.slane %v4155, 5
      %v4158 = vsel %vm4116, %v4153, %v4157
      %v4160 = vshrl.u32 %v4112, 16
      %v4162 = vrot.slane %v4160, 4
      %v4163 = vshll.u32 %v4112, 16
      %v4165 = vrot.slane %v4163, 5
      %v4166 = vor.u32 %v4162, %v4165
      %v4167 = vrot.slane %v4166, 4
      %v4169 = vshll.u32 %v4113, 16
      %v4171 = vrot.slane %v4169, 5
      %v4172 = vsel %vm4116, %v4167, %v4171
      %v4175 = vpack.i.b16 %v4144, %v4130
      %v4176 = vshrl.u32 %v4130, 16
      %v4177 = vshrl.u32 %v4144, 16
      %v4178 = vpack.i.b16 %v4177, %v4176
      %v4181 = vpack.i.b16 %v4172, %v4158
      %v4182 = vshrl.u32 %v4158, 16
      %v4183 = vshrl.u32 %v4172, 16
      %v4184 = vpack.i.b16 %v4183, %v4182
      %v4187 = vunpack.c.l.s4 1983009808
      %v4188 = vunpack.c.0.s8 %v4187
      %v4189 = vperm.slane %v4175, %v4188
      %v4192 = vunpack.c.l.s4 1983009808
      %v4193 = vunpack.c.0.s8 %v4192
      %v4194 = vperm.slane %v4181, %v4193
      %v4195 = vrot.slane %v4194, 4
      %v4196 = vsel %vm3735, %v4195, %v4189
      %v4197 = vrot.slane %v4189, 4
      %v4198 = vsel %vm3735, %v4194, %v4197
      %v4200 = vunpack.c.l.s4 1934713408
      %v4201 = vunpack.c.0.s8 %v4200
      %v4202 = vperm.slane %v4196, %v4201
      %v4204 = vunpack.c.l.s4 1934713408
      %v4205 = vunpack.c.0.s8 %v4204
      %v4206 = vperm.slane %v4198, %v4205
      %v4207 = vrot.slane %v4202, 4
      %v4208 = vsel %vm3735, 0, %v4207
      %v4209 = vrot.slane %v4206, 4
      %v4210 = vsel %vm3735, 0, %v4209
      %v4213 = vunpack.c.l.s4 1983009808
      %v4214 = vunpack.c.0.s8 %v4213
      %v4215 = vperm.slane %v4178, %v4214
      %v4218 = vunpack.c.l.s4 1983009808
      %v4219 = vunpack.c.0.s8 %v4218
      %v4220 = vperm.slane %v4184, %v4219
      %v4221 = vrot.slane %v4220, 4
      %v4222 = vsel %vm3735, %v4221, %v4215
      %v4223 = vrot.slane %v4215, 4
      %v4224 = vsel %vm3735, %v4220, %v4223
      %v4226 = vunpack.c.l.s4 1934713408
      %v4227 = vunpack.c.0.s8 %v4226
      %v4228 = vperm.slane %v4222, %v4227
      %v4230 = vunpack.c.l.s4 1934713408
      %v4231 = vunpack.c.0.s8 %v4230
      %v4232 = vperm.slane %v4224, %v4231
      %v4233 = vrot.slane %v4228, 4
      %v4234 = vsel %vm3735, 0, %v4233
      %v4235 = vrot.slane %v4232, 4
      %v4236 = vsel %vm3735, 0, %v4235
      %v4238 = vunpack.c.l.b16 %v4228
      %v4239 = vpack.c.b16 %v4238, %v4238
      %4240 = vrot.lane.b32.xlu0 %v4239, 8
      %v4241 = vpop.permute.xlu0 %4240
      %v4243 = vunpack.c.l.b16 %v4208
      %v4244 = vpack.c.b16 %v4243, %v4243
      %4245 = vrot.lane.b32.xlu0 %v4244, 16
      %v4246 = vpop.permute.xlu0 %4245
      %v4248 = vunpack.c.l.b16 %v4234
      %v4249 = vpack.c.b16 %v4248, %v4248
      %4250 = vrot.lane.b32.xlu0 %v4249, 24
      %v4251 = vpop.permute.xlu0 %4250
      %v4253 = vunpack.c.l.b16 %v4206
      %v4254 = vpack.c.b16 %v4253, %v4253
      %4255 = vrot.lane.b32.xlu0 %v4254, 32
      %v4256 = vpop.permute.xlu0 %4255
      %v4258 = vunpack.c.l.b16 %v4232
      %v4259 = vpack.c.b16 %v4258, %v4258
      %4260 = vrot.lane.b32.xlu0 %v4259, 40
      %v4261 = vpop.permute.xlu0 %4260
      %v4263 = vunpack.c.l.b16 %v4210
      %v4264 = vpack.c.b16 %v4263, %v4263
      %4265 = vrot.lane.b32.xlu0 %v4264, 48
      %v4266 = vpop.permute.xlu0 %4265
      %v4268 = vunpack.c.l.b16 %v4236
      %v4269 = vpack.c.b16 %v4268, %v4268
      %4270 = vrot.lane.b32.xlu0 %v4269, 56
      %v4271 = vpop.permute.xlu0 %4270
      %v4274 = vsel %vm3812, %v4202, %v4241
      %v4276 = vsel %vm3816, %v4274, %v4246
      %v4278 = vsel %vm3819, %v4276, %v4251
      %v4280 = vsel %vm3822, %v4278, %v4256
      %v4282 = vsel %vm3825, %v4280, %v4261
      %v4284 = vsel %vm3828, %v4282, %v4266
      %v4286 = vsel %vm3831, %v4284, %v4271
      %v4288 = vunpack.c.l.b16 %v4286
      %v4289 = vpack.c.b16 %v4288, %v4288
      %v4290 = vrot.slane %v4289, 6
      %4292 = vst.msk [vmem:[#allocation3 + $0x4] sm:$0xc] %vm3972, %v4290
      %v4293 = vld [vmem:[#allocation2] sm:$0xf]
      %v4294 = vld [vmem:[#allocation2 + $0x4] sm:$0x1]
      %v4295 = vld [vmem:[#allocation2 + $0x8] sm:$0xf]
      %v4296 = vld [vmem:[#allocation2 + $0xc] sm:$0x1]
      %v4297 = vld [vmem:[#allocation2 + $0x10] sm:$0xf]
      %v4298 = vld [vmem:[#allocation2 + $0x14] sm:$0x1]
      %v4299 = vld [vmem:[#allocation2 + $0x18] sm:$0xf]
      %v4300 = vld [vmem:[#allocation2 + $0x1c] sm:$0x1]
      %v4302 = vshrl.u32 %v4293, 16
      %v4304 = vrot.slane %v4302, 4
      %v4305 = vshll.u32 %v4293, 16
      %v4307 = vrot.slane %v4305, 5
      %v4308 = vor.u32 %v4304, %v4307
      %v4309 = vrot.slane %v4308, 4
      %v4311 = vshll.u32 %v4294, 16
      %v4313 = vrot.slane %v4311, 5
      %v4314 = vsel %vm4116, %v4309, %v4313
      %v4316 = vshrl.u32 %v4295, 16
      %v4318 = vrot.slane %v4316, 4
      %v4319 = vshll.u32 %v4295, 16
      %v4321 = vrot.slane %v4319, 5
      %v4322 = vor.u32 %v4318, %v4321
      %v4323 = vrot.slane %v4322, 4
      %v4325 = vshll.u32 %v4296, 16
      %v4327 = vrot.slane %v4325, 5
      %v4328 = vsel %vm4116, %v4323, %v4327
      %v4330 = vshrl.u32 %v4297, 16
      %v4332 = vrot.slane %v4330, 4
      %v4333 = vshll.u32 %v4297, 16
      %v4335 = vrot.slane %v4333, 5
      %v4336 = vor.u32 %v4332, %v4335
      %v4337 = vrot.slane %v4336, 4
      %v4339 = vshll.u32 %v4298, 16
      %v4341 = vrot.slane %v4339, 5
      %v4342 = vsel %vm4116, %v4337, %v4341
      %v4344 = vshrl.u32 %v4299, 16
      %v4346 = vrot.slane %v4344, 4
      %v4347 = vshll.u32 %v4299, 16
      %v4349 = vrot.slane %v4347, 5
      %v4350 = vor.u32 %v4346, %v4349
      %v4351 = vrot.slane %v4350, 4
      %v4353 = vshll.u32 %v4300, 16
      %v4355 = vrot.slane %v4353, 5
      %v4356 = vsel %vm4116, %v4351, %v4355
      %4357 = vrot.lane.b32.xlu0 %v4314, 127
      %v4358 = vpop.permute.xlu0 %4357
      %4359 = vrot.lane.b32.xlu0 %v4328, 127
      %v4360 = vpop.permute.xlu0 %4359
      %4361 = vrot.lane.b32.xlu0 %v4342, 127
      %v4362 = vpop.permute.xlu0 %4361
      %4363 = vrot.lane.b32.xlu0 %v4356, 127
      %v4364 = vpop.permute.xlu0 %4363
      %v4367 = vpack.i.b16 %v4360, %v4358
      %v4368 = vshrl.u32 %v4358, 16
      %v4369 = vshrl.u32 %v4360, 16
      %v4370 = vpack.i.b16 %v4369, %v4368
      %v4373 = vpack.i.b16 %v4364, %v4362
      %v4374 = vshrl.u32 %v4362, 16
      %v4375 = vshrl.u32 %v4364, 16
      %v4376 = vpack.i.b16 %v4375, %v4374
      %v4379 = vunpack.c.l.s4 1983009808
      %v4380 = vunpack.c.0.s8 %v4379
      %v4381 = vperm.slane %v4367, %v4380
      %v4384 = vunpack.c.l.s4 1983009808
      %v4385 = vunpack.c.0.s8 %v4384
      %v4386 = vperm.slane %v4373, %v4385
      %v4387 = vrot.slane %v4386, 4
      %v4388 = vsel %vm3735, %v4387, %v4381
      %v4389 = vrot.slane %v4381, 4
      %v4390 = vsel %vm3735, %v4386, %v4389
      %v4392 = vunpack.c.l.s4 1934713408
      %v4393 = vunpack.c.0.s8 %v4392
      %v4394 = vperm.slane %v4388, %v4393
      %v4396 = vunpack.c.l.s4 1934713408
      %v4397 = vunpack.c.0.s8 %v4396
      %v4398 = vperm.slane %v4390, %v4397
      %v4399 = vrot.slane %v4394, 4
      %v4400 = vsel %vm3735, 0, %v4399
      %v4401 = vrot.slane %v4398, 4
      %v4402 = vsel %vm3735, 0, %v4401
      %v4405 = vunpack.c.l.s4 1983009808
      %v4406 = vunpack.c.0.s8 %v4405
      %v4407 = vperm.slane %v4370, %v4406
      %v4410 = vunpack.c.l.s4 1983009808
      %v4411 = vunpack.c.0.s8 %v4410
      %v4412 = vperm.slane %v4376, %v4411
      %v4413 = vrot.slane %v4412, 4
      %v4414 = vsel %vm3735, %v4413, %v4407
      %v4415 = vrot.slane %v4407, 4
      %v4416 = vsel %vm3735, %v4412, %v4415
      %v4418 = vunpack.c.l.s4 1934713408
      %v4419 = vunpack.c.0.s8 %v4418
      %v4420 = vperm.slane %v4414, %v4419
      %v4422 = vunpack.c.l.s4 1934713408
      %v4423 = vunpack.c.0.s8 %v4422
      %v4424 = vperm.slane %v4416, %v4423
      %v4425 = vrot.slane %v4420, 4
      %v4426 = vsel %vm3735, 0, %v4425
      %v4427 = vrot.slane %v4424, 4
      %v4428 = vsel %vm3735, 0, %v4427
      %v4430 = vunpack.c.l.b16 %v4420
      %v4431 = vpack.c.b16 %v4430, %v4430
      %4432 = vrot.lane.b32.xlu0 %v4431, 8
      %v4433 = vpop.permute.xlu0 %4432
      %v4435 = vunpack.c.l.b16 %v4400
      %v4436 = vpack.c.b16 %v4435, %v4435
      %4437 = vrot.lane.b32.xlu0 %v4436, 16
      %v4438 = vpop.permute.xlu0 %4437
      %v4440 = vunpack.c.l.b16 %v4426
      %v4441 = vpack.c.b16 %v4440, %v4440
      %4442 = vrot.lane.b32.xlu0 %v4441, 24
      %v4443 = vpop.permute.xlu0 %4442
      %v4445 = vunpack.c.l.b16 %v4398
      %v4446 = vpack.c.b16 %v4445, %v4445
      %4447 = vrot.lane.b32.xlu0 %v4446, 32
      %v4448 = vpop.permute.xlu0 %4447
      %v4450 = vunpack.c.l.b16 %v4424
      %v4451 = vpack.c.b16 %v4450, %v4450
      %4452 = vrot.lane.b32.xlu0 %v4451, 40
      %v4453 = vpop.permute.xlu0 %4452
      %v4455 = vunpack.c.l.b16 %v4402
      %v4456 = vpack.c.b16 %v4455, %v4455
      %4457 = vrot.lane.b32.xlu0 %v4456, 48
      %v4458 = vpop.permute.xlu0 %4457
      %v4460 = vunpack.c.l.b16 %v4428
      %v4461 = vpack.c.b16 %v4460, %v4460
      %4462 = vrot.lane.b32.xlu0 %v4461, 56
      %v4463 = vpop.permute.xlu0 %4462
      %v4466 = vsel %vm3812, %v4394, %v4433
      %v4468 = vsel %vm3816, %v4466, %v4438
      %v4470 = vsel %vm3819, %v4468, %v4443
      %v4472 = vsel %vm3822, %v4470, %v4448
      %v4474 = vsel %vm3825, %v4472, %v4453
      %v4476 = vsel %vm3828, %v4474, %v4458
      %v4478 = vsel %vm3831, %v4476, %v4463
      %4480 = vst.msk [vmem:[#allocation3 + $0x8] sm:$0x3] %vm3835, %v4478
      %v4481 = vld [vmem:[#allocation2] sm:$0xf]
      %v4482 = vld [vmem:[#allocation2 + $0x4] sm:$0x1]
      %v4483 = vld [vmem:[#allocation2 + $0x8] sm:$0xf]
      %v4484 = vld [vmem:[#allocation2 + $0xc] sm:$0x1]
      %v4485 = vld [vmem:[#allocation2 + $0x10] sm:$0xf]
      %v4486 = vld [vmem:[#allocation2 + $0x14] sm:$0x1]
      %v4487 = vld [vmem:[#allocation2 + $0x18] sm:$0xf]
      %v4488 = vld [vmem:[#allocation2 + $0x1c] sm:$0x1]
      %v4490 = vshrl.u32 %v4481, 16
      %v4492 = vrot.slane %v4490, 4
      %v4493 = vshll.u32 %v4481, 16
      %v4495 = vrot.slane %v4493, 5
      %v4496 = vor.u32 %v4492, %v4495
      %v4497 = vrot.slane %v4496, 4
      %v4499 = vshll.u32 %v4482, 16
      %v4501 = vrot.slane %v4499, 5
      %v4502 = vsel %vm4116, %v4497, %v4501
      %v4504 = vshrl.u32 %v4483, 16
      %v4506 = vrot.slane %v4504, 4
      %v4507 = vshll.u32 %v4483, 16
      %v4509 = vrot.slane %v4507, 5
      %v4510 = vor.u32 %v4506, %v4509
      %v4511 = vrot.slane %v4510, 4
      %v4513 = vshll.u32 %v4484, 16
      %v4515 = vrot.slane %v4513, 5
      %v4516 = vsel %vm4116, %v4511, %v4515
      %v4518 = vshrl.u32 %v4485, 16
      %v4520 = vrot.slane %v4518, 4
      %v4521 = vshll.u32 %v4485, 16
      %v4523 = vrot.slane %v4521, 5
      %v4524 = vor.u32 %v4520, %v4523
      %v4525 = vrot.slane %v4524, 4
      %v4527 = vshll.u32 %v4486, 16
      %v4529 = vrot.slane %v4527, 5
      %v4530 = vsel %vm4116, %v4525, %v4529
      %v4532 = vshrl.u32 %v4487, 16
      %v4534 = vrot.slane %v4532, 4
      %v4535 = vshll.u32 %v4487, 16
      %v4537 = vrot.slane %v4535, 5
      %v4538 = vor.u32 %v4534, %v4537
      %v4539 = vrot.slane %v4538, 4
      %v4541 = vshll.u32 %v4488, 16
      %v4543 = vrot.slane %v4541, 5
      %v4544 = vsel %vm4116, %v4539, %v4543
      %4545 = vrot.lane.b32.xlu0 %v4502, 126
      %v4546 = vpop.permute.xlu0 %4545
      %4547 = vrot.lane.b32.xlu0 %v4516, 126
      %v4548 = vpop.permute.xlu0 %4547
      %4549 = vrot.lane.b32.xlu0 %v4530, 126
      %v4550 = vpop.permute.xlu0 %4549
      %4551 = vrot.lane.b32.xlu0 %v4544, 126
      %v4552 = vpop.permute.xlu0 %4551
      %v4555 = vpack.i.b16 %v4548, %v4546
      %v4556 = vshrl.u32 %v4546, 16
      %v4557 = vshrl.u32 %v4548, 16
      %v4558 = vpack.i.b16 %v4557, %v4556
      %v4561 = vpack.i.b16 %v4552, %v4550
      %v4562 = vshrl.u32 %v4550, 16
      %v4563 = vshrl.u32 %v4552, 16
      %v4564 = vpack.i.b16 %v4563, %v4562
      %v4567 = vunpack.c.l.s4 1983009808
      %v4568 = vunpack.c.0.s8 %v4567
      %v4569 = vperm.slane %v4555, %v4568
      %v4572 = vunpack.c.l.s4 1983009808
      %v4573 = vunpack.c.0.s8 %v4572
      %v4574 = vperm.slane %v4561, %v4573
      %v4575 = vrot.slane %v4574, 4
      %v4576 = vsel %vm3735, %v4575, %v4569
      %v4577 = vrot.slane %v4569, 4
      %v4578 = vsel %vm3735, %v4574, %v4577
      %v4580 = vunpack.c.l.s4 1934713408
      %v4581 = vunpack.c.0.s8 %v4580
      %v4582 = vperm.slane %v4576, %v4581
      %v4584 = vunpack.c.l.s4 1934713408
      %v4585 = vunpack.c.0.s8 %v4584
      %v4586 = vperm.slane %v4578, %v4585
      %v4587 = vrot.slane %v4582, 4
      %v4588 = vsel %vm3735, 0, %v4587
      %v4589 = vrot.slane %v4586, 4
      %v4590 = vsel %vm3735, 0, %v4589
      %v4593 = vunpack.c.l.s4 1983009808
      %v4594 = vunpack.c.0.s8 %v4593
      %v4595 = vperm.slane %v4558, %v4594
      %v4598 = vunpack.c.l.s4 1983009808
      %v4599 = vunpack.c.0.s8 %v4598
      %v4600 = vperm.slane %v4564, %v4599
      %v4601 = vrot.slane %v4600, 4
      %v4602 = vsel %vm3735, %v4601, %v4595
      %v4603 = vrot.slane %v4595, 4
      %v4604 = vsel %vm3735, %v4600, %v4603
      %v4606 = vunpack.c.l.s4 1934713408
      %v4607 = vunpack.c.0.s8 %v4606
      %v4608 = vperm.slane %v4602, %v4607
      %v4610 = vunpack.c.l.s4 1934713408
      %v4611 = vunpack.c.0.s8 %v4610
      %v4612 = vperm.slane %v4604, %v4611
      %v4613 = vrot.slane %v4608, 4
      %v4614 = vsel %vm3735, 0, %v4613
      %v4615 = vrot.slane %v4612, 4
      %v4616 = vsel %vm3735, 0, %v4615
      %v4618 = vunpack.c.l.b16 %v4608
      %v4619 = vpack.c.b16 %v4618, %v4618
      %4620 = vrot.lane.b32.xlu0 %v4619, 8
      %v4621 = vpop.permute.xlu0 %4620
      %v4623 = vunpack.c.l.b16 %v4588
      %v4624 = vpack.c.b16 %v4623, %v4623
      %4625 = vrot.lane.b32.xlu0 %v4624, 16
      %v4626 = vpop.permute.xlu0 %4625
      %v4628 = vunpack.c.l.b16 %v4614
      %v4629 = vpack.c.b16 %v4628, %v4628
      %4630 = vrot.lane.b32.xlu0 %v4629, 24
      %v4631 = vpop.permute.xlu0 %4630
      %v4633 = vunpack.c.l.b16 %v4586
      %v4634 = vpack.c.b16 %v4633, %v4633
      %4635 = vrot.lane.b32.xlu0 %v4634, 32
      %v4636 = vpop.permute.xlu0 %4635
      %v4638 = vunpack.c.l.b16 %v4612
      %v4639 = vpack.c.b16 %v4638, %v4638
      %4640 = vrot.lane.b32.xlu0 %v4639, 40
      %v4641 = vpop.permute.xlu0 %4640
      %v4643 = vunpack.c.l.b16 %v4590
      %v4644 = vpack.c.b16 %v4643, %v4643
      %4645 = vrot.lane.b32.xlu0 %v4644, 48
      %v4646 = vpop.permute.xlu0 %4645
      %v4648 = vunpack.c.l.b16 %v4616
      %v4649 = vpack.c.b16 %v4648, %v4648
      %4650 = vrot.lane.b32.xlu0 %v4649, 56
      %v4651 = vpop.permute.xlu0 %4650
      %v4654 = vsel %vm3812, %v4582, %v4621
      %v4656 = vsel %vm3816, %v4654, %v4626
      %v4658 = vsel %vm3819, %v4656, %v4631
      %v4660 = vsel %vm3822, %v4658, %v4636
      %v4662 = vsel %vm3825, %v4660, %v4641
      %v4664 = vsel %vm3828, %v4662, %v4646
      %v4666 = vsel %vm3831, %v4664, %v4651
      %v4668 = vunpack.c.l.b16 %v4666
      %v4669 = vpack.c.b16 %v4668, %v4668
      %v4670 = vrot.slane %v4669, 6
      %4672 = vst.msk [vmem:[#allocation3 + $0x8] sm:$0xc] %vm3972, %v4670
      %v4673 = vld [vmem:[#allocation2] sm:$0xe]
      %v4674 = vld [vmem:[#allocation2 + $0x4] sm:$0x1]
      %v4675 = vld [vmem:[#allocation2 + $0x8] sm:$0xe]
      %v4676 = vld [vmem:[#allocation2 + $0xc] sm:$0x1]
      %v4677 = vld [vmem:[#allocation2 + $0x10] sm:$0xe]
      %v4678 = vld [vmem:[#allocation2 + $0x14] sm:$0x1]
      %v4679 = vld [vmem:[#allocation2 + $0x18] sm:$0xe]
      %v4680 = vld [vmem:[#allocation2 + $0x1c] sm:$0x1]
      %vm4689 = vcmask 1042432
      %vm4690 = vcmask 1046532
      %vm4691 = vmor %vm4689, %vm4690
      %v4692 = vrot.slane %v4673, 5
      %v4693 = vrot.slane %v4692, 4
      %v4694 = vrot.slane %v4674, 5
      %v4695 = vsel %vm4691, %v4693, %v4694
      %v4696 = vrot.slane %v4675, 5
      %v4697 = vrot.slane %v4696, 4
      %v4698 = vrot.slane %v4676, 5
      %v4699 = vsel %vm4691, %v4697, %v4698
      %v4700 = vrot.slane %v4677, 5
      %v4701 = vrot.slane %v4700, 4
      %v4702 = vrot.slane %v4678, 5
      %v4703 = vsel %vm4691, %v4701, %v4702
      %v4704 = vrot.slane %v4679, 5
      %v4705 = vrot.slane %v4704, 4
      %v4706 = vrot.slane %v4680, 5
      %v4707 = vsel %vm4691, %v4705, %v4706
      %v4710 = vpack.i.b16 %v4699, %v4695
      %v4711 = vshrl.u32 %v4695, 16
      %v4712 = vshrl.u32 %v4699, 16
      %v4713 = vpack.i.b16 %v4712, %v4711
      %v4716 = vpack.i.b16 %v4707, %v4703
      %v4717 = vshrl.u32 %v4703, 16
      %v4718 = vshrl.u32 %v4707, 16
      %v4719 = vpack.i.b16 %v4718, %v4717
      %v4722 = vunpack.c.l.s4 1983009808
      %v4723 = vunpack.c.0.s8 %v4722
      %v4724 = vperm.slane %v4710, %v4723
      %v4727 = vunpack.c.l.s4 1983009808
      %v4728 = vunpack.c.0.s8 %v4727
      %v4729 = vperm.slane %v4716, %v4728
      %v4730 = vrot.slane %v4729, 4
      %v4731 = vsel %vm3735, %v4730, %v4724
      %v4732 = vrot.slane %v4724, 4
      %v4733 = vsel %vm3735, %v4729, %v4732
      %v4735 = vunpack.c.l.s4 1934713408
      %v4736 = vunpack.c.0.s8 %v4735
      %v4737 = vperm.slane %v4731, %v4736
      %v4739 = vunpack.c.l.s4 1934713408
      %v4740 = vunpack.c.0.s8 %v4739
      %v4741 = vperm.slane %v4733, %v4740
      %v4742 = vrot.slane %v4737, 4
      %v4743 = vsel %vm3735, 0, %v4742
      %v4744 = vrot.slane %v4741, 4
      %v4745 = vsel %vm3735, 0, %v4744
      %v4748 = vunpack.c.l.s4 1983009808
      %v4749 = vunpack.c.0.s8 %v4748
      %v4750 = vperm.slane %v4713, %v4749
      %v4753 = vunpack.c.l.s4 1983009808
      %v4754 = vunpack.c.0.s8 %v4753
      %v4755 = vperm.slane %v4719, %v4754
      %v4756 = vrot.slane %v4755, 4
      %v4757 = vsel %vm3735, %v4756, %v4750
      %v4758 = vrot.slane %v4750, 4
      %v4759 = vsel %vm3735, %v4755, %v4758
      %v4761 = vunpack.c.l.s4 1934713408
      %v4762 = vunpack.c.0.s8 %v4761
      %v4763 = vperm.slane %v4757, %v4762
      %v4765 = vunpack.c.l.s4 1934713408
      %v4766 = vunpack.c.0.s8 %v4765
      %v4767 = vperm.slane %v4759, %v4766
      %v4768 = vrot.slane %v4763, 4
      %v4769 = vsel %vm3735, 0, %v4768
      %v4770 = vrot.slane %v4767, 4
      %v4771 = vsel %vm3735, 0, %v4770
      %v4773 = vunpack.c.l.b16 %v4763
      %v4774 = vpack.c.b16 %v4773, %v4773
      %4775 = vrot.lane.b32.xlu0 %v4774, 8
      %v4776 = vpop.permute.xlu0 %4775
      %v4778 = vunpack.c.l.b16 %v4743
      %v4779 = vpack.c.b16 %v4778, %v4778
      %4780 = vrot.lane.b32.xlu0 %v4779, 16
      %v4781 = vpop.permute.xlu0 %4780
      %v4783 = vunpack.c.l.b16 %v4769
      %v4784 = vpack.c.b16 %v4783, %v4783
      %4785 = vrot.lane.b32.xlu0 %v4784, 24
      %v4786 = vpop.permute.xlu0 %4785
      %v4788 = vunpack.c.l.b16 %v4741
      %v4789 = vpack.c.b16 %v4788, %v4788
      %4790 = vrot.lane.b32.xlu0 %v4789, 32
      %v4791 = vpop.permute.xlu0 %4790
      %v4793 = vunpack.c.l.b16 %v4767
      %v4794 = vpack.c.b16 %v4793, %v4793
      %4795 = vrot.lane.b32.xlu0 %v4794, 40
      %v4796 = vpop.permute.xlu0 %4795
      %v4798 = vunpack.c.l.b16 %v4745
      %v4799 = vpack.c.b16 %v4798, %v4798
      %4800 = vrot.lane.b32.xlu0 %v4799, 48
      %v4801 = vpop.permute.xlu0 %4800
      %v4803 = vunpack.c.l.b16 %v4771
      %v4804 = vpack.c.b16 %v4803, %v4803
      %4805 = vrot.lane.b32.xlu0 %v4804, 56
      %v4806 = vpop.permute.xlu0 %4805
      %v4809 = vsel %vm3812, %v4737, %v4776
      %v4811 = vsel %vm3816, %v4809, %v4781
      %v4813 = vsel %vm3819, %v4811, %v4786
      %v4815 = vsel %vm3822, %v4813, %v4791
      %v4817 = vsel %vm3825, %v4815, %v4796
      %v4819 = vsel %vm3828, %v4817, %v4801
      %v4821 = vsel %vm3831, %v4819, %v4806
      %4823 = vst.msk [vmem:[#allocation3 + $0xc] sm:$0x3] %vm3835, %v4821
      %v4824 = vld [vmem:[#allocation2] sm:$0xe]
      %v4825 = vld [vmem:[#allocation2 + $0x4] sm:$0x1]
      %v4826 = vld [vmem:[#allocation2 + $0x8] sm:$0xe]
      %v4827 = vld [vmem:[#allocation2 + $0xc] sm:$0x1]
      %v4828 = vld [vmem:[#allocation2 + $0x10] sm:$0xe]
      %v4829 = vld [vmem:[#allocation2 + $0x14] sm:$0x1]
      %v4830 = vld [vmem:[#allocation2 + $0x18] sm:$0xe]
      %v4831 = vld [vmem:[#allocation2 + $0x1c] sm:$0x1]
      %v4840 = vrot.slane %v4824, 5
      %v4841 = vrot.slane %v4840, 4
      %v4842 = vrot.slane %v4825, 5
      %v4843 = vsel %vm4691, %v4841, %v4842
      %v4844 = vrot.slane %v4826, 5
      %v4845 = vrot.slane %v4844, 4
      %v4846 = vrot.slane %v4827, 5
      %v4847 = vsel %vm4691, %v4845, %v4846
      %v4848 = vrot.slane %v4828, 5
      %v4849 = vrot.slane %v4848, 4
      %v4850 = vrot.slane %v4829, 5
      %v4851 = vsel %vm4691, %v4849, %v4850
      %v4852 = vrot.slane %v4830, 5
      %v4853 = vrot.slane %v4852, 4
      %v4854 = vrot.slane %v4831, 5
      %v4855 = vsel %vm4691, %v4853, %v4854
      %4856 = vrot.lane.b32.xlu0 %v4843, 127
      %v4857 = vpop.permute.xlu0 %4856
      %4858 = vrot.lane.b32.xlu0 %v4847, 127
      %v4859 = vpop.permute.xlu0 %4858
      %4860 = vrot.lane.b32.xlu0 %v4851, 127
      %v4861 = vpop.permute.xlu0 %4860
      %4862 = vrot.lane.b32.xlu0 %v4855, 127
      %v4863 = vpop.permute.xlu0 %4862
      %v4866 = vpack.i.b16 %v4859, %v4857
      %v4867 = vshrl.u32 %v4857, 16
      %v4868 = vshrl.u32 %v4859, 16
      %v4869 = vpack.i.b16 %v4868, %v4867
      %v4872 = vpack.i.b16 %v4863, %v4861
      %v4873 = vshrl.u32 %v4861, 16
      %v4874 = vshrl.u32 %v4863, 16
      %v4875 = vpack.i.b16 %v4874, %v4873
      %v4878 = vunpack.c.l.s4 1983009808
      %v4879 = vunpack.c.0.s8 %v4878
      %v4880 = vperm.slane %v4866, %v4879
      %v4883 = vunpack.c.l.s4 1983009808
      %v4884 = vunpack.c.0.s8 %v4883
      %v4885 = vperm.slane %v4872, %v4884
      %v4886 = vrot.slane %v4885, 4
      %v4887 = vsel %vm3735, %v4886, %v4880
      %v4888 = vrot.slane %v4880, 4
      %v4889 = vsel %vm3735, %v4885, %v4888
      %v4891 = vunpack.c.l.s4 1934713408
      %v4892 = vunpack.c.0.s8 %v4891
      %v4893 = vperm.slane %v4887, %v4892
      %v4895 = vunpack.c.l.s4 1934713408
      %v4896 = vunpack.c.0.s8 %v4895
      %v4897 = vperm.slane %v4889, %v4896
      %v4898 = vrot.slane %v4893, 4
      %v4899 = vsel %vm3735, 0, %v4898
      %v4900 = vrot.slane %v4897, 4
      %v4901 = vsel %vm3735, 0, %v4900
      %v4904 = vunpack.c.l.s4 1983009808
      %v4905 = vunpack.c.0.s8 %v4904
      %v4906 = vperm.slane %v4869, %v4905
      %v4909 = vunpack.c.l.s4 1983009808
      %v4910 = vunpack.c.0.s8 %v4909
      %v4911 = vperm.slane %v4875, %v4910
      %v4912 = vrot.slane %v4911, 4
      %v4913 = vsel %vm3735, %v4912, %v4906
      %v4914 = vrot.slane %v4906, 4
      %v4915 = vsel %vm3735, %v4911, %v4914
      %v4917 = vunpack.c.l.s4 1934713408
      %v4918 = vunpack.c.0.s8 %v4917
      %v4919 = vperm.slane %v4913, %v4918
      %v4921 = vunpack.c.l.s4 1934713408
      %v4922 = vunpack.c.0.s8 %v4921
      %v4923 = vperm.slane %v4915, %v4922
      %v4924 = vrot.slane %v4919, 4
      %v4925 = vsel %vm3735, 0, %v4924
      %v4926 = vrot.slane %v4923, 4
      %v4927 = vsel %vm3735, 0, %v4926
      %v4929 = vunpack.c.l.b16 %v4919
      %v4930 = vpack.c.b16 %v4929, %v4929
      %4931 = vrot.lane.b32.xlu0 %v4930, 8
      %v4932 = vpop.permute.xlu0 %4931
      %v4934 = vunpack.c.l.b16 %v4899
      %v4935 = vpack.c.b16 %v4934, %v4934
      %4936 = vrot.lane.b32.xlu0 %v4935, 16
      %v4937 = vpop.permute.xlu0 %4936
      %v4939 = vunpack.c.l.b16 %v4925
      %v4940 = vpack.c.b16 %v4939, %v4939
      %4941 = vrot.lane.b32.xlu0 %v4940, 24
      %v4942 = vpop.permute.xlu0 %4941
      %v4944 = vunpack.c.l.b16 %v4897
      %v4945 = vpack.c.b16 %v4944, %v4944
      %4946 = vrot.lane.b32.xlu0 %v4945, 32
      %v4947 = vpop.permute.xlu0 %4946
      %v4949 = vunpack.c.l.b16 %v4923
      %v4950 = vpack.c.b16 %v4949, %v4949
      %4951 = vrot.lane.b32.xlu0 %v4950, 40
      %v4952 = vpop.permute.xlu0 %4951
      %v4954 = vunpack.c.l.b16 %v4901
      %v4955 = vpack.c.b16 %v4954, %v4954
      %4956 = vrot.lane.b32.xlu0 %v4955, 48
      %v4957 = vpop.permute.xlu0 %4956
      %v4959 = vunpack.c.l.b16 %v4927
      %v4960 = vpack.c.b16 %v4959, %v4959
      %4961 = vrot.lane.b32.xlu0 %v4960, 56
      %v4962 = vpop.permute.xlu0 %4961
      %v4965 = vsel %vm3812, %v4893, %v4932
      %v4967 = vsel %vm3816, %v4965, %v4937
      %v4969 = vsel %vm3819, %v4967, %v4942
      %v4971 = vsel %vm3822, %v4969, %v4947
      %v4973 = vsel %vm3825, %v4971, %v4952
      %v4975 = vsel %vm3828, %v4973, %v4957
      %v4977 = vsel %vm3831, %v4975, %v4962
      %v4979 = vunpack.c.l.b16 %v4977
      %v4980 = vpack.c.b16 %v4979, %v4979
      %v4981 = vrot.slane %v4980, 6
      %4983 = vst.msk [vmem:[#allocation3 + $0xc] sm:$0xc] %vm3972, %v4981
      %v4984 = vld [vmem:[#allocation2] sm:$0xe]
      %v4985 = vld [vmem:[#allocation2 + $0x4] sm:$0x1]
      %v4986 = vld [vmem:[#allocation2 + $0x8] sm:$0xe]
      %v4987 = vld [vmem:[#allocation2 + $0xc] sm:$0x1]
      %v4988 = vld [vmem:[#allocation2 + $0x10] sm:$0xe]
      %v4989 = vld [vmem:[#allocation2 + $0x14] sm:$0x1]
      %v4990 = vld [vmem:[#allocation2 + $0x18] sm:$0xe]
      %v4991 = vld [vmem:[#allocation2 + $0x1c] sm:$0x1]
      %v5000 = vrot.slane %v4984, 5
      %v5001 = vrot.slane %v5000, 4
      %v5002 = vrot.slane %v4985, 5
      %v5003 = vsel %vm4691, %v5001, %v5002
      %v5004 = vrot.slane %v4986, 5
      %v5005 = vrot.slane %v5004, 4
      %v5006 = vrot.slane %v4987, 5
      %v5007 = vsel %vm4691, %v5005, %v5006
      %v5008 = vrot.slane %v4988, 5
      %v5009 = vrot.slane %v5008, 4
      %v5010 = vrot.slane %v4989, 5
      %v5011 = vsel %vm4691, %v5009, %v5010
      %v5012 = vrot.slane %v4990, 5
      %v5013 = vrot.slane %v5012, 4
      %v5014 = vrot.slane %v4991, 5
      %v5015 = vsel %vm4691, %v5013, %v5014
      %5016 = vrot.lane.b32.xlu0 %v5003, 126
      %v5017 = vpop.permute.xlu0 %5016
      %5018 = vrot.lane.b32.xlu0 %v5007, 126
      %v5019 = vpop.permute.xlu0 %5018
      %5020 = vrot.lane.b32.xlu0 %v5011, 126
      %v5021 = vpop.permute.xlu0 %5020
      %5022 = vrot.lane.b32.xlu0 %v5015, 126
      %v5023 = vpop.permute.xlu0 %5022
      %v5026 = vpack.i.b16 %v5019, %v5017
      %v5027 = vshrl.u32 %v5017, 16
      %v5028 = vshrl.u32 %v5019, 16
      %v5029 = vpack.i.b16 %v5028, %v5027
      %v5032 = vpack.i.b16 %v5023, %v5021
      %v5033 = vshrl.u32 %v5021, 16
      %v5034 = vshrl.u32 %v5023, 16
      %v5035 = vpack.i.b16 %v5034, %v5033
      %v5038 = vunpack.c.l.s4 1983009808
      %v5039 = vunpack.c.0.s8 %v5038
      %v5040 = vperm.slane %v5026, %v5039
      %v5043 = vunpack.c.l.s4 1983009808
      %v5044 = vunpack.c.0.s8 %v5043
      %v5045 = vperm.slane %v5032, %v5044
      %v5046 = vrot.slane %v5045, 4
      %v5047 = vsel %vm3735, %v5046, %v5040
      %v5048 = vrot.slane %v5040, 4
      %v5049 = vsel %vm3735, %v5045, %v5048
      %v5051 = vunpack.c.l.s4 1934713408
      %v5052 = vunpack.c.0.s8 %v5051
      %v5053 = vperm.slane %v5047, %v5052
      %v5055 = vunpack.c.l.s4 1934713408
      %v5056 = vunpack.c.0.s8 %v5055
      %v5057 = vperm.slane %v5049, %v5056
      %v5058 = vrot.slane %v5053, 4
      %v5059 = vsel %vm3735, 0, %v5058
      %v5060 = vrot.slane %v5057, 4
      %v5061 = vsel %vm3735, 0, %v5060
      %v5064 = vunpack.c.l.s4 1983009808
      %v5065 = vunpack.c.0.s8 %v5064
      %v5066 = vperm.slane %v5029, %v5065
      %v5069 = vunpack.c.l.s4 1983009808
      %v5070 = vunpack.c.0.s8 %v5069
      %v5071 = vperm.slane %v5035, %v5070
      %v5072 = vrot.slane %v5071, 4
      %v5073 = vsel %vm3735, %v5072, %v5066
      %v5074 = vrot.slane %v5066, 4
      %v5075 = vsel %vm3735, %v5071, %v5074
      %v5077 = vunpack.c.l.s4 1934713408
      %v5078 = vunpack.c.0.s8 %v5077
      %v5079 = vperm.slane %v5073, %v5078
      %v5081 = vunpack.c.l.s4 1934713408
      %v5082 = vunpack.c.0.s8 %v5081
      %v5083 = vperm.slane %v5075, %v5082
      %v5084 = vrot.slane %v5079, 4
      %v5085 = vsel %vm3735, 0, %v5084
      %v5086 = vrot.slane %v5083, 4
      %v5087 = vsel %vm3735, 0, %v5086
      %v5089 = vunpack.c.l.b16 %v5079
      %v5090 = vpack.c.b16 %v5089, %v5089
      %5091 = vrot.lane.b32.xlu0 %v5090, 8
      %v5092 = vpop.permute.xlu0 %5091
      %v5094 = vunpack.c.l.b16 %v5059
      %v5095 = vpack.c.b16 %v5094, %v5094
      %5096 = vrot.lane.b32.xlu0 %v5095, 16
      %v5097 = vpop.permute.xlu0 %5096
      %v5099 = vunpack.c.l.b16 %v5085
      %v5100 = vpack.c.b16 %v5099, %v5099
      %5101 = vrot.lane.b32.xlu0 %v5100, 24
      %v5102 = vpop.permute.xlu0 %5101
      %v5104 = vunpack.c.l.b16 %v5057
      %v5105 = vpack.c.b16 %v5104, %v5104
      %5106 = vrot.lane.b32.xlu0 %v5105, 32
      %v5107 = vpop.permute.xlu0 %5106
      %v5109 = vunpack.c.l.b16 %v5083
      %v5110 = vpack.c.b16 %v5109, %v5109
      %5111 = vrot.lane.b32.xlu0 %v5110, 40
      %v5112 = vpop.permute.xlu0 %5111
      %v5114 = vunpack.c.l.b16 %v5061
      %v5115 = vpack.c.b16 %v5114, %v5114
      %5116 = vrot.lane.b32.xlu0 %v5115, 48
      %v5117 = vpop.permute.xlu0 %5116
      %v5119 = vunpack.c.l.b16 %v5087
      %v5120 = vpack.c.b16 %v5119, %v5119
      %5121 = vrot.lane.b32.xlu0 %v5120, 56
      %v5122 = vpop.permute.xlu0 %5121
      %v5125 = vsel %vm3812, %v5053, %v5092
      %v5127 = vsel %vm3816, %v5125, %v5097
      %v5129 = vsel %vm3819, %v5127, %v5102
      %v5131 = vsel %vm3822, %v5129, %v5107
      %v5133 = vsel %vm3825, %v5131, %v5112
      %v5135 = vsel %vm3828, %v5133, %v5117
      %v5137 = vsel %vm3831, %v5135, %v5122
      %5139 = vst.msk [vmem:[#allocation3 + $0x10] sm:$0x3] %vm3835, %v5137
      %v5140 = vld [vmem:[%s1] sm:$0xf]
      %v5141 = vld [vmem:[#allocation3] sm:$0xf]
      %v5142 = vld [vmem:[#allocation3 + $0x4] sm:$0xf]
      %v5143 = vld [vmem:[#allocation3 + $0x8] sm:$0xf]
      %v5144 = vld [vmem:[#allocation3 + $0xc] sm:$0xf]
      %v5145 = vld [vmem:[#allocation3 + $0x10] sm:$0x3]
      %v5151 = vunpack.c.l.b16 %v5141
      %v5152 = vunpack.c.l.b16 %v5142
      %v5153 = vunpack.c.l.b16 %v5143
      %v5154 = vunpack.c.l.b16 %v5144
      %v5155 = vunpack.c.l.b16 %v5145
      %v5156 = vpack.c.b16 %v5152, %v5151
      %v5157 = vpack.c.b16 %v5154, %v5153
      %v5158 = vpack.c.b16 %v5155, %v5155
      %vm5161 = vcmask 293888
      %v5163 = vsel %vm5161, %v5140, 0
      %vm5165 = vcmask 1041408
      %v5167 = vsel %vm5165, %v5158, 0
      %5169 = vmatpush.bf16.msra.mxu0 0
      %5170 = vmatpush.bf16.msra.mxu0 0
      %5171 = vmatpush.bf16.msra.mxu0 0
      %5172 = vmatpush.bf16.msra.mxu0 0
      %5173 = vmatpush.bf16.msra.mxu0 0
      %5174 = vmatpush.bf16.msra.mxu0 %v5167
      %5175 = vmatpush.bf16.msra.mxu0 %v5157
      %5176 = vmatpush.bf16.msra.mxu0 %v5156
      %5177 = vmatmul.bf16.gmra.mxu0 %v5163
      %v5178 = vpop.f32.mrf.mxu0
      %v5179 = vadd.f32 0.0, %v5178
      %v5180 = vpop.f32.mrf.mxu0
      %5181 = vdwg.mxu0
      %v5182 = vpack.c.bf16 %v5179, %v5179
      %vm5183 = vcmask 519168
      %5184 = vst.msk [vmem:[%s208] sm:$0xf] %vm5183, %v5182
      %vm5185 = vcmask 523264
      %v5186 = vsel %vm5185, %v5179, 0.0
      %5187 = vadd.xlane.f32.xlu0 %v5186
      %v5188 = vpop.xlane.xlu0 %5187
      %vm5189 = vcmask 7168
      %5190 = vst.msk [vmem:[%s212] sm:$0xff] %vm5189, %v5188
      %v5191 = vmul.f32 %v5179, %v5179
      %v5192 = vsel %vm5185, %v5191, 0.0
      %5193 = vadd.xlane.f32.xlu0 %v5192
      %v5194 = vpop.xlane.xlu0 %5193
      %5195 = vst.msk [vmem:[%s216] sm:$0xff] %vm5189, %v5194
      %p5196 = scmp.lt.s32.totalorder %s16, 1
      %s5197 = scalar_select %p5196, %s16, 1
      %s5198 = smul.addr %s5197, 4
      %s5199 = scalar_lea.vmem %s2, %s5198
      %p5200 = scmp.lt.s32.totalorder %s16, 1
      %s5201 = scalar_select %p5200, %s16, 1
      %s5202 = smul.addr %s5201, 8
      %s5203 = scalar_lea.vmem %s3, %s5202
      %p5204 = scmp.lt.s32.totalorder %s16, 1
      %s5205 = scalar_select %p5204, %s16, 1
      %s5206 = smul.addr %s5205, 8
      %s5207 = scalar_lea.vmem %s4, %s5206
      // Predicated region
      $region29: #{down_forward.3} parent=27 // pred_check
        %p5208 = pneg %p81
      $region30: #{down_forward.3} parent=27 // pred_check_branch
        %5210 = sbr.rel (%p5208) target = $region32
      $region31: #{down_forward.3} parent=27 // pred_region
        _
      $region32: #{down_forward.3} parent=27 // pred_fallthru
        _
      // Predicated region
      $region33: #{down_forward.3} parent=27 // pred_check
        %p5211 = pneg %p107
      $region34: #{down_forward.3} parent=27 // pred_check_branch
        %5213 = sbr.rel (%p5211) target = $region36
      $region35: #{down_forward.3} parent=27 // pred_region
        _
      $region36: #{down_forward.3} parent=27 // pred_fallthru
        _
      // Predicated region
      $region37: #{down_forward.3} parent=27 // pred_check
        %p5214 = pneg %p133
      $region38: #{down_forward.3} parent=27 // pred_check_branch
        %5216 = sbr.rel (%p5214) target = $region40
      $region39: #{down_forward.3} parent=27 // pred_region
        _
      $region40: #{down_forward.3} parent=27 // pred_fallthru
        _
    $region28: #{down_forward.3} parent=5 // pred_fallthru
      _
    %p5217 = scmp.le.s32.totalorder 2, %s11
    // Predicated region
    $region41: #{down_forward.3} parent=5 // pred_check
      %p5218 = pneg %p5217
    $region42: #{down_forward.3} parent=5 // pred_check_branch
      %5220 = sbr.rel (%p5218) target = $region44
    $region43: #{down_forward.3} parent=5 // pred_region
      %s5221 = ssub.s32 %s11, 2
      // Predicated region
      $region45: #{down_forward.3} parent=43 // pred_check
        %p5222 = pneg %p87
      $region46: #{down_forward.3} parent=43 // pred_check_branch
        %5224 = sbr.rel (%p5222) target = $region48
      $region47: #{down_forward.3} parent=43 // pred_region
        %p5225 = scmp.lt.s32.totalorder %s17, 1
        %s5226 = scalar_select %p5225, %s17, 1
        %s5227 = smul.addr %s5226, 4
        %s5228 = scalar_lea.vmem %s2, %s5227
      $region48: #{down_forward.3} parent=43 // pred_fallthru
        _
      // Predicated region
      $region49: #{down_forward.3} parent=43 // pred_check
        %p5229 = pneg %p113
      $region50: #{down_forward.3} parent=43 // pred_check_branch
        %5231 = sbr.rel (%p5229) target = $region52
      $region51: #{down_forward.3} parent=43 // pred_region
        %p5232 = scmp.lt.s32.totalorder %s17, 1
        %s5233 = scalar_select %p5232, %s17, 1
        %s5234 = smul.addr %s5233, 8
        %s5235 = scalar_lea.vmem %s3, %s5234
      $region52: #{down_forward.3} parent=43 // pred_fallthru
        _
      // Predicated region
      $region53: #{down_forward.3} parent=43 // pred_check
        %p5236 = pneg %p139
      $region54: #{down_forward.3} parent=43 // pred_check_branch
        %5238 = sbr.rel (%p5236) target = $region56
      $region55: #{down_forward.3} parent=43 // pred_region
        %p5239 = scmp.lt.s32.totalorder %s17, 1
        %s5240 = scalar_select %p5239, %s17, 1
        %s5241 = smul.addr %s5240, 8
        %s5242 = scalar_lea.vmem %s4, %s5241
      $region56: #{down_forward.3} parent=43 // pred_fallthru
        _
    $region44: #{down_forward.3} parent=5 // pred_fallthru
      _
  $region6: #{down_forward.3} parent=0 // loop_footer
    %s15 = sadd.s32 1, %s11
  $region7: #{down_forward.3} parent=0 // loop_footer_branch
    %10 = sbr.rel target = $region3
  $region8: #{down_forward.3} parent=0 // loop_exit
    _

</llo_original>
